<compile_context>
chip_gen: v5e
topology: v5e:2x2
jax: 0.10.0
libtpu: 0.0.40
codegen_flags: <defaults>
</compile_context>

<pallas_src>
import math

import jax
import jax.numpy as jnp
import numpy as np
from jax import lax
from jax.experimental import pallas as pl
from jax.experimental.pallas import tpu as pltpu

EPS = 1e-5
VMEM_LIMIT = 32 * 1024 * 1024


# ----------------------------- kernel helpers ------------------------------

def _conv3x3_im2col(h2d, pad_ref, w_ref, b_ref):
    """3x3 'SAME' conv of one image as a single im2col matmul.

    h2d     : (H*W, C)   activation (f32)
    pad_ref : VMEM scratch (H+2, W+2, C) used as the zero-padded image
    w_ref   : (9*C, Cout) conv weight (HWIO reshaped)
    b_ref   : (1, Cout)   bias
    returns : (H*W, Cout) f32
    """
    Hp, Wp, C = pad_ref.shape
    H, W = Hp - 2, Wp - 2
    # in-kernel zero padding (no wrapper-side jnp.pad HBM round trip)
    pad_ref[...] = jnp.zeros_like(pad_ref)
    pad_ref[1:H + 1, 1:W + 1, :] = h2d.reshape(H, W, C)
    taps = [pad_ref[dy:dy + H, dx:dx + W, :]
            for dy in range(3) for dx in range(3)]
    slab = jnp.concatenate(taps, axis=-1).reshape(H * W, 9 * C)
    return jnp.dot(slab, w_ref[...],
                   preferred_element_type=jnp.float32) + b_ref[...]


def _partial_stats(acc):
    # per-image sum / sum-of-squares over the spatial axis -> (2, Cout)
    s = jnp.sum(acc, axis=0, keepdims=True)
    ss = jnp.sum(acc * acc, axis=0, keepdims=True)
    return jnp.concatenate([s, ss], axis=0)


# -------------------------------- kernels -----------------------------------

def _tadd_conv1_kernel(x_ref, temb_ref, wt_ref, bt_ref, w_ref, b_ref,
                       y_ref, stat_ref, pad_ref):
    n = pl.program_id(0)
    te = temb_ref[pl.ds(n, 1), :]                                   # (1, T)
    t = jnp.dot(te, wt_ref[...],
                preferred_element_type=jnp.float32) + bt_ref[...]   # (1, Cin)
    h = x_ref[0] + t                                                # (HW, Cin)
    acc = _conv3x3_im2col(h, pad_ref, w_ref, b_ref)                 # (HW, Cout)
    y_ref[0] = acc.astype(y_ref.dtype)
    stat_ref[0] = _partial_stats(acc).astype(stat_ref.dtype)


def _bnsilu_conv2_kernel(y1_ref, sc_ref, sh_ref, w_ref, b_ref,
                         y2_ref, stat_ref, pad_ref):
    h = y1_ref[0] * sc_ref[...] + sh_ref[...]     # BN1 as scale/shift
    h = h * jax.nn.sigmoid(h)                     # SiLU (sigmoid -> EUP)
    acc = _conv3x3_im2col(h, pad_ref, w_ref, b_ref)
    y2_ref[0] = acc.astype(y2_ref.dtype)
    stat_ref[0] = _partial_stats(acc).astype(stat_ref.dtype)


def _bnsilu_res_proj_kernel(y2_ref, x_ref, sc_ref, sh_ref, wr_ref, br_ref,
                            out_ref):
    h = y2_ref[0] * sc_ref[...] + sh_ref[...]
    h = h * jax.nn.sigmoid(h)
    res = jnp.dot(x_ref[0], wr_ref[...],
                  preferred_element_type=jnp.float32) + br_ref[...]
    out_ref[0] = (h + res).astype(out_ref.dtype)


def _bnsilu_res_id_kernel(y2_ref, x_ref, sc_ref, sh_ref, out_ref):
    # identity residual: plain add, no eye-matrix matmul
    h = y2_ref[0] * sc_ref[...] + sh_ref[...]
    h = h * jax.nn.sigmoid(h)
    out_ref[0] = (h + x_ref[0]).astype(out_ref.dtype)


# --------------------------------- wrapper ----------------------------------

def _compiler_params():
    return pltpu.CompilerParams(dimension_semantics=("parallel",),
                                vmem_limit_bytes=VMEM_LIMIT)


def _bn_scale_shift(stats, gamma, beta, count):
    # reduce per-image partial sums to BatchNorm scale/shift (tiny (2,C) math)
    s = jnp.sum(stats, axis=0)                 # (2, C)
    mean = s[0] / count
    var = s[1] / count - mean * mean           # biased (training-mode) variance
    scale = gamma.reshape(-1) * lax.rsqrt(var + EPS)
    shift = beta.reshape(-1) - mean * scale
    return scale.reshape(1, -1), shift.reshape(1, -1)


@jax.jit
def down_layer_forward(x_nchw, t_emb, params):
    N, Cin, H, W = x_nchw.shape
    Cout = params["w1"].shape[-1]
    T = t_emb.shape[-1]
    HW = H * W

    x_flat = jnp.transpose(x_nchw, (0, 2, 3, 1)).reshape(N, HW, Cin)
    w1r = params["w1"].reshape(9 * Cin, Cout)     # HWIO -> (9*Cin, Cout)
    w2r = params["w2"].reshape(9 * Cout, Cout)

    # ---- kernel A: (+ t_emb) -> conv1 -> partial BN1 stats ------------------
    y1, st1 = pl.pallas_call(
        _tadd_conv1_kernel,
        out_shape=(jax.ShapeDtypeStruct((N, HW, Cout), jnp.float32),
                   jax.ShapeDtypeStruct((N, 2, Cout), jnp.float32)),
        grid_spec=pltpu.PrefetchScalarGridSpec(
            num_scalar_prefetch=0,
            grid=(N,),
            in_specs=[
                pl.BlockSpec((1, HW, Cin), lambda n: (n, 0, 0)),
                pl.BlockSpec((N, T), lambda n: (0, 0)),
                pl.BlockSpec((T, Cin), lambda n: (0, 0)),
                pl.BlockSpec((1, Cin), lambda n: (0, 0)),
                pl.BlockSpec((9 * Cin, Cout), lambda n: (0, 0)),
                pl.BlockSpec((1, Cout), lambda n: (0, 0)),
            ],
            out_specs=[
                pl.BlockSpec((1, HW, Cout), lambda n: (n, 0, 0)),
                pl.BlockSpec((1, 2, Cout), lambda n: (n, 0, 0)),
            ],
            scratch_shapes=[pltpu.VMEM((H + 2, W + 2, Cin), jnp.float32)],
        ),
        compiler_params=_compiler_params(),
    )(x_flat, t_emb, params["wt"], params["bt"], w1r, params["b1"])

    sc1, sh1 = _bn_scale_shift(st1, params["g1"], params["be1"], N * HW)

    # ---- kernel B: BN1 + SiLU -> conv2 -> partial BN2 stats -----------------
    y2, st2 = pl.pallas_call(
        _bnsilu_conv2_kernel,
        out_shape=(jax.ShapeDtypeStruct((N, HW, Cout), jnp.float32),
                   jax.ShapeDtypeStruct((N, 2, Cout), jnp.float32)),
        grid_spec=pltpu.PrefetchScalarGridSpec(
            num_scalar_prefetch=0,
            grid=(N,),
            in_specs=[
                pl.BlockSpec((1, HW, Cout), lambda n: (n, 0, 0)),
                pl.BlockSpec((1, Cout), lambda n: (0, 0)),
                pl.BlockSpec((1, Cout), lambda n: (0, 0)),
                pl.BlockSpec((9 * Cout, Cout), lambda n: (0, 0)),
                pl.BlockSpec((1, Cout), lambda n: (0, 0)),
            ],
            out_specs=[
                pl.BlockSpec((1, HW, Cout), lambda n: (n, 0, 0)),
                pl.BlockSpec((1, 2, Cout), lambda n: (n, 0, 0)),
            ],
            scratch_shapes=[pltpu.VMEM((H + 2, W + 2, Cout), jnp.float32)],
        ),
        compiler_params=_compiler_params(),
    )(y1, sc1, sh1, w2r, params["b2"])

    sc2, sh2 = _bn_scale_shift(st2, params["g2"], params["be2"], N * HW)

    # ---- kernel C: BN2 + SiLU + residual + add ------------------------------
    out_shape = jax.ShapeDtypeStruct((N, HW, Cout), jnp.float32)
    if "wr" in params:   # 1x1-conv residual projection (in_dim != out_dim)
        out = pl.pallas_call(
            _bnsilu_res_proj_kernel,
            out_shape=out_shape,
            grid_spec=pltpu.PrefetchScalarGridSpec(
                num_scalar_prefetch=0,
                grid=(N,),
                in_specs=[
                    pl.BlockSpec((1, HW, Cout), lambda n: (n, 0, 0)),
                    pl.BlockSpec((1, HW, Cin), lambda n: (n, 0, 0)),
                    pl.BlockSpec((1, Cout), lambda n: (0, 0)),
                    pl.BlockSpec((1, Cout), lambda n: (0, 0)),
                    pl.BlockSpec((Cin, Cout), lambda n: (0, 0)),
                    pl.BlockSpec((1, Cout), lambda n: (0, 0)),
                ],
                out_specs=pl.BlockSpec((1, HW, Cout), lambda n: (n, 0, 0)),
            ),
            compiler_params=_compiler_params(),
        )(y2, x_flat, sc2, sh2, params["wr"], params["br"])
    else:                # identity residual
        out = pl.pallas_call(
            _bnsilu_res_id_kernel,
            out_shape=out_shape,
            grid_spec=pltpu.PrefetchScalarGridSpec(
                num_scalar_prefetch=0,
                grid=(N,),
                in_specs=[
                    pl.BlockSpec((1, HW, Cout), lambda n: (n, 0, 0)),
                    pl.BlockSpec((1, HW, Cin), lambda n: (n, 0, 0)),
                    pl.BlockSpec((1, Cout), lambda n: (0, 0)),
                    pl.BlockSpec((1, Cout), lambda n: (0, 0)),
                ],
                out_specs=pl.BlockSpec((1, HW, Cout), lambda n: (n, 0, 0)),
            ),
            compiler_params=_compiler_params(),
        )(y2, x_flat, sc2, sh2)

    out = out.reshape(N, H, W, Cout)
    return jnp.transpose(out, (0, 3, 1, 2))       # NHWC -> NCHW


# -------------------------- params / reference ------------------------------

def init_params(key, in_dim, out_dim, time_embed_dim):
    ks = jax.random.split(key, 8)

    def u(k, shape, fan_in):
        bound = 1.0 / math.sqrt(fan_in)
        return jax.random.uniform(k, shape, jnp.float32, -bound, bound)

    p = {
        "wt": u(ks[0], (time_embed_dim, in_dim), time_embed_dim),
        "bt": u(ks[1], (1, in_dim), time_embed_dim),
        "w1": u(ks[2], (3, 3, in_dim, out_dim), 9 * in_dim),
        "b1": u(ks[3], (1, out_dim), 9 * in_dim),
        "g1": jnp.ones((1, out_dim), jnp.float32),
        "be1": jnp.zeros((1, out_dim), jnp.float32),
        "w2": u(ks[4], (3, 3, out_dim, out_dim), 9 * out_dim),
        "b2": u(ks[5], (1, out_dim), 9 * out_dim),
        "g2": jnp.ones((1, out_dim), jnp.float32),
        "be2": jnp.zeros((1, out_dim), jnp.float32),
    }
    if in_dim != out_dim:
        p["wr"] = u(ks[6], (in_dim, out_dim), in_dim)
        p["br"] = u(ks[7], (1, out_dim), in_dim)
    return p


def ref_forward(x_nchw, t_emb, params):
    x = jnp.transpose(x_nchw, (0, 2, 3, 1))
    t = t_emb @ params["wt"] + params["bt"]
    h = x + t[:, None, None, :]

    def conv(z, w, b):
        y = lax.conv_general_dilated(
            z, w, (1, 1), "SAME", dimension_numbers=("NHWC", "HWIO", "NHWC"))
        return y + b.reshape(1, 1, 1, -1)

    def bn_silu(z, g, be):
        m = jnp.mean(z, axis=(0, 1, 2), keepdims=True)
        v = jnp.mean((z - m) ** 2, axis=(0, 1, 2), keepdims=True)
        y = (z - m) / jnp.sqrt(v + EPS)
        y = y * g.reshape(1, 1, 1, -1) + be.reshape(1, 1, 1, -1)
        return y * jax.nn.sigmoid(y)

    h = bn_silu(conv(h, params["w1"], params["b1"]), params["g1"], params["be1"])
    h = bn_silu(conv(h, params["w2"], params["b2"]), params["g2"], params["be2"])
    if "wr" in params:
        res = jnp.einsum("nhwc,cd->nhwd", x, params["wr"]) \
            + params["br"].reshape(1, 1, 1, -1)
    else:
        res = x
    return jnp.transpose(h + res, (0, 3, 1, 2))


# ---------------------------------- main -------------------------------------

if __name__ == "__main__":
    key = jax.random.PRNGKey(0)
    k1, k2, k3, k4 = jax.random.split(key, 4)

    # Case 1: in_dim != out_dim (1x1-conv residual path).
    N, Cin, H, W = 2, 4, 16, 16
    Cout, T = 8, 32
    x = jax.random.normal(k1, (N, Cin, H, W), jnp.float32)       # NCHW like PyTorch
    t_emb = jax.random.normal(k2, (N, T), jnp.float32)
    params = init_params(k3, Cin, Cout, T)

    out = jax.block_until_ready(down_layer_forward(x, t_emb, params))
    assert out.shape == (N, Cout, H, W)
    np.testing.assert_allclose(np.asarray(out),
                               np.asarray(ref_forward(x, t_emb, params)),
                               rtol=5e-4, atol=5e-4)

    # Case 2: in_dim == out_dim (identity residual, no 1x1 matmul).
    params2 = init_params(k4, Cout, Cout, T)
    x2 = jax.random.normal(k1, (N, Cout, H, W), jnp.float32)
    out2 = jax.block_until_ready(down_layer_forward(x2, t_emb, params2))
    assert out2.shape == (N, Cout, H, W)
    np.testing.assert_allclose(np.asarray(out2),
                               np.asarray(ref_forward(x2, t_emb, params2)),
                               rtol=5e-4, atol=5e-4)

    print("KERNEL_OK")
</pallas_src>

<mosaic_0001>
module attributes {stable_mosaic.version = 11 : i64} {
  func.func @_tadd_conv1_kernel(%arg0: i32, %arg1: memref<1x256x4xf32, #tpu.memory_space<vmem>>, %arg2: memref<2x32xf32, #tpu.memory_space<vmem>>, %arg3: memref<32x4xf32, #tpu.memory_space<vmem>>, %arg4: memref<1x4xf32, #tpu.memory_space<vmem>>, %arg5: memref<36x8xf32, #tpu.memory_space<vmem>>, %arg6: memref<1x8xf32, #tpu.memory_space<vmem>>, %arg7: memref<1x256x8xf32, #tpu.memory_space<vmem>>, %arg8: memref<1x2x8xf32, #tpu.memory_space<vmem>>, %arg9: memref<18x18x4xf32, #tpu.memory_space<vmem>>) attributes {dimension_semantics = [#tpu.dimension_semantics<parallel>], iteration_bounds = array<i64: 2>, scalar_prefetch = 0 : i64, scratch_operands = 1 : i64, tpu.core_type = #tpu.core_type<tc>, window_params = [{transform_indices = @transform_0, window_bounds = array<i64: 1, 256, 4>}, {pipeline_mode = #tpu.pipeline_mode<synchronous>, transform_indices = @transform_1, window_bounds = array<i64: 2, 32>}, {pipeline_mode = #tpu.pipeline_mode<synchronous>, transform_indices = @transform_2, window_bounds = array<i64: 32, 4>}, {pipeline_mode = #tpu.pipeline_mode<synchronous>, transform_indices = @transform_3, window_bounds = array<i64: 1, 4>}, {pipeline_mode = #tpu.pipeline_mode<synchronous>, transform_indices = @transform_4, window_bounds = array<i64: 36, 8>}, {pipeline_mode = #tpu.pipeline_mode<synchronous>, transform_indices = @transform_5, window_bounds = array<i64: 1, 8>}, {transform_indices = @transform_6, window_bounds = array<i64: 1, 256, 8>}, {transform_indices = @transform_7, window_bounds = array<i64: 1, 2, 8>}]} {
    %0 = arith.index_cast %arg0 : i32 to index
    %c0 = arith.constant 0 : index
    %1 = vector.load %arg2[%0, %c0] : memref<2x32xf32, #tpu.memory_space<vmem>>, vector<1x32xf32>
    %c0_0 = arith.constant 0 : index
    %c0_1 = arith.constant 0 : index
    %2 = vector.load %arg3[%c0_0, %c0_1] : memref<32x4xf32, #tpu.memory_space<vmem>>, vector<32x4xf32>
    %cst = arith.constant dense<0.000000e+00> : vector<1x4xf32>
    %3 = tpu.matmul %1, %2, %cst {dimension_numbers = #tpu.dot_dimension_numbers<[1], [0], [0], [1], [0, 0, 1, 1], [], []>} : vector<1x32xf32>, vector<32x4xf32>, vector<1x4xf32> -> vector<1x4xf32>
    %c0_2 = arith.constant 0 : index
    %c0_3 = arith.constant 0 : index
    %4 = vector.load %arg4[%c0_2, %c0_3] : memref<1x4xf32, #tpu.memory_space<vmem>>, vector<1x4xf32>
    %5 = arith.addf %3, %4 : vector<1x4xf32>
    %c0_4 = arith.constant 0 : index
    %c0_5 = arith.constant 0 : index
    %c0_6 = arith.constant 0 : index
    %6 = vector.load %arg1[%c0_4, %c0_5, %c0_6] : memref<1x256x4xf32, #tpu.memory_space<vmem>>, vector<1x256x4xf32>
    %7 = vector.shape_cast %6 : vector<1x256x4xf32> to vector<256x4xf32>
    %8 = vector.broadcast %5 : vector<1x4xf32> to vector<256x4xf32>
    %9 = arith.addf %7, %8 : vector<256x4xf32>
    %cst_7 = arith.constant 0.000000e+00 : f32
    %10 = vector.broadcast %cst_7 : f32 to vector<18x18x4xf32>
    %c0_8 = arith.constant 0 : index
    %c0_9 = arith.constant 0 : index
    %c0_10 = arith.constant 0 : index
    %11 = vector.load %arg9[%c0_8, %c0_9, %c0_10] : memref<18x18x4xf32, #tpu.memory_space<vmem>>, vector<18x18x4xf32>
    tpu.vector_store %arg9[%c0_8, %c0_9, %c0_10], %10 {strides = array<i32>} : memref<18x18x4xf32, #tpu.memory_space<vmem>>, vector<18x18x4xf32>,
    %12 = vector.shape_cast %9 : vector<256x4xf32> to vector<16x16x4xf32>
    %c1 = arith.constant 1 : index
    %c1_11 = arith.constant 1 : index
    %c0_12 = arith.constant 0 : index
    %13 = vector.load %arg9[%c1, %c1_11, %c0_12] : memref<18x18x4xf32, #tpu.memory_space<vmem>>, vector<16x16x4xf32>
    tpu.vector_store %arg9[%c1, %c1_11, %c0_12], %12 {strides = array<i32>} : memref<18x18x4xf32, #tpu.memory_space<vmem>>, vector<16x16x4xf32>,
    %c0_13 = arith.constant 0 : index
    %c0_14 = arith.constant 0 : index
    %c0_15 = arith.constant 0 : index
    %14 = vector.load %arg9[%c0_13, %c0_14, %c0_15] : memref<18x18x4xf32, #tpu.memory_space<vmem>>, vector<16x16x4xf32>
    %c0_16 = arith.constant 0 : index
    %c1_17 = arith.constant 1 : index
    %c0_18 = arith.constant 0 : index
    %15 = vector.load %arg9[%c0_16, %c1_17, %c0_18] : memref<18x18x4xf32, #tpu.memory_space<vmem>>, vector<16x16x4xf32>
    %c0_19 = arith.constant 0 : index
    %c2 = arith.constant 2 : index
    %c0_20 = arith.constant 0 : index
    %16 = vector.load %arg9[%c0_19, %c2, %c0_20] : memref<18x18x4xf32, #tpu.memory_space<vmem>>, vector<16x16x4xf32>
    %c1_21 = arith.constant 1 : index
    %c0_22 = arith.constant 0 : index
    %c0_23 = arith.constant 0 : index
    %17 = vector.load %arg9[%c1_21, %c0_22, %c0_23] : memref<18x18x4xf32, #tpu.memory_space<vmem>>, vector<16x16x4xf32>
    %c1_24 = arith.constant 1 : index
    %c1_25 = arith.constant 1 : index
    %c0_26 = arith.constant 0 : index
    %18 = vector.load %arg9[%c1_24, %c1_25, %c0_26] : memref<18x18x4xf32, #tpu.memory_space<vmem>>, vector<16x16x4xf32>
    %c1_27 = arith.constant 1 : index
    %c2_28 = arith.constant 2 : index
    %c0_29 = arith.constant 0 : index
    %19 = vector.load %arg9[%c1_27, %c2_28, %c0_29] : memref<18x18x4xf32, #tpu.memory_space<vmem>>, vector<16x16x4xf32>
    %c2_30 = arith.constant 2 : index
    %c0_31 = arith.constant 0 : index
    %c0_32 = arith.constant 0 : index
    %20 = vector.load %arg9[%c2_30, %c0_31, %c0_32] : memref<18x18x4xf32, #tpu.memory_space<vmem>>, vector<16x16x4xf32>
    %c2_33 = arith.constant 2 : index
    %c1_34 = arith.constant 1 : index
    %c0_35 = arith.constant 0 : index
    %21 = vector.load %arg9[%c2_33, %c1_34, %c0_35] : memref<18x18x4xf32, #tpu.memory_space<vmem>>, vector<16x16x4xf32>
    %c2_36 = arith.constant 2 : index
    %c2_37 = arith.constant 2 : index
    %c0_38 = arith.constant 0 : index
    %22 = vector.load %arg9[%c2_36, %c2_37, %c0_38] : memref<18x18x4xf32, #tpu.memory_space<vmem>>, vector<16x16x4xf32>
    %23 = tpu.concatenate %14, %15, %16, %17, %18, %19, %20, %21, %22 in 2 : vector<16x16x4xf32>, vector<16x16x4xf32>, vector<16x16x4xf32>, vector<16x16x4xf32>, vector<16x16x4xf32>, vector<16x16x4xf32>, vector<16x16x4xf32>, vector<16x16x4xf32>, vector<16x16x4xf32> -> vector<16x16x36xf32>
    %24 = vector.shape_cast %23 : vector<16x16x36xf32> to vector<256x36xf32>
    %c0_39 = arith.constant 0 : index
    %c0_40 = arith.constant 0 : index
    %25 = vector.load %arg5[%c0_39, %c0_40] : memref<36x8xf32, #tpu.memory_space<vmem>>, vector<36x8xf32>
    %cst_41 = arith.constant dense<0.000000e+00> : vector<256x8xf32>
    %26 = tpu.matmul %24, %25, %cst_41 {dimension_numbers = #tpu.dot_dimension_numbers<[1], [0], [0], [1], [0, 0, 1, 1], [], []>} : vector<256x36xf32>, vector<36x8xf32>, vector<256x8xf32> -> vector<256x8xf32>
    %c0_42 = arith.constant 0 : index
    %c0_43 = arith.constant 0 : index
    %27 = vector.load %arg6[%c0_42, %c0_43] : memref<1x8xf32, #tpu.memory_space<vmem>>, vector<1x8xf32>
    %28 = vector.broadcast %27 : vector<1x8xf32> to vector<256x8xf32>
    %29 = arith.addf %26, %28 : vector<256x8xf32>
    %c0_44 = arith.constant 0 : index
    %c0_45 = arith.constant 0 : index
    %c0_46 = arith.constant 0 : index
    %30 = vector.load %arg7[%c0_44, %c0_45, %c0_46] : memref<1x256x8xf32, #tpu.memory_space<vmem>>, vector<1x256x8xf32>
    %31 = vector.shape_cast %30 : vector<1x256x8xf32> to vector<256x8xf32>
    %32 = vector.shape_cast %29 : vector<256x8xf32> to vector<1x256x8xf32>
    tpu.vector_store %arg7[%c0_44, %c0_45, %c0_46], %32 {strides = array<i32>} : memref<1x256x8xf32, #tpu.memory_space<vmem>>, vector<1x256x8xf32>,
    %cst_47 = arith.constant dense<0.000000e+00> : vector<8xf32>
    %33 = vector.multi_reduction <add>, %29, %cst_47 [0] : vector<256x8xf32> to vector<8xf32>
    %34 = vector.shape_cast %33 : vector<8xf32> to vector<1x8xf32>
    %35 = arith.mulf %29, %29 : vector<256x8xf32>
    %cst_48 = arith.constant dense<0.000000e+00> : vector<8xf32>
    %36 = vector.multi_reduction <add>, %35, %cst_48 [0] : vector<256x8xf32> to vector<8xf32>
    %37 = vector.shape_cast %36 : vector<8xf32> to vector<1x8xf32>
    %38 = tpu.concatenate %34, %37 in 0 : vector<1x8xf32>, vector<1x8xf32> -> vector<2x8xf32>
    %c0_49 = arith.constant 0 : index
    %c0_50 = arith.constant 0 : index
    %c0_51 = arith.constant 0 : index
    %39 = vector.load %arg8[%c0_49, %c0_50, %c0_51] : memref<1x2x8xf32, #tpu.memory_space<vmem>>, vector<1x2x8xf32>
    %40 = vector.shape_cast %39 : vector<1x2x8xf32> to vector<2x8xf32>
    %41 = vector.shape_cast %38 : vector<2x8xf32> to vector<1x2x8xf32>
    tpu.vector_store %arg8[%c0_49, %c0_50, %c0_51], %41 {strides = array<i32>} : memref<1x2x8xf32, #tpu.memory_space<vmem>>, vector<1x2x8xf32>,
    return
  }
  func.func @transform_0(%arg0: i32) -> (i32, i32, i32) {
    %c0_i32 = arith.constant 0 : i32
    %c0_i32_0 = arith.constant 0 : i32
    %c0_i32_1 = arith.constant 0 : i32
    return %arg0, %c0_i32, %c0_i32_0 : i32, i32, i32
  }
  func.func @transform_1(%arg0: i32) -> (i32, i32) {
    %c0_i32 = arith.constant 0 : i32
    %c0_i32_0 = arith.constant 0 : i32
    %c0_i32_1 = arith.constant 0 : i32
    return %c0_i32, %c0_i32_0 : i32, i32
  }
  func.func @transform_2(%arg0: i32) -> (i32, i32) {
    %c0_i32 = arith.constant 0 : i32
    %c0_i32_0 = arith.constant 0 : i32
    %c0_i32_1 = arith.constant 0 : i32
    return %c0_i32, %c0_i32_0 : i32, i32
  }
  func.func @transform_3(%arg0: i32) -> (i32, i32) {
    %c0_i32 = arith.constant 0 : i32
    %c0_i32_0 = arith.constant 0 : i32
    %c0_i32_1 = arith.constant 0 : i32
    return %c0_i32, %c0_i32_0 : i32, i32
  }
  func.func @transform_4(%arg0: i32) -> (i32, i32) {
    %c0_i32 = arith.constant 0 : i32
    %c0_i32_0 = arith.constant 0 : i32
    %c0_i32_1 = arith.constant 0 : i32
    return %c0_i32, %c0_i32_0 : i32, i32
  }
  func.func @transform_5(%arg0: i32) -> (i32, i32) {
    %c0_i32 = arith.constant 0 : i32
    %c0_i32_0 = arith.constant 0 : i32
    %c0_i32_1 = arith.constant 0 : i32
    return %c0_i32, %c0_i32_0 : i32, i32
  }
  func.func @transform_6(%arg0: i32) -> (i32, i32, i32) {
    %c0_i32 = arith.constant 0 : i32
    %c0_i32_0 = arith.constant 0 : i32
    %c0_i32_1 = arith.constant 0 : i32
    return %arg0, %c0_i32, %c0_i32_0 : i32, i32, i32
  }
  func.func @transform_7(%arg0: i32) -> (i32, i32, i32) {
    %c0_i32 = arith.constant 0 : i32
    %c0_i32_0 = arith.constant 0 : i32
    %c0_i32_1 = arith.constant 0 : i32
    return %arg0, %c0_i32, %c0_i32_0 : i32, i32, i32
  }
}

module attributes {stable_mosaic.version = 11 : i64} {
  func.func @_bnsilu_res_proj_kernel(%arg0: i32, %arg1: memref<1x256x8xf32, #tpu.memory_space<vmem>>, %arg2: memref<1x256x4xf32, #tpu.memory_space<vmem>>, %arg3: memref<1x8xf32, #tpu.memory_space<vmem>>, %arg4: memref<1x8xf32, #tpu.memory_space<vmem>>, %arg5: memref<4x8xf32, #tpu.memory_space<vmem>>, %arg6: memref<1x8xf32, #tpu.memory_space<vmem>>, %arg7: memref<1x256x8xf32, #tpu.memory_space<vmem>>) attributes {dimension_semantics = [#tpu.dimension_semantics<parallel>], iteration_bounds = array<i64: 2>, scalar_prefetch = 0 : i64, scratch_operands = 0 : i64, tpu.core_type = #tpu.core_type<tc>, window_params = [{transform_indices = @transform_0, window_bounds = array<i64: 1, 256, 8>}, {transform_indices = @transform_1, window_bounds = array<i64: 1, 256, 4>}, {pipeline_mode = #tpu.pipeline_mode<synchronous>, transform_indices = @transform_2, window_bounds = array<i64: 1, 8>}, {pipeline_mode = #tpu.pipeline_mode<synchronous>, transform_indices = @transform_3, window_bounds = array<i64: 1, 8>}, {pipeline_mode = #tpu.pipeline_mode<synchronous>, transform_indices = @transform_4, window_bounds = array<i64: 4, 8>}, {pipeline_mode = #tpu.pipeline_mode<synchronous>, transform_indices = @transform_5, window_bounds = array<i64: 1, 8>}, {transform_indices = @transform_6, window_bounds = array<i64: 1, 256, 8>}]} {
    %c0 = arith.constant 0 : index
    %c0_0 = arith.constant 0 : index
    %c0_1 = arith.constant 0 : index
    %0 = vector.load %arg1[%c0, %c0_0, %c0_1] : memref<1x256x8xf32, #tpu.memory_space<vmem>>, vector<1x256x8xf32>
    %1 = vector.shape_cast %0 : vector<1x256x8xf32> to vector<256x8xf32>
    %c0_2 = arith.constant 0 : index
    %c0_3 = arith.constant 0 : index
    %2 = vector.load %arg3[%c0_2, %c0_3] : memref<1x8xf32, #tpu.memory_space<vmem>>, vector<1x8xf32>
    %3 = vector.broadcast %2 : vector<1x8xf32> to vector<256x8xf32>
    %4 = arith.mulf %1, %3 : vector<256x8xf32>
    %c0_4 = arith.constant 0 : index
    %c0_5 = arith.constant 0 : index
    %5 = vector.load %arg4[%c0_4, %c0_5] : memref<1x8xf32, #tpu.memory_space<vmem>>, vector<1x8xf32>
    %6 = vector.broadcast %5 : vector<1x8xf32> to vector<256x8xf32>
    %7 = arith.addf %4, %6 : vector<256x8xf32>
    %8 = arith.negf %7 : vector<256x8xf32>
    %9 = math.exp %8 : vector<256x8xf32>
    %cst = arith.constant 1.000000e+00 : f32
    %10 = vector.broadcast %cst : f32 to vector<256x8xf32>
    %11 = arith.addf %10, %9 : vector<256x8xf32>
    %12 = arith.divf %10, %11 : vector<256x8xf32>
    %13 = arith.mulf %7, %12 : vector<256x8xf32>
    %c0_6 = arith.constant 0 : index
    %c0_7 = arith.constant 0 : index
    %c0_8 = arith.constant 0 : index
    %14 = vector.load %arg2[%c0_6, %c0_7, %c0_8] : memref<1x256x4xf32, #tpu.memory_space<vmem>>, vector<1x256x4xf32>
    %15 = vector.shape_cast %14 : vector<1x256x4xf32> to vector<256x4xf32>
    %c0_9 = arith.constant 0 : index
    %c0_10 = arith.constant 0 : index
    %16 = vector.load %arg5[%c0_9, %c0_10] : memref<4x8xf32, #tpu.memory_space<vmem>>, vector<4x8xf32>
    %cst_11 = arith.constant dense<0.000000e+00> : vector<256x8xf32>
    %17 = tpu.matmul %15, %16, %cst_11 {dimension_numbers = #tpu.dot_dimension_numbers<[1], [0], [0], [1], [0, 0, 1, 1], [], []>} : vector<256x4xf32>, vector<4x8xf32>, vector<256x8xf32> -> vector<256x8xf32>
    %c0_12 = arith.constant 0 : index
    %c0_13 = arith.constant 0 : index
    %18 = vector.load %arg6[%c0_12, %c0_13] : memref<1x8xf32, #tpu.memory_space<vmem>>, vector<1x8xf32>
    %19 = vector.broadcast %18 : vector<1x8xf32> to vector<256x8xf32>
    %20 = arith.addf %17, %19 : vector<256x8xf32>
    %21 = arith.addf %13, %20 : vector<256x8xf32>
    %c0_14 = arith.constant 0 : index
    %c0_15 = arith.constant 0 : index
    %c0_16 = arith.constant 0 : index
    %22 = vector.load %arg7[%c0_14, %c0_15, %c0_16] : memref<1x256x8xf32, #tpu.memory_space<vmem>>, vector<1x256x8xf32>
    %23 = vector.shape_cast %22 : vector<1x256x8xf32> to vector<256x8xf32>
    %24 = vector.shape_cast %21 : vector<256x8xf32> to vector<1x256x8xf32>
    tpu.vector_store %arg7[%c0_14, %c0_15, %c0_16], %24 {strides = array<i32>} : memref<1x256x8xf32, #tpu.memory_space<vmem>>, vector<1x256x8xf32>,
    return
  }
  func.func @transform_0(%arg0: i32) -> (i32, i32, i32) {
    %c0_i32 = arith.constant 0 : i32
    %c0_i32_0 = arith.constant 0 : i32
    %c0_i32_1 = arith.constant 0 : i32
    return %arg0, %c0_i32, %c0_i32_0 : i32, i32, i32
  }
  func.func @transform_1(%arg0: i32) -> (i32, i32, i32) {
    %c0_i32 = arith.constant 0 : i32
    %c0_i32_0 = arith.constant 0 : i32
    %c0_i32_1 = arith.constant 0 : i32
    return %arg0, %c0_i32, %c0_i32_0 : i32, i32, i32
  }
  func.func @transform_2(%arg0: i32) -> (i32, i32) {
    %c0_i32 = arith.constant 0 : i32
    %c0_i32_0 = arith.constant 0 : i32
    %c0_i32_1 = arith.constant 0 : i32
    return %c0_i32, %c0_i32_0 : i32, i32
  }
  func.func @transform_3(%arg0: i32) -> (i32, i32) {
    %c0_i32 = arith.constant 0 : i32
    %c0_i32_0 = arith.constant 0 : i32
    %c0_i32_1 = arith.constant 0 : i32
    return %c0_i32, %c0_i32_0 : i32, i32
  }
  func.func @transform_4(%arg0: i32) -> (i32, i32) {
    %c0_i32 = arith.constant 0 : i32
    %c0_i32_0 = arith.constant 0 : i32
    %c0_i32_1 = arith.constant 0 : i32
    return %c0_i32, %c0_i32_0 : i32, i32
  }
  func.func @transform_5(%arg0: i32) -> (i32, i32) {
    %c0_i32 = arith.constant 0 : i32
    %c0_i32_0 = arith.constant 0 : i32
    %c0_i32_1 = arith.constant 0 : i32
    return %c0_i32, %c0_i32_0 : i32, i32
  }
  func.func @transform_6(%arg0: i32) -> (i32, i32, i32) {
    %c0_i32 = arith.constant 0 : i32
    %c0_i32_0 = arith.constant 0 : i32
    %c0_i32_1 = arith.constant 0 : i32
    return %arg0, %c0_i32, %c0_i32_0 : i32, i32, i32
  }
}

module attributes {stable_mosaic.version = 11 : i64} {
  func.func @_bnsilu_conv2_kernel(%arg0: i32, %arg1: memref<1x256x8xf32, #tpu.memory_space<vmem>>, %arg2: memref<1x8xf32, #tpu.memory_space<vmem>>, %arg3: memref<1x8xf32, #tpu.memory_space<vmem>>, %arg4: memref<72x8xf32, #tpu.memory_space<vmem>>, %arg5: memref<1x8xf32, #tpu.memory_space<vmem>>, %arg6: memref<1x256x8xf32, #tpu.memory_space<vmem>>, %arg7: memref<1x2x8xf32, #tpu.memory_space<vmem>>, %arg8: memref<18x18x8xf32, #tpu.memory_space<vmem>>) attributes {dimension_semantics = [#tpu.dimension_semantics<parallel>], iteration_bounds = array<i64: 2>, scalar_prefetch = 0 : i64, scratch_operands = 1 : i64, tpu.core_type = #tpu.core_type<tc>, window_params = [{transform_indices = @transform_0, window_bounds = array<i64: 1, 256, 8>}, {pipeline_mode = #tpu.pipeline_mode<synchronous>, transform_indices = @transform_1, window_bounds = array<i64: 1, 8>}, {pipeline_mode = #tpu.pipeline_mode<synchronous>, transform_indices = @transform_2, window_bounds = array<i64: 1, 8>}, {pipeline_mode = #tpu.pipeline_mode<synchronous>, transform_indices = @transform_3, window_bounds = array<i64: 72, 8>}, {pipeline_mode = #tpu.pipeline_mode<synchronous>, transform_indices = @transform_4, window_bounds = array<i64: 1, 8>}, {transform_indices = @transform_5, window_bounds = array<i64: 1, 256, 8>}, {transform_indices = @transform_6, window_bounds = array<i64: 1, 2, 8>}]} {
    %c0 = arith.constant 0 : index
    %c0_0 = arith.constant 0 : index
    %c0_1 = arith.constant 0 : index
    %0 = vector.load %arg1[%c0, %c0_0, %c0_1] : memref<1x256x8xf32, #tpu.memory_space<vmem>>, vector<1x256x8xf32>
    %1 = vector.shape_cast %0 : vector<1x256x8xf32> to vector<256x8xf32>
    %c0_2 = arith.constant 0 : index
    %c0_3 = arith.constant 0 : index
    %2 = vector.load %arg2[%c0_2, %c0_3] : memref<1x8xf32, #tpu.memory_space<vmem>>, vector<1x8xf32>
    %3 = vector.broadcast %2 : vector<1x8xf32> to vector<256x8xf32>
    %4 = arith.mulf %1, %3 : vector<256x8xf32>
    %c0_4 = arith.constant 0 : index
    %c0_5 = arith.constant 0 : index
    %5 = vector.load %arg3[%c0_4, %c0_5] : memref<1x8xf32, #tpu.memory_space<vmem>>, vector<1x8xf32>
    %6 = vector.broadcast %5 : vector<1x8xf32> to vector<256x8xf32>
    %7 = arith.addf %4, %6 : vector<256x8xf32>
    %8 = arith.negf %7 : vector<256x8xf32>
    %9 = math.exp %8 : vector<256x8xf32>
    %cst = arith.constant 1.000000e+00 : f32
    %10 = vector.broadcast %cst : f32 to vector<256x8xf32>
    %11 = arith.addf %10, %9 : vector<256x8xf32>
    %12 = arith.divf %10, %11 : vector<256x8xf32>
    %13 = arith.mulf %7, %12 : vector<256x8xf32>
    %cst_6 = arith.constant 0.000000e+00 : f32
    %14 = vector.broadcast %cst_6 : f32 to vector<18x18x8xf32>
    %c0_7 = arith.constant 0 : index
    %c0_8 = arith.constant 0 : index
    %c0_9 = arith.constant 0 : index
    %15 = vector.load %arg8[%c0_7, %c0_8, %c0_9] : memref<18x18x8xf32, #tpu.memory_space<vmem>>, vector<18x18x8xf32>
    tpu.vector_store %arg8[%c0_7, %c0_8, %c0_9], %14 {strides = array<i32>} : memref<18x18x8xf32, #tpu.memory_space<vmem>>, vector<18x18x8xf32>,
    %16 = vector.shape_cast %13 : vector<256x8xf32> to vector<16x16x8xf32>
    %c1 = arith.constant 1 : index
    %c1_10 = arith.constant 1 : index
    %c0_11 = arith.constant 0 : index
    %17 = vector.load %arg8[%c1, %c1_10, %c0_11] : memref<18x18x8xf32, #tpu.memory_space<vmem>>, vector<16x16x8xf32>
    tpu.vector_store %arg8[%c1, %c1_10, %c0_11], %16 {strides = array<i32>} : memref<18x18x8xf32, #tpu.memory_space<vmem>>, vector<16x16x8xf32>,
    %c0_12 = arith.constant 0 : index
    %c0_13 = arith.constant 0 : index
    %c0_14 = arith.constant 0 : index
    %18 = vector.load %arg8[%c0_12, %c0_13, %c0_14] : memref<18x18x8xf32, #tpu.memory_space<vmem>>, vector<16x16x8xf32>
    %c0_15 = arith.constant 0 : index
    %c1_16 = arith.constant 1 : index
    %c0_17 = arith.constant 0 : index
    %19 = vector.load %arg8[%c0_15, %c1_16, %c0_17] : memref<18x18x8xf32, #tpu.memory_space<vmem>>, vector<16x16x8xf32>
    %c0_18 = arith.constant 0 : index
    %c2 = arith.constant 2 : index
    %c0_19 = arith.constant 0 : index
    %20 = vector.load %arg8[%c0_18, %c2, %c0_19] : memref<18x18x8xf32, #tpu.memory_space<vmem>>, vector<16x16x8xf32>
    %c1_20 = arith.constant 1 : index
    %c0_21 = arith.constant 0 : index
    %c0_22 = arith.constant 0 : index
    %21 = vector.load %arg8[%c1_20, %c0_21, %c0_22] : memref<18x18x8xf32, #tpu.memory_space<vmem>>, vector<16x16x8xf32>
    %c1_23 = arith.constant 1 : index
    %c1_24 = arith.constant 1 : index
    %c0_25 = arith.constant 0 : index
    %22 = vector.load %arg8[%c1_23, %c1_24, %c0_25] : memref<18x18x8xf32, #tpu.memory_space<vmem>>, vector<16x16x8xf32>
    %c1_26 = arith.constant 1 : index
    %c2_27 = arith.constant 2 : index
    %c0_28 = arith.constant 0 : index
    %23 = vector.load %arg8[%c1_26, %c2_27, %c0_28] : memref<18x18x8xf32, #tpu.memory_space<vmem>>, vector<16x16x8xf32>
    %c2_29 = arith.constant 2 : index
    %c0_30 = arith.constant 0 : index
    %c0_31 = arith.constant 0 : index
    %24 = vector.load %arg8[%c2_29, %c0_30, %c0_31] : memref<18x18x8xf32, #tpu.memory_space<vmem>>, vector<16x16x8xf32>
    %c2_32 = arith.constant 2 : index
    %c1_33 = arith.constant 1 : index
    %c0_34 = arith.constant 0 : index
    %25 = vector.load %arg8[%c2_32, %c1_33, %c0_34] : memref<18x18x8xf32, #tpu.memory_space<vmem>>, vector<16x16x8xf32>
    %c2_35 = arith.constant 2 : index
    %c2_36 = arith.constant 2 : index
    %c0_37 = arith.constant 0 : index
    %26 = vector.load %arg8[%c2_35, %c2_36, %c0_37] : memref<18x18x8xf32, #tpu.memory_space<vmem>>, vector<16x16x8xf32>
    %27 = tpu.concatenate %18, %19, %20, %21, %22, %23, %24, %25, %26 in 2 : vector<16x16x8xf32>, vector<16x16x8xf32>, vector<16x16x8xf32>, vector<16x16x8xf32>, vector<16x16x8xf32>, vector<16x16x8xf32>, vector<16x16x8xf32>, vector<16x16x8xf32>, vector<16x16x8xf32> -> vector<16x16x72xf32>
    %28 = vector.shape_cast %27 : vector<16x16x72xf32> to vector<256x72xf32>
    %c0_38 = arith.constant 0 : index
    %c0_39 = arith.constant 0 : index
    %29 = vector.load %arg4[%c0_38, %c0_39] : memref<72x8xf32, #tpu.memory_space<vmem>>, vector<72x8xf32>
    %cst_40 = arith.constant dense<0.000000e+00> : vector<256x8xf32>
    %30 = tpu.matmul %28, %29, %cst_40 {dimension_numbers = #tpu.dot_dimension_numbers<[1], [0], [0], [1], [0, 0, 1, 1], [], []>} : vector<256x72xf32>, vector<72x8xf32>, vector<256x8xf32> -> vector<256x8xf32>
    %c0_41 = arith.constant 0 : index
    %c0_42 = arith.constant 0 : index
    %31 = vector.load %arg5[%c0_41, %c0_42] : memref<1x8xf32, #tpu.memory_space<vmem>>, vector<1x8xf32>
    %32 = vector.broadcast %31 : vector<1x8xf32> to vector<256x8xf32>
    %33 = arith.addf %30, %32 : vector<256x8xf32>
    %c0_43 = arith.constant 0 : index
    %c0_44 = arith.constant 0 : index
    %c0_45 = arith.constant 0 : index
    %34 = vector.load %arg6[%c0_43, %c0_44, %c0_45] : memref<1x256x8xf32, #tpu.memory_space<vmem>>, vector<1x256x8xf32>
    %35 = vector.shape_cast %34 : vector<1x256x8xf32> to vector<256x8xf32>
    %36 = vector.shape_cast %33 : vector<256x8xf32> to vector<1x256x8xf32>
    tpu.vector_store %arg6[%c0_43, %c0_44, %c0_45], %36 {strides = array<i32>} : memref<1x256x8xf32, #tpu.memory_space<vmem>>, vector<1x256x8xf32>,
    %cst_46 = arith.constant dense<0.000000e+00> : vector<8xf32>
    %37 = vector.multi_reduction <add>, %33, %cst_46 [0] : vector<256x8xf32> to vector<8xf32>
    %38 = vector.shape_cast %37 : vector<8xf32> to vector<1x8xf32>
    %39 = arith.mulf %33, %33 : vector<256x8xf32>
    %cst_47 = arith.constant dense<0.000000e+00> : vector<8xf32>
    %40 = vector.multi_reduction <add>, %39, %cst_47 [0] : vector<256x8xf32> to vector<8xf32>
    %41 = vector.shape_cast %40 : vector<8xf32> to vector<1x8xf32>
    %42 = tpu.concatenate %38, %41 in 0 : vector<1x8xf32>, vector<1x8xf32> -> vector<2x8xf32>
    %c0_48 = arith.constant 0 : index
    %c0_49 = arith.constant 0 : index
    %c0_50 = arith.constant 0 : index
    %43 = vector.load %arg7[%c0_48, %c0_49, %c0_50] : memref<1x2x8xf32, #tpu.memory_space<vmem>>, vector<1x2x8xf32>
    %44 = vector.shape_cast %43 : vector<1x2x8xf32> to vector<2x8xf32>
    %45 = vector.shape_cast %42 : vector<2x8xf32> to vector<1x2x8xf32>
    tpu.vector_store %arg7[%c0_48, %c0_49, %c0_50], %45 {strides = array<i32>} : memref<1x2x8xf32, #tpu.memory_space<vmem>>, vector<1x2x8xf32>,
    return
  }
  func.func @transform_0(%arg0: i32) -> (i32, i32, i32) {
    %c0_i32 = arith.constant 0 : i32
    %c0_i32_0 = arith.constant 0 : i32
    %c0_i32_1 = arith.constant 0 : i32
    return %arg0, %c0_i32, %c0_i32_0 : i32, i32, i32
  }
  func.func @transform_1(%arg0: i32) -> (i32, i32) {
    %c0_i32 = arith.constant 0 : i32
    %c0_i32_0 = arith.constant 0 : i32
    %c0_i32_1 = arith.constant 0 : i32
    return %c0_i32, %c0_i32_0 : i32, i32
  }
  func.func @transform_2(%arg0: i32) -> (i32, i32) {
    %c0_i32 = arith.constant 0 : i32
    %c0_i32_0 = arith.constant 0 : i32
    %c0_i32_1 = arith.constant 0 : i32
    return %c0_i32, %c0_i32_0 : i32, i32
  }
  func.func @transform_3(%arg0: i32) -> (i32, i32) {
    %c0_i32 = arith.constant 0 : i32
    %c0_i32_0 = arith.constant 0 : i32
    %c0_i32_1 = arith.constant 0 : i32
    return %c0_i32, %c0_i32_0 : i32, i32
  }
  func.func @transform_4(%arg0: i32) -> (i32, i32) {
    %c0_i32 = arith.constant 0 : i32
    %c0_i32_0 = arith.constant 0 : i32
    %c0_i32_1 = arith.constant 0 : i32
    return %c0_i32, %c0_i32_0 : i32, i32
  }
  func.func @transform_5(%arg0: i32) -> (i32, i32, i32) {
    %c0_i32 = arith.constant 0 : i32
    %c0_i32_0 = arith.constant 0 : i32
    %c0_i32_1 = arith.constant 0 : i32
    return %arg0, %c0_i32, %c0_i32_0 : i32, i32, i32
  }
  func.func @transform_6(%arg0: i32) -> (i32, i32, i32) {
    %c0_i32 = arith.constant 0 : i32
    %c0_i32_0 = arith.constant 0 : i32
    %c0_i32_1 = arith.constant 0 : i32
    return %arg0, %c0_i32, %c0_i32_0 : i32, i32, i32
  }
}

</mosaic_0001>

<llo_original>
// kernel: down_layer_forward.5
$region0: #{down_layer_forward.5}
  #allocation0 [shape = 'u32[]', space=smem, size = 0x4, offset = 0x4, fixed_abs, tag = 'smem constant byte address 0x4 - core index']
  #allocation1 [shape = 'u32[72,128]{1,0:T(1,128)}', space=vmem, size = 0x9000, scoped, tag = 'internal scratch']
  %s0 = inlined_call_operand.vmem [shape: f32[2,256,8], index: 0, kind: input, shape index: {}]
  %s1 = inlined_call_operand.vmem [shape: f32[2,256,4], index: 1, kind: input, shape index: {}]
  %s2 = inlined_call_operand.vmem [shape: f32[1,8], index: 2, kind: input, shape index: {}]
  %s3 = inlined_call_operand.vmem [shape: f32[1,8], index: 3, kind: input, shape index: {}]
  %s4 = inlined_call_operand.vmem [shape: f32[4,8], index: 4, kind: input, shape index: {}]
  %s5 = inlined_call_operand.vmem [shape: f32[1,8], index: 5, kind: input, shape index: {}]
  %s6 = inlined_call_operand.vmem [shape: f32[2,256,8], index: 6, kind: output, shape index: {}]
  %s7 = sld [smem:[#allocation0]]
  $region57: #{down_layer_forward.5} parent=0
    _
  %s9 = ssub.s32 1, %s7
  %s10 = scalar_select 0, %s9, %s7
  loop: start=0, step=1, limit=4
  $region2: #{down_layer_forward.5} parent=0 // loop_pre_header
    _
  $region3: #{down_layer_forward.5} parent=0 // loop_header
    %s12 = sphi 0, %s16
    %p13 = scmp.ge.s32.totalorder %s12, 4
    %s22 = sphi 0, %s24
    %s25 = sphi 0, %s22
    %s26 = sphi 0, %s25
    %s42 = sphi 0, %s26
    %s48 = sphi 0, %s50
    %s51 = sphi 0, %s48
    %s52 = sphi 0, %s51
    %s68 = sphi 0, %s52
    %s72 = sphi 0, %s72
    %s74 = sphi 0, %s72
    %s75 = sphi 0, %s74
    %s89 = sphi 0, %s75
    %s93 = sphi 0, %s93
    %s95 = sphi 0, %s93
    %s96 = sphi 0, %s95
    %s110 = sphi 0, %s96
    %s114 = sphi 0, %s114
    %s116 = sphi 0, %s114
    %s117 = sphi 0, %s116
    %s131 = sphi 0, %s117
    %s135 = sphi 0, %s135
    %s137 = sphi 0, %s135
    %s138 = sphi 0, %s137
    %s152 = sphi 0, %s138
    %s158 = sphi 0, %s160
    %s161 = sphi 0, %s158
    %s162 = sphi 0, %s161
    %s178 = sphi 0, %s162
  $region4: #{down_layer_forward.5} parent=0 // loop_header_branch
    %15 = sbr.rel (%p13) target = $region8
  $region5: #{down_layer_forward.5} parent=0 // loop_body
    %s17 = ssub.s32 %s12, 1
    %s18 = ssub.s32 %s12, 2
    %s19 = sadd.s32 %s12, 1
    %s20 = ssub.s32 %s12, %s19
    %p21 = scmp.eq.s32.totalorder %s20, 0
    %s23 = sadd.s32 %s22, 1
    %s24 = scalar_select %p21, %s22, %s23
    %p27 = pneg %p21
    %p28 = scmp.eq.s32.totalorder %s12, 1
    %p29 = por %p27, %p28
    %p30 = scmp.ne.s32.totalorder %s22, %s25
    %p31 = scmp.eq.s32.totalorder %s12, 0
    %p32 = por %p30, %p31
    %p33 = scmp.ne.s32.totalorder %s22, %s25
    %p34 = scmp.eq.s32.totalorder %s17, 1
    %p35 = por %p33, %p34
    %p36 = scmp.ne.s32.totalorder %s25, %s26
    %p37 = scmp.eq.s32.totalorder %s17, 0
    %p38 = por %p36, %p37
    %p39 = scmp.ne.s32.totalorder %s25, %s26
    %p40 = scmp.eq.s32.totalorder %s18, 1
    %p41 = por %p39, %p40
    %p43 = scmp.ne.s32.totalorder %s26, %s42
    %p44 = scmp.eq.s32.totalorder %s18, 0
    %p45 = por %p43, %p44
    %s46 = ssub.s32 %s12, %s19
    %p47 = scmp.eq.s32.totalorder %s46, 0
    %s49 = sadd.s32 %s48, 1
    %s50 = scalar_select %p47, %s48, %s49
    %p53 = pneg %p47
    %p54 = scmp.eq.s32.totalorder %s12, 1
    %p55 = por %p53, %p54
    %p56 = scmp.ne.s32.totalorder %s48, %s51
    %p57 = scmp.eq.s32.totalorder %s12, 0
    %p58 = por %p56, %p57
    %p59 = scmp.ne.s32.totalorder %s48, %s51
    %p60 = scmp.eq.s32.totalorder %s17, 1
    %p61 = por %p59, %p60
    %p62 = scmp.ne.s32.totalorder %s51, %s52
    %p63 = scmp.eq.s32.totalorder %s17, 0
    %p64 = por %p62, %p63
    %p65 = scmp.ne.s32.totalorder %s51, %s52
    %p66 = scmp.eq.s32.totalorder %s18, 1
    %p67 = por %p65, %p66
    %p69 = scmp.ne.s32.totalorder %s52, %s68
    %p70 = scmp.eq.s32.totalorder %s18, 0
    %p71 = por %p69, %p70
    %s73 = sadd.s32 %s72, 1
    %p76 = scmp.eq.s32.totalorder %s12, 1
    %p77 = scmp.ne.s32.totalorder %s72, %s74
    %p78 = scmp.eq.s32.totalorder %s12, 0
    %p79 = por %p77, %p78
    %p80 = scmp.ne.s32.totalorder %s72, %s74
    %p81 = scmp.eq.s32.totalorder %s17, 1
    %p82 = por %p80, %p81
    %p83 = scmp.ne.s32.totalorder %s74, %s75
    %p84 = scmp.eq.s32.totalorder %s17, 0
    %p85 = por %p83, %p84
    %p86 = scmp.ne.s32.totalorder %s74, %s75
    %p87 = scmp.eq.s32.totalorder %s18, 1
    %p88 = por %p86, %p87
    %p90 = scmp.ne.s32.totalorder %s75, %s89
    %p91 = scmp.eq.s32.totalorder %s18, 0
    %p92 = por %p90, %p91
    %s94 = sadd.s32 %s93, 1
    %p97 = scmp.eq.s32.totalorder %s12, 1
    %p98 = scmp.ne.s32.totalorder %s93, %s95
    %p99 = scmp.eq.s32.totalorder %s12, 0
    %p100 = por %p98, %p99
    %p101 = scmp.ne.s32.totalorder %s93, %s95
    %p102 = scmp.eq.s32.totalorder %s17, 1
    %p103 = por %p101, %p102
    %p104 = scmp.ne.s32.totalorder %s95, %s96
    %p105 = scmp.eq.s32.totalorder %s17, 0
    %p106 = por %p104, %p105
    %p107 = scmp.ne.s32.totalorder %s95, %s96
    %p108 = scmp.eq.s32.totalorder %s18, 1
    %p109 = por %p107, %p108
    %p111 = scmp.ne.s32.totalorder %s96, %s110
    %p112 = scmp.eq.s32.totalorder %s18, 0
    %p113 = por %p111, %p112
    %s115 = sadd.s32 %s114, 1
    %p118 = scmp.eq.s32.totalorder %s12, 1
    %p119 = scmp.ne.s32.totalorder %s114, %s116
    %p120 = scmp.eq.s32.totalorder %s12, 0
    %p121 = por %p119, %p120
    %p122 = scmp.ne.s32.totalorder %s114, %s116
    %p123 = scmp.eq.s32.totalorder %s17, 1
    %p124 = por %p122, %p123
    %p125 = scmp.ne.s32.totalorder %s116, %s117
    %p126 = scmp.eq.s32.totalorder %s17, 0
    %p127 = por %p125, %p126
    %p128 = scmp.ne.s32.totalorder %s116, %s117
    %p129 = scmp.eq.s32.totalorder %s18, 1
    %p130 = por %p128, %p129
    %p132 = scmp.ne.s32.totalorder %s117, %s131
    %p133 = scmp.eq.s32.totalorder %s18, 0
    %p134 = por %p132, %p133
    %s136 = sadd.s32 %s135, 1
    %p139 = scmp.eq.s32.totalorder %s12, 1
    %p140 = scmp.ne.s32.totalorder %s135, %s137
    %p141 = scmp.eq.s32.totalorder %s12, 0
    %p142 = por %p140, %p141
    %p143 = scmp.ne.s32.totalorder %s135, %s137
    %p144 = scmp.eq.s32.totalorder %s17, 1
    %p145 = por %p143, %p144
    %p146 = scmp.ne.s32.totalorder %s137, %s138
    %p147 = scmp.eq.s32.totalorder %s17, 0
    %p148 = por %p146, %p147
    %p149 = scmp.ne.s32.totalorder %s137, %s138
    %p150 = scmp.eq.s32.totalorder %s18, 1
    %p151 = por %p149, %p150
    %p153 = scmp.ne.s32.totalorder %s138, %s152
    %p154 = scmp.eq.s32.totalorder %s18, 0
    %p155 = por %p153, %p154
    %s156 = ssub.s32 %s12, %s19
    %p157 = scmp.eq.s32.totalorder %s156, 0
    %s159 = sadd.s32 %s158, 1
    %s160 = scalar_select %p157, %s158, %s159
    %p163 = pneg %p157
    %p164 = scmp.eq.s32.totalorder %s12, 1
    %p165 = por %p163, %p164
    %p166 = scmp.ne.s32.totalorder %s158, %s161
    %p167 = scmp.eq.s32.totalorder %s12, 0
    %p168 = por %p166, %p167
    %p169 = scmp.ne.s32.totalorder %s158, %s161
    %p170 = scmp.eq.s32.totalorder %s17, 1
    %p171 = por %p169, %p170
    %p172 = scmp.ne.s32.totalorder %s161, %s162
    %p173 = scmp.eq.s32.totalorder %s17, 0
    %p174 = por %p172, %p173
    %p175 = scmp.ne.s32.totalorder %s161, %s162
    %p176 = scmp.eq.s32.totalorder %s18, 1
    %p177 = por %p175, %p176
    %p179 = scmp.ne.s32.totalorder %s162, %s178
    %p180 = scmp.eq.s32.totalorder %s18, 0
    %p181 = por %p179, %p180
    %p182 = scmp.le.s32.totalorder 1, %s12
    %p183 = scmp.lt.s32.totalorder %s12, 3
    %p184 = pnand %p182, %p183
    %p185 = pneg %p184
    // Predicated region
    $region9: #{down_layer_forward.5} parent=5 // pred_check
      _
    $region10: #{down_layer_forward.5} parent=5 // pred_check_branch
      %187 = sbr.rel (%p184) target = $region12
    $region11: #{down_layer_forward.5} parent=5 // pred_region
      %s188 = ssub.s32 %s12, 1
      // Predicated region
      $region13: #{down_layer_forward.5} parent=11 // pred_check
        %p189 = pneg %p85
      $region14: #{down_layer_forward.5} parent=11 // pred_check_branch
        %191 = sbr.rel (%p189) target = $region16
      $region15: #{down_layer_forward.5} parent=11 // pred_region
        _
      $region16: #{down_layer_forward.5} parent=11 // pred_fallthru
        _
      // Predicated region
      $region17: #{down_layer_forward.5} parent=11 // pred_check
        %p192 = pneg %p106
      $region18: #{down_layer_forward.5} parent=11 // pred_check_branch
        %194 = sbr.rel (%p192) target = $region20
      $region19: #{down_layer_forward.5} parent=11 // pred_region
        _
      $region20: #{down_layer_forward.5} parent=11 // pred_fallthru
        _
      // Predicated region
      $region21: #{down_layer_forward.5} parent=11 // pred_check
        %p195 = pneg %p127
      $region22: #{down_layer_forward.5} parent=11 // pred_check_branch
        %197 = sbr.rel (%p195) target = $region24
      $region23: #{down_layer_forward.5} parent=11 // pred_region
        _
      $region24: #{down_layer_forward.5} parent=11 // pred_fallthru
        _
      // Predicated region
      $region25: #{down_layer_forward.5} parent=11 // pred_check
        %p198 = pneg %p148
      $region26: #{down_layer_forward.5} parent=11 // pred_check_branch
        %200 = sbr.rel (%p198) target = $region28
      $region27: #{down_layer_forward.5} parent=11 // pred_region
        _
      $region28: #{down_layer_forward.5} parent=11 // pred_fallthru
        _
    $region12: #{down_layer_forward.5} parent=5 // pred_fallthru
      _
    %p201 = scmp.lt.s32.totalorder %s12, 2
    // Predicated region
    $region29: #{down_layer_forward.5} parent=5 // pred_check
      %p202 = pneg %p201
    $region30: #{down_layer_forward.5} parent=5 // pred_check_branch
      %204 = sbr.rel (%p202) target = $region32
    $region31: #{down_layer_forward.5} parent=5 // pred_region
      // Predicated region
      $region33: #{down_layer_forward.5} parent=31 // pred_check
        %p205 = pneg %p32
      $region34: #{down_layer_forward.5} parent=31 // pred_check_branch
        %207 = sbr.rel (%p205) target = $region36
      $region35: #{down_layer_forward.5} parent=31 // pred_region
        %p208 = scmp.lt.s32.totalorder %s12, 1
        %s209 = scalar_select %p208, %s12, 1
        %s210 = smul.addr %s209, 32
        %s211 = smul.addr %s210, 8
        %s212 = scalar_lea.vmem %s0, %s211
      $region36: #{down_layer_forward.5} parent=31 // pred_fallthru
        _
      // Predicated region
      $region37: #{down_layer_forward.5} parent=31 // pred_check
        %p213 = pneg %p58
      $region38: #{down_layer_forward.5} parent=31 // pred_check_branch
        %215 = sbr.rel (%p213) target = $region40
      $region39: #{down_layer_forward.5} parent=31 // pred_region
        %p216 = scmp.lt.s32.totalorder %s12, 1
        %s217 = scalar_select %p216, %s12, 1
        %s218 = smul.addr %s217, 32
        %s219 = smul.addr %s218, 8
        %s220 = scalar_lea.vmem %s1, %s219
      $region40: #{down_layer_forward.5} parent=31 // pred_fallthru
        _
    $region32: #{down_layer_forward.5} parent=5 // pred_fallthru
      _
    %p221 = scmp.le.s32.totalorder 1, %s12
    %p222 = scmp.lt.s32.totalorder %s12, 3
    %p223 = pnand %p221, %p222
    %p224 = pneg %p223
    // Predicated region
    $region41: #{down_layer_forward.5} parent=5 // pred_check
      _
    $region42: #{down_layer_forward.5} parent=5 // pred_check_branch
      %226 = sbr.rel (%p223) target = $region44
    $region43: #{down_layer_forward.5} parent=5 // pred_region
      %s227 = ssub.s32 %s12, 1
      %p228 = scmp.lt.s32.totalorder %s17, 1
      %s229 = scalar_select %p228, %s17, 1
      %s230 = smul.addr %s229, 32
      %s231 = smul.addr %s230, 8
      %s232 = scalar_lea.vmem %s0, %s231
      %p233 = pneg %p38
      %p234 = pneg %p35
      %p235 = scmp.lt.s32.totalorder %s17, 1
      %s236 = scalar_select %p235, %s17, 1
      %s237 = smul.addr %s236, 32
      %s238 = smul.addr %s237, 8
      %s239 = scalar_lea.vmem %s1, %s238
      %p240 = pneg %p64
      %p241 = pneg %p61
      %p242 = pneg %p85
      %p243 = pneg %p82
      %p244 = pneg %p106
      %p245 = pneg %p103
      %p246 = pneg %p127
      %p247 = pneg %p124
      %p248 = pneg %p148
      %p249 = pneg %p145
      %p250 = pneg %p174
      %p251 = pneg %p171
      %p252 = scmp.lt.s32.totalorder %s17, 1
      %s253 = scalar_select %p252, %s17, 1
      %s254 = smul.addr %s253, 32
      %s255 = smul.addr %s254, 8
      %s256 = scalar_lea.vmem %s6, %s255
      %p257 = scmp.lt.s32.totalorder %s17, 1
      %s258 = scalar_select %p257, %s17, 1
      %s259 = smul.addr %s258, 32
      %s260 = smul.addr %s259, 8
      %s261 = scalar_lea.vmem %s0, %s260
      %p262 = scmp.lt.s32.totalorder %s17, 1
      %s263 = scalar_select %p262, %s17, 1
      %s264 = smul.addr %s263, 32
      %s265 = smul.addr %s264, 8
      %s266 = scalar_lea.vmem %s1, %s265
      %p267 = scmp.lt.s32.totalorder %s17, 1
      %s268 = scalar_select %p267, %s17, 1
      %s269 = smul.addr %s268, 32
      %s270 = smul.addr %s269, 8
      %s271 = scalar_lea.vmem %s6, %s270
      %v272 = vld [vmem:[%s261] sm:$0xff]
      %v273 = vld [vmem:[%s261 + $0x8] sm:$0xff]
      %v274 = vld [vmem:[%s261 + $0x10] sm:$0xff]
      %v275 = vld [vmem:[%s261 + $0x18] sm:$0xff]
      %v276 = vld [vmem:[%s261 + $0x20] sm:$0xff]
      %v277 = vld [vmem:[%s261 + $0x28] sm:$0xff]
      %v278 = vld [vmem:[%s261 + $0x30] sm:$0xff]
      %v279 = vld [vmem:[%s261 + $0x38] sm:$0xff]
      %v280 = vld [vmem:[%s261 + $0x40] sm:$0xff]
      %v281 = vld [vmem:[%s261 + $0x48] sm:$0xff]
      %v282 = vld [vmem:[%s261 + $0x50] sm:$0xff]
      %v283 = vld [vmem:[%s261 + $0x58] sm:$0xff]
      %v284 = vld [vmem:[%s261 + $0x60] sm:$0xff]
      %v285 = vld [vmem:[%s261 + $0x68] sm:$0xff]
      %v286 = vld [vmem:[%s261 + $0x70] sm:$0xff]
      %v287 = vld [vmem:[%s261 + $0x78] sm:$0xff]
      %v288 = vld [vmem:[%s261 + $0x80] sm:$0xff]
      %v289 = vld [vmem:[%s261 + $0x88] sm:$0xff]
      %v290 = vld [vmem:[%s261 + $0x90] sm:$0xff]
      %v291 = vld [vmem:[%s261 + $0x98] sm:$0xff]
      %v292 = vld [vmem:[%s261 + $0xa0] sm:$0xff]
      %v293 = vld [vmem:[%s261 + $0xa8] sm:$0xff]
      %v294 = vld [vmem:[%s261 + $0xb0] sm:$0xff]
      %v295 = vld [vmem:[%s261 + $0xb8] sm:$0xff]
      %v296 = vld [vmem:[%s261 + $0xc0] sm:$0xff]
      %v297 = vld [vmem:[%s261 + $0xc8] sm:$0xff]
      %v298 = vld [vmem:[%s261 + $0xd0] sm:$0xff]
      %v299 = vld [vmem:[%s261 + $0xd8] sm:$0xff]
      %v300 = vld [vmem:[%s261 + $0xe0] sm:$0xff]
      %v301 = vld [vmem:[%s261 + $0xe8] sm:$0xff]
      %v302 = vld [vmem:[%s261 + $0xf0] sm:$0xff]
      %v303 = vld [vmem:[%s261 + $0xf8] sm:$0xff]
      %v304 = vld [vmem:[%s2] sm:$0x1]
      %v306 = vperm.slane %v304, 0
      %v308 = vmul.f32 %v272, %v306
      %v309 = vmul.f32 %v273, %v306
      %v310 = vmul.f32 %v274, %v306
      %v311 = vmul.f32 %v275, %v306
      %v312 = vmul.f32 %v276, %v306
      %v313 = vmul.f32 %v277, %v306
      %v314 = vmul.f32 %v278, %v306
      %v315 = vmul.f32 %v279, %v306
      %v316 = vmul.f32 %v280, %v306
      %v317 = vmul.f32 %v281, %v306
      %v318 = vmul.f32 %v282, %v306
      %v319 = vmul.f32 %v283, %v306
      %v320 = vmul.f32 %v284, %v306
      %v321 = vmul.f32 %v285, %v306
      %v322 = vmul.f32 %v286, %v306
      %v323 = vmul.f32 %v287, %v306
      %v324 = vmul.f32 %v288, %v306
      %v325 = vmul.f32 %v289, %v306
      %v326 = vmul.f32 %v290, %v306
      %v327 = vmul.f32 %v291, %v306
      %v328 = vmul.f32 %v292, %v306
      %v329 = vmul.f32 %v293, %v306
      %v330 = vmul.f32 %v294, %v306
      %v331 = vmul.f32 %v295, %v306
      %v332 = vmul.f32 %v296, %v306
      %v333 = vmul.f32 %v297, %v306
      %v334 = vmul.f32 %v298, %v306
      %v335 = vmul.f32 %v299, %v306
      %v336 = vmul.f32 %v300, %v306
      %v337 = vmul.f32 %v301, %v306
      %v338 = vmul.f32 %v302, %v306
      %v339 = vmul.f32 %v303, %v306
      %v340 = vld [vmem:[%s3] sm:$0x1]
      %v342 = vperm.slane %v340, 0
      %v344 = vadd.f32 %v308, %v342
      %v345 = vadd.f32 %v309, %v342
      %v346 = vadd.f32 %v310, %v342
      %v347 = vadd.f32 %v311, %v342
      %v348 = vadd.f32 %v312, %v342
      %v349 = vadd.f32 %v313, %v342
      %v350 = vadd.f32 %v314, %v342
      %v351 = vadd.f32 %v315, %v342
      %v352 = vadd.f32 %v316, %v342
      %v353 = vadd.f32 %v317, %v342
      %v354 = vadd.f32 %v318, %v342
      %v355 = vadd.f32 %v319, %v342
      %v356 = vadd.f32 %v320, %v342
      %v357 = vadd.f32 %v321, %v342
      %v358 = vadd.f32 %v322, %v342
      %v359 = vadd.f32 %v323, %v342
      %v360 = vadd.f32 %v324, %v342
      %v361 = vadd.f32 %v325, %v342
      %v362 = vadd.f32 %v326, %v342
      %v363 = vadd.f32 %v327, %v342
      %v364 = vadd.f32 %v328, %v342
      %v365 = vadd.f32 %v329, %v342
      %v366 = vadd.f32 %v330, %v342
      %v367 = vadd.f32 %v331, %v342
      %v368 = vadd.f32 %v332, %v342
      %v369 = vadd.f32 %v333, %v342
      %v370 = vadd.f32 %v334, %v342
      %v371 = vadd.f32 %v335, %v342
      %v372 = vadd.f32 %v336, %v342
      %v373 = vadd.f32 %v337, %v342
      %v374 = vadd.f32 %v338, %v342
      %v375 = vadd.f32 %v339, %v342
      %v376 = vxor.u32 %v344, 2147483648
      %v377 = vxor.u32 %v345, 2147483648
      %v378 = vxor.u32 %v346, 2147483648
      %v379 = vxor.u32 %v347, 2147483648
      %v380 = vxor.u32 %v348, 2147483648
      %v381 = vxor.u32 %v349, 2147483648
      %v382 = vxor.u32 %v350, 2147483648
      %v383 = vxor.u32 %v351, 2147483648
      %v384 = vxor.u32 %v352, 2147483648
      %v385 = vxor.u32 %v353, 2147483648
      %v386 = vxor.u32 %v354, 2147483648
      %v387 = vxor.u32 %v355, 2147483648
      %v388 = vxor.u32 %v356, 2147483648
      %v389 = vxor.u32 %v357, 2147483648
      %v390 = vxor.u32 %v358, 2147483648
      %v391 = vxor.u32 %v359, 2147483648
      %v392 = vxor.u32 %v360, 2147483648
      %v393 = vxor.u32 %v361, 2147483648
      %v394 = vxor.u32 %v362, 2147483648
      %v395 = vxor.u32 %v363, 2147483648
      %v396 = vxor.u32 %v364, 2147483648
      %v397 = vxor.u32 %v365, 2147483648
      %v398 = vxor.u32 %v366, 2147483648
      %v399 = vxor.u32 %v367, 2147483648
      %v400 = vxor.u32 %v368, 2147483648
      %v401 = vxor.u32 %v369, 2147483648
      %v402 = vxor.u32 %v370, 2147483648
      %v403 = vxor.u32 %v371, 2147483648
      %v404 = vxor.u32 %v372, 2147483648
      %v405 = vxor.u32 %v373, 2147483648
      %v406 = vxor.u32 %v374, 2147483648
      %v407 = vxor.u32 %v375, 2147483648
      %v408 = vmul.f32 %v376, 1.442695
      %v409 = vpow.pop %v408
      %v410 = vmul.f32 %v377, 1.442695
      %v411 = vpow.pop %v410
      %v412 = vmul.f32 %v378, 1.442695
      %v413 = vpow.pop %v412
      %v414 = vmul.f32 %v379, 1.442695
      %v415 = vpow.pop %v414
      %v416 = vmul.f32 %v380, 1.442695
      %v417 = vpow.pop %v416
      %v418 = vmul.f32 %v381, 1.442695
      %v419 = vpow.pop %v418
      %v420 = vmul.f32 %v382, 1.442695
      %v421 = vpow.pop %v420
      %v422 = vmul.f32 %v383, 1.442695
      %v423 = vpow.pop %v422
      %v424 = vmul.f32 %v384, 1.442695
      %v425 = vpow.pop %v424
      %v426 = vmul.f32 %v385, 1.442695
      %v427 = vpow.pop %v426
      %v428 = vmul.f32 %v386, 1.442695
      %v429 = vpow.pop %v428
      %v430 = vmul.f32 %v387, 1.442695
      %v431 = vpow.pop %v430
      %v432 = vmul.f32 %v388, 1.442695
      %v433 = vpow.pop %v432
      %v434 = vmul.f32 %v389, 1.442695
      %v435 = vpow.pop %v434
      %v436 = vmul.f32 %v390, 1.442695
      %v437 = vpow.pop %v436
      %v438 = vmul.f32 %v391, 1.442695
      %v439 = vpow.pop %v438
      %v440 = vmul.f32 %v392, 1.442695
      %v441 = vpow.pop %v440
      %v442 = vmul.f32 %v393, 1.442695
      %v443 = vpow.pop %v442
      %v444 = vmul.f32 %v394, 1.442695
      %v445 = vpow.pop %v444
      %v446 = vmul.f32 %v395, 1.442695
      %v447 = vpow.pop %v446
      %v448 = vmul.f32 %v396, 1.442695
      %v449 = vpow.pop %v448
      %v450 = vmul.f32 %v397, 1.442695
      %v451 = vpow.pop %v450
      %v452 = vmul.f32 %v398, 1.442695
      %v453 = vpow.pop %v452
      %v454 = vmul.f32 %v399, 1.442695
      %v455 = vpow.pop %v454
      %v456 = vmul.f32 %v400, 1.442695
      %v457 = vpow.pop %v456
      %v458 = vmul.f32 %v401, 1.442695
      %v459 = vpow.pop %v458
      %v460 = vmul.f32 %v402, 1.442695
      %v461 = vpow.pop %v460
      %v462 = vmul.f32 %v403, 1.442695
      %v463 = vpow.pop %v462
      %v464 = vmul.f32 %v404, 1.442695
      %v465 = vpow.pop %v464
      %v466 = vmul.f32 %v405, 1.442695
      %v467 = vpow.pop %v466
      %v468 = vmul.f32 %v406, 1.442695
      %v469 = vpow.pop %v468
      %v470 = vmul.f32 %v407, 1.442695
      %v471 = vpow.pop %v470
      %v472 = vadd.f32 %v409, 1.0
      %v473 = vadd.f32 %v411, 1.0
      %v474 = vadd.f32 %v413, 1.0
      %v475 = vadd.f32 %v415, 1.0
      %v476 = vadd.f32 %v417, 1.0
      %v477 = vadd.f32 %v419, 1.0
      %v478 = vadd.f32 %v421, 1.0
      %v479 = vadd.f32 %v423, 1.0
      %v480 = vadd.f32 %v425, 1.0
      %v481 = vadd.f32 %v427, 1.0
      %v482 = vadd.f32 %v429, 1.0
      %v483 = vadd.f32 %v431, 1.0
      %v484 = vadd.f32 %v433, 1.0
      %v485 = vadd.f32 %v435, 1.0
      %v486 = vadd.f32 %v437, 1.0
      %v487 = vadd.f32 %v439, 1.0
      %v488 = vadd.f32 %v441, 1.0
      %v489 = vadd.f32 %v443, 1.0
      %v490 = vadd.f32 %v445, 1.0
      %v491 = vadd.f32 %v447, 1.0
      %v492 = vadd.f32 %v449, 1.0
      %v493 = vadd.f32 %v451, 1.0
      %v494 = vadd.f32 %v453, 1.0
      %v495 = vadd.f32 %v455, 1.0
      %v496 = vadd.f32 %v457, 1.0
      %v497 = vadd.f32 %v459, 1.0
      %v498 = vadd.f32 %v461, 1.0
      %v499 = vadd.f32 %v463, 1.0
      %v500 = vadd.f32 %v465, 1.0
      %v501 = vadd.f32 %v467, 1.0
      %v502 = vadd.f32 %v469, 1.0
      %v503 = vadd.f32 %v471, 1.0
      %v504 = vrcp.pop %v472
      %v505 = vmul.f32 %v472, %v504
      %v506 = vsub.f32 1.0, %v505
      %v507 = vmul.f32 %v504, %v506
      %v508 = vadd.f32 %v504, %v507
      %vm509 = vweird.f32 %v472
      %vm510 = vweird.f32 %v504
      %vm511 = vmor %vm509, %vm510
      %v512 = vsel %vm511, %v504, %v508
      %v513 = vand.u32 2147483647, %v472
      %vm514 = vcmp.eq.f32.partialorder %v513, 8.507059e+37
      %v515 = vand.u32 %v472, 2147483648
      %v516 = vor.u32 1.1754944e-38, %v515
      %v517 = vsel %vm514, %v516, %v512
      %v518 = vmul.f32 1.0, %v517
      %v519 = vrcp.pop %v473
      %v520 = vmul.f32 %v473, %v519
      %v521 = vsub.f32 1.0, %v520
      %v522 = vmul.f32 %v519, %v521
      %v523 = vadd.f32 %v519, %v522
      %vm524 = vweird.f32 %v473
      %vm525 = vweird.f32 %v519
      %vm526 = vmor %vm524, %vm525
      %v527 = vsel %vm526, %v519, %v523
      %v528 = vand.u32 2147483647, %v473
      %vm529 = vcmp.eq.f32.partialorder %v528, 8.507059e+37
      %v530 = vand.u32 %v473, 2147483648
      %v531 = vor.u32 1.1754944e-38, %v530
      %v532 = vsel %vm529, %v531, %v527
      %v533 = vmul.f32 1.0, %v532
      %v534 = vrcp.pop %v474
      %v535 = vmul.f32 %v474, %v534
      %v536 = vsub.f32 1.0, %v535
      %v537 = vmul.f32 %v534, %v536
      %v538 = vadd.f32 %v534, %v537
      %vm539 = vweird.f32 %v474
      %vm540 = vweird.f32 %v534
      %vm541 = vmor %vm539, %vm540
      %v542 = vsel %vm541, %v534, %v538
      %v543 = vand.u32 2147483647, %v474
      %vm544 = vcmp.eq.f32.partialorder %v543, 8.507059e+37
      %v545 = vand.u32 %v474, 2147483648
      %v546 = vor.u32 1.1754944e-38, %v545
      %v547 = vsel %vm544, %v546, %v542
      %v548 = vmul.f32 1.0, %v547
      %v549 = vrcp.pop %v475
      %v550 = vmul.f32 %v475, %v549
      %v551 = vsub.f32 1.0, %v550
      %v552 = vmul.f32 %v549, %v551
      %v553 = vadd.f32 %v549, %v552
      %vm554 = vweird.f32 %v475
      %vm555 = vweird.f32 %v549
      %vm556 = vmor %vm554, %vm555
      %v557 = vsel %vm556, %v549, %v553
      %v558 = vand.u32 2147483647, %v475
      %vm559 = vcmp.eq.f32.partialorder %v558, 8.507059e+37
      %v560 = vand.u32 %v475, 2147483648
      %v561 = vor.u32 1.1754944e-38, %v560
      %v562 = vsel %vm559, %v561, %v557
      %v563 = vmul.f32 1.0, %v562
      %v564 = vrcp.pop %v476
      %v565 = vmul.f32 %v476, %v564
      %v566 = vsub.f32 1.0, %v565
      %v567 = vmul.f32 %v564, %v566
      %v568 = vadd.f32 %v564, %v567
      %vm569 = vweird.f32 %v476
      %vm570 = vweird.f32 %v564
      %vm571 = vmor %vm569, %vm570
      %v572 = vsel %vm571, %v564, %v568
      %v573 = vand.u32 2147483647, %v476
      %vm574 = vcmp.eq.f32.partialorder %v573, 8.507059e+37
      %v575 = vand.u32 %v476, 2147483648
      %v576 = vor.u32 1.1754944e-38, %v575
      %v577 = vsel %vm574, %v576, %v572
      %v578 = vmul.f32 1.0, %v577
      %v579 = vrcp.pop %v477
      %v580 = vmul.f32 %v477, %v579
      %v581 = vsub.f32 1.0, %v580
      %v582 = vmul.f32 %v579, %v581
      %v583 = vadd.f32 %v579, %v582
      %vm584 = vweird.f32 %v477
      %vm585 = vweird.f32 %v579
      %vm586 = vmor %vm584, %vm585
      %v587 = vsel %vm586, %v579, %v583
      %v588 = vand.u32 2147483647, %v477
      %vm589 = vcmp.eq.f32.partialorder %v588, 8.507059e+37
      %v590 = vand.u32 %v477, 2147483648
      %v591 = vor.u32 1.1754944e-38, %v590
      %v592 = vsel %vm589, %v591, %v587
      %v593 = vmul.f32 1.0, %v592
      %v594 = vrcp.pop %v478
      %v595 = vmul.f32 %v478, %v594
      %v596 = vsub.f32 1.0, %v595
      %v597 = vmul.f32 %v594, %v596
      %v598 = vadd.f32 %v594, %v597
      %vm599 = vweird.f32 %v478
      %vm600 = vweird.f32 %v594
      %vm601 = vmor %vm599, %vm600
      %v602 = vsel %vm601, %v594, %v598
      %v603 = vand.u32 2147483647, %v478
      %vm604 = vcmp.eq.f32.partialorder %v603, 8.507059e+37
      %v605 = vand.u32 %v478, 2147483648
      %v606 = vor.u32 1.1754944e-38, %v605
      %v607 = vsel %vm604, %v606, %v602
      %v608 = vmul.f32 1.0, %v607
      %v609 = vrcp.pop %v479
      %v610 = vmul.f32 %v479, %v609
      %v611 = vsub.f32 1.0, %v610
      %v612 = vmul.f32 %v609, %v611
      %v613 = vadd.f32 %v609, %v612
      %vm614 = vweird.f32 %v479
      %vm615 = vweird.f32 %v609
      %vm616 = vmor %vm614, %vm615
      %v617 = vsel %vm616, %v609, %v613
      %v618 = vand.u32 2147483647, %v479
      %vm619 = vcmp.eq.f32.partialorder %v618, 8.507059e+37
      %v620 = vand.u32 %v479, 2147483648
      %v621 = vor.u32 1.1754944e-38, %v620
      %v622 = vsel %vm619, %v621, %v617
      %v623 = vmul.f32 1.0, %v622
      %v624 = vrcp.pop %v480
      %v625 = vmul.f32 %v480, %v624
      %v626 = vsub.f32 1.0, %v625
      %v627 = vmul.f32 %v624, %v626
      %v628 = vadd.f32 %v624, %v627
      %vm629 = vweird.f32 %v480
      %vm630 = vweird.f32 %v624
      %vm631 = vmor %vm629, %vm630
      %v632 = vsel %vm631, %v624, %v628
      %v633 = vand.u32 2147483647, %v480
      %vm634 = vcmp.eq.f32.partialorder %v633, 8.507059e+37
      %v635 = vand.u32 %v480, 2147483648
      %v636 = vor.u32 1.1754944e-38, %v635
      %v637 = vsel %vm634, %v636, %v632
      %v638 = vmul.f32 1.0, %v637
      %v639 = vrcp.pop %v481
      %v640 = vmul.f32 %v481, %v639
      %v641 = vsub.f32 1.0, %v640
      %v642 = vmul.f32 %v639, %v641
      %v643 = vadd.f32 %v639, %v642
      %vm644 = vweird.f32 %v481
      %vm645 = vweird.f32 %v639
      %vm646 = vmor %vm644, %vm645
      %v647 = vsel %vm646, %v639, %v643
      %v648 = vand.u32 2147483647, %v481
      %vm649 = vcmp.eq.f32.partialorder %v648, 8.507059e+37
      %v650 = vand.u32 %v481, 2147483648
      %v651 = vor.u32 1.1754944e-38, %v650
      %v652 = vsel %vm649, %v651, %v647
      %v653 = vmul.f32 1.0, %v652
      %v654 = vrcp.pop %v482
      %v655 = vmul.f32 %v482, %v654
      %v656 = vsub.f32 1.0, %v655
      %v657 = vmul.f32 %v654, %v656
      %v658 = vadd.f32 %v654, %v657
      %vm659 = vweird.f32 %v482
      %vm660 = vweird.f32 %v654
      %vm661 = vmor %vm659, %vm660
      %v662 = vsel %vm661, %v654, %v658
      %v663 = vand.u32 2147483647, %v482
      %vm664 = vcmp.eq.f32.partialorder %v663, 8.507059e+37
      %v665 = vand.u32 %v482, 2147483648
      %v666 = vor.u32 1.1754944e-38, %v665
      %v667 = vsel %vm664, %v666, %v662
      %v668 = vmul.f32 1.0, %v667
      %v669 = vrcp.pop %v483
      %v670 = vmul.f32 %v483, %v669
      %v671 = vsub.f32 1.0, %v670
      %v672 = vmul.f32 %v669, %v671
      %v673 = vadd.f32 %v669, %v672
      %vm674 = vweird.f32 %v483
      %vm675 = vweird.f32 %v669
      %vm676 = vmor %vm674, %vm675
      %v677 = vsel %vm676, %v669, %v673
      %v678 = vand.u32 2147483647, %v483
      %vm679 = vcmp.eq.f32.partialorder %v678, 8.507059e+37
      %v680 = vand.u32 %v483, 2147483648
      %v681 = vor.u32 1.1754944e-38, %v680
      %v682 = vsel %vm679, %v681, %v677
      %v683 = vmul.f32 1.0, %v682
      %v684 = vrcp.pop %v484
      %v685 = vmul.f32 %v484, %v684
      %v686 = vsub.f32 1.0, %v685
      %v687 = vmul.f32 %v684, %v686
      %v688 = vadd.f32 %v684, %v687
      %vm689 = vweird.f32 %v484
      %vm690 = vweird.f32 %v684
      %vm691 = vmor %vm689, %vm690
      %v692 = vsel %vm691, %v684, %v688
      %v693 = vand.u32 2147483647, %v484
      %vm694 = vcmp.eq.f32.partialorder %v693, 8.507059e+37
      %v695 = vand.u32 %v484, 2147483648
      %v696 = vor.u32 1.1754944e-38, %v695
      %v697 = vsel %vm694, %v696, %v692
      %v698 = vmul.f32 1.0, %v697
      %v699 = vrcp.pop %v485
      %v700 = vmul.f32 %v485, %v699
      %v701 = vsub.f32 1.0, %v700
      %v702 = vmul.f32 %v699, %v701
      %v703 = vadd.f32 %v699, %v702
      %vm704 = vweird.f32 %v485
      %vm705 = vweird.f32 %v699
      %vm706 = vmor %vm704, %vm705
      %v707 = vsel %vm706, %v699, %v703
      %v708 = vand.u32 2147483647, %v485
      %vm709 = vcmp.eq.f32.partialorder %v708, 8.507059e+37
      %v710 = vand.u32 %v485, 2147483648
      %v711 = vor.u32 1.1754944e-38, %v710
      %v712 = vsel %vm709, %v711, %v707
      %v713 = vmul.f32 1.0, %v712
      %v714 = vrcp.pop %v486
      %v715 = vmul.f32 %v486, %v714
      %v716 = vsub.f32 1.0, %v715
      %v717 = vmul.f32 %v714, %v716
      %v718 = vadd.f32 %v714, %v717
      %vm719 = vweird.f32 %v486
      %vm720 = vweird.f32 %v714
      %vm721 = vmor %vm719, %vm720
      %v722 = vsel %vm721, %v714, %v718
      %v723 = vand.u32 2147483647, %v486
      %vm724 = vcmp.eq.f32.partialorder %v723, 8.507059e+37
      %v725 = vand.u32 %v486, 2147483648
      %v726 = vor.u32 1.1754944e-38, %v725
      %v727 = vsel %vm724, %v726, %v722
      %v728 = vmul.f32 1.0, %v727
      %v729 = vrcp.pop %v487
      %v730 = vmul.f32 %v487, %v729
      %v731 = vsub.f32 1.0, %v730
      %v732 = vmul.f32 %v729, %v731
      %v733 = vadd.f32 %v729, %v732
      %vm734 = vweird.f32 %v487
      %vm735 = vweird.f32 %v729
      %vm736 = vmor %vm734, %vm735
      %v737 = vsel %vm736, %v729, %v733
      %v738 = vand.u32 2147483647, %v487
      %vm739 = vcmp.eq.f32.partialorder %v738, 8.507059e+37
      %v740 = vand.u32 %v487, 2147483648
      %v741 = vor.u32 1.1754944e-38, %v740
      %v742 = vsel %vm739, %v741, %v737
      %v743 = vmul.f32 1.0, %v742
      %v744 = vrcp.pop %v488
      %v745 = vmul.f32 %v488, %v744
      %v746 = vsub.f32 1.0, %v745
      %v747 = vmul.f32 %v744, %v746
      %v748 = vadd.f32 %v744, %v747
      %vm749 = vweird.f32 %v488
      %vm750 = vweird.f32 %v744
      %vm751 = vmor %vm749, %vm750
      %v752 = vsel %vm751, %v744, %v748
      %v753 = vand.u32 2147483647, %v488
      %vm754 = vcmp.eq.f32.partialorder %v753, 8.507059e+37
      %v755 = vand.u32 %v488, 2147483648
      %v756 = vor.u32 1.1754944e-38, %v755
      %v757 = vsel %vm754, %v756, %v752
      %v758 = vmul.f32 1.0, %v757
      %v759 = vrcp.pop %v489
      %v760 = vmul.f32 %v489, %v759
      %v761 = vsub.f32 1.0, %v760
      %v762 = vmul.f32 %v759, %v761
      %v763 = vadd.f32 %v759, %v762
      %vm764 = vweird.f32 %v489
      %vm765 = vweird.f32 %v759
      %vm766 = vmor %vm764, %vm765
      %v767 = vsel %vm766, %v759, %v763
      %v768 = vand.u32 2147483647, %v489
      %vm769 = vcmp.eq.f32.partialorder %v768, 8.507059e+37
      %v770 = vand.u32 %v489, 2147483648
      %v771 = vor.u32 1.1754944e-38, %v770
      %v772 = vsel %vm769, %v771, %v767
      %v773 = vmul.f32 1.0, %v772
      %v774 = vrcp.pop %v490
      %v775 = vmul.f32 %v490, %v774
      %v776 = vsub.f32 1.0, %v775
      %v777 = vmul.f32 %v774, %v776
      %v778 = vadd.f32 %v774, %v777
      %vm779 = vweird.f32 %v490
      %vm780 = vweird.f32 %v774
      %vm781 = vmor %vm779, %vm780
      %v782 = vsel %vm781, %v774, %v778
      %v783 = vand.u32 2147483647, %v490
      %vm784 = vcmp.eq.f32.partialorder %v783, 8.507059e+37
      %v785 = vand.u32 %v490, 2147483648
      %v786 = vor.u32 1.1754944e-38, %v785
      %v787 = vsel %vm784, %v786, %v782
      %v788 = vmul.f32 1.0, %v787
      %v789 = vrcp.pop %v491
      %v790 = vmul.f32 %v491, %v789
      %v791 = vsub.f32 1.0, %v790
      %v792 = vmul.f32 %v789, %v791
      %v793 = vadd.f32 %v789, %v792
      %vm794 = vweird.f32 %v491
      %vm795 = vweird.f32 %v789
      %vm796 = vmor %vm794, %vm795
      %v797 = vsel %vm796, %v789, %v793
      %v798 = vand.u32 2147483647, %v491
      %vm799 = vcmp.eq.f32.partialorder %v798, 8.507059e+37
      %v800 = vand.u32 %v491, 2147483648
      %v801 = vor.u32 1.1754944e-38, %v800
      %v802 = vsel %vm799, %v801, %v797
      %v803 = vmul.f32 1.0, %v802
      %v804 = vrcp.pop %v492
      %v805 = vmul.f32 %v492, %v804
      %v806 = vsub.f32 1.0, %v805
      %v807 = vmul.f32 %v804, %v806
      %v808 = vadd.f32 %v804, %v807
      %vm809 = vweird.f32 %v492
      %vm810 = vweird.f32 %v804
      %vm811 = vmor %vm809, %vm810
      %v812 = vsel %vm811, %v804, %v808
      %v813 = vand.u32 2147483647, %v492
      %vm814 = vcmp.eq.f32.partialorder %v813, 8.507059e+37
      %v815 = vand.u32 %v492, 2147483648
      %v816 = vor.u32 1.1754944e-38, %v815
      %v817 = vsel %vm814, %v816, %v812
      %v818 = vmul.f32 1.0, %v817
      %v819 = vrcp.pop %v493
      %v820 = vmul.f32 %v493, %v819
      %v821 = vsub.f32 1.0, %v820
      %v822 = vmul.f32 %v819, %v821
      %v823 = vadd.f32 %v819, %v822
      %vm824 = vweird.f32 %v493
      %vm825 = vweird.f32 %v819
      %vm826 = vmor %vm824, %vm825
      %v827 = vsel %vm826, %v819, %v823
      %v828 = vand.u32 2147483647, %v493
      %vm829 = vcmp.eq.f32.partialorder %v828, 8.507059e+37
      %v830 = vand.u32 %v493, 2147483648
      %v831 = vor.u32 1.1754944e-38, %v830
      %v832 = vsel %vm829, %v831, %v827
      %v833 = vmul.f32 1.0, %v832
      %v834 = vrcp.pop %v494
      %v835 = vmul.f32 %v494, %v834
      %v836 = vsub.f32 1.0, %v835
      %v837 = vmul.f32 %v834, %v836
      %v838 = vadd.f32 %v834, %v837
      %vm839 = vweird.f32 %v494
      %vm840 = vweird.f32 %v834
      %vm841 = vmor %vm839, %vm840
      %v842 = vsel %vm841, %v834, %v838
      %v843 = vand.u32 2147483647, %v494
      %vm844 = vcmp.eq.f32.partialorder %v843, 8.507059e+37
      %v845 = vand.u32 %v494, 2147483648
      %v846 = vor.u32 1.1754944e-38, %v845
      %v847 = vsel %vm844, %v846, %v842
      %v848 = vmul.f32 1.0, %v847
      %v849 = vrcp.pop %v495
      %v850 = vmul.f32 %v495, %v849
      %v851 = vsub.f32 1.0, %v850
      %v852 = vmul.f32 %v849, %v851
      %v853 = vadd.f32 %v849, %v852
      %vm854 = vweird.f32 %v495
      %vm855 = vweird.f32 %v849
      %vm856 = vmor %vm854, %vm855
      %v857 = vsel %vm856, %v849, %v853
      %v858 = vand.u32 2147483647, %v495
      %vm859 = vcmp.eq.f32.partialorder %v858, 8.507059e+37
      %v860 = vand.u32 %v495, 2147483648
      %v861 = vor.u32 1.1754944e-38, %v860
      %v862 = vsel %vm859, %v861, %v857
      %v863 = vmul.f32 1.0, %v862
      %v864 = vrcp.pop %v496
      %v865 = vmul.f32 %v496, %v864
      %v866 = vsub.f32 1.0, %v865
      %v867 = vmul.f32 %v864, %v866
      %v868 = vadd.f32 %v864, %v867
      %vm869 = vweird.f32 %v496
      %vm870 = vweird.f32 %v864
      %vm871 = vmor %vm869, %vm870
      %v872 = vsel %vm871, %v864, %v868
      %v873 = vand.u32 2147483647, %v496
      %vm874 = vcmp.eq.f32.partialorder %v873, 8.507059e+37
      %v875 = vand.u32 %v496, 2147483648
      %v876 = vor.u32 1.1754944e-38, %v875
      %v877 = vsel %vm874, %v876, %v872
      %v878 = vmul.f32 1.0, %v877
      %v879 = vrcp.pop %v497
      %v880 = vmul.f32 %v497, %v879
      %v881 = vsub.f32 1.0, %v880
      %v882 = vmul.f32 %v879, %v881
      %v883 = vadd.f32 %v879, %v882
      %vm884 = vweird.f32 %v497
      %vm885 = vweird.f32 %v879
      %vm886 = vmor %vm884, %vm885
      %v887 = vsel %vm886, %v879, %v883
      %v888 = vand.u32 2147483647, %v497
      %vm889 = vcmp.eq.f32.partialorder %v888, 8.507059e+37
      %v890 = vand.u32 %v497, 2147483648
      %v891 = vor.u32 1.1754944e-38, %v890
      %v892 = vsel %vm889, %v891, %v887
      %v893 = vmul.f32 1.0, %v892
      %v894 = vrcp.pop %v498
      %v895 = vmul.f32 %v498, %v894
      %v896 = vsub.f32 1.0, %v895
      %v897 = vmul.f32 %v894, %v896
      %v898 = vadd.f32 %v894, %v897
      %vm899 = vweird.f32 %v498
      %vm900 = vweird.f32 %v894
      %vm901 = vmor %vm899, %vm900
      %v902 = vsel %vm901, %v894, %v898
      %v903 = vand.u32 2147483647, %v498
      %vm904 = vcmp.eq.f32.partialorder %v903, 8.507059e+37
      %v905 = vand.u32 %v498, 2147483648
      %v906 = vor.u32 1.1754944e-38, %v905
      %v907 = vsel %vm904, %v906, %v902
      %v908 = vmul.f32 1.0, %v907
      %v909 = vrcp.pop %v499
      %v910 = vmul.f32 %v499, %v909
      %v911 = vsub.f32 1.0, %v910
      %v912 = vmul.f32 %v909, %v911
      %v913 = vadd.f32 %v909, %v912
      %vm914 = vweird.f32 %v499
      %vm915 = vweird.f32 %v909
      %vm916 = vmor %vm914, %vm915
      %v917 = vsel %vm916, %v909, %v913
      %v918 = vand.u32 2147483647, %v499
      %vm919 = vcmp.eq.f32.partialorder %v918, 8.507059e+37
      %v920 = vand.u32 %v499, 2147483648
      %v921 = vor.u32 1.1754944e-38, %v920
      %v922 = vsel %vm919, %v921, %v917
      %v923 = vmul.f32 1.0, %v922
      %v924 = vrcp.pop %v500
      %v925 = vmul.f32 %v500, %v924
      %v926 = vsub.f32 1.0, %v925
      %v927 = vmul.f32 %v924, %v926
      %v928 = vadd.f32 %v924, %v927
      %vm929 = vweird.f32 %v500
      %vm930 = vweird.f32 %v924
      %vm931 = vmor %vm929, %vm930
      %v932 = vsel %vm931, %v924, %v928
      %v933 = vand.u32 2147483647, %v500
      %vm934 = vcmp.eq.f32.partialorder %v933, 8.507059e+37
      %v935 = vand.u32 %v500, 2147483648
      %v936 = vor.u32 1.1754944e-38, %v935
      %v937 = vsel %vm934, %v936, %v932
      %v938 = vmul.f32 1.0, %v937
      %v939 = vrcp.pop %v501
      %v940 = vmul.f32 %v501, %v939
      %v941 = vsub.f32 1.0, %v940
      %v942 = vmul.f32 %v939, %v941
      %v943 = vadd.f32 %v939, %v942
      %vm944 = vweird.f32 %v501
      %vm945 = vweird.f32 %v939
      %vm946 = vmor %vm944, %vm945
      %v947 = vsel %vm946, %v939, %v943
      %v948 = vand.u32 2147483647, %v501
      %vm949 = vcmp.eq.f32.partialorder %v948, 8.507059e+37
      %v950 = vand.u32 %v501, 2147483648
      %v951 = vor.u32 1.1754944e-38, %v950
      %v952 = vsel %vm949, %v951, %v947
      %v953 = vmul.f32 1.0, %v952
      %v954 = vrcp.pop %v502
      %v955 = vmul.f32 %v502, %v954
      %v956 = vsub.f32 1.0, %v955
      %v957 = vmul.f32 %v954, %v956
      %v958 = vadd.f32 %v954, %v957
      %vm959 = vweird.f32 %v502
      %vm960 = vweird.f32 %v954
      %vm961 = vmor %vm959, %vm960
      %v962 = vsel %vm961, %v954, %v958
      %v963 = vand.u32 2147483647, %v502
      %vm964 = vcmp.eq.f32.partialorder %v963, 8.507059e+37
      %v965 = vand.u32 %v502, 2147483648
      %v966 = vor.u32 1.1754944e-38, %v965
      %v967 = vsel %vm964, %v966, %v962
      %v968 = vmul.f32 1.0, %v967
      %v969 = vrcp.pop %v503
      %v970 = vmul.f32 %v503, %v969
      %v971 = vsub.f32 1.0, %v970
      %v972 = vmul.f32 %v969, %v971
      %v973 = vadd.f32 %v969, %v972
      %vm974 = vweird.f32 %v503
      %vm975 = vweird.f32 %v969
      %vm976 = vmor %vm974, %vm975
      %v977 = vsel %vm976, %v969, %v973
      %v978 = vand.u32 2147483647, %v503
      %vm979 = vcmp.eq.f32.partialorder %v978, 8.507059e+37
      %v980 = vand.u32 %v503, 2147483648
      %v981 = vor.u32 1.1754944e-38, %v980
      %v982 = vsel %vm979, %v981, %v977
      %v983 = vmul.f32 1.0, %v982
      %v984 = vmul.f32 %v344, %v518
      %v985 = vmul.f32 %v345, %v533
      %v986 = vmul.f32 %v346, %v548
      %v987 = vmul.f32 %v347, %v563
      %v988 = vmul.f32 %v348, %v578
      %v989 = vmul.f32 %v349, %v593
      %v990 = vmul.f32 %v350, %v608
      %v991 = vmul.f32 %v351, %v623
      %v992 = vmul.f32 %v352, %v638
      %v993 = vmul.f32 %v353, %v653
      %v994 = vmul.f32 %v354, %v668
      %v995 = vmul.f32 %v355, %v683
      %v996 = vmul.f32 %v356, %v698
      %v997 = vmul.f32 %v357, %v713
      %v998 = vmul.f32 %v358, %v728
      %v999 = vmul.f32 %v359, %v743
      %v1000 = vmul.f32 %v360, %v758
      %v1001 = vmul.f32 %v361, %v773
      %v1002 = vmul.f32 %v362, %v788
      %v1003 = vmul.f32 %v363, %v803
      %v1004 = vmul.f32 %v364, %v818
      %v1005 = vmul.f32 %v365, %v833
      %v1006 = vmul.f32 %v366, %v848
      %v1007 = vmul.f32 %v367, %v863
      %v1008 = vmul.f32 %v368, %v878
      %v1009 = vmul.f32 %v369, %v893
      %v1010 = vmul.f32 %v370, %v908
      %v1011 = vmul.f32 %v371, %v923
      %v1012 = vmul.f32 %v372, %v938
      %v1013 = vmul.f32 %v373, %v953
      %v1014 = vmul.f32 %v374, %v968
      %v1015 = vmul.f32 %v375, %v983
      %v1016 = vld [vmem:[%s266] sm:$0xff]
      %v1017 = vld [vmem:[%s266 + $0x8] sm:$0xff]
      %v1018 = vld [vmem:[%s266 + $0x10] sm:$0xff]
      %v1019 = vld [vmem:[%s266 + $0x18] sm:$0xff]
      %v1020 = vld [vmem:[%s266 + $0x20] sm:$0xff]
      %v1021 = vld [vmem:[%s266 + $0x28] sm:$0xff]
      %v1022 = vld [vmem:[%s266 + $0x30] sm:$0xff]
      %v1023 = vld [vmem:[%s266 + $0x38] sm:$0xff]
      %v1024 = vld [vmem:[%s266 + $0x40] sm:$0xff]
      %v1025 = vld [vmem:[%s266 + $0x48] sm:$0xff]
      %v1026 = vld [vmem:[%s266 + $0x50] sm:$0xff]
      %v1027 = vld [vmem:[%s266 + $0x58] sm:$0xff]
      %v1028 = vld [vmem:[%s266 + $0x60] sm:$0xff]
      %v1029 = vld [vmem:[%s266 + $0x68] sm:$0xff]
      %v1030 = vld [vmem:[%s266 + $0x70] sm:$0xff]
      %v1031 = vld [vmem:[%s266 + $0x78] sm:$0xff]
      %v1032 = vld [vmem:[%s266 + $0x80] sm:$0xff]
      %v1033 = vld [vmem:[%s266 + $0x88] sm:$0xff]
      %v1034 = vld [vmem:[%s266 + $0x90] sm:$0xff]
      %v1035 = vld [vmem:[%s266 + $0x98] sm:$0xff]
      %v1036 = vld [vmem:[%s266 + $0xa0] sm:$0xff]
      %v1037 = vld [vmem:[%s266 + $0xa8] sm:$0xff]
      %v1038 = vld [vmem:[%s266 + $0xb0] sm:$0xff]
      %v1039 = vld [vmem:[%s266 + $0xb8] sm:$0xff]
      %v1040 = vld [vmem:[%s266 + $0xc0] sm:$0xff]
      %v1041 = vld [vmem:[%s266 + $0xc8] sm:$0xff]
      %v1042 = vld [vmem:[%s266 + $0xd0] sm:$0xff]
      %v1043 = vld [vmem:[%s266 + $0xd8] sm:$0xff]
      %v1044 = vld [vmem:[%s266 + $0xe0] sm:$0xff]
      %v1045 = vld [vmem:[%s266 + $0xe8] sm:$0xff]
      %v1046 = vld [vmem:[%s266 + $0xf0] sm:$0xff]
      %v1047 = vld [vmem:[%s266 + $0xf8] sm:$0xff]
      %v1048 = vld [vmem:[%s4] sm:$0xf]
      %v1049 = vld [vmem:[%s5] sm:$0x1]
      %v1051 = vperm.slane %v1049, 0
      %vm1053 = vcmask 31744
      %v1055 = vsel %vm1053, %v1016, 0
      %v1058 = vsel %vm1053, %v1017, 0
      %v1061 = vsel %vm1053, %v1018, 0
      %v1064 = vsel %vm1053, %v1019, 0
      %v1067 = vsel %vm1053, %v1020, 0
      %v1070 = vsel %vm1053, %v1021, 0
      %v1073 = vsel %vm1053, %v1022, 0
      %v1076 = vsel %vm1053, %v1023, 0
      %v1079 = vsel %vm1053, %v1024, 0
      %v1082 = vsel %vm1053, %v1025, 0
      %v1085 = vsel %vm1053, %v1026, 0
      %v1088 = vsel %vm1053, %v1027, 0
      %v1091 = vsel %vm1053, %v1028, 0
      %v1094 = vsel %vm1053, %v1029, 0
      %v1097 = vsel %vm1053, %v1030, 0
      %v1100 = vsel %vm1053, %v1031, 0
      %v1103 = vsel %vm1053, %v1032, 0
      %v1106 = vsel %vm1053, %v1033, 0
      %v1109 = vsel %vm1053, %v1034, 0
      %v1112 = vsel %vm1053, %v1035, 0
      %v1115 = vsel %vm1053, %v1036, 0
      %v1118 = vsel %vm1053, %v1037, 0
      %v1121 = vsel %vm1053, %v1038, 0
      %v1124 = vsel %vm1053, %v1039, 0
      %v1127 = vsel %vm1053, %v1040, 0
      %v1130 = vsel %vm1053, %v1041, 0
      %v1133 = vsel %vm1053, %v1042, 0
      %v1136 = vsel %vm1053, %v1043, 0
      %v1139 = vsel %vm1053, %v1044, 0
      %v1142 = vsel %vm1053, %v1045, 0
      %v1145 = vsel %vm1053, %v1046, 0
      %v1148 = vsel %vm1053, %v1047, 0
      %vm1150 = vcmask 1043456
      %v1152 = vsel %vm1150, %v1048, 0
      %1154 = vmatpush.msra.mxu0 0.0
      %1155 = vmatpush.msra.mxu0 0.0
      %1156 = vmatpush.msra.mxu0 0.0
      %1157 = vmatpush.msra.mxu0 0.0
      %1158 = vmatpush.msra.mxu0 0.0
      %1159 = vmatpush.msra.mxu0 0.0
      %1160 = vmatpush.msra.mxu0 0.0
      %1161 = vmatpush.msra.mxu0 0.0
      %1162 = vmatpush.msra.mxu0 0.0
      %1163 = vmatpush.msra.mxu0 0.0
      %1164 = vmatpush.msra.mxu0 0.0
      %1165 = vmatpush.msra.mxu0 0.0
      %1166 = vmatpush.msra.mxu0 0.0
      %1167 = vmatpush.msra.mxu0 0.0
      %1168 = vmatpush.msra.mxu0 0.0
      %1169 = vmatpush.msra.mxu0 %v1152
      %1170 = vmatmul.f32.gmra.mxu0 %v1055
      %v1171 = vpop.f32.mrf.mxu0
      %v1172 = vadd.f32 %v1051, %v1171
      %1173 = vmatmul.f32.gmra.mxu0 %v1058
      %v1174 = vpop.f32.mrf.mxu0
      %v1175 = vadd.f32 %v1051, %v1174
      %1176 = vmatmul.f32.gmra.mxu0 %v1061
      %v1177 = vpop.f32.mrf.mxu0
      %v1178 = vadd.f32 %v1051, %v1177
      %1179 = vmatmul.f32.gmra.mxu0 %v1064
      %v1180 = vpop.f32.mrf.mxu0
      %v1181 = vadd.f32 %v1051, %v1180
      %1182 = vmatmul.f32.gmra.mxu0 %v1067
      %v1183 = vpop.f32.mrf.mxu0
      %v1184 = vadd.f32 %v1051, %v1183
      %1185 = vmatmul.f32.gmra.mxu0 %v1070
      %v1186 = vpop.f32.mrf.mxu0
      %v1187 = vadd.f32 %v1051, %v1186
      %1188 = vmatmul.f32.gmra.mxu0 %v1073
      %v1189 = vpop.f32.mrf.mxu0
      %v1190 = vadd.f32 %v1051, %v1189
      %1191 = vmatmul.f32.gmra.mxu0 %v1076
      %v1192 = vpop.f32.mrf.mxu0
      %v1193 = vadd.f32 %v1051, %v1192
      %1194 = vmatmul.f32.gmra.mxu0 %v1079
      %v1195 = vpop.f32.mrf.mxu0
      %v1196 = vadd.f32 %v1051, %v1195
      %1197 = vmatmul.f32.gmra.mxu0 %v1082
      %v1198 = vpop.f32.mrf.mxu0
      %v1199 = vadd.f32 %v1051, %v1198
      %1200 = vmatmul.f32.gmra.mxu0 %v1085
      %v1201 = vpop.f32.mrf.mxu0
      %v1202 = vadd.f32 %v1051, %v1201
      %1203 = vmatmul.f32.gmra.mxu0 %v1088
      %v1204 = vpop.f32.mrf.mxu0
      %v1205 = vadd.f32 %v1051, %v1204
      %1206 = vmatmul.f32.gmra.mxu0 %v1091
      %v1207 = vpop.f32.mrf.mxu0
      %v1208 = vadd.f32 %v1051, %v1207
      %1209 = vmatmul.f32.gmra.mxu0 %v1094
      %v1210 = vpop.f32.mrf.mxu0
      %v1211 = vadd.f32 %v1051, %v1210
      %1212 = vmatmul.f32.gmra.mxu0 %v1097
      %v1213 = vpop.f32.mrf.mxu0
      %v1214 = vadd.f32 %v1051, %v1213
      %1215 = vmatmul.f32.gmra.mxu0 %v1100
      %v1216 = vpop.f32.mrf.mxu0
      %v1217 = vadd.f32 %v1051, %v1216
      %1218 = vmatmul.f32.gmra.mxu0 %v1103
      %v1219 = vpop.f32.mrf.mxu0
      %v1220 = vadd.f32 %v1051, %v1219
      %1221 = vmatmul.f32.gmra.mxu0 %v1106
      %v1222 = vpop.f32.mrf.mxu0
      %v1223 = vadd.f32 %v1051, %v1222
      %1224 = vmatmul.f32.gmra.mxu0 %v1109
      %v1225 = vpop.f32.mrf.mxu0
      %v1226 = vadd.f32 %v1051, %v1225
      %1227 = vmatmul.f32.gmra.mxu0 %v1112
      %v1228 = vpop.f32.mrf.mxu0
      %v1229 = vadd.f32 %v1051, %v1228
      %1230 = vmatmul.f32.gmra.mxu0 %v1115
      %v1231 = vpop.f32.mrf.mxu0
      %v1232 = vadd.f32 %v1051, %v1231
      %1233 = vmatmul.f32.gmra.mxu0 %v1118
      %v1234 = vpop.f32.mrf.mxu0
      %v1235 = vadd.f32 %v1051, %v1234
      %1236 = vmatmul.f32.gmra.mxu0 %v1121
      %v1237 = vpop.f32.mrf.mxu0
      %v1238 = vadd.f32 %v1051, %v1237
      %1239 = vmatmul.f32.gmra.mxu0 %v1124
      %v1240 = vpop.f32.mrf.mxu0
      %v1241 = vadd.f32 %v1051, %v1240
      %1242 = vmatmul.f32.gmra.mxu0 %v1127
      %v1243 = vpop.f32.mrf.mxu0
      %v1244 = vadd.f32 %v1051, %v1243
      %1245 = vmatmul.f32.gmra.mxu0 %v1130
      %v1246 = vpop.f32.mrf.mxu0
      %v1247 = vadd.f32 %v1051, %v1246
      %1248 = vmatmul.f32.gmra.mxu0 %v1133
      %v1249 = vpop.f32.mrf.mxu0
      %v1250 = vadd.f32 %v1051, %v1249
      %1251 = vmatmul.f32.gmra.mxu0 %v1136
      %v1252 = vpop.f32.mrf.mxu0
      %v1253 = vadd.f32 %v1051, %v1252
      %1254 = vmatmul.f32.gmra.mxu0 %v1139
      %v1255 = vpop.f32.mrf.mxu0
      %v1256 = vadd.f32 %v1051, %v1255
      %1257 = vmatmul.f32.gmra.mxu0 %v1142
      %v1258 = vpop.f32.mrf.mxu0
      %v1259 = vadd.f32 %v1051, %v1258
      %1260 = vmatmul.f32.gmra.mxu0 %v1145
      %v1261 = vpop.f32.mrf.mxu0
      %v1262 = vadd.f32 %v1051, %v1261
      %1263 = vmatmul.f32.gmra.mxu0 %v1148
      %v1264 = vpop.f32.mrf.mxu0
      %v1265 = vadd.f32 %v1051, %v1264
      %1266 = vdwg.mxu0
      %v1267 = vadd.f32 %v984, %v1172
      %v1268 = vadd.f32 %v985, %v1175
      %v1269 = vadd.f32 %v986, %v1178
      %v1270 = vadd.f32 %v987, %v1181
      %v1271 = vadd.f32 %v988, %v1184
      %v1272 = vadd.f32 %v989, %v1187
      %v1273 = vadd.f32 %v990, %v1190
      %v1274 = vadd.f32 %v991, %v1193
      %v1275 = vadd.f32 %v992, %v1196
      %v1276 = vadd.f32 %v993, %v1199
      %v1277 = vadd.f32 %v994, %v1202
      %v1278 = vadd.f32 %v995, %v1205
      %v1279 = vadd.f32 %v996, %v1208
      %v1280 = vadd.f32 %v997, %v1211
      %v1281 = vadd.f32 %v998, %v1214
      %v1282 = vadd.f32 %v999, %v1217
      %v1283 = vadd.f32 %v1000, %v1220
      %v1284 = vadd.f32 %v1001, %v1223
      %v1285 = vadd.f32 %v1002, %v1226
      %v1286 = vadd.f32 %v1003, %v1229
      %v1287 = vadd.f32 %v1004, %v1232
      %v1288 = vadd.f32 %v1005, %v1235
      %v1289 = vadd.f32 %v1006, %v1238
      %v1290 = vadd.f32 %v1007, %v1241
      %v1291 = vadd.f32 %v1008, %v1244
      %v1292 = vadd.f32 %v1009, %v1247
      %v1293 = vadd.f32 %v1010, %v1250
      %v1294 = vadd.f32 %v1011, %v1253
      %v1295 = vadd.f32 %v1012, %v1256
      %v1296 = vadd.f32 %v1013, %v1259
      %v1297 = vadd.f32 %v1014, %v1262
      %v1298 = vadd.f32 %v1015, %v1265
      %vm1299 = vcmask 64512
      %1300 = vst.msk [vmem:[%s271] sm:$0xff] %vm1299, %v1267
      %1301 = vst.msk [vmem:[%s271 + $0x8] sm:$0xff] %vm1299, %v1268
      %1302 = vst.msk [vmem:[%s271 + $0x10] sm:$0xff] %vm1299, %v1269
      %1303 = vst.msk [vmem:[%s271 + $0x18] sm:$0xff] %vm1299, %v1270
      %1304 = vst.msk [vmem:[%s271 + $0x20] sm:$0xff] %vm1299, %v1271
      %1305 = vst.msk [vmem:[%s271 + $0x28] sm:$0xff] %vm1299, %v1272
      %1306 = vst.msk [vmem:[%s271 + $0x30] sm:$0xff] %vm1299, %v1273
      %1307 = vst.msk [vmem:[%s271 + $0x38] sm:$0xff] %vm1299, %v1274
      %1308 = vst.msk [vmem:[%s271 + $0x40] sm:$0xff] %vm1299, %v1275
      %1309 = vst.msk [vmem:[%s271 + $0x48] sm:$0xff] %vm1299, %v1276
      %1310 = vst.msk [vmem:[%s271 + $0x50] sm:$0xff] %vm1299, %v1277
      %1311 = vst.msk [vmem:[%s271 + $0x58] sm:$0xff] %vm1299, %v1278
      %1312 = vst.msk [vmem:[%s271 + $0x60] sm:$0xff] %vm1299, %v1279
      %1313 = vst.msk [vmem:[%s271 + $0x68] sm:$0xff] %vm1299, %v1280
      %1314 = vst.msk [vmem:[%s271 + $0x70] sm:$0xff] %vm1299, %v1281
      %1315 = vst.msk [vmem:[%s271 + $0x78] sm:$0xff] %vm1299, %v1282
      %1316 = vst.msk [vmem:[%s271 + $0x80] sm:$0xff] %vm1299, %v1283
      %1317 = vst.msk [vmem:[%s271 + $0x88] sm:$0xff] %vm1299, %v1284
      %1318 = vst.msk [vmem:[%s271 + $0x90] sm:$0xff] %vm1299, %v1285
      %1319 = vst.msk [vmem:[%s271 + $0x98] sm:$0xff] %vm1299, %v1286
      %1320 = vst.msk [vmem:[%s271 + $0xa0] sm:$0xff] %vm1299, %v1287
      %1321 = vst.msk [vmem:[%s271 + $0xa8] sm:$0xff] %vm1299, %v1288
      %1322 = vst.msk [vmem:[%s271 + $0xb0] sm:$0xff] %vm1299, %v1289
      %1323 = vst.msk [vmem:[%s271 + $0xb8] sm:$0xff] %vm1299, %v1290
      %1324 = vst.msk [vmem:[%s271 + $0xc0] sm:$0xff] %vm1299, %v1291
      %1325 = vst.msk [vmem:[%s271 + $0xc8] sm:$0xff] %vm1299, %v1292
      %1326 = vst.msk [vmem:[%s271 + $0xd0] sm:$0xff] %vm1299, %v1293
      %1327 = vst.msk [vmem:[%s271 + $0xd8] sm:$0xff] %vm1299, %v1294
      %1328 = vst.msk [vmem:[%s271 + $0xe0] sm:$0xff] %vm1299, %v1295
      %1329 = vst.msk [vmem:[%s271 + $0xe8] sm:$0xff] %vm1299, %v1296
      %1330 = vst.msk [vmem:[%s271 + $0xf0] sm:$0xff] %vm1299, %v1297
      %1331 = vst.msk [vmem:[%s271 + $0xf8] sm:$0xff] %vm1299, %v1298
      %p1332 = scmp.lt.s32.totalorder %s17, 1
      %s1333 = scalar_select %p1332, %s17, 1
      %s1334 = smul.addr %s1333, 32
      %s1335 = smul.addr %s1334, 8
      %s1336 = scalar_lea.vmem %s6, %s1335
      // Predicated region
      $region45: #{down_layer_forward.5} parent=43 // pred_check
        %p1337 = pneg %p171
      $region46: #{down_layer_forward.5} parent=43 // pred_check_branch
        %1339 = sbr.rel (%p1337) target = $region48
      $region47: #{down_layer_forward.5} parent=43 // pred_region
        _
      $region48: #{down_layer_forward.5} parent=43 // pred_fallthru
        _
    $region44: #{down_layer_forward.5} parent=5 // pred_fallthru
      _
    %p1340 = scmp.le.s32.totalorder 2, %s12
    // Predicated region
    $region49: #{down_layer_forward.5} parent=5 // pred_check
      %p1341 = pneg %p1340
    $region50: #{down_layer_forward.5} parent=5 // pred_check_branch
      %1343 = sbr.rel (%p1341) target = $region52
    $region51: #{down_layer_forward.5} parent=5 // pred_region
      %s1344 = ssub.s32 %s12, 2
      // Predicated region
      $region53: #{down_layer_forward.5} parent=51 // pred_check
        %p1345 = pneg %p177
      $region54: #{down_layer_forward.5} parent=51 // pred_check_branch
        %1347 = sbr.rel (%p1345) target = $region56
      $region55: #{down_layer_forward.5} parent=51 // pred_region
        %p1348 = scmp.lt.s32.totalorder %s18, 1
        %s1349 = scalar_select %p1348, %s18, 1
        %s1350 = smul.addr %s1349, 32
        %s1351 = smul.addr %s1350, 8
        %s1352 = scalar_lea.vmem %s6, %s1351
      $region56: #{down_layer_forward.5} parent=51 // pred_fallthru
        _
    $region52: #{down_layer_forward.5} parent=5 // pred_fallthru
      _
  $region6: #{down_layer_forward.5} parent=0 // loop_footer
    %s16 = sadd.s32 1, %s12
  $region7: #{down_layer_forward.5} parent=0 // loop_footer_branch
    %11 = sbr.rel target = $region3
  $region8: #{down_layer_forward.5} parent=0 // loop_exit
    _

// kernel: down_layer_forward.3
$region0: #{down_layer_forward.3}
  #allocation0 [shape = 'u32[]', space=smem, size = 0x4, offset = 0x4, fixed_abs, tag = 'smem constant byte address 0x4 - core index']
  #allocation1 [shape = 'u32[72,128]{1,0:T(1,128)}', space=vmem, size = 0x9000, scoped, tag = 'internal scratch']
  #allocation2 [shape = 'f32[18,18,4]{2,1,0:T(8,128)}', space=vmem, size = 0x36000, scoped, tag = 'scratch operand']
  %s0 = inlined_call_operand.vmem [shape: f32[2,256,4], index: 0, kind: input, shape index: {}]
  %s1 = inlined_call_operand.vmem [shape: f32[2,32], index: 1, kind: input, shape index: {}]
  %s2 = inlined_call_operand.vmem [shape: f32[32,4], index: 2, kind: input, shape index: {}]
  %s3 = inlined_call_operand.vmem [shape: f32[1,4], index: 3, kind: input, shape index: {}]
  %s4 = inlined_call_operand.vmem [shape: f32[36,8], index: 4, kind: input, shape index: {}]
  %s5 = inlined_call_operand.vmem [shape: f32[1,8], index: 5, kind: input, shape index: {}]
  %s6 = inlined_call_operand.vmem [shape: f32[2,256,8], index: 6, kind: output, shape index: {0}]
  %s7 = inlined_call_operand.vmem [shape: f32[2,2,8], index: 7, kind: output, shape index: {1}]
  %8 = xla_tuple %s6, %s7
  %s9 = sld [smem:[#allocation0]]
  $region65: #{down_layer_forward.3} parent=0
    _
  %s11 = ssub.s32 1, %s9
  %s12 = scalar_select 0, %s11, %s9
  loop: start=0, step=1, limit=4
  $region2: #{down_layer_forward.3} parent=0 // loop_pre_header
    _
  $region3: #{down_layer_forward.3} parent=0 // loop_header
    %s14 = sphi 0, %s18
    %p15 = scmp.ge.s32.totalorder %s14, 4
    %s24 = sphi 0, %s26
    %s27 = sphi 0, %s24
    %s28 = sphi 0, %s27
    %s44 = sphi 0, %s28
    %s48 = sphi 0, %s48
    %s50 = sphi 0, %s48
    %s51 = sphi 0, %s50
    %s65 = sphi 0, %s51
    %s69 = sphi 0, %s69
    %s71 = sphi 0, %s69
    %s72 = sphi 0, %s71
    %s86 = sphi 0, %s72
    %s90 = sphi 0, %s90
    %s92 = sphi 0, %s90
    %s93 = sphi 0, %s92
    %s107 = sphi 0, %s93
    %s111 = sphi 0, %s111
    %s113 = sphi 0, %s111
    %s114 = sphi 0, %s113
    %s128 = sphi 0, %s114
    %s132 = sphi 0, %s132
    %s134 = sphi 0, %s132
    %s135 = sphi 0, %s134
    %s149 = sphi 0, %s135
    %s155 = sphi 0, %s157
    %s158 = sphi 0, %s155
    %s159 = sphi 0, %s158
    %s175 = sphi 0, %s159
    %s181 = sphi 0, %s183
    %s184 = sphi 0, %s181
    %s185 = sphi 0, %s184
    %s201 = sphi 0, %s185
  $region4: #{down_layer_forward.3} parent=0 // loop_header_branch
    %17 = sbr.rel (%p15) target = $region8
  $region5: #{down_layer_forward.3} parent=0 // loop_body
    %s19 = ssub.s32 %s14, 1
    %s20 = ssub.s32 %s14, 2
    %s21 = sadd.s32 %s14, 1
    %s22 = ssub.s32 %s14, %s21
    %p23 = scmp.eq.s32.totalorder %s22, 0
    %s25 = sadd.s32 %s24, 1
    %s26 = scalar_select %p23, %s24, %s25
    %p29 = pneg %p23
    %p30 = scmp.eq.s32.totalorder %s14, 1
    %p31 = por %p29, %p30
    %p32 = scmp.ne.s32.totalorder %s24, %s27
    %p33 = scmp.eq.s32.totalorder %s14, 0
    %p34 = por %p32, %p33
    %p35 = scmp.ne.s32.totalorder %s24, %s27
    %p36 = scmp.eq.s32.totalorder %s19, 1
    %p37 = por %p35, %p36
    %p38 = scmp.ne.s32.totalorder %s27, %s28
    %p39 = scmp.eq.s32.totalorder %s19, 0
    %p40 = por %p38, %p39
    %p41 = scmp.ne.s32.totalorder %s27, %s28
    %p42 = scmp.eq.s32.totalorder %s20, 1
    %p43 = por %p41, %p42
    %p45 = scmp.ne.s32.totalorder %s28, %s44
    %p46 = scmp.eq.s32.totalorder %s20, 0
    %p47 = por %p45, %p46
    %s49 = sadd.s32 %s48, 1
    %p52 = scmp.eq.s32.totalorder %s14, 1
    %p53 = scmp.ne.s32.totalorder %s48, %s50
    %p54 = scmp.eq.s32.totalorder %s14, 0
    %p55 = por %p53, %p54
    %p56 = scmp.ne.s32.totalorder %s48, %s50
    %p57 = scmp.eq.s32.totalorder %s19, 1
    %p58 = por %p56, %p57
    %p59 = scmp.ne.s32.totalorder %s50, %s51
    %p60 = scmp.eq.s32.totalorder %s19, 0
    %p61 = por %p59, %p60
    %p62 = scmp.ne.s32.totalorder %s50, %s51
    %p63 = scmp.eq.s32.totalorder %s20, 1
    %p64 = por %p62, %p63
    %p66 = scmp.ne.s32.totalorder %s51, %s65
    %p67 = scmp.eq.s32.totalorder %s20, 0
    %p68 = por %p66, %p67
    %s70 = sadd.s32 %s69, 1
    %p73 = scmp.eq.s32.totalorder %s14, 1
    %p74 = scmp.ne.s32.totalorder %s69, %s71
    %p75 = scmp.eq.s32.totalorder %s14, 0
    %p76 = por %p74, %p75
    %p77 = scmp.ne.s32.totalorder %s69, %s71
    %p78 = scmp.eq.s32.totalorder %s19, 1
    %p79 = por %p77, %p78
    %p80 = scmp.ne.s32.totalorder %s71, %s72
    %p81 = scmp.eq.s32.totalorder %s19, 0
    %p82 = por %p80, %p81
    %p83 = scmp.ne.s32.totalorder %s71, %s72
    %p84 = scmp.eq.s32.totalorder %s20, 1
    %p85 = por %p83, %p84
    %p87 = scmp.ne.s32.totalorder %s72, %s86
    %p88 = scmp.eq.s32.totalorder %s20, 0
    %p89 = por %p87, %p88
    %s91 = sadd.s32 %s90, 1
    %p94 = scmp.eq.s32.totalorder %s14, 1
    %p95 = scmp.ne.s32.totalorder %s90, %s92
    %p96 = scmp.eq.s32.totalorder %s14, 0
    %p97 = por %p95, %p96
    %p98 = scmp.ne.s32.totalorder %s90, %s92
    %p99 = scmp.eq.s32.totalorder %s19, 1
    %p100 = por %p98, %p99
    %p101 = scmp.ne.s32.totalorder %s92, %s93
    %p102 = scmp.eq.s32.totalorder %s19, 0
    %p103 = por %p101, %p102
    %p104 = scmp.ne.s32.totalorder %s92, %s93
    %p105 = scmp.eq.s32.totalorder %s20, 1
    %p106 = por %p104, %p105
    %p108 = scmp.ne.s32.totalorder %s93, %s107
    %p109 = scmp.eq.s32.totalorder %s20, 0
    %p110 = por %p108, %p109
    %s112 = sadd.s32 %s111, 1
    %p115 = scmp.eq.s32.totalorder %s14, 1
    %p116 = scmp.ne.s32.totalorder %s111, %s113
    %p117 = scmp.eq.s32.totalorder %s14, 0
    %p118 = por %p116, %p117
    %p119 = scmp.ne.s32.totalorder %s111, %s113
    %p120 = scmp.eq.s32.totalorder %s19, 1
    %p121 = por %p119, %p120
    %p122 = scmp.ne.s32.totalorder %s113, %s114
    %p123 = scmp.eq.s32.totalorder %s19, 0
    %p124 = por %p122, %p123
    %p125 = scmp.ne.s32.totalorder %s113, %s114
    %p126 = scmp.eq.s32.totalorder %s20, 1
    %p127 = por %p125, %p126
    %p129 = scmp.ne.s32.totalorder %s114, %s128
    %p130 = scmp.eq.s32.totalorder %s20, 0
    %p131 = por %p129, %p130
    %s133 = sadd.s32 %s132, 1
    %p136 = scmp.eq.s32.totalorder %s14, 1
    %p137 = scmp.ne.s32.totalorder %s132, %s134
    %p138 = scmp.eq.s32.totalorder %s14, 0
    %p139 = por %p137, %p138
    %p140 = scmp.ne.s32.totalorder %s132, %s134
    %p141 = scmp.eq.s32.totalorder %s19, 1
    %p142 = por %p140, %p141
    %p143 = scmp.ne.s32.totalorder %s134, %s135
    %p144 = scmp.eq.s32.totalorder %s19, 0
    %p145 = por %p143, %p144
    %p146 = scmp.ne.s32.totalorder %s134, %s135
    %p147 = scmp.eq.s32.totalorder %s20, 1
    %p148 = por %p146, %p147
    %p150 = scmp.ne.s32.totalorder %s135, %s149
    %p151 = scmp.eq.s32.totalorder %s20, 0
    %p152 = por %p150, %p151
    %s153 = ssub.s32 %s14, %s21
    %p154 = scmp.eq.s32.totalorder %s153, 0
    %s156 = sadd.s32 %s155, 1
    %s157 = scalar_select %p154, %s155, %s156
    %p160 = pneg %p154
    %p161 = scmp.eq.s32.totalorder %s14, 1
    %p162 = por %p160, %p161
    %p163 = scmp.ne.s32.totalorder %s155, %s158
    %p164 = scmp.eq.s32.totalorder %s14, 0
    %p165 = por %p163, %p164
    %p166 = scmp.ne.s32.totalorder %s155, %s158
    %p167 = scmp.eq.s32.totalorder %s19, 1
    %p168 = por %p166, %p167
    %p169 = scmp.ne.s32.totalorder %s158, %s159
    %p170 = scmp.eq.s32.totalorder %s19, 0
    %p171 = por %p169, %p170
    %p172 = scmp.ne.s32.totalorder %s158, %s159
    %p173 = scmp.eq.s32.totalorder %s20, 1
    %p174 = por %p172, %p173
    %p176 = scmp.ne.s32.totalorder %s159, %s175
    %p177 = scmp.eq.s32.totalorder %s20, 0
    %p178 = por %p176, %p177
    %s179 = ssub.s32 %s14, %s21
    %p180 = scmp.eq.s32.totalorder %s179, 0
    %s182 = sadd.s32 %s181, 1
    %s183 = scalar_select %p180, %s181, %s182
    %p186 = pneg %p180
    %p187 = scmp.eq.s32.totalorder %s14, 1
    %p188 = por %p186, %p187
    %p189 = scmp.ne.s32.totalorder %s181, %s184
    %p190 = scmp.eq.s32.totalorder %s14, 0
    %p191 = por %p189, %p190
    %p192 = scmp.ne.s32.totalorder %s181, %s184
    %p193 = scmp.eq.s32.totalorder %s19, 1
    %p194 = por %p192, %p193
    %p195 = scmp.ne.s32.totalorder %s184, %s185
    %p196 = scmp.eq.s32.totalorder %s19, 0
    %p197 = por %p195, %p196
    %p198 = scmp.ne.s32.totalorder %s184, %s185
    %p199 = scmp.eq.s32.totalorder %s20, 1
    %p200 = por %p198, %p199
    %p202 = scmp.ne.s32.totalorder %s185, %s201
    %p203 = scmp.eq.s32.totalorder %s20, 0
    %p204 = por %p202, %p203
    %p205 = scmp.le.s32.totalorder 1, %s14
    %p206 = scmp.lt.s32.totalorder %s14, 3
    %p207 = pnand %p205, %p206
    %p208 = pneg %p207
    // Predicated region
    $region9: #{down_layer_forward.3} parent=5 // pred_check
      _
    $region10: #{down_layer_forward.3} parent=5 // pred_check_branch
      %210 = sbr.rel (%p207) target = $region12
    $region11: #{down_layer_forward.3} parent=5 // pred_region
      %s211 = ssub.s32 %s14, 1
      // Predicated region
      $region13: #{down_layer_forward.3} parent=11 // pred_check
        %p212 = pneg %p61
      $region14: #{down_layer_forward.3} parent=11 // pred_check_branch
        %214 = sbr.rel (%p212) target = $region16
      $region15: #{down_layer_forward.3} parent=11 // pred_region
        _
      $region16: #{down_layer_forward.3} parent=11 // pred_fallthru
        _
      // Predicated region
      $region17: #{down_layer_forward.3} parent=11 // pred_check
        %p215 = pneg %p82
      $region18: #{down_layer_forward.3} parent=11 // pred_check_branch
        %217 = sbr.rel (%p215) target = $region20
      $region19: #{down_layer_forward.3} parent=11 // pred_region
        _
      $region20: #{down_layer_forward.3} parent=11 // pred_fallthru
        _
      // Predicated region
      $region21: #{down_layer_forward.3} parent=11 // pred_check
        %p218 = pneg %p103
      $region22: #{down_layer_forward.3} parent=11 // pred_check_branch
        %220 = sbr.rel (%p218) target = $region24
      $region23: #{down_layer_forward.3} parent=11 // pred_region
        _
      $region24: #{down_layer_forward.3} parent=11 // pred_fallthru
        _
      // Predicated region
      $region25: #{down_layer_forward.3} parent=11 // pred_check
        %p221 = pneg %p124
      $region26: #{down_layer_forward.3} parent=11 // pred_check_branch
        %223 = sbr.rel (%p221) target = $region28
      $region27: #{down_layer_forward.3} parent=11 // pred_region
        _
      $region28: #{down_layer_forward.3} parent=11 // pred_fallthru
        _
      // Predicated region
      $region29: #{down_layer_forward.3} parent=11 // pred_check
        %p224 = pneg %p145
      $region30: #{down_layer_forward.3} parent=11 // pred_check_branch
        %226 = sbr.rel (%p224) target = $region32
      $region31: #{down_layer_forward.3} parent=11 // pred_region
        _
      $region32: #{down_layer_forward.3} parent=11 // pred_fallthru
        _
    $region12: #{down_layer_forward.3} parent=5 // pred_fallthru
      _
    %p227 = scmp.lt.s32.totalorder %s14, 2
    // Predicated region
    $region33: #{down_layer_forward.3} parent=5 // pred_check
      %p228 = pneg %p227
    $region34: #{down_layer_forward.3} parent=5 // pred_check_branch
      %230 = sbr.rel (%p228) target = $region36
    $region35: #{down_layer_forward.3} parent=5 // pred_region
      // Predicated region
      $region37: #{down_layer_forward.3} parent=35 // pred_check
        %p231 = pneg %p34
      $region38: #{down_layer_forward.3} parent=35 // pred_check_branch
        %233 = sbr.rel (%p231) target = $region40
      $region39: #{down_layer_forward.3} parent=35 // pred_region
        %p234 = scmp.lt.s32.totalorder %s14, 1
        %s235 = scalar_select %p234, %s14, 1
        %s236 = smul.addr %s235, 32
        %s237 = smul.addr %s236, 8
        %s238 = scalar_lea.vmem %s0, %s237
      $region40: #{down_layer_forward.3} parent=35 // pred_fallthru
        _
    $region36: #{down_layer_forward.3} parent=5 // pred_fallthru
      _
    %p239 = scmp.le.s32.totalorder 1, %s14
    %p240 = scmp.lt.s32.totalorder %s14, 3
    %p241 = pnand %p239, %p240
    %p242 = pneg %p241
    // Predicated region
    $region41: #{down_layer_forward.3} parent=5 // pred_check
      _
    $region42: #{down_layer_forward.3} parent=5 // pred_check_branch
      %244 = sbr.rel (%p241) target = $region44
    $region43: #{down_layer_forward.3} parent=5 // pred_region
      %s245 = ssub.s32 %s14, 1
      %p246 = scmp.lt.s32.totalorder %s19, 1
      %s247 = scalar_select %p246, %s19, 1
      %s248 = smul.addr %s247, 32
      %s249 = smul.addr %s248, 8
      %s250 = scalar_lea.vmem %s0, %s249
      %p251 = pneg %p40
      %p252 = pneg %p37
      %p253 = pneg %p61
      %p254 = pneg %p58
      %p255 = pneg %p82
      %p256 = pneg %p79
      %p257 = pneg %p103
      %p258 = pneg %p100
      %p259 = pneg %p124
      %p260 = pneg %p121
      %p261 = pneg %p145
      %p262 = pneg %p142
      %p263 = pneg %p171
      %p264 = pneg %p168
      %p265 = scmp.lt.s32.totalorder %s19, 1
      %s266 = scalar_select %p265, %s19, 1
      %s267 = smul.addr %s266, 32
      %s268 = smul.addr %s267, 8
      %s269 = scalar_lea.vmem %s6, %s268
      %p270 = pneg %p197
      %p271 = pneg %p194
      %p272 = scmp.lt.s32.totalorder %s19, 1
      %s273 = scalar_select %p272, %s19, 1
      %s274 = smul.addr %s273, 2
      %s275 = scalar_lea.vmem %s7, %s274
      %p276 = scmp.lt.s32.totalorder %s19, 1
      %s277 = scalar_select %p276, %s19, 1
      %s278 = smul.addr %s277, 32
      %s279 = smul.addr %s278, 8
      %s280 = scalar_lea.vmem %s0, %s279
      %p281 = scmp.lt.s32.totalorder %s19, 1
      %s282 = scalar_select %p281, %s19, 1
      %s283 = smul.addr %s282, 32
      %s284 = smul.addr %s283, 8
      %s285 = scalar_lea.vmem %s6, %s284
      %p286 = scmp.lt.s32.totalorder %s19, 1
      %s287 = scalar_select %p286, %s19, 1
      %s288 = smul.addr %s287, 2
      %s289 = scalar_lea.vmem %s7, %s288
      %s290 = scalar_lea.vmem %s1, %s19
      %v291 = vld [vmem:[%s290] sm:$0x1]
      %v292 = vld [vmem:[%s2] sm:$0xff]
      %v293 = vld [vmem:[%s2 + $0x8] sm:$0xff]
      %v294 = vld [vmem:[%s2 + $0x10] sm:$0xff]
      %v295 = vld [vmem:[%s2 + $0x18] sm:$0xff]
      %v296 = vld [vmem:[%s3] sm:$0x1]
      %vm297 = vcmask 261120
      %v299 = vsel %vm297, %v291, 0
      %301 = vmatpush.msra.mxu0 0.0
      %302 = vmatpush.msra.mxu0 0.0
      %303 = vmatpush.msra.mxu0 0.0
      %304 = vmatpush.msra.mxu0 0.0
      %305 = vmatpush.msra.mxu0 0.0
      %306 = vmatpush.msra.mxu0 0.0
      %307 = vmatpush.msra.mxu0 0.0
      %308 = vmatpush.msra.mxu0 0.0
      %309 = vmatpush.msra.mxu0 0.0
      %310 = vmatpush.msra.mxu0 0.0
      %311 = vmatpush.msra.mxu0 0.0
      %312 = vmatpush.msra.mxu0 0.0
      %313 = vmatpush.msra.mxu0 %v295
      %314 = vmatpush.msra.mxu0 %v294
      %315 = vmatpush.msra.mxu0 %v293
      %316 = vmatpush.msra.mxu0 %v292
      %317 = vmatmul.f32.gmra.mxu0 %v299
      %v318 = vpop.f32.mrf.mxu0
      %v319 = vadd.f32 %v296, %v318
      %320 = vdwg.mxu0
      %v321 = vld [vmem:[%s280] sm:$0xff]
      %v322 = vld [vmem:[%s280 + $0x8] sm:$0xff]
      %v323 = vld [vmem:[%s280 + $0x10] sm:$0xff]
      %v324 = vld [vmem:[%s280 + $0x18] sm:$0xff]
      %v325 = vld [vmem:[%s280 + $0x20] sm:$0xff]
      %v326 = vld [vmem:[%s280 + $0x28] sm:$0xff]
      %v327 = vld [vmem:[%s280 + $0x30] sm:$0xff]
      %v328 = vld [vmem:[%s280 + $0x38] sm:$0xff]
      %v329 = vld [vmem:[%s280 + $0x40] sm:$0xff]
      %v330 = vld [vmem:[%s280 + $0x48] sm:$0xff]
      %v331 = vld [vmem:[%s280 + $0x50] sm:$0xff]
      %v332 = vld [vmem:[%s280 + $0x58] sm:$0xff]
      %v333 = vld [vmem:[%s280 + $0x60] sm:$0xff]
      %v334 = vld [vmem:[%s280 + $0x68] sm:$0xff]
      %v335 = vld [vmem:[%s280 + $0x70] sm:$0xff]
      %v336 = vld [vmem:[%s280 + $0x78] sm:$0xff]
      %v337 = vld [vmem:[%s280 + $0x80] sm:$0xff]
      %v338 = vld [vmem:[%s280 + $0x88] sm:$0xff]
      %v339 = vld [vmem:[%s280 + $0x90] sm:$0xff]
      %v340 = vld [vmem:[%s280 + $0x98] sm:$0xff]
      %v341 = vld [vmem:[%s280 + $0xa0] sm:$0xff]
      %v342 = vld [vmem:[%s280 + $0xa8] sm:$0xff]
      %v343 = vld [vmem:[%s280 + $0xb0] sm:$0xff]
      %v344 = vld [vmem:[%s280 + $0xb8] sm:$0xff]
      %v345 = vld [vmem:[%s280 + $0xc0] sm:$0xff]
      %v346 = vld [vmem:[%s280 + $0xc8] sm:$0xff]
      %v347 = vld [vmem:[%s280 + $0xd0] sm:$0xff]
      %v348 = vld [vmem:[%s280 + $0xd8] sm:$0xff]
      %v349 = vld [vmem:[%s280 + $0xe0] sm:$0xff]
      %v350 = vld [vmem:[%s280 + $0xe8] sm:$0xff]
      %v351 = vld [vmem:[%s280 + $0xf0] sm:$0xff]
      %v352 = vld [vmem:[%s280 + $0xf8] sm:$0xff]
      %v353 = vperm.slane %v319, 0
      %v354 = vadd.f32 %v321, %v353
      %v355 = vadd.f32 %v322, %v353
      %v356 = vadd.f32 %v323, %v353
      %v357 = vadd.f32 %v324, %v353
      %v358 = vadd.f32 %v325, %v353
      %v359 = vadd.f32 %v326, %v353
      %v360 = vadd.f32 %v327, %v353
      %v361 = vadd.f32 %v328, %v353
      %v362 = vadd.f32 %v329, %v353
      %v363 = vadd.f32 %v330, %v353
      %v364 = vadd.f32 %v331, %v353
      %v365 = vadd.f32 %v332, %v353
      %v366 = vadd.f32 %v333, %v353
      %v367 = vadd.f32 %v334, %v353
      %v368 = vadd.f32 %v335, %v353
      %v369 = vadd.f32 %v336, %v353
      %v370 = vadd.f32 %v337, %v353
      %v371 = vadd.f32 %v338, %v353
      %v372 = vadd.f32 %v339, %v353
      %v373 = vadd.f32 %v340, %v353
      %v374 = vadd.f32 %v341, %v353
      %v375 = vadd.f32 %v342, %v353
      %v376 = vadd.f32 %v343, %v353
      %v377 = vadd.f32 %v344, %v353
      %v378 = vadd.f32 %v345, %v353
      %v379 = vadd.f32 %v346, %v353
      %v380 = vadd.f32 %v347, %v353
      %v381 = vadd.f32 %v348, %v353
      %v382 = vadd.f32 %v349, %v353
      %v383 = vadd.f32 %v350, %v353
      %v384 = vadd.f32 %v351, %v353
      %v385 = vadd.f32 %v352, %v353
      %vm386 = vcmask 31744
      %387 = vst.msk [vmem:[#allocation2] sm:$0xff] %vm386, 0.0
      %388 = vst.msk [vmem:[#allocation2 + $0x8] sm:$0xff] %vm386, 0.0
      %vm389 = vcmask 25600
      %390 = vst.msk [vmem:[#allocation2 + $0x10] sm:$0x3] %vm389, 0.0
      %391 = vst.msk [vmem:[#allocation2 + $0x18] sm:$0xff] %vm386, 0.0
      %392 = vst.msk [vmem:[#allocation2 + $0x20] sm:$0xff] %vm386, 0.0
      %393 = vst.msk [vmem:[#allocation2 + $0x28] sm:$0x3] %vm389, 0.0
      %394 = vst.msk [vmem:[#allocation2 + $0x30] sm:$0xff] %vm386, 0.0
      %395 = vst.msk [vmem:[#allocation2 + $0x38] sm:$0xff] %vm386, 0.0
      %396 = vst.msk [vmem:[#allocation2 + $0x40] sm:$0x3] %vm389, 0.0
      %397 = vst.msk [vmem:[#allocation2 + $0x48] sm:$0xff] %vm386, 0.0
      %398 = vst.msk [vmem:[#allocation2 + $0x50] sm:$0xff] %vm386, 0.0
      %399 = vst.msk [vmem:[#allocation2 + $0x58] sm:$0x3] %vm389, 0.0
      %400 = vst.msk [vmem:[#allocation2 + $0x60] sm:$0xff] %vm386, 0.0
      %401 = vst.msk [vmem:[#allocation2 + $0x68] sm:$0xff] %vm386, 0.0
      %402 = vst.msk [vmem:[#allocation2 + $0x70] sm:$0x3] %vm389, 0.0
      %403 = vst.msk [vmem:[#allocation2 + $0x78] sm:$0xff] %vm386, 0.0
      %404 = vst.msk [vmem:[#allocation2 + $0x80] sm:$0xff] %vm386, 0.0
      %405 = vst.msk [vmem:[#allocation2 + $0x88] sm:$0x3] %vm389, 0.0
      %406 = vst.msk [vmem:[#allocation2 + $0x90] sm:$0xff] %vm386, 0.0
      %407 = vst.msk [vmem:[#allocation2 + $0x98] sm:$0xff] %vm386, 0.0
      %408 = vst.msk [vmem:[#allocation2 + $0xa0] sm:$0x3] %vm389, 0.0
      %409 = vst.msk [vmem:[#allocation2 + $0xa8] sm:$0xff] %vm386, 0.0
      %410 = vst.msk [vmem:[#allocation2 + $0xb0] sm:$0xff] %vm386, 0.0
      %411 = vst.msk [vmem:[#allocation2 + $0xb8] sm:$0x3] %vm389, 0.0
      %412 = vst.msk [vmem:[#allocation2 + $0xc0] sm:$0xff] %vm386, 0.0
      %413 = vst.msk [vmem:[#allocation2 + $0xc8] sm:$0xff] %vm386, 0.0
      %414 = vst.msk [vmem:[#allocation2 + $0xd0] sm:$0x3] %vm389, 0.0
      %415 = vst.msk [vmem:[#allocation2 + $0xd8] sm:$0xff] %vm386, 0.0
      %416 = vst.msk [vmem:[#allocation2 + $0xe0] sm:$0xff] %vm386, 0.0
      %417 = vst.msk [vmem:[#allocation2 + $0xe8] sm:$0x3] %vm389, 0.0
      %418 = vst.msk [vmem:[#allocation2 + $0xf0] sm:$0xff] %vm386, 0.0
      %419 = vst.msk [vmem:[#allocation2 + $0xf8] sm:$0xff] %vm386, 0.0
      %420 = vst.msk [vmem:[#allocation2 + $0x100] sm:$0x3] %vm389, 0.0
      %421 = vst.msk [vmem:[#allocation2 + $0x108] sm:$0xff] %vm386, 0.0
      %422 = vst.msk [vmem:[#allocation2 + $0x110] sm:$0xff] %vm386, 0.0
      %423 = vst.msk [vmem:[#allocation2 + $0x118] sm:$0x3] %vm389, 0.0
      %424 = vst.msk [vmem:[#allocation2 + $0x120] sm:$0xff] %vm386, 0.0
      %425 = vst.msk [vmem:[#allocation2 + $0x128] sm:$0xff] %vm386, 0.0
      %426 = vst.msk [vmem:[#allocation2 + $0x130] sm:$0x3] %vm389, 0.0
      %427 = vst.msk [vmem:[#allocation2 + $0x138] sm:$0xff] %vm386, 0.0
      %428 = vst.msk [vmem:[#allocation2 + $0x140] sm:$0xff] %vm386, 0.0
      %429 = vst.msk [vmem:[#allocation2 + $0x148] sm:$0x3] %vm389, 0.0
      %430 = vst.msk [vmem:[#allocation2 + $0x150] sm:$0xff] %vm386, 0.0
      %431 = vst.msk [vmem:[#allocation2 + $0x158] sm:$0xff] %vm386, 0.0
      %432 = vst.msk [vmem:[#allocation2 + $0x160] sm:$0x3] %vm389, 0.0
      %433 = vst.msk [vmem:[#allocation2 + $0x168] sm:$0xff] %vm386, 0.0
      %434 = vst.msk [vmem:[#allocation2 + $0x170] sm:$0xff] %vm386, 0.0
      %435 = vst.msk [vmem:[#allocation2 + $0x178] sm:$0x3] %vm389, 0.0
      %436 = vst.msk [vmem:[#allocation2 + $0x180] sm:$0xff] %vm386, 0.0
      %437 = vst.msk [vmem:[#allocation2 + $0x188] sm:$0xff] %vm386, 0.0
      %438 = vst.msk [vmem:[#allocation2 + $0x190] sm:$0x3] %vm389, 0.0
      %439 = vst.msk [vmem:[#allocation2 + $0x198] sm:$0xff] %vm386, 0.0
      %440 = vst.msk [vmem:[#allocation2 + $0x1a0] sm:$0xff] %vm386, 0.0
      %441 = vst.msk [vmem:[#allocation2 + $0x1a8] sm:$0x3] %vm389, 0.0
      %s442 = scalar_lea.vmem [#allocation2], 24
      %443 = vst.msk [vmem:[%s442 + $0x1] sm:$0xff] %vm386, %v354
      %444 = vst.msk [vmem:[%s442 + $0x9] sm:$0xff] %vm386, %v355
      %445 = vst.msk [vmem:[%s442 + $0x19] sm:$0xff] %vm386, %v356
      %446 = vst.msk [vmem:[%s442 + $0x21] sm:$0xff] %vm386, %v357
      %447 = vst.msk [vmem:[%s442 + $0x31] sm:$0xff] %vm386, %v358
      %448 = vst.msk [vmem:[%s442 + $0x39] sm:$0xff] %vm386, %v359
      %449 = vst.msk [vmem:[%s442 + $0x49] sm:$0xff] %vm386, %v360
      %450 = vst.msk [vmem:[%s442 + $0x51] sm:$0xff] %vm386, %v361
      %451 = vst.msk [vmem:[%s442 + $0x61] sm:$0xff] %vm386, %v362
      %452 = vst.msk [vmem:[%s442 + $0x69] sm:$0xff] %vm386, %v363
      %453 = vst.msk [vmem:[%s442 + $0x79] sm:$0xff] %vm386, %v364
      %454 = vst.msk [vmem:[%s442 + $0x81] sm:$0xff] %vm386, %v365
      %455 = vst.msk [vmem:[%s442 + $0x91] sm:$0xff] %vm386, %v366
      %456 = vst.msk [vmem:[%s442 + $0x99] sm:$0xff] %vm386, %v367
      %457 = vst.msk [vmem:[%s442 + $0xa9] sm:$0xff] %vm386, %v368
      %458 = vst.msk [vmem:[%s442 + $0xb1] sm:$0xff] %vm386, %v369
      %459 = vst.msk [vmem:[%s442 + $0xc1] sm:$0xff] %vm386, %v370
      %460 = vst.msk [vmem:[%s442 + $0xc9] sm:$0xff] %vm386, %v371
      %461 = vst.msk [vmem:[%s442 + $0xd9] sm:$0xff] %vm386, %v372
      %462 = vst.msk [vmem:[%s442 + $0xe1] sm:$0xff] %vm386, %v373
      %463 = vst.msk [vmem:[%s442 + $0xf1] sm:$0xff] %vm386, %v374
      %464 = vst.msk [vmem:[%s442 + $0xf9] sm:$0xff] %vm386, %v375
      %465 = vst.msk [vmem:[%s442 + $0x109] sm:$0xff] %vm386, %v376
      %466 = vst.msk [vmem:[%s442 + $0x111] sm:$0xff] %vm386, %v377
      %467 = vst.msk [vmem:[%s442 + $0x121] sm:$0xff] %vm386, %v378
      %468 = vst.msk [vmem:[%s442 + $0x129] sm:$0xff] %vm386, %v379
      %469 = vst.msk [vmem:[%s442 + $0x139] sm:$0xff] %vm386, %v380
      %470 = vst.msk [vmem:[%s442 + $0x141] sm:$0xff] %vm386, %v381
      %471 = vst.msk [vmem:[%s442 + $0x151] sm:$0xff] %vm386, %v382
      %472 = vst.msk [vmem:[%s442 + $0x159] sm:$0xff] %vm386, %v383
      %473 = vst.msk [vmem:[%s442 + $0x169] sm:$0xff] %vm386, %v384
      %474 = vst.msk [vmem:[%s442 + $0x171] sm:$0xff] %vm386, %v385
      %v475 = vld [vmem:[#allocation2] sm:$0xff]
      %v476 = vld [vmem:[#allocation2 + $0x8] sm:$0xff]
      %v477 = vld [vmem:[#allocation2 + $0x18] sm:$0xff]
      %v478 = vld [vmem:[#allocation2 + $0x20] sm:$0xff]
      %v479 = vld [vmem:[#allocation2 + $0x30] sm:$0xff]
      %v480 = vld [vmem:[#allocation2 + $0x38] sm:$0xff]
      %v481 = vld [vmem:[#allocation2 + $0x48] sm:$0xff]
      %v482 = vld [vmem:[#allocation2 + $0x50] sm:$0xff]
      %v483 = vld [vmem:[#allocation2 + $0x60] sm:$0xff]
      %v484 = vld [vmem:[#allocation2 + $0x68] sm:$0xff]
      %v485 = vld [vmem:[#allocation2 + $0x78] sm:$0xff]
      %v486 = vld [vmem:[#allocation2 + $0x80] sm:$0xff]
      %v487 = vld [vmem:[#allocation2 + $0x90] sm:$0xff]
      %v488 = vld [vmem:[#allocation2 + $0x98] sm:$0xff]
      %v489 = vld [vmem:[#allocation2 + $0xa8] sm:$0xff]
      %v490 = vld [vmem:[#allocation2 + $0xb0] sm:$0xff]
      %v491 = vld [vmem:[#allocation2 + $0xc0] sm:$0xff]
      %v492 = vld [vmem:[#allocation2 + $0xc8] sm:$0xff]
      %v493 = vld [vmem:[#allocation2 + $0xd8] sm:$0xff]
      %v494 = vld [vmem:[#allocation2 + $0xe0] sm:$0xff]
      %v495 = vld [vmem:[#allocation2 + $0xf0] sm:$0xff]
      %v496 = vld [vmem:[#allocation2 + $0xf8] sm:$0xff]
      %v497 = vld [vmem:[#allocation2 + $0x108] sm:$0xff]
      %v498 = vld [vmem:[#allocation2 + $0x110] sm:$0xff]
      %v499 = vld [vmem:[#allocation2 + $0x120] sm:$0xff]
      %v500 = vld [vmem:[#allocation2 + $0x128] sm:$0xff]
      %v501 = vld [vmem:[#allocation2 + $0x138] sm:$0xff]
      %v502 = vld [vmem:[#allocation2 + $0x140] sm:$0xff]
      %v503 = vld [vmem:[#allocation2 + $0x150] sm:$0xff]
      %v504 = vld [vmem:[#allocation2 + $0x158] sm:$0xff]
      %v505 = vld [vmem:[#allocation2 + $0x168] sm:$0xff]
      %v506 = vld [vmem:[#allocation2 + $0x170] sm:$0xff]
      %v507 = vld [vmem:[#allocation2 + $0x1] sm:$0xff]
      %v508 = vld [vmem:[#allocation2 + $0x9] sm:$0xff]
      %v509 = vld [vmem:[#allocation2 + $0x19] sm:$0xff]
      %v510 = vld [vmem:[#allocation2 + $0x21] sm:$0xff]
      %v511 = vld [vmem:[#allocation2 + $0x31] sm:$0xff]
      %v512 = vld [vmem:[#allocation2 + $0x39] sm:$0xff]
      %v513 = vld [vmem:[#allocation2 + $0x49] sm:$0xff]
      %v514 = vld [vmem:[#allocation2 + $0x51] sm:$0xff]
      %v515 = vld [vmem:[#allocation2 + $0x61] sm:$0xff]
      %v516 = vld [vmem:[#allocation2 + $0x69] sm:$0xff]
      %v517 = vld [vmem:[#allocation2 + $0x79] sm:$0xff]
      %v518 = vld [vmem:[#allocation2 + $0x81] sm:$0xff]
      %v519 = vld [vmem:[#allocation2 + $0x91] sm:$0xff]
      %v520 = vld [vmem:[#allocation2 + $0x99] sm:$0xff]
      %v521 = vld [vmem:[#allocation2 + $0xa9] sm:$0xff]
      %v522 = vld [vmem:[#allocation2 + $0xb1] sm:$0xff]
      %v523 = vld [vmem:[#allocation2 + $0xc1] sm:$0xff]
      %v524 = vld [vmem:[#allocation2 + $0xc9] sm:$0xff]
      %v525 = vld [vmem:[#allocation2 + $0xd9] sm:$0xff]
      %v526 = vld [vmem:[#allocation2 + $0xe1] sm:$0xff]
      %v527 = vld [vmem:[#allocation2 + $0xf1] sm:$0xff]
      %v528 = vld [vmem:[#allocation2 + $0xf9] sm:$0xff]
      %v529 = vld [vmem:[#allocation2 + $0x109] sm:$0xff]
      %v530 = vld [vmem:[#allocation2 + $0x111] sm:$0xff]
      %v531 = vld [vmem:[#allocation2 + $0x121] sm:$0xff]
      %v532 = vld [vmem:[#allocation2 + $0x129] sm:$0xff]
      %v533 = vld [vmem:[#allocation2 + $0x139] sm:$0xff]
      %v534 = vld [vmem:[#allocation2 + $0x141] sm:$0xff]
      %v535 = vld [vmem:[#allocation2 + $0x151] sm:$0xff]
      %v536 = vld [vmem:[#allocation2 + $0x159] sm:$0xff]
      %v537 = vld [vmem:[#allocation2 + $0x169] sm:$0xff]
      %v538 = vld [vmem:[#allocation2 + $0x171] sm:$0xff]
      %v539 = vld [vmem:[#allocation2 + $0x2] sm:$0xff]
      %v540 = vld [vmem:[#allocation2 + $0xa] sm:$0xff]
      %v541 = vld [vmem:[#allocation2 + $0x1a] sm:$0xff]
      %v542 = vld [vmem:[#allocation2 + $0x22] sm:$0xff]
      %v543 = vld [vmem:[#allocation2 + $0x32] sm:$0xff]
      %v544 = vld [vmem:[#allocation2 + $0x3a] sm:$0xff]
      %v545 = vld [vmem:[#allocation2 + $0x4a] sm:$0xff]
      %v546 = vld [vmem:[#allocation2 + $0x52] sm:$0xff]
      %v547 = vld [vmem:[#allocation2 + $0x62] sm:$0xff]
      %v548 = vld [vmem:[#allocation2 + $0x6a] sm:$0xff]
      %v549 = vld [vmem:[#allocation2 + $0x7a] sm:$0xff]
      %v550 = vld [vmem:[#allocation2 + $0x82] sm:$0xff]
      %v551 = vld [vmem:[#allocation2 + $0x92] sm:$0xff]
      %v552 = vld [vmem:[#allocation2 + $0x9a] sm:$0xff]
      %v553 = vld [vmem:[#allocation2 + $0xaa] sm:$0xff]
      %v554 = vld [vmem:[#allocation2 + $0xb2] sm:$0xff]
      %v555 = vld [vmem:[#allocation2 + $0xc2] sm:$0xff]
      %v556 = vld [vmem:[#allocation2 + $0xca] sm:$0xff]
      %v557 = vld [vmem:[#allocation2 + $0xda] sm:$0xff]
      %v558 = vld [vmem:[#allocation2 + $0xe2] sm:$0xff]
      %v559 = vld [vmem:[#allocation2 + $0xf2] sm:$0xff]
      %v560 = vld [vmem:[#allocation2 + $0xfa] sm:$0xff]
      %v561 = vld [vmem:[#allocation2 + $0x10a] sm:$0xff]
      %v562 = vld [vmem:[#allocation2 + $0x112] sm:$0xff]
      %v563 = vld [vmem:[#allocation2 + $0x122] sm:$0xff]
      %v564 = vld [vmem:[#allocation2 + $0x12a] sm:$0xff]
      %v565 = vld [vmem:[#allocation2 + $0x13a] sm:$0xff]
      %v566 = vld [vmem:[#allocation2 + $0x142] sm:$0xff]
      %v567 = vld [vmem:[#allocation2 + $0x152] sm:$0xff]
      %v568 = vld [vmem:[#allocation2 + $0x15a] sm:$0xff]
      %v569 = vld [vmem:[#allocation2 + $0x16a] sm:$0xff]
      %v570 = vld [vmem:[#allocation2 + $0x172] sm:$0xff]
      %v571 = vld [vmem:[%s442] sm:$0xff]
      %v572 = vld [vmem:[%s442 + $0x8] sm:$0xff]
      %v573 = vld [vmem:[%s442 + $0x18] sm:$0xff]
      %v574 = vld [vmem:[%s442 + $0x20] sm:$0xff]
      %v575 = vld [vmem:[%s442 + $0x30] sm:$0xff]
      %v576 = vld [vmem:[%s442 + $0x38] sm:$0xff]
      %v577 = vld [vmem:[%s442 + $0x48] sm:$0xff]
      %v578 = vld [vmem:[%s442 + $0x50] sm:$0xff]
      %v579 = vld [vmem:[%s442 + $0x60] sm:$0xff]
      %v580 = vld [vmem:[%s442 + $0x68] sm:$0xff]
      %v581 = vld [vmem:[%s442 + $0x78] sm:$0xff]
      %v582 = vld [vmem:[%s442 + $0x80] sm:$0xff]
      %v583 = vld [vmem:[%s442 + $0x90] sm:$0xff]
      %v584 = vld [vmem:[%s442 + $0x98] sm:$0xff]
      %v585 = vld [vmem:[%s442 + $0xa8] sm:$0xff]
      %v586 = vld [vmem:[%s442 + $0xb0] sm:$0xff]
      %v587 = vld [vmem:[%s442 + $0xc0] sm:$0xff]
      %v588 = vld [vmem:[%s442 + $0xc8] sm:$0xff]
      %v589 = vld [vmem:[%s442 + $0xd8] sm:$0xff]
      %v590 = vld [vmem:[%s442 + $0xe0] sm:$0xff]
      %v591 = vld [vmem:[%s442 + $0xf0] sm:$0xff]
      %v592 = vld [vmem:[%s442 + $0xf8] sm:$0xff]
      %v593 = vld [vmem:[%s442 + $0x108] sm:$0xff]
      %v594 = vld [vmem:[%s442 + $0x110] sm:$0xff]
      %v595 = vld [vmem:[%s442 + $0x120] sm:$0xff]
      %v596 = vld [vmem:[%s442 + $0x128] sm:$0xff]
      %v597 = vld [vmem:[%s442 + $0x138] sm:$0xff]
      %v598 = vld [vmem:[%s442 + $0x140] sm:$0xff]
      %v599 = vld [vmem:[%s442 + $0x150] sm:$0xff]
      %v600 = vld [vmem:[%s442 + $0x158] sm:$0xff]
      %v601 = vld [vmem:[%s442 + $0x168] sm:$0xff]
      %v602 = vld [vmem:[%s442 + $0x170] sm:$0xff]
      %v603 = vld [vmem:[%s442 + $0x1] sm:$0xff]
      %v604 = vld [vmem:[%s442 + $0x9] sm:$0xff]
      %v605 = vld [vmem:[%s442 + $0x19] sm:$0xff]
      %v606 = vld [vmem:[%s442 + $0x21] sm:$0xff]
      %v607 = vld [vmem:[%s442 + $0x31] sm:$0xff]
      %v608 = vld [vmem:[%s442 + $0x39] sm:$0xff]
      %v609 = vld [vmem:[%s442 + $0x49] sm:$0xff]
      %v610 = vld [vmem:[%s442 + $0x51] sm:$0xff]
      %v611 = vld [vmem:[%s442 + $0x61] sm:$0xff]
      %v612 = vld [vmem:[%s442 + $0x69] sm:$0xff]
      %v613 = vld [vmem:[%s442 + $0x79] sm:$0xff]
      %v614 = vld [vmem:[%s442 + $0x81] sm:$0xff]
      %v615 = vld [vmem:[%s442 + $0x91] sm:$0xff]
      %v616 = vld [vmem:[%s442 + $0x99] sm:$0xff]
      %v617 = vld [vmem:[%s442 + $0xa9] sm:$0xff]
      %v618 = vld [vmem:[%s442 + $0xb1] sm:$0xff]
      %v619 = vld [vmem:[%s442 + $0xc1] sm:$0xff]
      %v620 = vld [vmem:[%s442 + $0xc9] sm:$0xff]
      %v621 = vld [vmem:[%s442 + $0xd9] sm:$0xff]
      %v622 = vld [vmem:[%s442 + $0xe1] sm:$0xff]
      %v623 = vld [vmem:[%s442 + $0xf1] sm:$0xff]
      %v624 = vld [vmem:[%s442 + $0xf9] sm:$0xff]
      %v625 = vld [vmem:[%s442 + $0x109] sm:$0xff]
      %v626 = vld [vmem:[%s442 + $0x111] sm:$0xff]
      %v627 = vld [vmem:[%s442 + $0x121] sm:$0xff]
      %v628 = vld [vmem:[%s442 + $0x129] sm:$0xff]
      %v629 = vld [vmem:[%s442 + $0x139] sm:$0xff]
      %v630 = vld [vmem:[%s442 + $0x141] sm:$0xff]
      %v631 = vld [vmem:[%s442 + $0x151] sm:$0xff]
      %v632 = vld [vmem:[%s442 + $0x159] sm:$0xff]
      %v633 = vld [vmem:[%s442 + $0x169] sm:$0xff]
      %v634 = vld [vmem:[%s442 + $0x171] sm:$0xff]
      %v635 = vld [vmem:[%s442 + $0x2] sm:$0xff]
      %v636 = vld [vmem:[%s442 + $0xa] sm:$0xff]
      %v637 = vld [vmem:[%s442 + $0x1a] sm:$0xff]
      %v638 = vld [vmem:[%s442 + $0x22] sm:$0xff]
      %v639 = vld [vmem:[%s442 + $0x32] sm:$0xff]
      %v640 = vld [vmem:[%s442 + $0x3a] sm:$0xff]
      %v641 = vld [vmem:[%s442 + $0x4a] sm:$0xff]
      %v642 = vld [vmem:[%s442 + $0x52] sm:$0xff]
      %v643 = vld [vmem:[%s442 + $0x62] sm:$0xff]
      %v644 = vld [vmem:[%s442 + $0x6a] sm:$0xff]
      %v645 = vld [vmem:[%s442 + $0x7a] sm:$0xff]
      %v646 = vld [vmem:[%s442 + $0x82] sm:$0xff]
      %v647 = vld [vmem:[%s442 + $0x92] sm:$0xff]
      %v648 = vld [vmem:[%s442 + $0x9a] sm:$0xff]
      %v649 = vld [vmem:[%s442 + $0xaa] sm:$0xff]
      %v650 = vld [vmem:[%s442 + $0xb2] sm:$0xff]
      %v651 = vld [vmem:[%s442 + $0xc2] sm:$0xff]
      %v652 = vld [vmem:[%s442 + $0xca] sm:$0xff]
      %v653 = vld [vmem:[%s442 + $0xda] sm:$0xff]
      %v654 = vld [vmem:[%s442 + $0xe2] sm:$0xff]
      %v655 = vld [vmem:[%s442 + $0xf2] sm:$0xff]
      %v656 = vld [vmem:[%s442 + $0xfa] sm:$0xff]
      %v657 = vld [vmem:[%s442 + $0x10a] sm:$0xff]
      %v658 = vld [vmem:[%s442 + $0x112] sm:$0xff]
      %v659 = vld [vmem:[%s442 + $0x122] sm:$0xff]
      %v660 = vld [vmem:[%s442 + $0x12a] sm:$0xff]
      %v661 = vld [vmem:[%s442 + $0x13a] sm:$0xff]
      %v662 = vld [vmem:[%s442 + $0x142] sm:$0xff]
      %v663 = vld [vmem:[%s442 + $0x152] sm:$0xff]
      %v664 = vld [vmem:[%s442 + $0x15a] sm:$0xff]
      %v665 = vld [vmem:[%s442 + $0x16a] sm:$0xff]
      %v666 = vld [vmem:[%s442 + $0x172] sm:$0xff]
      %s667 = scalar_lea.vmem [#allocation2], 48
      %v668 = vld [vmem:[%s667] sm:$0xff]
      %v669 = vld [vmem:[%s667 + $0x8] sm:$0xff]
      %v670 = vld [vmem:[%s667 + $0x18] sm:$0xff]
      %v671 = vld [vmem:[%s667 + $0x20] sm:$0xff]
      %v672 = vld [vmem:[%s667 + $0x30] sm:$0xff]
      %v673 = vld [vmem:[%s667 + $0x38] sm:$0xff]
      %v674 = vld [vmem:[%s667 + $0x48] sm:$0xff]
      %v675 = vld [vmem:[%s667 + $0x50] sm:$0xff]
      %v676 = vld [vmem:[%s667 + $0x60] sm:$0xff]
      %v677 = vld [vmem:[%s667 + $0x68] sm:$0xff]
      %v678 = vld [vmem:[%s667 + $0x78] sm:$0xff]
      %v679 = vld [vmem:[%s667 + $0x80] sm:$0xff]
      %v680 = vld [vmem:[%s667 + $0x90] sm:$0xff]
      %v681 = vld [vmem:[%s667 + $0x98] sm:$0xff]
      %v682 = vld [vmem:[%s667 + $0xa8] sm:$0xff]
      %v683 = vld [vmem:[%s667 + $0xb0] sm:$0xff]
      %v684 = vld [vmem:[%s667 + $0xc0] sm:$0xff]
      %v685 = vld [vmem:[%s667 + $0xc8] sm:$0xff]
      %v686 = vld [vmem:[%s667 + $0xd8] sm:$0xff]
      %v687 = vld [vmem:[%s667 + $0xe0] sm:$0xff]
      %v688 = vld [vmem:[%s667 + $0xf0] sm:$0xff]
      %v689 = vld [vmem:[%s667 + $0xf8] sm:$0xff]
      %v690 = vld [vmem:[%s667 + $0x108] sm:$0xff]
      %v691 = vld [vmem:[%s667 + $0x110] sm:$0xff]
      %v692 = vld [vmem:[%s667 + $0x120] sm:$0xff]
      %v693 = vld [vmem:[%s667 + $0x128] sm:$0xff]
      %v694 = vld [vmem:[%s667 + $0x138] sm:$0xff]
      %v695 = vld [vmem:[%s667 + $0x140] sm:$0xff]
      %v696 = vld [vmem:[%s667 + $0x150] sm:$0xff]
      %v697 = vld [vmem:[%s667 + $0x158] sm:$0xff]
      %v698 = vld [vmem:[%s667 + $0x168] sm:$0xff]
      %v699 = vld [vmem:[%s667 + $0x170] sm:$0xff]
      %v700 = vld [vmem:[%s667 + $0x1] sm:$0xff]
      %v701 = vld [vmem:[%s667 + $0x9] sm:$0xff]
      %v702 = vld [vmem:[%s667 + $0x19] sm:$0xff]
      %v703 = vld [vmem:[%s667 + $0x21] sm:$0xff]
      %v704 = vld [vmem:[%s667 + $0x31] sm:$0xff]
      %v705 = vld [vmem:[%s667 + $0x39] sm:$0xff]
      %v706 = vld [vmem:[%s667 + $0x49] sm:$0xff]
      %v707 = vld [vmem:[%s667 + $0x51] sm:$0xff]
      %v708 = vld [vmem:[%s667 + $0x61] sm:$0xff]
      %v709 = vld [vmem:[%s667 + $0x69] sm:$0xff]
      %v710 = vld [vmem:[%s667 + $0x79] sm:$0xff]
      %v711 = vld [vmem:[%s667 + $0x81] sm:$0xff]
      %v712 = vld [vmem:[%s667 + $0x91] sm:$0xff]
      %v713 = vld [vmem:[%s667 + $0x99] sm:$0xff]
      %v714 = vld [vmem:[%s667 + $0xa9] sm:$0xff]
      %v715 = vld [vmem:[%s667 + $0xb1] sm:$0xff]
      %v716 = vld [vmem:[%s667 + $0xc1] sm:$0xff]
      %v717 = vld [vmem:[%s667 + $0xc9] sm:$0xff]
      %v718 = vld [vmem:[%s667 + $0xd9] sm:$0xff]
      %v719 = vld [vmem:[%s667 + $0xe1] sm:$0xff]
      %v720 = vld [vmem:[%s667 + $0xf1] sm:$0xff]
      %v721 = vld [vmem:[%s667 + $0xf9] sm:$0xff]
      %v722 = vld [vmem:[%s667 + $0x109] sm:$0xff]
      %v723 = vld [vmem:[%s667 + $0x111] sm:$0xff]
      %v724 = vld [vmem:[%s667 + $0x121] sm:$0xff]
      %v725 = vld [vmem:[%s667 + $0x129] sm:$0xff]
      %v726 = vld [vmem:[%s667 + $0x139] sm:$0xff]
      %v727 = vld [vmem:[%s667 + $0x141] sm:$0xff]
      %v728 = vld [vmem:[%s667 + $0x151] sm:$0xff]
      %v729 = vld [vmem:[%s667 + $0x159] sm:$0xff]
      %v730 = vld [vmem:[%s667 + $0x169] sm:$0xff]
      %v731 = vld [vmem:[%s667 + $0x171] sm:$0xff]
      %v732 = vld [vmem:[%s667 + $0x2] sm:$0xff]
      %v733 = vld [vmem:[%s667 + $0xa] sm:$0xff]
      %v734 = vld [vmem:[%s667 + $0x1a] sm:$0xff]
      %v735 = vld [vmem:[%s667 + $0x22] sm:$0xff]
      %v736 = vld [vmem:[%s667 + $0x32] sm:$0xff]
      %v737 = vld [vmem:[%s667 + $0x3a] sm:$0xff]
      %v738 = vld [vmem:[%s667 + $0x4a] sm:$0xff]
      %v739 = vld [vmem:[%s667 + $0x52] sm:$0xff]
      %v740 = vld [vmem:[%s667 + $0x62] sm:$0xff]
      %v741 = vld [vmem:[%s667 + $0x6a] sm:$0xff]
      %v742 = vld [vmem:[%s667 + $0x7a] sm:$0xff]
      %v743 = vld [vmem:[%s667 + $0x82] sm:$0xff]
      %v744 = vld [vmem:[%s667 + $0x92] sm:$0xff]
      %v745 = vld [vmem:[%s667 + $0x9a] sm:$0xff]
      %v746 = vld [vmem:[%s667 + $0xaa] sm:$0xff]
      %v747 = vld [vmem:[%s667 + $0xb2] sm:$0xff]
      %v748 = vld [vmem:[%s667 + $0xc2] sm:$0xff]
      %v749 = vld [vmem:[%s667 + $0xca] sm:$0xff]
      %v750 = vld [vmem:[%s667 + $0xda] sm:$0xff]
      %v751 = vld [vmem:[%s667 + $0xe2] sm:$0xff]
      %v752 = vld [vmem:[%s667 + $0xf2] sm:$0xff]
      %v753 = vld [vmem:[%s667 + $0xfa] sm:$0xff]
      %v754 = vld [vmem:[%s667 + $0x10a] sm:$0xff]
      %v755 = vld [vmem:[%s667 + $0x112] sm:$0xff]
      %v756 = vld [vmem:[%s667 + $0x122] sm:$0xff]
      %v757 = vld [vmem:[%s667 + $0x12a] sm:$0xff]
      %v758 = vld [vmem:[%s667 + $0x13a] sm:$0xff]
      %v759 = vld [vmem:[%s667 + $0x142] sm:$0xff]
      %v760 = vld [vmem:[%s667 + $0x152] sm:$0xff]
      %v761 = vld [vmem:[%s667 + $0x15a] sm:$0xff]
      %v762 = vld [vmem:[%s667 + $0x16a] sm:$0xff]
      %v763 = vld [vmem:[%s667 + $0x172] sm:$0xff]
      %796 = vrot.lane.b32.xlu0 %v507, 4
      %v797 = vpop.permute.xlu0 %796
      %798 = vrot.lane.b32.xlu0 %v508, 4
      %v799 = vpop.permute.xlu0 %798
      %800 = vrot.lane.b32.xlu0 %v509, 4
      %v801 = vpop.permute.xlu0 %800
      %802 = vrot.lane.b32.xlu0 %v510, 4
      %v803 = vpop.permute.xlu0 %802
      %804 = vrot.lane.b32.xlu0 %v511, 4
      %v805 = vpop.permute.xlu0 %804
      %806 = vrot.lane.b32.xlu0 %v512, 4
      %v807 = vpop.permute.xlu0 %806
      %808 = vrot.lane.b32.xlu0 %v513, 4
      %v809 = vpop.permute.xlu0 %808
      %810 = vrot.lane.b32.xlu0 %v514, 4
      %v811 = vpop.permute.xlu0 %810
      %812 = vrot.lane.b32.xlu0 %v515, 4
      %v813 = vpop.permute.xlu0 %812
      %814 = vrot.lane.b32.xlu0 %v516, 4
      %v815 = vpop.permute.xlu0 %814
      %816 = vrot.lane.b32.xlu0 %v517, 4
      %v817 = vpop.permute.xlu0 %816
      %818 = vrot.lane.b32.xlu0 %v518, 4
      %v819 = vpop.permute.xlu0 %818
      %820 = vrot.lane.b32.xlu0 %v519, 4
      %v821 = vpop.permute.xlu0 %820
      %822 = vrot.lane.b32.xlu0 %v520, 4
      %v823 = vpop.permute.xlu0 %822
      %824 = vrot.lane.b32.xlu0 %v521, 4
      %v825 = vpop.permute.xlu0 %824
      %826 = vrot.lane.b32.xlu0 %v522, 4
      %v827 = vpop.permute.xlu0 %826
      %828 = vrot.lane.b32.xlu0 %v523, 4
      %v829 = vpop.permute.xlu0 %828
      %830 = vrot.lane.b32.xlu0 %v524, 4
      %v831 = vpop.permute.xlu0 %830
      %832 = vrot.lane.b32.xlu0 %v525, 4
      %v833 = vpop.permute.xlu0 %832
      %834 = vrot.lane.b32.xlu0 %v526, 4
      %v835 = vpop.permute.xlu0 %834
      %836 = vrot.lane.b32.xlu0 %v527, 4
      %v837 = vpop.permute.xlu0 %836
      %838 = vrot.lane.b32.xlu0 %v528, 4
      %v839 = vpop.permute.xlu0 %838
      %840 = vrot.lane.b32.xlu0 %v529, 4
      %v841 = vpop.permute.xlu0 %840
      %842 = vrot.lane.b32.xlu0 %v530, 4
      %v843 = vpop.permute.xlu0 %842
      %844 = vrot.lane.b32.xlu0 %v531, 4
      %v845 = vpop.permute.xlu0 %844
      %846 = vrot.lane.b32.xlu0 %v532, 4
      %v847 = vpop.permute.xlu0 %846
      %848 = vrot.lane.b32.xlu0 %v533, 4
      %v849 = vpop.permute.xlu0 %848
      %850 = vrot.lane.b32.xlu0 %v534, 4
      %v851 = vpop.permute.xlu0 %850
      %852 = vrot.lane.b32.xlu0 %v535, 4
      %v853 = vpop.permute.xlu0 %852
      %854 = vrot.lane.b32.xlu0 %v536, 4
      %v855 = vpop.permute.xlu0 %854
      %856 = vrot.lane.b32.xlu0 %v537, 4
      %v857 = vpop.permute.xlu0 %856
      %858 = vrot.lane.b32.xlu0 %v538, 4
      %v859 = vpop.permute.xlu0 %858
      %924 = vrot.lane.b32.xlu0 %v539, 8
      %v925 = vpop.permute.xlu0 %924
      %926 = vrot.lane.b32.xlu0 %v540, 8
      %v927 = vpop.permute.xlu0 %926
      %928 = vrot.lane.b32.xlu0 %v541, 8
      %v929 = vpop.permute.xlu0 %928
      %930 = vrot.lane.b32.xlu0 %v542, 8
      %v931 = vpop.permute.xlu0 %930
      %932 = vrot.lane.b32.xlu0 %v543, 8
      %v933 = vpop.permute.xlu0 %932
      %934 = vrot.lane.b32.xlu0 %v544, 8
      %v935 = vpop.permute.xlu0 %934
      %936 = vrot.lane.b32.xlu0 %v545, 8
      %v937 = vpop.permute.xlu0 %936
      %938 = vrot.lane.b32.xlu0 %v546, 8
      %v939 = vpop.permute.xlu0 %938
      %940 = vrot.lane.b32.xlu0 %v547, 8
      %v941 = vpop.permute.xlu0 %940
      %942 = vrot.lane.b32.xlu0 %v548, 8
      %v943 = vpop.permute.xlu0 %942
      %944 = vrot.lane.b32.xlu0 %v549, 8
      %v945 = vpop.permute.xlu0 %944
      %946 = vrot.lane.b32.xlu0 %v550, 8
      %v947 = vpop.permute.xlu0 %946
      %948 = vrot.lane.b32.xlu0 %v551, 8
      %v949 = vpop.permute.xlu0 %948
      %950 = vrot.lane.b32.xlu0 %v552, 8
      %v951 = vpop.permute.xlu0 %950
      %952 = vrot.lane.b32.xlu0 %v553, 8
      %v953 = vpop.permute.xlu0 %952
      %954 = vrot.lane.b32.xlu0 %v554, 8
      %v955 = vpop.permute.xlu0 %954
      %956 = vrot.lane.b32.xlu0 %v555, 8
      %v957 = vpop.permute.xlu0 %956
      %958 = vrot.lane.b32.xlu0 %v556, 8
      %v959 = vpop.permute.xlu0 %958
      %960 = vrot.lane.b32.xlu0 %v557, 8
      %v961 = vpop.permute.xlu0 %960
      %962 = vrot.lane.b32.xlu0 %v558, 8
      %v963 = vpop.permute.xlu0 %962
      %964 = vrot.lane.b32.xlu0 %v559, 8
      %v965 = vpop.permute.xlu0 %964
      %966 = vrot.lane.b32.xlu0 %v560, 8
      %v967 = vpop.permute.xlu0 %966
      %968 = vrot.lane.b32.xlu0 %v561, 8
      %v969 = vpop.permute.xlu0 %968
      %970 = vrot.lane.b32.xlu0 %v562, 8
      %v971 = vpop.permute.xlu0 %970
      %972 = vrot.lane.b32.xlu0 %v563, 8
      %v973 = vpop.permute.xlu0 %972
      %974 = vrot.lane.b32.xlu0 %v564, 8
      %v975 = vpop.permute.xlu0 %974
      %976 = vrot.lane.b32.xlu0 %v565, 8
      %v977 = vpop.permute.xlu0 %976
      %978 = vrot.lane.b32.xlu0 %v566, 8
      %v979 = vpop.permute.xlu0 %978
      %980 = vrot.lane.b32.xlu0 %v567, 8
      %v981 = vpop.permute.xlu0 %980
      %982 = vrot.lane.b32.xlu0 %v568, 8
      %v983 = vpop.permute.xlu0 %982
      %984 = vrot.lane.b32.xlu0 %v569, 8
      %v985 = vpop.permute.xlu0 %984
      %986 = vrot.lane.b32.xlu0 %v570, 8
      %v987 = vpop.permute.xlu0 %986
      %1052 = vrot.lane.b32.xlu0 %v571, 12
      %v1053 = vpop.permute.xlu0 %1052
      %1054 = vrot.lane.b32.xlu0 %v572, 12
      %v1055 = vpop.permute.xlu0 %1054
      %1056 = vrot.lane.b32.xlu0 %v573, 12
      %v1057 = vpop.permute.xlu0 %1056
      %1058 = vrot.lane.b32.xlu0 %v574, 12
      %v1059 = vpop.permute.xlu0 %1058
      %1060 = vrot.lane.b32.xlu0 %v575, 12
      %v1061 = vpop.permute.xlu0 %1060
      %1062 = vrot.lane.b32.xlu0 %v576, 12
      %v1063 = vpop.permute.xlu0 %1062
      %1064 = vrot.lane.b32.xlu0 %v577, 12
      %v1065 = vpop.permute.xlu0 %1064
      %1066 = vrot.lane.b32.xlu0 %v578, 12
      %v1067 = vpop.permute.xlu0 %1066
      %1068 = vrot.lane.b32.xlu0 %v579, 12
      %v1069 = vpop.permute.xlu0 %1068
      %1070 = vrot.lane.b32.xlu0 %v580, 12
      %v1071 = vpop.permute.xlu0 %1070
      %1072 = vrot.lane.b32.xlu0 %v581, 12
      %v1073 = vpop.permute.xlu0 %1072
      %1074 = vrot.lane.b32.xlu0 %v582, 12
      %v1075 = vpop.permute.xlu0 %1074
      %1076 = vrot.lane.b32.xlu0 %v583, 12
      %v1077 = vpop.permute.xlu0 %1076
      %1078 = vrot.lane.b32.xlu0 %v584, 12
      %v1079 = vpop.permute.xlu0 %1078
      %1080 = vrot.lane.b32.xlu0 %v585, 12
      %v1081 = vpop.permute.xlu0 %1080
      %1082 = vrot.lane.b32.xlu0 %v586, 12
      %v1083 = vpop.permute.xlu0 %1082
      %1084 = vrot.lane.b32.xlu0 %v587, 12
      %v1085 = vpop.permute.xlu0 %1084
      %1086 = vrot.lane.b32.xlu0 %v588, 12
      %v1087 = vpop.permute.xlu0 %1086
      %1088 = vrot.lane.b32.xlu0 %v589, 12
      %v1089 = vpop.permute.xlu0 %1088
      %1090 = vrot.lane.b32.xlu0 %v590, 12
      %v1091 = vpop.permute.xlu0 %1090
      %1092 = vrot.lane.b32.xlu0 %v591, 12
      %v1093 = vpop.permute.xlu0 %1092
      %1094 = vrot.lane.b32.xlu0 %v592, 12
      %v1095 = vpop.permute.xlu0 %1094
      %1096 = vrot.lane.b32.xlu0 %v593, 12
      %v1097 = vpop.permute.xlu0 %1096
      %1098 = vrot.lane.b32.xlu0 %v594, 12
      %v1099 = vpop.permute.xlu0 %1098
      %1100 = vrot.lane.b32.xlu0 %v595, 12
      %v1101 = vpop.permute.xlu0 %1100
      %1102 = vrot.lane.b32.xlu0 %v596, 12
      %v1103 = vpop.permute.xlu0 %1102
      %1104 = vrot.lane.b32.xlu0 %v597, 12
      %v1105 = vpop.permute.xlu0 %1104
      %1106 = vrot.lane.b32.xlu0 %v598, 12
      %v1107 = vpop.permute.xlu0 %1106
      %1108 = vrot.lane.b32.xlu0 %v599, 12
      %v1109 = vpop.permute.xlu0 %1108
      %1110 = vrot.lane.b32.xlu0 %v600, 12
      %v1111 = vpop.permute.xlu0 %1110
      %1112 = vrot.lane.b32.xlu0 %v601, 12
      %v1113 = vpop.permute.xlu0 %1112
      %1114 = vrot.lane.b32.xlu0 %v602, 12
      %v1115 = vpop.permute.xlu0 %1114
      %1180 = vrot.lane.b32.xlu0 %v603, 16
      %v1181 = vpop.permute.xlu0 %1180
      %1182 = vrot.lane.b32.xlu0 %v604, 16
      %v1183 = vpop.permute.xlu0 %1182
      %1184 = vrot.lane.b32.xlu0 %v605, 16
      %v1185 = vpop.permute.xlu0 %1184
      %1186 = vrot.lane.b32.xlu0 %v606, 16
      %v1187 = vpop.permute.xlu0 %1186
      %1188 = vrot.lane.b32.xlu0 %v607, 16
      %v1189 = vpop.permute.xlu0 %1188
      %1190 = vrot.lane.b32.xlu0 %v608, 16
      %v1191 = vpop.permute.xlu0 %1190
      %1192 = vrot.lane.b32.xlu0 %v609, 16
      %v1193 = vpop.permute.xlu0 %1192
      %1194 = vrot.lane.b32.xlu0 %v610, 16
      %v1195 = vpop.permute.xlu0 %1194
      %1196 = vrot.lane.b32.xlu0 %v611, 16
      %v1197 = vpop.permute.xlu0 %1196
      %1198 = vrot.lane.b32.xlu0 %v612, 16
      %v1199 = vpop.permute.xlu0 %1198
      %1200 = vrot.lane.b32.xlu0 %v613, 16
      %v1201 = vpop.permute.xlu0 %1200
      %1202 = vrot.lane.b32.xlu0 %v614, 16
      %v1203 = vpop.permute.xlu0 %1202
      %1204 = vrot.lane.b32.xlu0 %v615, 16
      %v1205 = vpop.permute.xlu0 %1204
      %1206 = vrot.lane.b32.xlu0 %v616, 16
      %v1207 = vpop.permute.xlu0 %1206
      %1208 = vrot.lane.b32.xlu0 %v617, 16
      %v1209 = vpop.permute.xlu0 %1208
      %1210 = vrot.lane.b32.xlu0 %v618, 16
      %v1211 = vpop.permute.xlu0 %1210
      %1212 = vrot.lane.b32.xlu0 %v619, 16
      %v1213 = vpop.permute.xlu0 %1212
      %1214 = vrot.lane.b32.xlu0 %v620, 16
      %v1215 = vpop.permute.xlu0 %1214
      %1216 = vrot.lane.b32.xlu0 %v621, 16
      %v1217 = vpop.permute.xlu0 %1216
      %1218 = vrot.lane.b32.xlu0 %v622, 16
      %v1219 = vpop.permute.xlu0 %1218
      %1220 = vrot.lane.b32.xlu0 %v623, 16
      %v1221 = vpop.permute.xlu0 %1220
      %1222 = vrot.lane.b32.xlu0 %v624, 16
      %v1223 = vpop.permute.xlu0 %1222
      %1224 = vrot.lane.b32.xlu0 %v625, 16
      %v1225 = vpop.permute.xlu0 %1224
      %1226 = vrot.lane.b32.xlu0 %v626, 16
      %v1227 = vpop.permute.xlu0 %1226
      %1228 = vrot.lane.b32.xlu0 %v627, 16
      %v1229 = vpop.permute.xlu0 %1228
      %1230 = vrot.lane.b32.xlu0 %v628, 16
      %v1231 = vpop.permute.xlu0 %1230
      %1232 = vrot.lane.b32.xlu0 %v629, 16
      %v1233 = vpop.permute.xlu0 %1232
      %1234 = vrot.lane.b32.xlu0 %v630, 16
      %v1235 = vpop.permute.xlu0 %1234
      %1236 = vrot.lane.b32.xlu0 %v631, 16
      %v1237 = vpop.permute.xlu0 %1236
      %1238 = vrot.lane.b32.xlu0 %v632, 16
      %v1239 = vpop.permute.xlu0 %1238
      %1240 = vrot.lane.b32.xlu0 %v633, 16
      %v1241 = vpop.permute.xlu0 %1240
      %1242 = vrot.lane.b32.xlu0 %v634, 16
      %v1243 = vpop.permute.xlu0 %1242
      %1308 = vrot.lane.b32.xlu0 %v635, 20
      %v1309 = vpop.permute.xlu0 %1308
      %1310 = vrot.lane.b32.xlu0 %v636, 20
      %v1311 = vpop.permute.xlu0 %1310
      %1312 = vrot.lane.b32.xlu0 %v637, 20
      %v1313 = vpop.permute.xlu0 %1312
      %1314 = vrot.lane.b32.xlu0 %v638, 20
      %v1315 = vpop.permute.xlu0 %1314
      %1316 = vrot.lane.b32.xlu0 %v639, 20
      %v1317 = vpop.permute.xlu0 %1316
      %1318 = vrot.lane.b32.xlu0 %v640, 20
      %v1319 = vpop.permute.xlu0 %1318
      %1320 = vrot.lane.b32.xlu0 %v641, 20
      %v1321 = vpop.permute.xlu0 %1320
      %1322 = vrot.lane.b32.xlu0 %v642, 20
      %v1323 = vpop.permute.xlu0 %1322
      %1324 = vrot.lane.b32.xlu0 %v643, 20
      %v1325 = vpop.permute.xlu0 %1324
      %1326 = vrot.lane.b32.xlu0 %v644, 20
      %v1327 = vpop.permute.xlu0 %1326
      %1328 = vrot.lane.b32.xlu0 %v645, 20
      %v1329 = vpop.permute.xlu0 %1328
      %1330 = vrot.lane.b32.xlu0 %v646, 20
      %v1331 = vpop.permute.xlu0 %1330
      %1332 = vrot.lane.b32.xlu0 %v647, 20
      %v1333 = vpop.permute.xlu0 %1332
      %1334 = vrot.lane.b32.xlu0 %v648, 20
      %v1335 = vpop.permute.xlu0 %1334
      %1336 = vrot.lane.b32.xlu0 %v649, 20
      %v1337 = vpop.permute.xlu0 %1336
      %1338 = vrot.lane.b32.xlu0 %v650, 20
      %v1339 = vpop.permute.xlu0 %1338
      %1340 = vrot.lane.b32.xlu0 %v651, 20
      %v1341 = vpop.permute.xlu0 %1340
      %1342 = vrot.lane.b32.xlu0 %v652, 20
      %v1343 = vpop.permute.xlu0 %1342
      %1344 = vrot.lane.b32.xlu0 %v653, 20
      %v1345 = vpop.permute.xlu0 %1344
      %1346 = vrot.lane.b32.xlu0 %v654, 20
      %v1347 = vpop.permute.xlu0 %1346
      %1348 = vrot.lane.b32.xlu0 %v655, 20
      %v1349 = vpop.permute.xlu0 %1348
      %1350 = vrot.lane.b32.xlu0 %v656, 20
      %v1351 = vpop.permute.xlu0 %1350
      %1352 = vrot.lane.b32.xlu0 %v657, 20
      %v1353 = vpop.permute.xlu0 %1352
      %1354 = vrot.lane.b32.xlu0 %v658, 20
      %v1355 = vpop.permute.xlu0 %1354
      %1356 = vrot.lane.b32.xlu0 %v659, 20
      %v1357 = vpop.permute.xlu0 %1356
      %1358 = vrot.lane.b32.xlu0 %v660, 20
      %v1359 = vpop.permute.xlu0 %1358
      %1360 = vrot.lane.b32.xlu0 %v661, 20
      %v1361 = vpop.permute.xlu0 %1360
      %1362 = vrot.lane.b32.xlu0 %v662, 20
      %v1363 = vpop.permute.xlu0 %1362
      %1364 = vrot.lane.b32.xlu0 %v663, 20
      %v1365 = vpop.permute.xlu0 %1364
      %1366 = vrot.lane.b32.xlu0 %v664, 20
      %v1367 = vpop.permute.xlu0 %1366
      %1368 = vrot.lane.b32.xlu0 %v665, 20
      %v1369 = vpop.permute.xlu0 %1368
      %1370 = vrot.lane.b32.xlu0 %v666, 20
      %v1371 = vpop.permute.xlu0 %1370
      %1436 = vrot.lane.b32.xlu0 %v668, 24
      %v1437 = vpop.permute.xlu0 %1436
      %1438 = vrot.lane.b32.xlu0 %v669, 24
      %v1439 = vpop.permute.xlu0 %1438
      %1440 = vrot.lane.b32.xlu0 %v670, 24
      %v1441 = vpop.permute.xlu0 %1440
      %1442 = vrot.lane.b32.xlu0 %v671, 24
      %v1443 = vpop.permute.xlu0 %1442
      %1444 = vrot.lane.b32.xlu0 %v672, 24
      %v1445 = vpop.permute.xlu0 %1444
      %1446 = vrot.lane.b32.xlu0 %v673, 24
      %v1447 = vpop.permute.xlu0 %1446
      %1448 = vrot.lane.b32.xlu0 %v674, 24
      %v1449 = vpop.permute.xlu0 %1448
      %1450 = vrot.lane.b32.xlu0 %v675, 24
      %v1451 = vpop.permute.xlu0 %1450
      %1452 = vrot.lane.b32.xlu0 %v676, 24
      %v1453 = vpop.permute.xlu0 %1452
      %1454 = vrot.lane.b32.xlu0 %v677, 24
      %v1455 = vpop.permute.xlu0 %1454
      %1456 = vrot.lane.b32.xlu0 %v678, 24
      %v1457 = vpop.permute.xlu0 %1456
      %1458 = vrot.lane.b32.xlu0 %v679, 24
      %v1459 = vpop.permute.xlu0 %1458
      %1460 = vrot.lane.b32.xlu0 %v680, 24
      %v1461 = vpop.permute.xlu0 %1460
      %1462 = vrot.lane.b32.xlu0 %v681, 24
      %v1463 = vpop.permute.xlu0 %1462
      %1464 = vrot.lane.b32.xlu0 %v682, 24
      %v1465 = vpop.permute.xlu0 %1464
      %1466 = vrot.lane.b32.xlu0 %v683, 24
      %v1467 = vpop.permute.xlu0 %1466
      %1468 = vrot.lane.b32.xlu0 %v684, 24
      %v1469 = vpop.permute.xlu0 %1468
      %1470 = vrot.lane.b32.xlu0 %v685, 24
      %v1471 = vpop.permute.xlu0 %1470
      %1472 = vrot.lane.b32.xlu0 %v686, 24
      %v1473 = vpop.permute.xlu0 %1472
      %1474 = vrot.lane.b32.xlu0 %v687, 24
      %v1475 = vpop.permute.xlu0 %1474
      %1476 = vrot.lane.b32.xlu0 %v688, 24
      %v1477 = vpop.permute.xlu0 %1476
      %1478 = vrot.lane.b32.xlu0 %v689, 24
      %v1479 = vpop.permute.xlu0 %1478
      %1480 = vrot.lane.b32.xlu0 %v690, 24
      %v1481 = vpop.permute.xlu0 %1480
      %1482 = vrot.lane.b32.xlu0 %v691, 24
      %v1483 = vpop.permute.xlu0 %1482
      %1484 = vrot.lane.b32.xlu0 %v692, 24
      %v1485 = vpop.permute.xlu0 %1484
      %1486 = vrot.lane.b32.xlu0 %v693, 24
      %v1487 = vpop.permute.xlu0 %1486
      %1488 = vrot.lane.b32.xlu0 %v694, 24
      %v1489 = vpop.permute.xlu0 %1488
      %1490 = vrot.lane.b32.xlu0 %v695, 24
      %v1491 = vpop.permute.xlu0 %1490
      %1492 = vrot.lane.b32.xlu0 %v696, 24
      %v1493 = vpop.permute.xlu0 %1492
      %1494 = vrot.lane.b32.xlu0 %v697, 24
      %v1495 = vpop.permute.xlu0 %1494
      %1496 = vrot.lane.b32.xlu0 %v698, 24
      %v1497 = vpop.permute.xlu0 %1496
      %1498 = vrot.lane.b32.xlu0 %v699, 24
      %v1499 = vpop.permute.xlu0 %1498
      %1564 = vrot.lane.b32.xlu0 %v700, 28
      %v1565 = vpop.permute.xlu0 %1564
      %1566 = vrot.lane.b32.xlu0 %v701, 28
      %v1567 = vpop.permute.xlu0 %1566
      %1568 = vrot.lane.b32.xlu0 %v702, 28
      %v1569 = vpop.permute.xlu0 %1568
      %1570 = vrot.lane.b32.xlu0 %v703, 28
      %v1571 = vpop.permute.xlu0 %1570
      %1572 = vrot.lane.b32.xlu0 %v704, 28
      %v1573 = vpop.permute.xlu0 %1572
      %1574 = vrot.lane.b32.xlu0 %v705, 28
      %v1575 = vpop.permute.xlu0 %1574
      %1576 = vrot.lane.b32.xlu0 %v706, 28
      %v1577 = vpop.permute.xlu0 %1576
      %1578 = vrot.lane.b32.xlu0 %v707, 28
      %v1579 = vpop.permute.xlu0 %1578
      %1580 = vrot.lane.b32.xlu0 %v708, 28
      %v1581 = vpop.permute.xlu0 %1580
      %1582 = vrot.lane.b32.xlu0 %v709, 28
      %v1583 = vpop.permute.xlu0 %1582
      %1584 = vrot.lane.b32.xlu0 %v710, 28
      %v1585 = vpop.permute.xlu0 %1584
      %1586 = vrot.lane.b32.xlu0 %v711, 28
      %v1587 = vpop.permute.xlu0 %1586
      %1588 = vrot.lane.b32.xlu0 %v712, 28
      %v1589 = vpop.permute.xlu0 %1588
      %1590 = vrot.lane.b32.xlu0 %v713, 28
      %v1591 = vpop.permute.xlu0 %1590
      %1592 = vrot.lane.b32.xlu0 %v714, 28
      %v1593 = vpop.permute.xlu0 %1592
      %1594 = vrot.lane.b32.xlu0 %v715, 28
      %v1595 = vpop.permute.xlu0 %1594
      %1596 = vrot.lane.b32.xlu0 %v716, 28
      %v1597 = vpop.permute.xlu0 %1596
      %1598 = vrot.lane.b32.xlu0 %v717, 28
      %v1599 = vpop.permute.xlu0 %1598
      %1600 = vrot.lane.b32.xlu0 %v718, 28
      %v1601 = vpop.permute.xlu0 %1600
      %1602 = vrot.lane.b32.xlu0 %v719, 28
      %v1603 = vpop.permute.xlu0 %1602
      %1604 = vrot.lane.b32.xlu0 %v720, 28
      %v1605 = vpop.permute.xlu0 %1604
      %1606 = vrot.lane.b32.xlu0 %v721, 28
      %v1607 = vpop.permute.xlu0 %1606
      %1608 = vrot.lane.b32.xlu0 %v722, 28
      %v1609 = vpop.permute.xlu0 %1608
      %1610 = vrot.lane.b32.xlu0 %v723, 28
      %v1611 = vpop.permute.xlu0 %1610
      %1612 = vrot.lane.b32.xlu0 %v724, 28
      %v1613 = vpop.permute.xlu0 %1612
      %1614 = vrot.lane.b32.xlu0 %v725, 28
      %v1615 = vpop.permute.xlu0 %1614
      %1616 = vrot.lane.b32.xlu0 %v726, 28
      %v1617 = vpop.permute.xlu0 %1616
      %1618 = vrot.lane.b32.xlu0 %v727, 28
      %v1619 = vpop.permute.xlu0 %1618
      %1620 = vrot.lane.b32.xlu0 %v728, 28
      %v1621 = vpop.permute.xlu0 %1620
      %1622 = vrot.lane.b32.xlu0 %v729, 28
      %v1623 = vpop.permute.xlu0 %1622
      %1624 = vrot.lane.b32.xlu0 %v730, 28
      %v1625 = vpop.permute.xlu0 %1624
      %1626 = vrot.lane.b32.xlu0 %v731, 28
      %v1627 = vpop.permute.xlu0 %1626
      %1692 = vrot.lane.b32.xlu0 %v732, 32
      %v1693 = vpop.permute.xlu0 %1692
      %1694 = vrot.lane.b32.xlu0 %v733, 32
      %v1695 = vpop.permute.xlu0 %1694
      %1696 = vrot.lane.b32.xlu0 %v734, 32
      %v1697 = vpop.permute.xlu0 %1696
      %1698 = vrot.lane.b32.xlu0 %v735, 32
      %v1699 = vpop.permute.xlu0 %1698
      %1700 = vrot.lane.b32.xlu0 %v736, 32
      %v1701 = vpop.permute.xlu0 %1700
      %1702 = vrot.lane.b32.xlu0 %v737, 32
      %v1703 = vpop.permute.xlu0 %1702
      %1704 = vrot.lane.b32.xlu0 %v738, 32
      %v1705 = vpop.permute.xlu0 %1704
      %1706 = vrot.lane.b32.xlu0 %v739, 32
      %v1707 = vpop.permute.xlu0 %1706
      %1708 = vrot.lane.b32.xlu0 %v740, 32
      %v1709 = vpop.permute.xlu0 %1708
      %1710 = vrot.lane.b32.xlu0 %v741, 32
      %v1711 = vpop.permute.xlu0 %1710
      %1712 = vrot.lane.b32.xlu0 %v742, 32
      %v1713 = vpop.permute.xlu0 %1712
      %1714 = vrot.lane.b32.xlu0 %v743, 32
      %v1715 = vpop.permute.xlu0 %1714
      %1716 = vrot.lane.b32.xlu0 %v744, 32
      %v1717 = vpop.permute.xlu0 %1716
      %1718 = vrot.lane.b32.xlu0 %v745, 32
      %v1719 = vpop.permute.xlu0 %1718
      %1720 = vrot.lane.b32.xlu0 %v746, 32
      %v1721 = vpop.permute.xlu0 %1720
      %1722 = vrot.lane.b32.xlu0 %v747, 32
      %v1723 = vpop.permute.xlu0 %1722
      %1724 = vrot.lane.b32.xlu0 %v748, 32
      %v1725 = vpop.permute.xlu0 %1724
      %1726 = vrot.lane.b32.xlu0 %v749, 32
      %v1727 = vpop.permute.xlu0 %1726
      %1728 = vrot.lane.b32.xlu0 %v750, 32
      %v1729 = vpop.permute.xlu0 %1728
      %1730 = vrot.lane.b32.xlu0 %v751, 32
      %v1731 = vpop.permute.xlu0 %1730
      %1732 = vrot.lane.b32.xlu0 %v752, 32
      %v1733 = vpop.permute.xlu0 %1732
      %1734 = vrot.lane.b32.xlu0 %v753, 32
      %v1735 = vpop.permute.xlu0 %1734
      %1736 = vrot.lane.b32.xlu0 %v754, 32
      %v1737 = vpop.permute.xlu0 %1736
      %1738 = vrot.lane.b32.xlu0 %v755, 32
      %v1739 = vpop.permute.xlu0 %1738
      %1740 = vrot.lane.b32.xlu0 %v756, 32
      %v1741 = vpop.permute.xlu0 %1740
      %1742 = vrot.lane.b32.xlu0 %v757, 32
      %v1743 = vpop.permute.xlu0 %1742
      %1744 = vrot.lane.b32.xlu0 %v758, 32
      %v1745 = vpop.permute.xlu0 %1744
      %1746 = vrot.lane.b32.xlu0 %v759, 32
      %v1747 = vpop.permute.xlu0 %1746
      %1748 = vrot.lane.b32.xlu0 %v760, 32
      %v1749 = vpop.permute.xlu0 %1748
      %1750 = vrot.lane.b32.xlu0 %v761, 32
      %v1751 = vpop.permute.xlu0 %1750
      %1752 = vrot.lane.b32.xlu0 %v762, 32
      %v1753 = vpop.permute.xlu0 %1752
      %1754 = vrot.lane.b32.xlu0 %v763, 32
      %v1755 = vpop.permute.xlu0 %1754
      %v1788 = vsel %vm386, %v475, %v797
      %v1789 = vsel %vm386, %v476, %v799
      %v1790 = vsel %vm386, %v477, %v801
      %v1791 = vsel %vm386, %v478, %v803
      %v1792 = vsel %vm386, %v479, %v805
      %v1793 = vsel %vm386, %v480, %v807
      %v1794 = vsel %vm386, %v481, %v809
      %v1795 = vsel %vm386, %v482, %v811
      %v1796 = vsel %vm386, %v483, %v813
      %v1797 = vsel %vm386, %v484, %v815
      %v1798 = vsel %vm386, %v485, %v817
      %v1799 = vsel %vm386, %v486, %v819
      %v1800 = vsel %vm386, %v487, %v821
      %v1801 = vsel %vm386, %v488, %v823
      %v1802 = vsel %vm386, %v489, %v825
      %v1803 = vsel %vm386, %v490, %v827
      %v1804 = vsel %vm386, %v491, %v829
      %v1805 = vsel %vm386, %v492, %v831
      %v1806 = vsel %vm386, %v493, %v833
      %v1807 = vsel %vm386, %v494, %v835
      %v1808 = vsel %vm386, %v495, %v837
      %v1809 = vsel %vm386, %v496, %v839
      %v1810 = vsel %vm386, %v497, %v841
      %v1811 = vsel %vm386, %v498, %v843
      %v1812 = vsel %vm386, %v499, %v845
      %v1813 = vsel %vm386, %v500, %v847
      %v1814 = vsel %vm386, %v501, %v849
      %v1815 = vsel %vm386, %v502, %v851
      %v1816 = vsel %vm386, %v503, %v853
      %v1817 = vsel %vm386, %v504, %v855
      %v1818 = vsel %vm386, %v505, %v857
      %v1819 = vsel %vm386, %v506, %v859
      %vm1820 = vcmask 64512
      %v1821 = vsel %vm1820, %v1788, %v925
      %v1822 = vsel %vm1820, %v1789, %v927
      %v1823 = vsel %vm1820, %v1790, %v929
      %v1824 = vsel %vm1820, %v1791, %v931
      %v1825 = vsel %vm1820, %v1792, %v933
      %v1826 = vsel %vm1820, %v1793, %v935
      %v1827 = vsel %vm1820, %v1794, %v937
      %v1828 = vsel %vm1820, %v1795, %v939
      %v1829 = vsel %vm1820, %v1796, %v941
      %v1830 = vsel %vm1820, %v1797, %v943
      %v1831 = vsel %vm1820, %v1798, %v945
      %v1832 = vsel %vm1820, %v1799, %v947
      %v1833 = vsel %vm1820, %v1800, %v949
      %v1834 = vsel %vm1820, %v1801, %v951
      %v1835 = vsel %vm1820, %v1802, %v953
      %v1836 = vsel %vm1820, %v1803, %v955
      %v1837 = vsel %vm1820, %v1804, %v957
      %v1838 = vsel %vm1820, %v1805, %v959
      %v1839 = vsel %vm1820, %v1806, %v961
      %v1840 = vsel %vm1820, %v1807, %v963
      %v1841 = vsel %vm1820, %v1808, %v965
      %v1842 = vsel %vm1820, %v1809, %v967
      %v1843 = vsel %vm1820, %v1810, %v969
      %v1844 = vsel %vm1820, %v1811, %v971
      %v1845 = vsel %vm1820, %v1812, %v973
      %v1846 = vsel %vm1820, %v1813, %v975
      %v1847 = vsel %vm1820, %v1814, %v977
      %v1848 = vsel %vm1820, %v1815, %v979
      %v1849 = vsel %vm1820, %v1816, %v981
      %v1850 = vsel %vm1820, %v1817, %v983
      %v1851 = vsel %vm1820, %v1818, %v985
      %v1852 = vsel %vm1820, %v1819, %v987
      %vm1853 = vcmask 97280
      %v1854 = vsel %vm1853, %v1821, %v1053
      %v1855 = vsel %vm1853, %v1822, %v1055
      %v1856 = vsel %vm1853, %v1823, %v1057
      %v1857 = vsel %vm1853, %v1824, %v1059
      %v1858 = vsel %vm1853, %v1825, %v1061
      %v1859 = vsel %vm1853, %v1826, %v1063
      %v1860 = vsel %vm1853, %v1827, %v1065
      %v1861 = vsel %vm1853, %v1828, %v1067
      %v1862 = vsel %vm1853, %v1829, %v1069
      %v1863 = vsel %vm1853, %v1830, %v1071
      %v1864 = vsel %vm1853, %v1831, %v1073
      %v1865 = vsel %vm1853, %v1832, %v1075
      %v1866 = vsel %vm1853, %v1833, %v1077
      %v1867 = vsel %vm1853, %v1834, %v1079
      %v1868 = vsel %vm1853, %v1835, %v1081
      %v1869 = vsel %vm1853, %v1836, %v1083
      %v1870 = vsel %vm1853, %v1837, %v1085
      %v1871 = vsel %vm1853, %v1838, %v1087
      %v1872 = vsel %vm1853, %v1839, %v1089
      %v1873 = vsel %vm1853, %v1840, %v1091
      %v1874 = vsel %vm1853, %v1841, %v1093
      %v1875 = vsel %vm1853, %v1842, %v1095
      %v1876 = vsel %vm1853, %v1843, %v1097
      %v1877 = vsel %vm1853, %v1844, %v1099
      %v1878 = vsel %vm1853, %v1845, %v1101
      %v1879 = vsel %vm1853, %v1846, %v1103
      %v1880 = vsel %vm1853, %v1847, %v1105
      %v1881 = vsel %vm1853, %v1848, %v1107
      %v1882 = vsel %vm1853, %v1849, %v1109
      %v1883 = vsel %vm1853, %v1850, %v1111
      %v1884 = vsel %vm1853, %v1851, %v1113
      %v1885 = vsel %vm1853, %v1852, %v1115
      %vm1886 = vcmask 130048
      %v1887 = vsel %vm1886, %v1854, %v1181
      %v1888 = vsel %vm1886, %v1855, %v1183
      %v1889 = vsel %vm1886, %v1856, %v1185
      %v1890 = vsel %vm1886, %v1857, %v1187
      %v1891 = vsel %vm1886, %v1858, %v1189
      %v1892 = vsel %vm1886, %v1859, %v1191
      %v1893 = vsel %vm1886, %v1860, %v1193
      %v1894 = vsel %vm1886, %v1861, %v1195
      %v1895 = vsel %vm1886, %v1862, %v1197
      %v1896 = vsel %vm1886, %v1863, %v1199
      %v1897 = vsel %vm1886, %v1864, %v1201
      %v1898 = vsel %vm1886, %v1865, %v1203
      %v1899 = vsel %vm1886, %v1866, %v1205
      %v1900 = vsel %vm1886, %v1867, %v1207
      %v1901 = vsel %vm1886, %v1868, %v1209
      %v1902 = vsel %vm1886, %v1869, %v1211
      %v1903 = vsel %vm1886, %v1870, %v1213
      %v1904 = vsel %vm1886, %v1871, %v1215
      %v1905 = vsel %vm1886, %v1872, %v1217
      %v1906 = vsel %vm1886, %v1873, %v1219
      %v1907 = vsel %vm1886, %v1874, %v1221
      %v1908 = vsel %vm1886, %v1875, %v1223
      %v1909 = vsel %vm1886, %v1876, %v1225
      %v1910 = vsel %vm1886, %v1877, %v1227
      %v1911 = vsel %vm1886, %v1878, %v1229
      %v1912 = vsel %vm1886, %v1879, %v1231
      %v1913 = vsel %vm1886, %v1880, %v1233
      %v1914 = vsel %vm1886, %v1881, %v1235
      %v1915 = vsel %vm1886, %v1882, %v1237
      %v1916 = vsel %vm1886, %v1883, %v1239
      %v1917 = vsel %vm1886, %v1884, %v1241
      %v1918 = vsel %vm1886, %v1885, %v1243
      %vm1919 = vcmask 162816
      %v1920 = vsel %vm1919, %v1887, %v1309
      %v1921 = vsel %vm1919, %v1888, %v1311
      %v1922 = vsel %vm1919, %v1889, %v1313
      %v1923 = vsel %vm1919, %v1890, %v1315
      %v1924 = vsel %vm1919, %v1891, %v1317
      %v1925 = vsel %vm1919, %v1892, %v1319
      %v1926 = vsel %vm1919, %v1893, %v1321
      %v1927 = vsel %vm1919, %v1894, %v1323
      %v1928 = vsel %vm1919, %v1895, %v1325
      %v1929 = vsel %vm1919, %v1896, %v1327
      %v1930 = vsel %vm1919, %v1897, %v1329
      %v1931 = vsel %vm1919, %v1898, %v1331
      %v1932 = vsel %vm1919, %v1899, %v1333
      %v1933 = vsel %vm1919, %v1900, %v1335
      %v1934 = vsel %vm1919, %v1901, %v1337
      %v1935 = vsel %vm1919, %v1902, %v1339
      %v1936 = vsel %vm1919, %v1903, %v1341
      %v1937 = vsel %vm1919, %v1904, %v1343
      %v1938 = vsel %vm1919, %v1905, %v1345
      %v1939 = vsel %vm1919, %v1906, %v1347
      %v1940 = vsel %vm1919, %v1907, %v1349
      %v1941 = vsel %vm1919, %v1908, %v1351
      %v1942 = vsel %vm1919, %v1909, %v1353
      %v1943 = vsel %vm1919, %v1910, %v1355
      %v1944 = vsel %vm1919, %v1911, %v1357
      %v1945 = vsel %vm1919, %v1912, %v1359
      %v1946 = vsel %vm1919, %v1913, %v1361
      %v1947 = vsel %vm1919, %v1914, %v1363
      %v1948 = vsel %vm1919, %v1915, %v1365
      %v1949 = vsel %vm1919, %v1916, %v1367
      %v1950 = vsel %vm1919, %v1917, %v1369
      %v1951 = vsel %vm1919, %v1918, %v1371
      %vm1952 = vcmask 195584
      %v1953 = vsel %vm1952, %v1920, %v1437
      %v1954 = vsel %vm1952, %v1921, %v1439
      %v1955 = vsel %vm1952, %v1922, %v1441
      %v1956 = vsel %vm1952, %v1923, %v1443
      %v1957 = vsel %vm1952, %v1924, %v1445
      %v1958 = vsel %vm1952, %v1925, %v1447
      %v1959 = vsel %vm1952, %v1926, %v1449
      %v1960 = vsel %vm1952, %v1927, %v1451
      %v1961 = vsel %vm1952, %v1928, %v1453
      %v1962 = vsel %vm1952, %v1929, %v1455
      %v1963 = vsel %vm1952, %v1930, %v1457
      %v1964 = vsel %vm1952, %v1931, %v1459
      %v1965 = vsel %vm1952, %v1932, %v1461
      %v1966 = vsel %vm1952, %v1933, %v1463
      %v1967 = vsel %vm1952, %v1934, %v1465
      %v1968 = vsel %vm1952, %v1935, %v1467
      %v1969 = vsel %vm1952, %v1936, %v1469
      %v1970 = vsel %vm1952, %v1937, %v1471
      %v1971 = vsel %vm1952, %v1938, %v1473
      %v1972 = vsel %vm1952, %v1939, %v1475
      %v1973 = vsel %vm1952, %v1940, %v1477
      %v1974 = vsel %vm1952, %v1941, %v1479
      %v1975 = vsel %vm1952, %v1942, %v1481
      %v1976 = vsel %vm1952, %v1943, %v1483
      %v1977 = vsel %vm1952, %v1944, %v1485
      %v1978 = vsel %vm1952, %v1945, %v1487
      %v1979 = vsel %vm1952, %v1946, %v1489
      %v1980 = vsel %vm1952, %v1947, %v1491
      %v1981 = vsel %vm1952, %v1948, %v1493
      %v1982 = vsel %vm1952, %v1949, %v1495
      %v1983 = vsel %vm1952, %v1950, %v1497
      %v1984 = vsel %vm1952, %v1951, %v1499
      %vm1985 = vcmask 228352
      %v1986 = vsel %vm1985, %v1953, %v1565
      %v1987 = vsel %vm1985, %v1954, %v1567
      %v1988 = vsel %vm1985, %v1955, %v1569
      %v1989 = vsel %vm1985, %v1956, %v1571
      %v1990 = vsel %vm1985, %v1957, %v1573
      %v1991 = vsel %vm1985, %v1958, %v1575
      %v1992 = vsel %vm1985, %v1959, %v1577
      %v1993 = vsel %vm1985, %v1960, %v1579
      %v1994 = vsel %vm1985, %v1961, %v1581
      %v1995 = vsel %vm1985, %v1962, %v1583
      %v1996 = vsel %vm1985, %v1963, %v1585
      %v1997 = vsel %vm1985, %v1964, %v1587
      %v1998 = vsel %vm1985, %v1965, %v1589
      %v1999 = vsel %vm1985, %v1966, %v1591
      %v2000 = vsel %vm1985, %v1967, %v1593
      %v2001 = vsel %vm1985, %v1968, %v1595
      %v2002 = vsel %vm1985, %v1969, %v1597
      %v2003 = vsel %vm1985, %v1970, %v1599
      %v2004 = vsel %vm1985, %v1971, %v1601
      %v2005 = vsel %vm1985, %v1972, %v1603
      %v2006 = vsel %vm1985, %v1973, %v1605
      %v2007 = vsel %vm1985, %v1974, %v1607
      %v2008 = vsel %vm1985, %v1975, %v1609
      %v2009 = vsel %vm1985, %v1976, %v1611
      %v2010 = vsel %vm1985, %v1977, %v1613
      %v2011 = vsel %vm1985, %v1978, %v1615
      %v2012 = vsel %vm1985, %v1979, %v1617
      %v2013 = vsel %vm1985, %v1980, %v1619
      %v2014 = vsel %vm1985, %v1981, %v1621
      %v2015 = vsel %vm1985, %v1982, %v1623
      %v2016 = vsel %vm1985, %v1983, %v1625
      %v2017 = vsel %vm1985, %v1984, %v1627
      %v2018 = vsel %vm297, %v1986, %v1693
      %v2019 = vsel %vm297, %v1987, %v1695
      %v2020 = vsel %vm297, %v1988, %v1697
      %v2021 = vsel %vm297, %v1989, %v1699
      %v2022 = vsel %vm297, %v1990, %v1701
      %v2023 = vsel %vm297, %v1991, %v1703
      %v2024 = vsel %vm297, %v1992, %v1705
      %v2025 = vsel %vm297, %v1993, %v1707
      %v2026 = vsel %vm297, %v1994, %v1709
      %v2027 = vsel %vm297, %v1995, %v1711
      %v2028 = vsel %vm297, %v1996, %v1713
      %v2029 = vsel %vm297, %v1997, %v1715
      %v2030 = vsel %vm297, %v1998, %v1717
      %v2031 = vsel %vm297, %v1999, %v1719
      %v2032 = vsel %vm297, %v2000, %v1721
      %v2033 = vsel %vm297, %v2001, %v1723
      %v2034 = vsel %vm297, %v2002, %v1725
      %v2035 = vsel %vm297, %v2003, %v1727
      %v2036 = vsel %vm297, %v2004, %v1729
      %v2037 = vsel %vm297, %v2005, %v1731
      %v2038 = vsel %vm297, %v2006, %v1733
      %v2039 = vsel %vm297, %v2007, %v1735
      %v2040 = vsel %vm297, %v2008, %v1737
      %v2041 = vsel %vm297, %v2009, %v1739
      %v2042 = vsel %vm297, %v2010, %v1741
      %v2043 = vsel %vm297, %v2011, %v1743
      %v2044 = vsel %vm297, %v2012, %v1745
      %v2045 = vsel %vm297, %v2013, %v1747
      %v2046 = vsel %vm297, %v2014, %v1749
      %v2047 = vsel %vm297, %v2015, %v1751
      %v2048 = vsel %vm297, %v2016, %v1753
      %v2049 = vsel %vm297, %v2017, %v1755
      %v2050 = vld [vmem:[%s4] sm:$0xff]
      %v2051 = vld [vmem:[%s4 + $0x8] sm:$0xff]
      %v2052 = vld [vmem:[%s4 + $0x10] sm:$0xff]
      %v2053 = vld [vmem:[%s4 + $0x18] sm:$0xff]
      %v2054 = vld [vmem:[%s4 + $0x20] sm:$0xf]
      %v2055 = vld [vmem:[%s5] sm:$0x1]
      %v2057 = vperm.slane %v2055, 0
      %vm2059 = vcmask 293888
      %v2061 = vsel %vm2059, %v2018, 0
      %v2064 = vsel %vm2059, %v2019, 0
      %v2067 = vsel %vm2059, %v2020, 0
      %v2070 = vsel %vm2059, %v2021, 0
      %v2073 = vsel %vm2059, %v2022, 0
      %v2076 = vsel %vm2059, %v2023, 0
      %v2079 = vsel %vm2059, %v2024, 0
      %v2082 = vsel %vm2059, %v2025, 0
      %v2085 = vsel %vm2059, %v2026, 0
      %v2088 = vsel %vm2059, %v2027, 0
      %v2091 = vsel %vm2059, %v2028, 0
      %v2094 = vsel %vm2059, %v2029, 0
      %v2097 = vsel %vm2059, %v2030, 0
      %v2100 = vsel %vm2059, %v2031, 0
      %v2103 = vsel %vm2059, %v2032, 0
      %v2106 = vsel %vm2059, %v2033, 0
      %v2109 = vsel %vm2059, %v2034, 0
      %v2112 = vsel %vm2059, %v2035, 0
      %v2115 = vsel %vm2059, %v2036, 0
      %v2118 = vsel %vm2059, %v2037, 0
      %v2121 = vsel %vm2059, %v2038, 0
      %v2124 = vsel %vm2059, %v2039, 0
      %v2127 = vsel %vm2059, %v2040, 0
      %v2130 = vsel %vm2059, %v2041, 0
      %v2133 = vsel %vm2059, %v2042, 0
      %v2136 = vsel %vm2059, %v2043, 0
      %v2139 = vsel %vm2059, %v2044, 0
      %v2142 = vsel %vm2059, %v2045, 0
      %v2145 = vsel %vm2059, %v2046, 0
      %v2148 = vsel %vm2059, %v2047, 0
      %v2151 = vsel %vm2059, %v2048, 0
      %v2154 = vsel %vm2059, %v2049, 0
      %vm2156 = vcmask 1043456
      %v2158 = vsel %vm2156, %v2054, 0
      %2160 = vmatpush.msra.mxu0 0.0
      %2161 = vmatpush.msra.mxu0 0.0
      %2162 = vmatpush.msra.mxu0 0.0
      %2163 = vmatpush.msra.mxu0 0.0
      %2164 = vmatpush.msra.mxu0 0.0
      %2165 = vmatpush.msra.mxu0 0.0
      %2166 = vmatpush.msra.mxu0 0.0
      %2167 = vmatpush.msra.mxu0 0.0
      %2168 = vmatpush.msra.mxu0 0.0
      %2169 = vmatpush.msra.mxu0 0.0
      %2170 = vmatpush.msra.mxu0 0.0
      %2171 = vmatpush.msra.mxu0 %v2158
      %2172 = vmatpush.msra.mxu0 %v2053
      %2173 = vmatpush.msra.mxu0 %v2052
      %2174 = vmatpush.msra.mxu0 %v2051
      %2175 = vmatpush.msra.mxu0 %v2050
      %2176 = vmatmul.f32.gmra.mxu0 %v2061
      %v2177 = vpop.f32.mrf.mxu0
      %v2178 = vadd.f32 %v2057, %v2177
      %2179 = vmatmul.f32.gmra.mxu0 %v2064
      %v2180 = vpop.f32.mrf.mxu0
      %v2181 = vadd.f32 %v2057, %v2180
      %2182 = vmatmul.f32.gmra.mxu0 %v2067
      %v2183 = vpop.f32.mrf.mxu0
      %v2184 = vadd.f32 %v2057, %v2183
      %2185 = vmatmul.f32.gmra.mxu0 %v2070
      %v2186 = vpop.f32.mrf.mxu0
      %v2187 = vadd.f32 %v2057, %v2186
      %2188 = vmatmul.f32.gmra.mxu0 %v2073
      %v2189 = vpop.f32.mrf.mxu0
      %v2190 = vadd.f32 %v2057, %v2189
      %2191 = vmatmul.f32.gmra.mxu0 %v2076
      %v2192 = vpop.f32.mrf.mxu0
      %v2193 = vadd.f32 %v2057, %v2192
      %2194 = vmatmul.f32.gmra.mxu0 %v2079
      %v2195 = vpop.f32.mrf.mxu0
      %v2196 = vadd.f32 %v2057, %v2195
      %2197 = vmatmul.f32.gmra.mxu0 %v2082
      %v2198 = vpop.f32.mrf.mxu0
      %v2199 = vadd.f32 %v2057, %v2198
      %2200 = vmatmul.f32.gmra.mxu0 %v2085
      %v2201 = vpop.f32.mrf.mxu0
      %v2202 = vadd.f32 %v2057, %v2201
      %2203 = vmatmul.f32.gmra.mxu0 %v2088
      %v2204 = vpop.f32.mrf.mxu0
      %v2205 = vadd.f32 %v2057, %v2204
      %2206 = vmatmul.f32.gmra.mxu0 %v2091
      %v2207 = vpop.f32.mrf.mxu0
      %v2208 = vadd.f32 %v2057, %v2207
      %2209 = vmatmul.f32.gmra.mxu0 %v2094
      %v2210 = vpop.f32.mrf.mxu0
      %v2211 = vadd.f32 %v2057, %v2210
      %2212 = vmatmul.f32.gmra.mxu0 %v2097
      %v2213 = vpop.f32.mrf.mxu0
      %v2214 = vadd.f32 %v2057, %v2213
      %2215 = vmatmul.f32.gmra.mxu0 %v2100
      %v2216 = vpop.f32.mrf.mxu0
      %v2217 = vadd.f32 %v2057, %v2216
      %2218 = vmatmul.f32.gmra.mxu0 %v2103
      %v2219 = vpop.f32.mrf.mxu0
      %v2220 = vadd.f32 %v2057, %v2219
      %2221 = vmatmul.f32.gmra.mxu0 %v2106
      %v2222 = vpop.f32.mrf.mxu0
      %v2223 = vadd.f32 %v2057, %v2222
      %2224 = vmatmul.f32.gmra.mxu0 %v2109
      %v2225 = vpop.f32.mrf.mxu0
      %v2226 = vadd.f32 %v2057, %v2225
      %2227 = vmatmul.f32.gmra.mxu0 %v2112
      %v2228 = vpop.f32.mrf.mxu0
      %v2229 = vadd.f32 %v2057, %v2228
      %2230 = vmatmul.f32.gmra.mxu0 %v2115
      %v2231 = vpop.f32.mrf.mxu0
      %v2232 = vadd.f32 %v2057, %v2231
      %2233 = vmatmul.f32.gmra.mxu0 %v2118
      %v2234 = vpop.f32.mrf.mxu0
      %v2235 = vadd.f32 %v2057, %v2234
      %2236 = vmatmul.f32.gmra.mxu0 %v2121
      %v2237 = vpop.f32.mrf.mxu0
      %v2238 = vadd.f32 %v2057, %v2237
      %2239 = vmatmul.f32.gmra.mxu0 %v2124
      %v2240 = vpop.f32.mrf.mxu0
      %v2241 = vadd.f32 %v2057, %v2240
      %2242 = vmatmul.f32.gmra.mxu0 %v2127
      %v2243 = vpop.f32.mrf.mxu0
      %v2244 = vadd.f32 %v2057, %v2243
      %2245 = vmatmul.f32.gmra.mxu0 %v2130
      %v2246 = vpop.f32.mrf.mxu0
      %v2247 = vadd.f32 %v2057, %v2246
      %2248 = vmatmul.f32.gmra.mxu0 %v2133
      %v2249 = vpop.f32.mrf.mxu0
      %v2250 = vadd.f32 %v2057, %v2249
      %2251 = vmatmul.f32.gmra.mxu0 %v2136
      %v2252 = vpop.f32.mrf.mxu0
      %v2253 = vadd.f32 %v2057, %v2252
      %2254 = vmatmul.f32.gmra.mxu0 %v2139
      %v2255 = vpop.f32.mrf.mxu0
      %v2256 = vadd.f32 %v2057, %v2255
      %2257 = vmatmul.f32.gmra.mxu0 %v2142
      %v2258 = vpop.f32.mrf.mxu0
      %v2259 = vadd.f32 %v2057, %v2258
      %2260 = vmatmul.f32.gmra.mxu0 %v2145
      %v2261 = vpop.f32.mrf.mxu0
      %v2262 = vadd.f32 %v2057, %v2261
      %2263 = vmatmul.f32.gmra.mxu0 %v2148
      %v2264 = vpop.f32.mrf.mxu0
      %v2265 = vadd.f32 %v2057, %v2264
      %2266 = vmatmul.f32.gmra.mxu0 %v2151
      %v2267 = vpop.f32.mrf.mxu0
      %v2268 = vadd.f32 %v2057, %v2267
      %2269 = vmatmul.f32.gmra.mxu0 %v2154
      %v2270 = vpop.f32.mrf.mxu0
      %v2271 = vadd.f32 %v2057, %v2270
      %2272 = vdwg.mxu0
      %2273 = vst.msk [vmem:[%s285] sm:$0xff] %vm1820, %v2178
      %2274 = vst.msk [vmem:[%s285 + $0x8] sm:$0xff] %vm1820, %v2181
      %2275 = vst.msk [vmem:[%s285 + $0x10] sm:$0xff] %vm1820, %v2184
      %2276 = vst.msk [vmem:[%s285 + $0x18] sm:$0xff] %vm1820, %v2187
      %2277 = vst.msk [vmem:[%s285 + $0x20] sm:$0xff] %vm1820, %v2190
      %2278 = vst.msk [vmem:[%s285 + $0x28] sm:$0xff] %vm1820, %v2193
      %2279 = vst.msk [vmem:[%s285 + $0x30] sm:$0xff] %vm1820, %v2196
      %2280 = vst.msk [vmem:[%s285 + $0x38] sm:$0xff] %vm1820, %v2199
      %2281 = vst.msk [vmem:[%s285 + $0x40] sm:$0xff] %vm1820, %v2202
      %2282 = vst.msk [vmem:[%s285 + $0x48] sm:$0xff] %vm1820, %v2205
      %2283 = vst.msk [vmem:[%s285 + $0x50] sm:$0xff] %vm1820, %v2208
      %2284 = vst.msk [vmem:[%s285 + $0x58] sm:$0xff] %vm1820, %v2211
      %2285 = vst.msk [vmem:[%s285 + $0x60] sm:$0xff] %vm1820, %v2214
      %2286 = vst.msk [vmem:[%s285 + $0x68] sm:$0xff] %vm1820, %v2217
      %2287 = vst.msk [vmem:[%s285 + $0x70] sm:$0xff] %vm1820, %v2220
      %2288 = vst.msk [vmem:[%s285 + $0x78] sm:$0xff] %vm1820, %v2223
      %2289 = vst.msk [vmem:[%s285 + $0x80] sm:$0xff] %vm1820, %v2226
      %2290 = vst.msk [vmem:[%s285 + $0x88] sm:$0xff] %vm1820, %v2229
      %2291 = vst.msk [vmem:[%s285 + $0x90] sm:$0xff] %vm1820, %v2232
      %2292 = vst.msk [vmem:[%s285 + $0x98] sm:$0xff] %vm1820, %v2235
      %2293 = vst.msk [vmem:[%s285 + $0xa0] sm:$0xff] %vm1820, %v2238
      %2294 = vst.msk [vmem:[%s285 + $0xa8] sm:$0xff] %vm1820, %v2241
      %2295 = vst.msk [vmem:[%s285 + $0xb0] sm:$0xff] %vm1820, %v2244
      %2296 = vst.msk [vmem:[%s285 + $0xb8] sm:$0xff] %vm1820, %v2247
      %2297 = vst.msk [vmem:[%s285 + $0xc0] sm:$0xff] %vm1820, %v2250
      %2298 = vst.msk [vmem:[%s285 + $0xc8] sm:$0xff] %vm1820, %v2253
      %2299 = vst.msk [vmem:[%s285 + $0xd0] sm:$0xff] %vm1820, %v2256
      %2300 = vst.msk [vmem:[%s285 + $0xd8] sm:$0xff] %vm1820, %v2259
      %2301 = vst.msk [vmem:[%s285 + $0xe0] sm:$0xff] %vm1820, %v2262
      %2302 = vst.msk [vmem:[%s285 + $0xe8] sm:$0xff] %vm1820, %v2265
      %2303 = vst.msk [vmem:[%s285 + $0xf0] sm:$0xff] %vm1820, %v2268
      %2304 = vst.msk [vmem:[%s285 + $0xf8] sm:$0xff] %vm1820, %v2271
      %v2305 = vsel %vm1820, %v2178, 0.0
      %v2306 = vsel %vm1820, %v2181, 0.0
      %v2307 = vadd.f32 %v2305, %v2306
      %v2308 = vsel %vm1820, %v2184, 0.0
      %v2309 = vadd.f32 %v2307, %v2308
      %v2310 = vsel %vm1820, %v2187, 0.0
      %v2311 = vadd.f32 %v2309, %v2310
      %v2312 = vsel %vm1820, %v2190, 0.0
      %v2313 = vadd.f32 %v2311, %v2312
      %v2314 = vsel %vm1820, %v2193, 0.0
      %v2315 = vadd.f32 %v2313, %v2314
      %v2316 = vsel %vm1820, %v2196, 0.0
      %v2317 = vadd.f32 %v2315, %v2316
      %v2318 = vsel %vm1820, %v2199, 0.0
      %v2319 = vadd.f32 %v2317, %v2318
      %v2320 = vsel %vm1820, %v2202, 0.0
      %v2321 = vadd.f32 %v2319, %v2320
      %v2322 = vsel %vm1820, %v2205, 0.0
      %v2323 = vadd.f32 %v2321, %v2322
      %v2324 = vsel %vm1820, %v2208, 0.0
      %v2325 = vadd.f32 %v2323, %v2324
      %v2326 = vsel %vm1820, %v2211, 0.0
      %v2327 = vadd.f32 %v2325, %v2326
      %v2328 = vsel %vm1820, %v2214, 0.0
      %v2329 = vadd.f32 %v2327, %v2328
      %v2330 = vsel %vm1820, %v2217, 0.0
      %v2331 = vadd.f32 %v2329, %v2330
      %v2332 = vsel %vm1820, %v2220, 0.0
      %v2333 = vadd.f32 %v2331, %v2332
      %v2334 = vsel %vm1820, %v2223, 0.0
      %v2335 = vadd.f32 %v2333, %v2334
      %v2336 = vsel %vm1820, %v2226, 0.0
      %v2337 = vadd.f32 %v2335, %v2336
      %v2338 = vsel %vm1820, %v2229, 0.0
      %v2339 = vadd.f32 %v2337, %v2338
      %v2340 = vsel %vm1820, %v2232, 0.0
      %v2341 = vadd.f32 %v2339, %v2340
      %v2342 = vsel %vm1820, %v2235, 0.0
      %v2343 = vadd.f32 %v2341, %v2342
      %v2344 = vsel %vm1820, %v2238, 0.0
      %v2345 = vadd.f32 %v2343, %v2344
      %v2346 = vsel %vm1820, %v2241, 0.0
      %v2347 = vadd.f32 %v2345, %v2346
      %v2348 = vsel %vm1820, %v2244, 0.0
      %v2349 = vadd.f32 %v2347, %v2348
      %v2350 = vsel %vm1820, %v2247, 0.0
      %v2351 = vadd.f32 %v2349, %v2350
      %v2352 = vsel %vm1820, %v2250, 0.0
      %v2353 = vadd.f32 %v2351, %v2352
      %v2354 = vsel %vm1820, %v2253, 0.0
      %v2355 = vadd.f32 %v2353, %v2354
      %v2356 = vsel %vm1820, %v2256, 0.0
      %v2357 = vadd.f32 %v2355, %v2356
      %v2358 = vsel %vm1820, %v2259, 0.0
      %v2359 = vadd.f32 %v2357, %v2358
      %v2360 = vsel %vm1820, %v2262, 0.0
      %v2361 = vadd.f32 %v2359, %v2360
      %v2362 = vsel %vm1820, %v2265, 0.0
      %v2363 = vadd.f32 %v2361, %v2362
      %v2364 = vsel %vm1820, %v2268, 0.0
      %v2365 = vadd.f32 %v2363, %v2364
      %v2366 = vsel %vm1820, %v2271, 0.0
      %v2367 = vadd.f32 %v2365, %v2366
      %v2368 = vrot.slane %v2367, 4
      %v2369 = vadd.f32 %v2367, %v2368
      %v2370 = vrot.slane %v2369, 2
      %v2371 = vadd.f32 %v2369, %v2370
      %v2372 = vrot.slane %v2371, 1
      %v2373 = vadd.f32 %v2371, %v2372
      %v2374 = vmul.f32 %v2178, %v2178
      %v2375 = vmul.f32 %v2181, %v2181
      %v2376 = vmul.f32 %v2184, %v2184
      %v2377 = vmul.f32 %v2187, %v2187
      %v2378 = vmul.f32 %v2190, %v2190
      %v2379 = vmul.f32 %v2193, %v2193
      %v2380 = vmul.f32 %v2196, %v2196
      %v2381 = vmul.f32 %v2199, %v2199
      %v2382 = vmul.f32 %v2202, %v2202
      %v2383 = vmul.f32 %v2205, %v2205
      %v2384 = vmul.f32 %v2208, %v2208
      %v2385 = vmul.f32 %v2211, %v2211
      %v2386 = vmul.f32 %v2214, %v2214
      %v2387 = vmul.f32 %v2217, %v2217
      %v2388 = vmul.f32 %v2220, %v2220
      %v2389 = vmul.f32 %v2223, %v2223
      %v2390 = vmul.f32 %v2226, %v2226
      %v2391 = vmul.f32 %v2229, %v2229
      %v2392 = vmul.f32 %v2232, %v2232
      %v2393 = vmul.f32 %v2235, %v2235
      %v2394 = vmul.f32 %v2238, %v2238
      %v2395 = vmul.f32 %v2241, %v2241
      %v2396 = vmul.f32 %v2244, %v2244
      %v2397 = vmul.f32 %v2247, %v2247
      %v2398 = vmul.f32 %v2250, %v2250
      %v2399 = vmul.f32 %v2253, %v2253
      %v2400 = vmul.f32 %v2256, %v2256
      %v2401 = vmul.f32 %v2259, %v2259
      %v2402 = vmul.f32 %v2262, %v2262
      %v2403 = vmul.f32 %v2265, %v2265
      %v2404 = vmul.f32 %v2268, %v2268
      %v2405 = vmul.f32 %v2271, %v2271
      %v2406 = vsel %vm1820, %v2374, 0.0
      %v2407 = vsel %vm1820, %v2375, 0.0
      %v2408 = vadd.f32 %v2406, %v2407
      %v2409 = vsel %vm1820, %v2376, 0.0
      %v2410 = vadd.f32 %v2408, %v2409
      %v2411 = vsel %vm1820, %v2377, 0.0
      %v2412 = vadd.f32 %v2410, %v2411
      %v2413 = vsel %vm1820, %v2378, 0.0
      %v2414 = vadd.f32 %v2412, %v2413
      %v2415 = vsel %vm1820, %v2379, 0.0
      %v2416 = vadd.f32 %v2414, %v2415
      %v2417 = vsel %vm1820, %v2380, 0.0
      %v2418 = vadd.f32 %v2416, %v2417
      %v2419 = vsel %vm1820, %v2381, 0.0
      %v2420 = vadd.f32 %v2418, %v2419
      %v2421 = vsel %vm1820, %v2382, 0.0
      %v2422 = vadd.f32 %v2420, %v2421
      %v2423 = vsel %vm1820, %v2383, 0.0
      %v2424 = vadd.f32 %v2422, %v2423
      %v2425 = vsel %vm1820, %v2384, 0.0
      %v2426 = vadd.f32 %v2424, %v2425
      %v2427 = vsel %vm1820, %v2385, 0.0
      %v2428 = vadd.f32 %v2426, %v2427
      %v2429 = vsel %vm1820, %v2386, 0.0
      %v2430 = vadd.f32 %v2428, %v2429
      %v2431 = vsel %vm1820, %v2387, 0.0
      %v2432 = vadd.f32 %v2430, %v2431
      %v2433 = vsel %vm1820, %v2388, 0.0
      %v2434 = vadd.f32 %v2432, %v2433
      %v2435 = vsel %vm1820, %v2389, 0.0
      %v2436 = vadd.f32 %v2434, %v2435
      %v2437 = vsel %vm1820, %v2390, 0.0
      %v2438 = vadd.f32 %v2436, %v2437
      %v2439 = vsel %vm1820, %v2391, 0.0
      %v2440 = vadd.f32 %v2438, %v2439
      %v2441 = vsel %vm1820, %v2392, 0.0
      %v2442 = vadd.f32 %v2440, %v2441
      %v2443 = vsel %vm1820, %v2393, 0.0
      %v2444 = vadd.f32 %v2442, %v2443
      %v2445 = vsel %vm1820, %v2394, 0.0
      %v2446 = vadd.f32 %v2444, %v2445
      %v2447 = vsel %vm1820, %v2395, 0.0
      %v2448 = vadd.f32 %v2446, %v2447
      %v2449 = vsel %vm1820, %v2396, 0.0
      %v2450 = vadd.f32 %v2448, %v2449
      %v2451 = vsel %vm1820, %v2397, 0.0
      %v2452 = vadd.f32 %v2450, %v2451
      %v2453 = vsel %vm1820, %v2398, 0.0
      %v2454 = vadd.f32 %v2452, %v2453
      %v2455 = vsel %vm1820, %v2399, 0.0
      %v2456 = vadd.f32 %v2454, %v2455
      %v2457 = vsel %vm1820, %v2400, 0.0
      %v2458 = vadd.f32 %v2456, %v2457
      %v2459 = vsel %vm1820, %v2401, 0.0
      %v2460 = vadd.f32 %v2458, %v2459
      %v2461 = vsel %vm1820, %v2402, 0.0
      %v2462 = vadd.f32 %v2460, %v2461
      %v2463 = vsel %vm1820, %v2403, 0.0
      %v2464 = vadd.f32 %v2462, %v2463
      %v2465 = vsel %vm1820, %v2404, 0.0
      %v2466 = vadd.f32 %v2464, %v2465
      %v2467 = vsel %vm1820, %v2405, 0.0
      %v2468 = vadd.f32 %v2466, %v2467
      %v2469 = vrot.slane %v2468, 4
      %v2470 = vadd.f32 %v2468, %v2469
      %v2471 = vrot.slane %v2470, 2
      %v2472 = vadd.f32 %v2470, %v2471
      %v2473 = vrot.slane %v2472, 1
      %v2474 = vadd.f32 %v2472, %v2473
      %vm2475 = vcmask 1040384
      %v2476 = vsel %vm2475, %v2373, %v2474
      %vm2477 = vcmask 58368
      %2478 = vst.msk [vmem:[%s289] sm:$0x3] %vm2477, %v2476
      %p2479 = scmp.lt.s32.totalorder %s19, 1
      %s2480 = scalar_select %p2479, %s19, 1
      %s2481 = smul.addr %s2480, 32
      %s2482 = smul.addr %s2481, 8
      %s2483 = scalar_lea.vmem %s6, %s2482
      %p2484 = scmp.lt.s32.totalorder %s19, 1
      %s2485 = scalar_select %p2484, %s19, 1
      %s2486 = smul.addr %s2485, 2
      %s2487 = scalar_lea.vmem %s7, %s2486
      // Predicated region
      $region45: #{down_layer_forward.3} parent=43 // pred_check
        %p2488 = pneg %p168
      $region46: #{down_layer_forward.3} parent=43 // pred_check_branch
        %2490 = sbr.rel (%p2488) target = $region48
      $region47: #{down_layer_forward.3} parent=43 // pred_region
        _
      $region48: #{down_layer_forward.3} parent=43 // pred_fallthru
        _
      // Predicated region
      $region49: #{down_layer_forward.3} parent=43 // pred_check
        %p2491 = pneg %p194
      $region50: #{down_layer_forward.3} parent=43 // pred_check_branch
        %2493 = sbr.rel (%p2491) target = $region52
      $region51: #{down_layer_forward.3} parent=43 // pred_region
        _
      $region52: #{down_layer_forward.3} parent=43 // pred_fallthru
        _
    $region44: #{down_layer_forward.3} parent=5 // pred_fallthru
      _
    %p2494 = scmp.le.s32.totalorder 2, %s14
    // Predicated region
    $region53: #{down_layer_forward.3} parent=5 // pred_check
      %p2495 = pneg %p2494
    $region54: #{down_layer_forward.3} parent=5 // pred_check_branch
      %2497 = sbr.rel (%p2495) target = $region56
    $region55: #{down_layer_forward.3} parent=5 // pred_region
      %s2498 = ssub.s32 %s14, 2
      // Predicated region
      $region57: #{down_layer_forward.3} parent=55 // pred_check
        %p2499 = pneg %p174
      $region58: #{down_layer_forward.3} parent=55 // pred_check_branch
        %2501 = sbr.rel (%p2499) target = $region60
      $region59: #{down_layer_forward.3} parent=55 // pred_region
        %p2502 = scmp.lt.s32.totalorder %s20, 1
        %s2503 = scalar_select %p2502, %s20, 1
        %s2504 = smul.addr %s2503, 32
        %s2505 = smul.addr %s2504, 8
        %s2506 = scalar_lea.vmem %s6, %s2505
      $region60: #{down_layer_forward.3} parent=55 // pred_fallthru
        _
      // Predicated region
      $region61: #{down_layer_forward.3} parent=55 // pred_check
        %p2507 = pneg %p200
      $region62: #{down_layer_forward.3} parent=55 // pred_check_branch
        %2509 = sbr.rel (%p2507) target = $region64
      $region63: #{down_layer_forward.3} parent=55 // pred_region
        %p2510 = scmp.lt.s32.totalorder %s20, 1
        %s2511 = scalar_select %p2510, %s20, 1
        %s2512 = smul.addr %s2511, 2
        %s2513 = scalar_lea.vmem %s7, %s2512
      $region64: #{down_layer_forward.3} parent=55 // pred_fallthru
        _
    $region56: #{down_layer_forward.3} parent=5 // pred_fallthru
      _
  $region6: #{down_layer_forward.3} parent=0 // loop_footer
    %s18 = sadd.s32 1, %s14
  $region7: #{down_layer_forward.3} parent=0 // loop_footer_branch
    %13 = sbr.rel target = $region3
  $region8: #{down_layer_forward.3} parent=0 // loop_exit
    _

// kernel: down_layer_forward.4
$region0: #{down_layer_forward.4}
  #allocation0 [shape = 'u32[]', space=smem, size = 0x4, offset = 0x4, fixed_abs, tag = 'smem constant byte address 0x4 - core index']
  #allocation1 [shape = 'u32[72,128]{1,0:T(1,128)}', space=vmem, size = 0x9000, scoped, tag = 'internal scratch']
  #allocation2 [shape = 'f32[18,18,8]{2,1,0:T(8,128)}', space=vmem, size = 0x36000, scoped, tag = 'scratch operand']
  %s0 = inlined_call_operand.vmem [shape: f32[2,256,8], index: 0, kind: input, shape index: {}]
  %s1 = inlined_call_operand.vmem [shape: f32[1,8], index: 1, kind: input, shape index: {}]
  %s2 = inlined_call_operand.vmem [shape: f32[1,8], index: 2, kind: input, shape index: {}]
  %s3 = inlined_call_operand.vmem [shape: f32[72,8], index: 3, kind: input, shape index: {}]
  %s4 = inlined_call_operand.vmem [shape: f32[1,8], index: 4, kind: input, shape index: {}]
  %s5 = inlined_call_operand.vmem [shape: f32[2,256,8], index: 5, kind: output, shape index: {0}]
  %s6 = inlined_call_operand.vmem [shape: f32[2,2,8], index: 6, kind: output, shape index: {1}]
  %7 = xla_tuple %s5, %s6
  %s8 = sld [smem:[#allocation0]]
  $region61: #{down_layer_forward.4} parent=0
    _
  %s10 = ssub.s32 1, %s8
  %s11 = scalar_select 0, %s10, %s8
  loop: start=0, step=1, limit=4
  $region2: #{down_layer_forward.4} parent=0 // loop_pre_header
    _
  $region3: #{down_layer_forward.4} parent=0 // loop_header
    %s13 = sphi 0, %s17
    %p14 = scmp.ge.s32.totalorder %s13, 4
    %s23 = sphi 0, %s25
    %s26 = sphi 0, %s23
    %s27 = sphi 0, %s26
    %s43 = sphi 0, %s27
    %s47 = sphi 0, %s47
    %s49 = sphi 0, %s47
    %s50 = sphi 0, %s49
    %s64 = sphi 0, %s50
    %s68 = sphi 0, %s68
    %s70 = sphi 0, %s68
    %s71 = sphi 0, %s70
    %s85 = sphi 0, %s71
    %s89 = sphi 0, %s89
    %s91 = sphi 0, %s89
    %s92 = sphi 0, %s91
    %s106 = sphi 0, %s92
    %s110 = sphi 0, %s110
    %s112 = sphi 0, %s110
    %s113 = sphi 0, %s112
    %s127 = sphi 0, %s113
    %s133 = sphi 0, %s135
    %s136 = sphi 0, %s133
    %s137 = sphi 0, %s136
    %s153 = sphi 0, %s137
    %s159 = sphi 0, %s161
    %s162 = sphi 0, %s159
    %s163 = sphi 0, %s162
    %s179 = sphi 0, %s163
  $region4: #{down_layer_forward.4} parent=0 // loop_header_branch
    %16 = sbr.rel (%p14) target = $region8
  $region5: #{down_layer_forward.4} parent=0 // loop_body
    %s18 = ssub.s32 %s13, 1
    %s19 = ssub.s32 %s13, 2
    %s20 = sadd.s32 %s13, 1
    %s21 = ssub.s32 %s13, %s20
    %p22 = scmp.eq.s32.totalorder %s21, 0
    %s24 = sadd.s32 %s23, 1
    %s25 = scalar_select %p22, %s23, %s24
    %p28 = pneg %p22
    %p29 = scmp.eq.s32.totalorder %s13, 1
    %p30 = por %p28, %p29
    %p31 = scmp.ne.s32.totalorder %s23, %s26
    %p32 = scmp.eq.s32.totalorder %s13, 0
    %p33 = por %p31, %p32
    %p34 = scmp.ne.s32.totalorder %s23, %s26
    %p35 = scmp.eq.s32.totalorder %s18, 1
    %p36 = por %p34, %p35
    %p37 = scmp.ne.s32.totalorder %s26, %s27
    %p38 = scmp.eq.s32.totalorder %s18, 0
    %p39 = por %p37, %p38
    %p40 = scmp.ne.s32.totalorder %s26, %s27
    %p41 = scmp.eq.s32.totalorder %s19, 1
    %p42 = por %p40, %p41
    %p44 = scmp.ne.s32.totalorder %s27, %s43
    %p45 = scmp.eq.s32.totalorder %s19, 0
    %p46 = por %p44, %p45
    %s48 = sadd.s32 %s47, 1
    %p51 = scmp.eq.s32.totalorder %s13, 1
    %p52 = scmp.ne.s32.totalorder %s47, %s49
    %p53 = scmp.eq.s32.totalorder %s13, 0
    %p54 = por %p52, %p53
    %p55 = scmp.ne.s32.totalorder %s47, %s49
    %p56 = scmp.eq.s32.totalorder %s18, 1
    %p57 = por %p55, %p56
    %p58 = scmp.ne.s32.totalorder %s49, %s50
    %p59 = scmp.eq.s32.totalorder %s18, 0
    %p60 = por %p58, %p59
    %p61 = scmp.ne.s32.totalorder %s49, %s50
    %p62 = scmp.eq.s32.totalorder %s19, 1
    %p63 = por %p61, %p62
    %p65 = scmp.ne.s32.totalorder %s50, %s64
    %p66 = scmp.eq.s32.totalorder %s19, 0
    %p67 = por %p65, %p66
    %s69 = sadd.s32 %s68, 1
    %p72 = scmp.eq.s32.totalorder %s13, 1
    %p73 = scmp.ne.s32.totalorder %s68, %s70
    %p74 = scmp.eq.s32.totalorder %s13, 0
    %p75 = por %p73, %p74
    %p76 = scmp.ne.s32.totalorder %s68, %s70
    %p77 = scmp.eq.s32.totalorder %s18, 1
    %p78 = por %p76, %p77
    %p79 = scmp.ne.s32.totalorder %s70, %s71
    %p80 = scmp.eq.s32.totalorder %s18, 0
    %p81 = por %p79, %p80
    %p82 = scmp.ne.s32.totalorder %s70, %s71
    %p83 = scmp.eq.s32.totalorder %s19, 1
    %p84 = por %p82, %p83
    %p86 = scmp.ne.s32.totalorder %s71, %s85
    %p87 = scmp.eq.s32.totalorder %s19, 0
    %p88 = por %p86, %p87
    %s90 = sadd.s32 %s89, 1
    %p93 = scmp.eq.s32.totalorder %s13, 1
    %p94 = scmp.ne.s32.totalorder %s89, %s91
    %p95 = scmp.eq.s32.totalorder %s13, 0
    %p96 = por %p94, %p95
    %p97 = scmp.ne.s32.totalorder %s89, %s91
    %p98 = scmp.eq.s32.totalorder %s18, 1
    %p99 = por %p97, %p98
    %p100 = scmp.ne.s32.totalorder %s91, %s92
    %p101 = scmp.eq.s32.totalorder %s18, 0
    %p102 = por %p100, %p101
    %p103 = scmp.ne.s32.totalorder %s91, %s92
    %p104 = scmp.eq.s32.totalorder %s19, 1
    %p105 = por %p103, %p104
    %p107 = scmp.ne.s32.totalorder %s92, %s106
    %p108 = scmp.eq.s32.totalorder %s19, 0
    %p109 = por %p107, %p108
    %s111 = sadd.s32 %s110, 1
    %p114 = scmp.eq.s32.totalorder %s13, 1
    %p115 = scmp.ne.s32.totalorder %s110, %s112
    %p116 = scmp.eq.s32.totalorder %s13, 0
    %p117 = por %p115, %p116
    %p118 = scmp.ne.s32.totalorder %s110, %s112
    %p119 = scmp.eq.s32.totalorder %s18, 1
    %p120 = por %p118, %p119
    %p121 = scmp.ne.s32.totalorder %s112, %s113
    %p122 = scmp.eq.s32.totalorder %s18, 0
    %p123 = por %p121, %p122
    %p124 = scmp.ne.s32.totalorder %s112, %s113
    %p125 = scmp.eq.s32.totalorder %s19, 1
    %p126 = por %p124, %p125
    %p128 = scmp.ne.s32.totalorder %s113, %s127
    %p129 = scmp.eq.s32.totalorder %s19, 0
    %p130 = por %p128, %p129
    %s131 = ssub.s32 %s13, %s20
    %p132 = scmp.eq.s32.totalorder %s131, 0
    %s134 = sadd.s32 %s133, 1
    %s135 = scalar_select %p132, %s133, %s134
    %p138 = pneg %p132
    %p139 = scmp.eq.s32.totalorder %s13, 1
    %p140 = por %p138, %p139
    %p141 = scmp.ne.s32.totalorder %s133, %s136
    %p142 = scmp.eq.s32.totalorder %s13, 0
    %p143 = por %p141, %p142
    %p144 = scmp.ne.s32.totalorder %s133, %s136
    %p145 = scmp.eq.s32.totalorder %s18, 1
    %p146 = por %p144, %p145
    %p147 = scmp.ne.s32.totalorder %s136, %s137
    %p148 = scmp.eq.s32.totalorder %s18, 0
    %p149 = por %p147, %p148
    %p150 = scmp.ne.s32.totalorder %s136, %s137
    %p151 = scmp.eq.s32.totalorder %s19, 1
    %p152 = por %p150, %p151
    %p154 = scmp.ne.s32.totalorder %s137, %s153
    %p155 = scmp.eq.s32.totalorder %s19, 0
    %p156 = por %p154, %p155
    %s157 = ssub.s32 %s13, %s20
    %p158 = scmp.eq.s32.totalorder %s157, 0
    %s160 = sadd.s32 %s159, 1
    %s161 = scalar_select %p158, %s159, %s160
    %p164 = pneg %p158
    %p165 = scmp.eq.s32.totalorder %s13, 1
    %p166 = por %p164, %p165
    %p167 = scmp.ne.s32.totalorder %s159, %s162
    %p168 = scmp.eq.s32.totalorder %s13, 0
    %p169 = por %p167, %p168
    %p170 = scmp.ne.s32.totalorder %s159, %s162
    %p171 = scmp.eq.s32.totalorder %s18, 1
    %p172 = por %p170, %p171
    %p173 = scmp.ne.s32.totalorder %s162, %s163
    %p174 = scmp.eq.s32.totalorder %s18, 0
    %p175 = por %p173, %p174
    %p176 = scmp.ne.s32.totalorder %s162, %s163
    %p177 = scmp.eq.s32.totalorder %s19, 1
    %p178 = por %p176, %p177
    %p180 = scmp.ne.s32.totalorder %s163, %s179
    %p181 = scmp.eq.s32.totalorder %s19, 0
    %p182 = por %p180, %p181
    %p183 = scmp.le.s32.totalorder 1, %s13
    %p184 = scmp.lt.s32.totalorder %s13, 3
    %p185 = pnand %p183, %p184
    %p186 = pneg %p185
    // Predicated region
    $region9: #{down_layer_forward.4} parent=5 // pred_check
      _
    $region10: #{down_layer_forward.4} parent=5 // pred_check_branch
      %188 = sbr.rel (%p185) target = $region12
    $region11: #{down_layer_forward.4} parent=5 // pred_region
      %s189 = ssub.s32 %s13, 1
      // Predicated region
      $region13: #{down_layer_forward.4} parent=11 // pred_check
        %p190 = pneg %p60
      $region14: #{down_layer_forward.4} parent=11 // pred_check_branch
        %192 = sbr.rel (%p190) target = $region16
      $region15: #{down_layer_forward.4} parent=11 // pred_region
        _
      $region16: #{down_layer_forward.4} parent=11 // pred_fallthru
        _
      // Predicated region
      $region17: #{down_layer_forward.4} parent=11 // pred_check
        %p193 = pneg %p81
      $region18: #{down_layer_forward.4} parent=11 // pred_check_branch
        %195 = sbr.rel (%p193) target = $region20
      $region19: #{down_layer_forward.4} parent=11 // pred_region
        _
      $region20: #{down_layer_forward.4} parent=11 // pred_fallthru
        _
      // Predicated region
      $region21: #{down_layer_forward.4} parent=11 // pred_check
        %p196 = pneg %p102
      $region22: #{down_layer_forward.4} parent=11 // pred_check_branch
        %198 = sbr.rel (%p196) target = $region24
      $region23: #{down_layer_forward.4} parent=11 // pred_region
        _
      $region24: #{down_layer_forward.4} parent=11 // pred_fallthru
        _
      // Predicated region
      $region25: #{down_layer_forward.4} parent=11 // pred_check
        %p199 = pneg %p123
      $region26: #{down_layer_forward.4} parent=11 // pred_check_branch
        %201 = sbr.rel (%p199) target = $region28
      $region27: #{down_layer_forward.4} parent=11 // pred_region
        _
      $region28: #{down_layer_forward.4} parent=11 // pred_fallthru
        _
    $region12: #{down_layer_forward.4} parent=5 // pred_fallthru
      _
    %p202 = scmp.lt.s32.totalorder %s13, 2
    // Predicated region
    $region29: #{down_layer_forward.4} parent=5 // pred_check
      %p203 = pneg %p202
    $region30: #{down_layer_forward.4} parent=5 // pred_check_branch
      %205 = sbr.rel (%p203) target = $region32
    $region31: #{down_layer_forward.4} parent=5 // pred_region
      // Predicated region
      $region33: #{down_layer_forward.4} parent=31 // pred_check
        %p206 = pneg %p33
      $region34: #{down_layer_forward.4} parent=31 // pred_check_branch
        %208 = sbr.rel (%p206) target = $region36
      $region35: #{down_layer_forward.4} parent=31 // pred_region
        %p209 = scmp.lt.s32.totalorder %s13, 1
        %s210 = scalar_select %p209, %s13, 1
        %s211 = smul.addr %s210, 32
        %s212 = smul.addr %s211, 8
        %s213 = scalar_lea.vmem %s0, %s212
      $region36: #{down_layer_forward.4} parent=31 // pred_fallthru
        _
    $region32: #{down_layer_forward.4} parent=5 // pred_fallthru
      _
    %p214 = scmp.le.s32.totalorder 1, %s13
    %p215 = scmp.lt.s32.totalorder %s13, 3
    %p216 = pnand %p214, %p215
    %p217 = pneg %p216
    // Predicated region
    $region37: #{down_layer_forward.4} parent=5 // pred_check
      _
    $region38: #{down_layer_forward.4} parent=5 // pred_check_branch
      %219 = sbr.rel (%p216) target = $region40
    $region39: #{down_layer_forward.4} parent=5 // pred_region
      %s220 = ssub.s32 %s13, 1
      %p221 = scmp.lt.s32.totalorder %s18, 1
      %s222 = scalar_select %p221, %s18, 1
      %s223 = smul.addr %s222, 32
      %s224 = smul.addr %s223, 8
      %s225 = scalar_lea.vmem %s0, %s224
      %p226 = pneg %p39
      %p227 = pneg %p36
      %p228 = pneg %p60
      %p229 = pneg %p57
      %p230 = pneg %p81
      %p231 = pneg %p78
      %p232 = pneg %p102
      %p233 = pneg %p99
      %p234 = pneg %p123
      %p235 = pneg %p120
      %p236 = pneg %p149
      %p237 = pneg %p146
      %p238 = scmp.lt.s32.totalorder %s18, 1
      %s239 = scalar_select %p238, %s18, 1
      %s240 = smul.addr %s239, 32
      %s241 = smul.addr %s240, 8
      %s242 = scalar_lea.vmem %s5, %s241
      %p243 = pneg %p175
      %p244 = pneg %p172
      %p245 = scmp.lt.s32.totalorder %s18, 1
      %s246 = scalar_select %p245, %s18, 1
      %s247 = smul.addr %s246, 2
      %s248 = scalar_lea.vmem %s6, %s247
      %p249 = scmp.lt.s32.totalorder %s18, 1
      %s250 = scalar_select %p249, %s18, 1
      %s251 = smul.addr %s250, 32
      %s252 = smul.addr %s251, 8
      %s253 = scalar_lea.vmem %s0, %s252
      %p254 = scmp.lt.s32.totalorder %s18, 1
      %s255 = scalar_select %p254, %s18, 1
      %s256 = smul.addr %s255, 32
      %s257 = smul.addr %s256, 8
      %s258 = scalar_lea.vmem %s5, %s257
      %p259 = scmp.lt.s32.totalorder %s18, 1
      %s260 = scalar_select %p259, %s18, 1
      %s261 = smul.addr %s260, 2
      %s262 = scalar_lea.vmem %s6, %s261
      %v263 = vld [vmem:[%s253] sm:$0xff]
      %v264 = vld [vmem:[%s253 + $0x8] sm:$0xff]
      %v265 = vld [vmem:[%s253 + $0x10] sm:$0xff]
      %v266 = vld [vmem:[%s253 + $0x18] sm:$0xff]
      %v267 = vld [vmem:[%s253 + $0x20] sm:$0xff]
      %v268 = vld [vmem:[%s253 + $0x28] sm:$0xff]
      %v269 = vld [vmem:[%s253 + $0x30] sm:$0xff]
      %v270 = vld [vmem:[%s253 + $0x38] sm:$0xff]
      %v271 = vld [vmem:[%s253 + $0x40] sm:$0xff]
      %v272 = vld [vmem:[%s253 + $0x48] sm:$0xff]
      %v273 = vld [vmem:[%s253 + $0x50] sm:$0xff]
      %v274 = vld [vmem:[%s253 + $0x58] sm:$0xff]
      %v275 = vld [vmem:[%s253 + $0x60] sm:$0xff]
      %v276 = vld [vmem:[%s253 + $0x68] sm:$0xff]
      %v277 = vld [vmem:[%s253 + $0x70] sm:$0xff]
      %v278 = vld [vmem:[%s253 + $0x78] sm:$0xff]
      %v279 = vld [vmem:[%s253 + $0x80] sm:$0xff]
      %v280 = vld [vmem:[%s253 + $0x88] sm:$0xff]
      %v281 = vld [vmem:[%s253 + $0x90] sm:$0xff]
      %v282 = vld [vmem:[%s253 + $0x98] sm:$0xff]
      %v283 = vld [vmem:[%s253 + $0xa0] sm:$0xff]
      %v284 = vld [vmem:[%s253 + $0xa8] sm:$0xff]
      %v285 = vld [vmem:[%s253 + $0xb0] sm:$0xff]
      %v286 = vld [vmem:[%s253 + $0xb8] sm:$0xff]
      %v287 = vld [vmem:[%s253 + $0xc0] sm:$0xff]
      %v288 = vld [vmem:[%s253 + $0xc8] sm:$0xff]
      %v289 = vld [vmem:[%s253 + $0xd0] sm:$0xff]
      %v290 = vld [vmem:[%s253 + $0xd8] sm:$0xff]
      %v291 = vld [vmem:[%s253 + $0xe0] sm:$0xff]
      %v292 = vld [vmem:[%s253 + $0xe8] sm:$0xff]
      %v293 = vld [vmem:[%s253 + $0xf0] sm:$0xff]
      %v294 = vld [vmem:[%s253 + $0xf8] sm:$0xff]
      %v295 = vld [vmem:[%s1] sm:$0x1]
      %v297 = vperm.slane %v295, 0
      %v299 = vmul.f32 %v263, %v297
      %v300 = vmul.f32 %v264, %v297
      %v301 = vmul.f32 %v265, %v297
      %v302 = vmul.f32 %v266, %v297
      %v303 = vmul.f32 %v267, %v297
      %v304 = vmul.f32 %v268, %v297
      %v305 = vmul.f32 %v269, %v297
      %v306 = vmul.f32 %v270, %v297
      %v307 = vmul.f32 %v271, %v297
      %v308 = vmul.f32 %v272, %v297
      %v309 = vmul.f32 %v273, %v297
      %v310 = vmul.f32 %v274, %v297
      %v311 = vmul.f32 %v275, %v297
      %v312 = vmul.f32 %v276, %v297
      %v313 = vmul.f32 %v277, %v297
      %v314 = vmul.f32 %v278, %v297
      %v315 = vmul.f32 %v279, %v297
      %v316 = vmul.f32 %v280, %v297
      %v317 = vmul.f32 %v281, %v297
      %v318 = vmul.f32 %v282, %v297
      %v319 = vmul.f32 %v283, %v297
      %v320 = vmul.f32 %v284, %v297
      %v321 = vmul.f32 %v285, %v297
      %v322 = vmul.f32 %v286, %v297
      %v323 = vmul.f32 %v287, %v297
      %v324 = vmul.f32 %v288, %v297
      %v325 = vmul.f32 %v289, %v297
      %v326 = vmul.f32 %v290, %v297
      %v327 = vmul.f32 %v291, %v297
      %v328 = vmul.f32 %v292, %v297
      %v329 = vmul.f32 %v293, %v297
      %v330 = vmul.f32 %v294, %v297
      %v331 = vld [vmem:[%s2] sm:$0x1]
      %v333 = vperm.slane %v331, 0
      %v335 = vadd.f32 %v299, %v333
      %v336 = vadd.f32 %v300, %v333
      %v337 = vadd.f32 %v301, %v333
      %v338 = vadd.f32 %v302, %v333
      %v339 = vadd.f32 %v303, %v333
      %v340 = vadd.f32 %v304, %v333
      %v341 = vadd.f32 %v305, %v333
      %v342 = vadd.f32 %v306, %v333
      %v343 = vadd.f32 %v307, %v333
      %v344 = vadd.f32 %v308, %v333
      %v345 = vadd.f32 %v309, %v333
      %v346 = vadd.f32 %v310, %v333
      %v347 = vadd.f32 %v311, %v333
      %v348 = vadd.f32 %v312, %v333
      %v349 = vadd.f32 %v313, %v333
      %v350 = vadd.f32 %v314, %v333
      %v351 = vadd.f32 %v315, %v333
      %v352 = vadd.f32 %v316, %v333
      %v353 = vadd.f32 %v317, %v333
      %v354 = vadd.f32 %v318, %v333
      %v355 = vadd.f32 %v319, %v333
      %v356 = vadd.f32 %v320, %v333
      %v357 = vadd.f32 %v321, %v333
      %v358 = vadd.f32 %v322, %v333
      %v359 = vadd.f32 %v323, %v333
      %v360 = vadd.f32 %v324, %v333
      %v361 = vadd.f32 %v325, %v333
      %v362 = vadd.f32 %v326, %v333
      %v363 = vadd.f32 %v327, %v333
      %v364 = vadd.f32 %v328, %v333
      %v365 = vadd.f32 %v329, %v333
      %v366 = vadd.f32 %v330, %v333
      %v367 = vxor.u32 %v335, 2147483648
      %v368 = vxor.u32 %v336, 2147483648
      %v369 = vxor.u32 %v337, 2147483648
      %v370 = vxor.u32 %v338, 2147483648
      %v371 = vxor.u32 %v339, 2147483648
      %v372 = vxor.u32 %v340, 2147483648
      %v373 = vxor.u32 %v341, 2147483648
      %v374 = vxor.u32 %v342, 2147483648
      %v375 = vxor.u32 %v343, 2147483648
      %v376 = vxor.u32 %v344, 2147483648
      %v377 = vxor.u32 %v345, 2147483648
      %v378 = vxor.u32 %v346, 2147483648
      %v379 = vxor.u32 %v347, 2147483648
      %v380 = vxor.u32 %v348, 2147483648
      %v381 = vxor.u32 %v349, 2147483648
      %v382 = vxor.u32 %v350, 2147483648
      %v383 = vxor.u32 %v351, 2147483648
      %v384 = vxor.u32 %v352, 2147483648
      %v385 = vxor.u32 %v353, 2147483648
      %v386 = vxor.u32 %v354, 2147483648
      %v387 = vxor.u32 %v355, 2147483648
      %v388 = vxor.u32 %v356, 2147483648
      %v389 = vxor.u32 %v357, 2147483648
      %v390 = vxor.u32 %v358, 2147483648
      %v391 = vxor.u32 %v359, 2147483648
      %v392 = vxor.u32 %v360, 2147483648
      %v393 = vxor.u32 %v361, 2147483648
      %v394 = vxor.u32 %v362, 2147483648
      %v395 = vxor.u32 %v363, 2147483648
      %v396 = vxor.u32 %v364, 2147483648
      %v397 = vxor.u32 %v365, 2147483648
      %v398 = vxor.u32 %v366, 2147483648
      %v399 = vmul.f32 %v367, 1.442695
      %v400 = vpow.pop %v399
      %v401 = vmul.f32 %v368, 1.442695
      %v402 = vpow.pop %v401
      %v403 = vmul.f32 %v369, 1.442695
      %v404 = vpow.pop %v403
      %v405 = vmul.f32 %v370, 1.442695
      %v406 = vpow.pop %v405
      %v407 = vmul.f32 %v371, 1.442695
      %v408 = vpow.pop %v407
      %v409 = vmul.f32 %v372, 1.442695
      %v410 = vpow.pop %v409
      %v411 = vmul.f32 %v373, 1.442695
      %v412 = vpow.pop %v411
      %v413 = vmul.f32 %v374, 1.442695
      %v414 = vpow.pop %v413
      %v415 = vmul.f32 %v375, 1.442695
      %v416 = vpow.pop %v415
      %v417 = vmul.f32 %v376, 1.442695
      %v418 = vpow.pop %v417
      %v419 = vmul.f32 %v377, 1.442695
      %v420 = vpow.pop %v419
      %v421 = vmul.f32 %v378, 1.442695
      %v422 = vpow.pop %v421
      %v423 = vmul.f32 %v379, 1.442695
      %v424 = vpow.pop %v423
      %v425 = vmul.f32 %v380, 1.442695
      %v426 = vpow.pop %v425
      %v427 = vmul.f32 %v381, 1.442695
      %v428 = vpow.pop %v427
      %v429 = vmul.f32 %v382, 1.442695
      %v430 = vpow.pop %v429
      %v431 = vmul.f32 %v383, 1.442695
      %v432 = vpow.pop %v431
      %v433 = vmul.f32 %v384, 1.442695
      %v434 = vpow.pop %v433
      %v435 = vmul.f32 %v385, 1.442695
      %v436 = vpow.pop %v435
      %v437 = vmul.f32 %v386, 1.442695
      %v438 = vpow.pop %v437
      %v439 = vmul.f32 %v387, 1.442695
      %v440 = vpow.pop %v439
      %v441 = vmul.f32 %v388, 1.442695
      %v442 = vpow.pop %v441
      %v443 = vmul.f32 %v389, 1.442695
      %v444 = vpow.pop %v443
      %v445 = vmul.f32 %v390, 1.442695
      %v446 = vpow.pop %v445
      %v447 = vmul.f32 %v391, 1.442695
      %v448 = vpow.pop %v447
      %v449 = vmul.f32 %v392, 1.442695
      %v450 = vpow.pop %v449
      %v451 = vmul.f32 %v393, 1.442695
      %v452 = vpow.pop %v451
      %v453 = vmul.f32 %v394, 1.442695
      %v454 = vpow.pop %v453
      %v455 = vmul.f32 %v395, 1.442695
      %v456 = vpow.pop %v455
      %v457 = vmul.f32 %v396, 1.442695
      %v458 = vpow.pop %v457
      %v459 = vmul.f32 %v397, 1.442695
      %v460 = vpow.pop %v459
      %v461 = vmul.f32 %v398, 1.442695
      %v462 = vpow.pop %v461
      %v463 = vadd.f32 %v400, 1.0
      %v464 = vadd.f32 %v402, 1.0
      %v465 = vadd.f32 %v404, 1.0
      %v466 = vadd.f32 %v406, 1.0
      %v467 = vadd.f32 %v408, 1.0
      %v468 = vadd.f32 %v410, 1.0
      %v469 = vadd.f32 %v412, 1.0
      %v470 = vadd.f32 %v414, 1.0
      %v471 = vadd.f32 %v416, 1.0
      %v472 = vadd.f32 %v418, 1.0
      %v473 = vadd.f32 %v420, 1.0
      %v474 = vadd.f32 %v422, 1.0
      %v475 = vadd.f32 %v424, 1.0
      %v476 = vadd.f32 %v426, 1.0
      %v477 = vadd.f32 %v428, 1.0
      %v478 = vadd.f32 %v430, 1.0
      %v479 = vadd.f32 %v432, 1.0
      %v480 = vadd.f32 %v434, 1.0
      %v481 = vadd.f32 %v436, 1.0
      %v482 = vadd.f32 %v438, 1.0
      %v483 = vadd.f32 %v440, 1.0
      %v484 = vadd.f32 %v442, 1.0
      %v485 = vadd.f32 %v444, 1.0
      %v486 = vadd.f32 %v446, 1.0
      %v487 = vadd.f32 %v448, 1.0
      %v488 = vadd.f32 %v450, 1.0
      %v489 = vadd.f32 %v452, 1.0
      %v490 = vadd.f32 %v454, 1.0
      %v491 = vadd.f32 %v456, 1.0
      %v492 = vadd.f32 %v458, 1.0
      %v493 = vadd.f32 %v460, 1.0
      %v494 = vadd.f32 %v462, 1.0
      %v495 = vrcp.pop %v463
      %v496 = vmul.f32 %v463, %v495
      %v497 = vsub.f32 1.0, %v496
      %v498 = vmul.f32 %v495, %v497
      %v499 = vadd.f32 %v495, %v498
      %vm500 = vweird.f32 %v463
      %vm501 = vweird.f32 %v495
      %vm502 = vmor %vm500, %vm501
      %v503 = vsel %vm502, %v495, %v499
      %v504 = vand.u32 2147483647, %v463
      %vm505 = vcmp.eq.f32.partialorder %v504, 8.507059e+37
      %v506 = vand.u32 %v463, 2147483648
      %v507 = vor.u32 1.1754944e-38, %v506
      %v508 = vsel %vm505, %v507, %v503
      %v509 = vmul.f32 1.0, %v508
      %v510 = vrcp.pop %v464
      %v511 = vmul.f32 %v464, %v510
      %v512 = vsub.f32 1.0, %v511
      %v513 = vmul.f32 %v510, %v512
      %v514 = vadd.f32 %v510, %v513
      %vm515 = vweird.f32 %v464
      %vm516 = vweird.f32 %v510
      %vm517 = vmor %vm515, %vm516
      %v518 = vsel %vm517, %v510, %v514
      %v519 = vand.u32 2147483647, %v464
      %vm520 = vcmp.eq.f32.partialorder %v519, 8.507059e+37
      %v521 = vand.u32 %v464, 2147483648
      %v522 = vor.u32 1.1754944e-38, %v521
      %v523 = vsel %vm520, %v522, %v518
      %v524 = vmul.f32 1.0, %v523
      %v525 = vrcp.pop %v465
      %v526 = vmul.f32 %v465, %v525
      %v527 = vsub.f32 1.0, %v526
      %v528 = vmul.f32 %v525, %v527
      %v529 = vadd.f32 %v525, %v528
      %vm530 = vweird.f32 %v465
      %vm531 = vweird.f32 %v525
      %vm532 = vmor %vm530, %vm531
      %v533 = vsel %vm532, %v525, %v529
      %v534 = vand.u32 2147483647, %v465
      %vm535 = vcmp.eq.f32.partialorder %v534, 8.507059e+37
      %v536 = vand.u32 %v465, 2147483648
      %v537 = vor.u32 1.1754944e-38, %v536
      %v538 = vsel %vm535, %v537, %v533
      %v539 = vmul.f32 1.0, %v538
      %v540 = vrcp.pop %v466
      %v541 = vmul.f32 %v466, %v540
      %v542 = vsub.f32 1.0, %v541
      %v543 = vmul.f32 %v540, %v542
      %v544 = vadd.f32 %v540, %v543
      %vm545 = vweird.f32 %v466
      %vm546 = vweird.f32 %v540
      %vm547 = vmor %vm545, %vm546
      %v548 = vsel %vm547, %v540, %v544
      %v549 = vand.u32 2147483647, %v466
      %vm550 = vcmp.eq.f32.partialorder %v549, 8.507059e+37
      %v551 = vand.u32 %v466, 2147483648
      %v552 = vor.u32 1.1754944e-38, %v551
      %v553 = vsel %vm550, %v552, %v548
      %v554 = vmul.f32 1.0, %v553
      %v555 = vrcp.pop %v467
      %v556 = vmul.f32 %v467, %v555
      %v557 = vsub.f32 1.0, %v556
      %v558 = vmul.f32 %v555, %v557
      %v559 = vadd.f32 %v555, %v558
      %vm560 = vweird.f32 %v467
      %vm561 = vweird.f32 %v555
      %vm562 = vmor %vm560, %vm561
      %v563 = vsel %vm562, %v555, %v559
      %v564 = vand.u32 2147483647, %v467
      %vm565 = vcmp.eq.f32.partialorder %v564, 8.507059e+37
      %v566 = vand.u32 %v467, 2147483648
      %v567 = vor.u32 1.1754944e-38, %v566
      %v568 = vsel %vm565, %v567, %v563
      %v569 = vmul.f32 1.0, %v568
      %v570 = vrcp.pop %v468
      %v571 = vmul.f32 %v468, %v570
      %v572 = vsub.f32 1.0, %v571
      %v573 = vmul.f32 %v570, %v572
      %v574 = vadd.f32 %v570, %v573
      %vm575 = vweird.f32 %v468
      %vm576 = vweird.f32 %v570
      %vm577 = vmor %vm575, %vm576
      %v578 = vsel %vm577, %v570, %v574
      %v579 = vand.u32 2147483647, %v468
      %vm580 = vcmp.eq.f32.partialorder %v579, 8.507059e+37
      %v581 = vand.u32 %v468, 2147483648
      %v582 = vor.u32 1.1754944e-38, %v581
      %v583 = vsel %vm580, %v582, %v578
      %v584 = vmul.f32 1.0, %v583
      %v585 = vrcp.pop %v469
      %v586 = vmul.f32 %v469, %v585
      %v587 = vsub.f32 1.0, %v586
      %v588 = vmul.f32 %v585, %v587
      %v589 = vadd.f32 %v585, %v588
      %vm590 = vweird.f32 %v469
      %vm591 = vweird.f32 %v585
      %vm592 = vmor %vm590, %vm591
      %v593 = vsel %vm592, %v585, %v589
      %v594 = vand.u32 2147483647, %v469
      %vm595 = vcmp.eq.f32.partialorder %v594, 8.507059e+37
      %v596 = vand.u32 %v469, 2147483648
      %v597 = vor.u32 1.1754944e-38, %v596
      %v598 = vsel %vm595, %v597, %v593
      %v599 = vmul.f32 1.0, %v598
      %v600 = vrcp.pop %v470
      %v601 = vmul.f32 %v470, %v600
      %v602 = vsub.f32 1.0, %v601
      %v603 = vmul.f32 %v600, %v602
      %v604 = vadd.f32 %v600, %v603
      %vm605 = vweird.f32 %v470
      %vm606 = vweird.f32 %v600
      %vm607 = vmor %vm605, %vm606
      %v608 = vsel %vm607, %v600, %v604
      %v609 = vand.u32 2147483647, %v470
      %vm610 = vcmp.eq.f32.partialorder %v609, 8.507059e+37
      %v611 = vand.u32 %v470, 2147483648
      %v612 = vor.u32 1.1754944e-38, %v611
      %v613 = vsel %vm610, %v612, %v608
      %v614 = vmul.f32 1.0, %v613
      %v615 = vrcp.pop %v471
      %v616 = vmul.f32 %v471, %v615
      %v617 = vsub.f32 1.0, %v616
      %v618 = vmul.f32 %v615, %v617
      %v619 = vadd.f32 %v615, %v618
      %vm620 = vweird.f32 %v471
      %vm621 = vweird.f32 %v615
      %vm622 = vmor %vm620, %vm621
      %v623 = vsel %vm622, %v615, %v619
      %v624 = vand.u32 2147483647, %v471
      %vm625 = vcmp.eq.f32.partialorder %v624, 8.507059e+37
      %v626 = vand.u32 %v471, 2147483648
      %v627 = vor.u32 1.1754944e-38, %v626
      %v628 = vsel %vm625, %v627, %v623
      %v629 = vmul.f32 1.0, %v628
      %v630 = vrcp.pop %v472
      %v631 = vmul.f32 %v472, %v630
      %v632 = vsub.f32 1.0, %v631
      %v633 = vmul.f32 %v630, %v632
      %v634 = vadd.f32 %v630, %v633
      %vm635 = vweird.f32 %v472
      %vm636 = vweird.f32 %v630
      %vm637 = vmor %vm635, %vm636
      %v638 = vsel %vm637, %v630, %v634
      %v639 = vand.u32 2147483647, %v472
      %vm640 = vcmp.eq.f32.partialorder %v639, 8.507059e+37
      %v641 = vand.u32 %v472, 2147483648
      %v642 = vor.u32 1.1754944e-38, %v641
      %v643 = vsel %vm640, %v642, %v638
      %v644 = vmul.f32 1.0, %v643
      %v645 = vrcp.pop %v473
      %v646 = vmul.f32 %v473, %v645
      %v647 = vsub.f32 1.0, %v646
      %v648 = vmul.f32 %v645, %v647
      %v649 = vadd.f32 %v645, %v648
      %vm650 = vweird.f32 %v473
      %vm651 = vweird.f32 %v645
      %vm652 = vmor %vm650, %vm651
      %v653 = vsel %vm652, %v645, %v649
      %v654 = vand.u32 2147483647, %v473
      %vm655 = vcmp.eq.f32.partialorder %v654, 8.507059e+37
      %v656 = vand.u32 %v473, 2147483648
      %v657 = vor.u32 1.1754944e-38, %v656
      %v658 = vsel %vm655, %v657, %v653
      %v659 = vmul.f32 1.0, %v658
      %v660 = vrcp.pop %v474
      %v661 = vmul.f32 %v474, %v660
      %v662 = vsub.f32 1.0, %v661
      %v663 = vmul.f32 %v660, %v662
      %v664 = vadd.f32 %v660, %v663
      %vm665 = vweird.f32 %v474
      %vm666 = vweird.f32 %v660
      %vm667 = vmor %vm665, %vm666
      %v668 = vsel %vm667, %v660, %v664
      %v669 = vand.u32 2147483647, %v474
      %vm670 = vcmp.eq.f32.partialorder %v669, 8.507059e+37
      %v671 = vand.u32 %v474, 2147483648
      %v672 = vor.u32 1.1754944e-38, %v671
      %v673 = vsel %vm670, %v672, %v668
      %v674 = vmul.f32 1.0, %v673
      %v675 = vrcp.pop %v475
      %v676 = vmul.f32 %v475, %v675
      %v677 = vsub.f32 1.0, %v676
      %v678 = vmul.f32 %v675, %v677
      %v679 = vadd.f32 %v675, %v678
      %vm680 = vweird.f32 %v475
      %vm681 = vweird.f32 %v675
      %vm682 = vmor %vm680, %vm681
      %v683 = vsel %vm682, %v675, %v679
      %v684 = vand.u32 2147483647, %v475
      %vm685 = vcmp.eq.f32.partialorder %v684, 8.507059e+37
      %v686 = vand.u32 %v475, 2147483648
      %v687 = vor.u32 1.1754944e-38, %v686
      %v688 = vsel %vm685, %v687, %v683
      %v689 = vmul.f32 1.0, %v688
      %v690 = vrcp.pop %v476
      %v691 = vmul.f32 %v476, %v690
      %v692 = vsub.f32 1.0, %v691
      %v693 = vmul.f32 %v690, %v692
      %v694 = vadd.f32 %v690, %v693
      %vm695 = vweird.f32 %v476
      %vm696 = vweird.f32 %v690
      %vm697 = vmor %vm695, %vm696
      %v698 = vsel %vm697, %v690, %v694
      %v699 = vand.u32 2147483647, %v476
      %vm700 = vcmp.eq.f32.partialorder %v699, 8.507059e+37
      %v701 = vand.u32 %v476, 2147483648
      %v702 = vor.u32 1.1754944e-38, %v701
      %v703 = vsel %vm700, %v702, %v698
      %v704 = vmul.f32 1.0, %v703
      %v705 = vrcp.pop %v477
      %v706 = vmul.f32 %v477, %v705
      %v707 = vsub.f32 1.0, %v706
      %v708 = vmul.f32 %v705, %v707
      %v709 = vadd.f32 %v705, %v708
      %vm710 = vweird.f32 %v477
      %vm711 = vweird.f32 %v705
      %vm712 = vmor %vm710, %vm711
      %v713 = vsel %vm712, %v705, %v709
      %v714 = vand.u32 2147483647, %v477
      %vm715 = vcmp.eq.f32.partialorder %v714, 8.507059e+37
      %v716 = vand.u32 %v477, 2147483648
      %v717 = vor.u32 1.1754944e-38, %v716
      %v718 = vsel %vm715, %v717, %v713
      %v719 = vmul.f32 1.0, %v718
      %v720 = vrcp.pop %v478
      %v721 = vmul.f32 %v478, %v720
      %v722 = vsub.f32 1.0, %v721
      %v723 = vmul.f32 %v720, %v722
      %v724 = vadd.f32 %v720, %v723
      %vm725 = vweird.f32 %v478
      %vm726 = vweird.f32 %v720
      %vm727 = vmor %vm725, %vm726
      %v728 = vsel %vm727, %v720, %v724
      %v729 = vand.u32 2147483647, %v478
      %vm730 = vcmp.eq.f32.partialorder %v729, 8.507059e+37
      %v731 = vand.u32 %v478, 2147483648
      %v732 = vor.u32 1.1754944e-38, %v731
      %v733 = vsel %vm730, %v732, %v728
      %v734 = vmul.f32 1.0, %v733
      %v735 = vrcp.pop %v479
      %v736 = vmul.f32 %v479, %v735
      %v737 = vsub.f32 1.0, %v736
      %v738 = vmul.f32 %v735, %v737
      %v739 = vadd.f32 %v735, %v738
      %vm740 = vweird.f32 %v479
      %vm741 = vweird.f32 %v735
      %vm742 = vmor %vm740, %vm741
      %v743 = vsel %vm742, %v735, %v739
      %v744 = vand.u32 2147483647, %v479
      %vm745 = vcmp.eq.f32.partialorder %v744, 8.507059e+37
      %v746 = vand.u32 %v479, 2147483648
      %v747 = vor.u32 1.1754944e-38, %v746
      %v748 = vsel %vm745, %v747, %v743
      %v749 = vmul.f32 1.0, %v748
      %v750 = vrcp.pop %v480
      %v751 = vmul.f32 %v480, %v750
      %v752 = vsub.f32 1.0, %v751
      %v753 = vmul.f32 %v750, %v752
      %v754 = vadd.f32 %v750, %v753
      %vm755 = vweird.f32 %v480
      %vm756 = vweird.f32 %v750
      %vm757 = vmor %vm755, %vm756
      %v758 = vsel %vm757, %v750, %v754
      %v759 = vand.u32 2147483647, %v480
      %vm760 = vcmp.eq.f32.partialorder %v759, 8.507059e+37
      %v761 = vand.u32 %v480, 2147483648
      %v762 = vor.u32 1.1754944e-38, %v761
      %v763 = vsel %vm760, %v762, %v758
      %v764 = vmul.f32 1.0, %v763
      %v765 = vrcp.pop %v481
      %v766 = vmul.f32 %v481, %v765
      %v767 = vsub.f32 1.0, %v766
      %v768 = vmul.f32 %v765, %v767
      %v769 = vadd.f32 %v765, %v768
      %vm770 = vweird.f32 %v481
      %vm771 = vweird.f32 %v765
      %vm772 = vmor %vm770, %vm771
      %v773 = vsel %vm772, %v765, %v769
      %v774 = vand.u32 2147483647, %v481
      %vm775 = vcmp.eq.f32.partialorder %v774, 8.507059e+37
      %v776 = vand.u32 %v481, 2147483648
      %v777 = vor.u32 1.1754944e-38, %v776
      %v778 = vsel %vm775, %v777, %v773
      %v779 = vmul.f32 1.0, %v778
      %v780 = vrcp.pop %v482
      %v781 = vmul.f32 %v482, %v780
      %v782 = vsub.f32 1.0, %v781
      %v783 = vmul.f32 %v780, %v782
      %v784 = vadd.f32 %v780, %v783
      %vm785 = vweird.f32 %v482
      %vm786 = vweird.f32 %v780
      %vm787 = vmor %vm785, %vm786
      %v788 = vsel %vm787, %v780, %v784
      %v789 = vand.u32 2147483647, %v482
      %vm790 = vcmp.eq.f32.partialorder %v789, 8.507059e+37
      %v791 = vand.u32 %v482, 2147483648
      %v792 = vor.u32 1.1754944e-38, %v791
      %v793 = vsel %vm790, %v792, %v788
      %v794 = vmul.f32 1.0, %v793
      %v795 = vrcp.pop %v483
      %v796 = vmul.f32 %v483, %v795
      %v797 = vsub.f32 1.0, %v796
      %v798 = vmul.f32 %v795, %v797
      %v799 = vadd.f32 %v795, %v798
      %vm800 = vweird.f32 %v483
      %vm801 = vweird.f32 %v795
      %vm802 = vmor %vm800, %vm801
      %v803 = vsel %vm802, %v795, %v799
      %v804 = vand.u32 2147483647, %v483
      %vm805 = vcmp.eq.f32.partialorder %v804, 8.507059e+37
      %v806 = vand.u32 %v483, 2147483648
      %v807 = vor.u32 1.1754944e-38, %v806
      %v808 = vsel %vm805, %v807, %v803
      %v809 = vmul.f32 1.0, %v808
      %v810 = vrcp.pop %v484
      %v811 = vmul.f32 %v484, %v810
      %v812 = vsub.f32 1.0, %v811
      %v813 = vmul.f32 %v810, %v812
      %v814 = vadd.f32 %v810, %v813
      %vm815 = vweird.f32 %v484
      %vm816 = vweird.f32 %v810
      %vm817 = vmor %vm815, %vm816
      %v818 = vsel %vm817, %v810, %v814
      %v819 = vand.u32 2147483647, %v484
      %vm820 = vcmp.eq.f32.partialorder %v819, 8.507059e+37
      %v821 = vand.u32 %v484, 2147483648
      %v822 = vor.u32 1.1754944e-38, %v821
      %v823 = vsel %vm820, %v822, %v818
      %v824 = vmul.f32 1.0, %v823
      %v825 = vrcp.pop %v485
      %v826 = vmul.f32 %v485, %v825
      %v827 = vsub.f32 1.0, %v826
      %v828 = vmul.f32 %v825, %v827
      %v829 = vadd.f32 %v825, %v828
      %vm830 = vweird.f32 %v485
      %vm831 = vweird.f32 %v825
      %vm832 = vmor %vm830, %vm831
      %v833 = vsel %vm832, %v825, %v829
      %v834 = vand.u32 2147483647, %v485
      %vm835 = vcmp.eq.f32.partialorder %v834, 8.507059e+37
      %v836 = vand.u32 %v485, 2147483648
      %v837 = vor.u32 1.1754944e-38, %v836
      %v838 = vsel %vm835, %v837, %v833
      %v839 = vmul.f32 1.0, %v838
      %v840 = vrcp.pop %v486
      %v841 = vmul.f32 %v486, %v840
      %v842 = vsub.f32 1.0, %v841
      %v843 = vmul.f32 %v840, %v842
      %v844 = vadd.f32 %v840, %v843
      %vm845 = vweird.f32 %v486
      %vm846 = vweird.f32 %v840
      %vm847 = vmor %vm845, %vm846
      %v848 = vsel %vm847, %v840, %v844
      %v849 = vand.u32 2147483647, %v486
      %vm850 = vcmp.eq.f32.partialorder %v849, 8.507059e+37
      %v851 = vand.u32 %v486, 2147483648
      %v852 = vor.u32 1.1754944e-38, %v851
      %v853 = vsel %vm850, %v852, %v848
      %v854 = vmul.f32 1.0, %v853
      %v855 = vrcp.pop %v487
      %v856 = vmul.f32 %v487, %v855
      %v857 = vsub.f32 1.0, %v856
      %v858 = vmul.f32 %v855, %v857
      %v859 = vadd.f32 %v855, %v858
      %vm860 = vweird.f32 %v487
      %vm861 = vweird.f32 %v855
      %vm862 = vmor %vm860, %vm861
      %v863 = vsel %vm862, %v855, %v859
      %v864 = vand.u32 2147483647, %v487
      %vm865 = vcmp.eq.f32.partialorder %v864, 8.507059e+37
      %v866 = vand.u32 %v487, 2147483648
      %v867 = vor.u32 1.1754944e-38, %v866
      %v868 = vsel %vm865, %v867, %v863
      %v869 = vmul.f32 1.0, %v868
      %v870 = vrcp.pop %v488
      %v871 = vmul.f32 %v488, %v870
      %v872 = vsub.f32 1.0, %v871
      %v873 = vmul.f32 %v870, %v872
      %v874 = vadd.f32 %v870, %v873
      %vm875 = vweird.f32 %v488
      %vm876 = vweird.f32 %v870
      %vm877 = vmor %vm875, %vm876
      %v878 = vsel %vm877, %v870, %v874
      %v879 = vand.u32 2147483647, %v488
      %vm880 = vcmp.eq.f32.partialorder %v879, 8.507059e+37
      %v881 = vand.u32 %v488, 2147483648
      %v882 = vor.u32 1.1754944e-38, %v881
      %v883 = vsel %vm880, %v882, %v878
      %v884 = vmul.f32 1.0, %v883
      %v885 = vrcp.pop %v489
      %v886 = vmul.f32 %v489, %v885
      %v887 = vsub.f32 1.0, %v886
      %v888 = vmul.f32 %v885, %v887
      %v889 = vadd.f32 %v885, %v888
      %vm890 = vweird.f32 %v489
      %vm891 = vweird.f32 %v885
      %vm892 = vmor %vm890, %vm891
      %v893 = vsel %vm892, %v885, %v889
      %v894 = vand.u32 2147483647, %v489
      %vm895 = vcmp.eq.f32.partialorder %v894, 8.507059e+37
      %v896 = vand.u32 %v489, 2147483648
      %v897 = vor.u32 1.1754944e-38, %v896
      %v898 = vsel %vm895, %v897, %v893
      %v899 = vmul.f32 1.0, %v898
      %v900 = vrcp.pop %v490
      %v901 = vmul.f32 %v490, %v900
      %v902 = vsub.f32 1.0, %v901
      %v903 = vmul.f32 %v900, %v902
      %v904 = vadd.f32 %v900, %v903
      %vm905 = vweird.f32 %v490
      %vm906 = vweird.f32 %v900
      %vm907 = vmor %vm905, %vm906
      %v908 = vsel %vm907, %v900, %v904
      %v909 = vand.u32 2147483647, %v490
      %vm910 = vcmp.eq.f32.partialorder %v909, 8.507059e+37
      %v911 = vand.u32 %v490, 2147483648
      %v912 = vor.u32 1.1754944e-38, %v911
      %v913 = vsel %vm910, %v912, %v908
      %v914 = vmul.f32 1.0, %v913
      %v915 = vrcp.pop %v491
      %v916 = vmul.f32 %v491, %v915
      %v917 = vsub.f32 1.0, %v916
      %v918 = vmul.f32 %v915, %v917
      %v919 = vadd.f32 %v915, %v918
      %vm920 = vweird.f32 %v491
      %vm921 = vweird.f32 %v915
      %vm922 = vmor %vm920, %vm921
      %v923 = vsel %vm922, %v915, %v919
      %v924 = vand.u32 2147483647, %v491
      %vm925 = vcmp.eq.f32.partialorder %v924, 8.507059e+37
      %v926 = vand.u32 %v491, 2147483648
      %v927 = vor.u32 1.1754944e-38, %v926
      %v928 = vsel %vm925, %v927, %v923
      %v929 = vmul.f32 1.0, %v928
      %v930 = vrcp.pop %v492
      %v931 = vmul.f32 %v492, %v930
      %v932 = vsub.f32 1.0, %v931
      %v933 = vmul.f32 %v930, %v932
      %v934 = vadd.f32 %v930, %v933
      %vm935 = vweird.f32 %v492
      %vm936 = vweird.f32 %v930
      %vm937 = vmor %vm935, %vm936
      %v938 = vsel %vm937, %v930, %v934
      %v939 = vand.u32 2147483647, %v492
      %vm940 = vcmp.eq.f32.partialorder %v939, 8.507059e+37
      %v941 = vand.u32 %v492, 2147483648
      %v942 = vor.u32 1.1754944e-38, %v941
      %v943 = vsel %vm940, %v942, %v938
      %v944 = vmul.f32 1.0, %v943
      %v945 = vrcp.pop %v493
      %v946 = vmul.f32 %v493, %v945
      %v947 = vsub.f32 1.0, %v946
      %v948 = vmul.f32 %v945, %v947
      %v949 = vadd.f32 %v945, %v948
      %vm950 = vweird.f32 %v493
      %vm951 = vweird.f32 %v945
      %vm952 = vmor %vm950, %vm951
      %v953 = vsel %vm952, %v945, %v949
      %v954 = vand.u32 2147483647, %v493
      %vm955 = vcmp.eq.f32.partialorder %v954, 8.507059e+37
      %v956 = vand.u32 %v493, 2147483648
      %v957 = vor.u32 1.1754944e-38, %v956
      %v958 = vsel %vm955, %v957, %v953
      %v959 = vmul.f32 1.0, %v958
      %v960 = vrcp.pop %v494
      %v961 = vmul.f32 %v494, %v960
      %v962 = vsub.f32 1.0, %v961
      %v963 = vmul.f32 %v960, %v962
      %v964 = vadd.f32 %v960, %v963
      %vm965 = vweird.f32 %v494
      %vm966 = vweird.f32 %v960
      %vm967 = vmor %vm965, %vm966
      %v968 = vsel %vm967, %v960, %v964
      %v969 = vand.u32 2147483647, %v494
      %vm970 = vcmp.eq.f32.partialorder %v969, 8.507059e+37
      %v971 = vand.u32 %v494, 2147483648
      %v972 = vor.u32 1.1754944e-38, %v971
      %v973 = vsel %vm970, %v972, %v968
      %v974 = vmul.f32 1.0, %v973
      %v975 = vmul.f32 %v335, %v509
      %v976 = vmul.f32 %v336, %v524
      %v977 = vmul.f32 %v337, %v539
      %v978 = vmul.f32 %v338, %v554
      %v979 = vmul.f32 %v339, %v569
      %v980 = vmul.f32 %v340, %v584
      %v981 = vmul.f32 %v341, %v599
      %v982 = vmul.f32 %v342, %v614
      %v983 = vmul.f32 %v343, %v629
      %v984 = vmul.f32 %v344, %v644
      %v985 = vmul.f32 %v345, %v659
      %v986 = vmul.f32 %v346, %v674
      %v987 = vmul.f32 %v347, %v689
      %v988 = vmul.f32 %v348, %v704
      %v989 = vmul.f32 %v349, %v719
      %v990 = vmul.f32 %v350, %v734
      %v991 = vmul.f32 %v351, %v749
      %v992 = vmul.f32 %v352, %v764
      %v993 = vmul.f32 %v353, %v779
      %v994 = vmul.f32 %v354, %v794
      %v995 = vmul.f32 %v355, %v809
      %v996 = vmul.f32 %v356, %v824
      %v997 = vmul.f32 %v357, %v839
      %v998 = vmul.f32 %v358, %v854
      %v999 = vmul.f32 %v359, %v869
      %v1000 = vmul.f32 %v360, %v884
      %v1001 = vmul.f32 %v361, %v899
      %v1002 = vmul.f32 %v362, %v914
      %v1003 = vmul.f32 %v363, %v929
      %v1004 = vmul.f32 %v364, %v944
      %v1005 = vmul.f32 %v365, %v959
      %v1006 = vmul.f32 %v366, %v974
      %vm1007 = vcmask 64512
      %1008 = vst.msk [vmem:[#allocation2] sm:$0xff] %vm1007, 0.0
      %1009 = vst.msk [vmem:[#allocation2 + $0x8] sm:$0xff] %vm1007, 0.0
      %vm1010 = vcmask 58368
      %1011 = vst.msk [vmem:[#allocation2 + $0x10] sm:$0x3] %vm1010, 0.0
      %1012 = vst.msk [vmem:[#allocation2 + $0x18] sm:$0xff] %vm1007, 0.0
      %1013 = vst.msk [vmem:[#allocation2 + $0x20] sm:$0xff] %vm1007, 0.0
      %1014 = vst.msk [vmem:[#allocation2 + $0x28] sm:$0x3] %vm1010, 0.0
      %1015 = vst.msk [vmem:[#allocation2 + $0x30] sm:$0xff] %vm1007, 0.0
      %1016 = vst.msk [vmem:[#allocation2 + $0x38] sm:$0xff] %vm1007, 0.0
      %1017 = vst.msk [vmem:[#allocation2 + $0x40] sm:$0x3] %vm1010, 0.0
      %1018 = vst.msk [vmem:[#allocation2 + $0x48] sm:$0xff] %vm1007, 0.0
      %1019 = vst.msk [vmem:[#allocation2 + $0x50] sm:$0xff] %vm1007, 0.0
      %1020 = vst.msk [vmem:[#allocation2 + $0x58] sm:$0x3] %vm1010, 0.0
      %1021 = vst.msk [vmem:[#allocation2 + $0x60] sm:$0xff] %vm1007, 0.0
      %1022 = vst.msk [vmem:[#allocation2 + $0x68] sm:$0xff] %vm1007, 0.0
      %1023 = vst.msk [vmem:[#allocation2 + $0x70] sm:$0x3] %vm1010, 0.0
      %1024 = vst.msk [vmem:[#allocation2 + $0x78] sm:$0xff] %vm1007, 0.0
      %1025 = vst.msk [vmem:[#allocation2 + $0x80] sm:$0xff] %vm1007, 0.0
      %1026 = vst.msk [vmem:[#allocation2 + $0x88] sm:$0x3] %vm1010, 0.0
      %1027 = vst.msk [vmem:[#allocation2 + $0x90] sm:$0xff] %vm1007, 0.0
      %1028 = vst.msk [vmem:[#allocation2 + $0x98] sm:$0xff] %vm1007, 0.0
      %1029 = vst.msk [vmem:[#allocation2 + $0xa0] sm:$0x3] %vm1010, 0.0
      %1030 = vst.msk [vmem:[#allocation2 + $0xa8] sm:$0xff] %vm1007, 0.0
      %1031 = vst.msk [vmem:[#allocation2 + $0xb0] sm:$0xff] %vm1007, 0.0
      %1032 = vst.msk [vmem:[#allocation2 + $0xb8] sm:$0x3] %vm1010, 0.0
      %1033 = vst.msk [vmem:[#allocation2 + $0xc0] sm:$0xff] %vm1007, 0.0
      %1034 = vst.msk [vmem:[#allocation2 + $0xc8] sm:$0xff] %vm1007, 0.0
      %1035 = vst.msk [vmem:[#allocation2 + $0xd0] sm:$0x3] %vm1010, 0.0
      %1036 = vst.msk [vmem:[#allocation2 + $0xd8] sm:$0xff] %vm1007, 0.0
      %1037 = vst.msk [vmem:[#allocation2 + $0xe0] sm:$0xff] %vm1007, 0.0
      %1038 = vst.msk [vmem:[#allocation2 + $0xe8] sm:$0x3] %vm1010, 0.0
      %1039 = vst.msk [vmem:[#allocation2 + $0xf0] sm:$0xff] %vm1007, 0.0
      %1040 = vst.msk [vmem:[#allocation2 + $0xf8] sm:$0xff] %vm1007, 0.0
      %1041 = vst.msk [vmem:[#allocation2 + $0x100] sm:$0x3] %vm1010, 0.0
      %1042 = vst.msk [vmem:[#allocation2 + $0x108] sm:$0xff] %vm1007, 0.0
      %1043 = vst.msk [vmem:[#allocation2 + $0x110] sm:$0xff] %vm1007, 0.0
      %1044 = vst.msk [vmem:[#allocation2 + $0x118] sm:$0x3] %vm1010, 0.0
      %1045 = vst.msk [vmem:[#allocation2 + $0x120] sm:$0xff] %vm1007, 0.0
      %1046 = vst.msk [vmem:[#allocation2 + $0x128] sm:$0xff] %vm1007, 0.0
      %1047 = vst.msk [vmem:[#allocation2 + $0x130] sm:$0x3] %vm1010, 0.0
      %1048 = vst.msk [vmem:[#allocation2 + $0x138] sm:$0xff] %vm1007, 0.0
      %1049 = vst.msk [vmem:[#allocation2 + $0x140] sm:$0xff] %vm1007, 0.0
      %1050 = vst.msk [vmem:[#allocation2 + $0x148] sm:$0x3] %vm1010, 0.0
      %1051 = vst.msk [vmem:[#allocation2 + $0x150] sm:$0xff] %vm1007, 0.0
      %1052 = vst.msk [vmem:[#allocation2 + $0x158] sm:$0xff] %vm1007, 0.0
      %1053 = vst.msk [vmem:[#allocation2 + $0x160] sm:$0x3] %vm1010, 0.0
      %1054 = vst.msk [vmem:[#allocation2 + $0x168] sm:$0xff] %vm1007, 0.0
      %1055 = vst.msk [vmem:[#allocation2 + $0x170] sm:$0xff] %vm1007, 0.0
      %1056 = vst.msk [vmem:[#allocation2 + $0x178] sm:$0x3] %vm1010, 0.0
      %1057 = vst.msk [vmem:[#allocation2 + $0x180] sm:$0xff] %vm1007, 0.0
      %1058 = vst.msk [vmem:[#allocation2 + $0x188] sm:$0xff] %vm1007, 0.0
      %1059 = vst.msk [vmem:[#allocation2 + $0x190] sm:$0x3] %vm1010, 0.0
      %1060 = vst.msk [vmem:[#allocation2 + $0x198] sm:$0xff] %vm1007, 0.0
      %1061 = vst.msk [vmem:[#allocation2 + $0x1a0] sm:$0xff] %vm1007, 0.0
      %1062 = vst.msk [vmem:[#allocation2 + $0x1a8] sm:$0x3] %vm1010, 0.0
      %s1063 = scalar_lea.vmem [#allocation2], 24
      %1064 = vst.msk [vmem:[%s1063 + $0x1] sm:$0xff] %vm1007, %v975
      %1065 = vst.msk [vmem:[%s1063 + $0x9] sm:$0xff] %vm1007, %v976
      %1066 = vst.msk [vmem:[%s1063 + $0x19] sm:$0xff] %vm1007, %v977
      %1067 = vst.msk [vmem:[%s1063 + $0x21] sm:$0xff] %vm1007, %v978
      %1068 = vst.msk [vmem:[%s1063 + $0x31] sm:$0xff] %vm1007, %v979
      %1069 = vst.msk [vmem:[%s1063 + $0x39] sm:$0xff] %vm1007, %v980
      %1070 = vst.msk [vmem:[%s1063 + $0x49] sm:$0xff] %vm1007, %v981
      %1071 = vst.msk [vmem:[%s1063 + $0x51] sm:$0xff] %vm1007, %v982
      %1072 = vst.msk [vmem:[%s1063 + $0x61] sm:$0xff] %vm1007, %v983
      %1073 = vst.msk [vmem:[%s1063 + $0x69] sm:$0xff] %vm1007, %v984
      %1074 = vst.msk [vmem:[%s1063 + $0x79] sm:$0xff] %vm1007, %v985
      %1075 = vst.msk [vmem:[%s1063 + $0x81] sm:$0xff] %vm1007, %v986
      %1076 = vst.msk [vmem:[%s1063 + $0x91] sm:$0xff] %vm1007, %v987
      %1077 = vst.msk [vmem:[%s1063 + $0x99] sm:$0xff] %vm1007, %v988
      %1078 = vst.msk [vmem:[%s1063 + $0xa9] sm:$0xff] %vm1007, %v989
      %1079 = vst.msk [vmem:[%s1063 + $0xb1] sm:$0xff] %vm1007, %v990
      %1080 = vst.msk [vmem:[%s1063 + $0xc1] sm:$0xff] %vm1007, %v991
      %1081 = vst.msk [vmem:[%s1063 + $0xc9] sm:$0xff] %vm1007, %v992
      %1082 = vst.msk [vmem:[%s1063 + $0xd9] sm:$0xff] %vm1007, %v993
      %1083 = vst.msk [vmem:[%s1063 + $0xe1] sm:$0xff] %vm1007, %v994
      %1084 = vst.msk [vmem:[%s1063 + $0xf1] sm:$0xff] %vm1007, %v995
      %1085 = vst.msk [vmem:[%s1063 + $0xf9] sm:$0xff] %vm1007, %v996
      %1086 = vst.msk [vmem:[%s1063 + $0x109] sm:$0xff] %vm1007, %v997
      %1087 = vst.msk [vmem:[%s1063 + $0x111] sm:$0xff] %vm1007, %v998
      %1088 = vst.msk [vmem:[%s1063 + $0x121] sm:$0xff] %vm1007, %v999
      %1089 = vst.msk [vmem:[%s1063 + $0x129] sm:$0xff] %vm1007, %v1000
      %1090 = vst.msk [vmem:[%s1063 + $0x139] sm:$0xff] %vm1007, %v1001
      %1091 = vst.msk [vmem:[%s1063 + $0x141] sm:$0xff] %vm1007, %v1002
      %1092 = vst.msk [vmem:[%s1063 + $0x151] sm:$0xff] %vm1007, %v1003
      %1093 = vst.msk [vmem:[%s1063 + $0x159] sm:$0xff] %vm1007, %v1004
      %1094 = vst.msk [vmem:[%s1063 + $0x169] sm:$0xff] %vm1007, %v1005
      %1095 = vst.msk [vmem:[%s1063 + $0x171] sm:$0xff] %vm1007, %v1006
      %v1096 = vld [vmem:[#allocation2] sm:$0xff]
      %v1097 = vld [vmem:[#allocation2 + $0x8] sm:$0xff]
      %v1098 = vld [vmem:[#allocation2 + $0x18] sm:$0xff]
      %v1099 = vld [vmem:[#allocation2 + $0x20] sm:$0xff]
      %v1100 = vld [vmem:[#allocation2 + $0x30] sm:$0xff]
      %v1101 = vld [vmem:[#allocation2 + $0x38] sm:$0xff]
      %v1102 = vld [vmem:[#allocation2 + $0x48] sm:$0xff]
      %v1103 = vld [vmem:[#allocation2 + $0x50] sm:$0xff]
      %v1104 = vld [vmem:[#allocation2 + $0x60] sm:$0xff]
      %v1105 = vld [vmem:[#allocation2 + $0x68] sm:$0xff]
      %v1106 = vld [vmem:[#allocation2 + $0x78] sm:$0xff]
      %v1107 = vld [vmem:[#allocation2 + $0x80] sm:$0xff]
      %v1108 = vld [vmem:[#allocation2 + $0x90] sm:$0xff]
      %v1109 = vld [vmem:[#allocation2 + $0x98] sm:$0xff]
      %v1110 = vld [vmem:[#allocation2 + $0xa8] sm:$0xff]
      %v1111 = vld [vmem:[#allocation2 + $0xb0] sm:$0xff]
      %v1112 = vld [vmem:[#allocation2 + $0xc0] sm:$0xff]
      %v1113 = vld [vmem:[#allocation2 + $0xc8] sm:$0xff]
      %v1114 = vld [vmem:[#allocation2 + $0xd8] sm:$0xff]
      %v1115 = vld [vmem:[#allocation2 + $0xe0] sm:$0xff]
      %v1116 = vld [vmem:[#allocation2 + $0xf0] sm:$0xff]
      %v1117 = vld [vmem:[#allocation2 + $0xf8] sm:$0xff]
      %v1118 = vld [vmem:[#allocation2 + $0x108] sm:$0xff]
      %v1119 = vld [vmem:[#allocation2 + $0x110] sm:$0xff]
      %v1120 = vld [vmem:[#allocation2 + $0x120] sm:$0xff]
      %v1121 = vld [vmem:[#allocation2 + $0x128] sm:$0xff]
      %v1122 = vld [vmem:[#allocation2 + $0x138] sm:$0xff]
      %v1123 = vld [vmem:[#allocation2 + $0x140] sm:$0xff]
      %v1124 = vld [vmem:[#allocation2 + $0x150] sm:$0xff]
      %v1125 = vld [vmem:[#allocation2 + $0x158] sm:$0xff]
      %v1126 = vld [vmem:[#allocation2 + $0x168] sm:$0xff]
      %v1127 = vld [vmem:[#allocation2 + $0x170] sm:$0xff]
      %v1128 = vld [vmem:[#allocation2 + $0x1] sm:$0xff]
      %v1129 = vld [vmem:[#allocation2 + $0x9] sm:$0xff]
      %v1130 = vld [vmem:[#allocation2 + $0x19] sm:$0xff]
      %v1131 = vld [vmem:[#allocation2 + $0x21] sm:$0xff]
      %v1132 = vld [vmem:[#allocation2 + $0x31] sm:$0xff]
      %v1133 = vld [vmem:[#allocation2 + $0x39] sm:$0xff]
      %v1134 = vld [vmem:[#allocation2 + $0x49] sm:$0xff]
      %v1135 = vld [vmem:[#allocation2 + $0x51] sm:$0xff]
      %v1136 = vld [vmem:[#allocation2 + $0x61] sm:$0xff]
      %v1137 = vld [vmem:[#allocation2 + $0x69] sm:$0xff]
      %v1138 = vld [vmem:[#allocation2 + $0x79] sm:$0xff]
      %v1139 = vld [vmem:[#allocation2 + $0x81] sm:$0xff]
      %v1140 = vld [vmem:[#allocation2 + $0x91] sm:$0xff]
      %v1141 = vld [vmem:[#allocation2 + $0x99] sm:$0xff]
      %v1142 = vld [vmem:[#allocation2 + $0xa9] sm:$0xff]
      %v1143 = vld [vmem:[#allocation2 + $0xb1] sm:$0xff]
      %v1144 = vld [vmem:[#allocation2 + $0xc1] sm:$0xff]
      %v1145 = vld [vmem:[#allocation2 + $0xc9] sm:$0xff]
      %v1146 = vld [vmem:[#allocation2 + $0xd9] sm:$0xff]
      %v1147 = vld [vmem:[#allocation2 + $0xe1] sm:$0xff]
      %v1148 = vld [vmem:[#allocation2 + $0xf1] sm:$0xff]
      %v1149 = vld [vmem:[#allocation2 + $0xf9] sm:$0xff]
      %v1150 = vld [vmem:[#allocation2 + $0x109] sm:$0xff]
      %v1151 = vld [vmem:[#allocation2 + $0x111] sm:$0xff]
      %v1152 = vld [vmem:[#allocation2 + $0x121] sm:$0xff]
      %v1153 = vld [vmem:[#allocation2 + $0x129] sm:$0xff]
      %v1154 = vld [vmem:[#allocation2 + $0x139] sm:$0xff]
      %v1155 = vld [vmem:[#allocation2 + $0x141] sm:$0xff]
      %v1156 = vld [vmem:[#allocation2 + $0x151] sm:$0xff]
      %v1157 = vld [vmem:[#allocation2 + $0x159] sm:$0xff]
      %v1158 = vld [vmem:[#allocation2 + $0x169] sm:$0xff]
      %v1159 = vld [vmem:[#allocation2 + $0x171] sm:$0xff]
      %v1160 = vld [vmem:[#allocation2 + $0x2] sm:$0xff]
      %v1161 = vld [vmem:[#allocation2 + $0xa] sm:$0xff]
      %v1162 = vld [vmem:[#allocation2 + $0x1a] sm:$0xff]
      %v1163 = vld [vmem:[#allocation2 + $0x22] sm:$0xff]
      %v1164 = vld [vmem:[#allocation2 + $0x32] sm:$0xff]
      %v1165 = vld [vmem:[#allocation2 + $0x3a] sm:$0xff]
      %v1166 = vld [vmem:[#allocation2 + $0x4a] sm:$0xff]
      %v1167 = vld [vmem:[#allocation2 + $0x52] sm:$0xff]
      %v1168 = vld [vmem:[#allocation2 + $0x62] sm:$0xff]
      %v1169 = vld [vmem:[#allocation2 + $0x6a] sm:$0xff]
      %v1170 = vld [vmem:[#allocation2 + $0x7a] sm:$0xff]
      %v1171 = vld [vmem:[#allocation2 + $0x82] sm:$0xff]
      %v1172 = vld [vmem:[#allocation2 + $0x92] sm:$0xff]
      %v1173 = vld [vmem:[#allocation2 + $0x9a] sm:$0xff]
      %v1174 = vld [vmem:[#allocation2 + $0xaa] sm:$0xff]
      %v1175 = vld [vmem:[#allocation2 + $0xb2] sm:$0xff]
      %v1176 = vld [vmem:[#allocation2 + $0xc2] sm:$0xff]
      %v1177 = vld [vmem:[#allocation2 + $0xca] sm:$0xff]
      %v1178 = vld [vmem:[#allocation2 + $0xda] sm:$0xff]
      %v1179 = vld [vmem:[#allocation2 + $0xe2] sm:$0xff]
      %v1180 = vld [vmem:[#allocation2 + $0xf2] sm:$0xff]
      %v1181 = vld [vmem:[#allocation2 + $0xfa] sm:$0xff]
      %v1182 = vld [vmem:[#allocation2 + $0x10a] sm:$0xff]
      %v1183 = vld [vmem:[#allocation2 + $0x112] sm:$0xff]
      %v1184 = vld [vmem:[#allocation2 + $0x122] sm:$0xff]
      %v1185 = vld [vmem:[#allocation2 + $0x12a] sm:$0xff]
      %v1186 = vld [vmem:[#allocation2 + $0x13a] sm:$0xff]
      %v1187 = vld [vmem:[#allocation2 + $0x142] sm:$0xff]
      %v1188 = vld [vmem:[#allocation2 + $0x152] sm:$0xff]
      %v1189 = vld [vmem:[#allocation2 + $0x15a] sm:$0xff]
      %v1190 = vld [vmem:[#allocation2 + $0x16a] sm:$0xff]
      %v1191 = vld [vmem:[#allocation2 + $0x172] sm:$0xff]
      %v1192 = vld [vmem:[%s1063] sm:$0xff]
      %v1193 = vld [vmem:[%s1063 + $0x8] sm:$0xff]
      %v1194 = vld [vmem:[%s1063 + $0x18] sm:$0xff]
      %v1195 = vld [vmem:[%s1063 + $0x20] sm:$0xff]
      %v1196 = vld [vmem:[%s1063 + $0x30] sm:$0xff]
      %v1197 = vld [vmem:[%s1063 + $0x38] sm:$0xff]
      %v1198 = vld [vmem:[%s1063 + $0x48] sm:$0xff]
      %v1199 = vld [vmem:[%s1063 + $0x50] sm:$0xff]
      %v1200 = vld [vmem:[%s1063 + $0x60] sm:$0xff]
      %v1201 = vld [vmem:[%s1063 + $0x68] sm:$0xff]
      %v1202 = vld [vmem:[%s1063 + $0x78] sm:$0xff]
      %v1203 = vld [vmem:[%s1063 + $0x80] sm:$0xff]
      %v1204 = vld [vmem:[%s1063 + $0x90] sm:$0xff]
      %v1205 = vld [vmem:[%s1063 + $0x98] sm:$0xff]
      %v1206 = vld [vmem:[%s1063 + $0xa8] sm:$0xff]
      %v1207 = vld [vmem:[%s1063 + $0xb0] sm:$0xff]
      %v1208 = vld [vmem:[%s1063 + $0xc0] sm:$0xff]
      %v1209 = vld [vmem:[%s1063 + $0xc8] sm:$0xff]
      %v1210 = vld [vmem:[%s1063 + $0xd8] sm:$0xff]
      %v1211 = vld [vmem:[%s1063 + $0xe0] sm:$0xff]
      %v1212 = vld [vmem:[%s1063 + $0xf0] sm:$0xff]
      %v1213 = vld [vmem:[%s1063 + $0xf8] sm:$0xff]
      %v1214 = vld [vmem:[%s1063 + $0x108] sm:$0xff]
      %v1215 = vld [vmem:[%s1063 + $0x110] sm:$0xff]
      %v1216 = vld [vmem:[%s1063 + $0x120] sm:$0xff]
      %v1217 = vld [vmem:[%s1063 + $0x128] sm:$0xff]
      %v1218 = vld [vmem:[%s1063 + $0x138] sm:$0xff]
      %v1219 = vld [vmem:[%s1063 + $0x140] sm:$0xff]
      %v1220 = vld [vmem:[%s1063 + $0x150] sm:$0xff]
      %v1221 = vld [vmem:[%s1063 + $0x158] sm:$0xff]
      %v1222 = vld [vmem:[%s1063 + $0x168] sm:$0xff]
      %v1223 = vld [vmem:[%s1063 + $0x170] sm:$0xff]
      %v1224 = vld [vmem:[%s1063 + $0x1] sm:$0xff]
      %v1225 = vld [vmem:[%s1063 + $0x9] sm:$0xff]
      %v1226 = vld [vmem:[%s1063 + $0x19] sm:$0xff]
      %v1227 = vld [vmem:[%s1063 + $0x21] sm:$0xff]
      %v1228 = vld [vmem:[%s1063 + $0x31] sm:$0xff]
      %v1229 = vld [vmem:[%s1063 + $0x39] sm:$0xff]
      %v1230 = vld [vmem:[%s1063 + $0x49] sm:$0xff]
      %v1231 = vld [vmem:[%s1063 + $0x51] sm:$0xff]
      %v1232 = vld [vmem:[%s1063 + $0x61] sm:$0xff]
      %v1233 = vld [vmem:[%s1063 + $0x69] sm:$0xff]
      %v1234 = vld [vmem:[%s1063 + $0x79] sm:$0xff]
      %v1235 = vld [vmem:[%s1063 + $0x81] sm:$0xff]
      %v1236 = vld [vmem:[%s1063 + $0x91] sm:$0xff]
      %v1237 = vld [vmem:[%s1063 + $0x99] sm:$0xff]
      %v1238 = vld [vmem:[%s1063 + $0xa9] sm:$0xff]
      %v1239 = vld [vmem:[%s1063 + $0xb1] sm:$0xff]
      %v1240 = vld [vmem:[%s1063 + $0xc1] sm:$0xff]
      %v1241 = vld [vmem:[%s1063 + $0xc9] sm:$0xff]
      %v1242 = vld [vmem:[%s1063 + $0xd9] sm:$0xff]
      %v1243 = vld [vmem:[%s1063 + $0xe1] sm:$0xff]
      %v1244 = vld [vmem:[%s1063 + $0xf1] sm:$0xff]
      %v1245 = vld [vmem:[%s1063 + $0xf9] sm:$0xff]
      %v1246 = vld [vmem:[%s1063 + $0x109] sm:$0xff]
      %v1247 = vld [vmem:[%s1063 + $0x111] sm:$0xff]
      %v1248 = vld [vmem:[%s1063 + $0x121] sm:$0xff]
      %v1249 = vld [vmem:[%s1063 + $0x129] sm:$0xff]
      %v1250 = vld [vmem:[%s1063 + $0x139] sm:$0xff]
      %v1251 = vld [vmem:[%s1063 + $0x141] sm:$0xff]
      %v1252 = vld [vmem:[%s1063 + $0x151] sm:$0xff]
      %v1253 = vld [vmem:[%s1063 + $0x159] sm:$0xff]
      %v1254 = vld [vmem:[%s1063 + $0x169] sm:$0xff]
      %v1255 = vld [vmem:[%s1063 + $0x171] sm:$0xff]
      %v1256 = vld [vmem:[%s1063 + $0x2] sm:$0xff]
      %v1257 = vld [vmem:[%s1063 + $0xa] sm:$0xff]
      %v1258 = vld [vmem:[%s1063 + $0x1a] sm:$0xff]
      %v1259 = vld [vmem:[%s1063 + $0x22] sm:$0xff]
      %v1260 = vld [vmem:[%s1063 + $0x32] sm:$0xff]
      %v1261 = vld [vmem:[%s1063 + $0x3a] sm:$0xff]
      %v1262 = vld [vmem:[%s1063 + $0x4a] sm:$0xff]
      %v1263 = vld [vmem:[%s1063 + $0x52] sm:$0xff]
      %v1264 = vld [vmem:[%s1063 + $0x62] sm:$0xff]
      %v1265 = vld [vmem:[%s1063 + $0x6a] sm:$0xff]
      %v1266 = vld [vmem:[%s1063 + $0x7a] sm:$0xff]
      %v1267 = vld [vmem:[%s1063 + $0x82] sm:$0xff]
      %v1268 = vld [vmem:[%s1063 + $0x92] sm:$0xff]
      %v1269 = vld [vmem:[%s1063 + $0x9a] sm:$0xff]
      %v1270 = vld [vmem:[%s1063 + $0xaa] sm:$0xff]
      %v1271 = vld [vmem:[%s1063 + $0xb2] sm:$0xff]
      %v1272 = vld [vmem:[%s1063 + $0xc2] sm:$0xff]
      %v1273 = vld [vmem:[%s1063 + $0xca] sm:$0xff]
      %v1274 = vld [vmem:[%s1063 + $0xda] sm:$0xff]
      %v1275 = vld [vmem:[%s1063 + $0xe2] sm:$0xff]
      %v1276 = vld [vmem:[%s1063 + $0xf2] sm:$0xff]
      %v1277 = vld [vmem:[%s1063 + $0xfa] sm:$0xff]
      %v1278 = vld [vmem:[%s1063 + $0x10a] sm:$0xff]
      %v1279 = vld [vmem:[%s1063 + $0x112] sm:$0xff]
      %v1280 = vld [vmem:[%s1063 + $0x122] sm:$0xff]
      %v1281 = vld [vmem:[%s1063 + $0x12a] sm:$0xff]
      %v1282 = vld [vmem:[%s1063 + $0x13a] sm:$0xff]
      %v1283 = vld [vmem:[%s1063 + $0x142] sm:$0xff]
      %v1284 = vld [vmem:[%s1063 + $0x152] sm:$0xff]
      %v1285 = vld [vmem:[%s1063 + $0x15a] sm:$0xff]
      %v1286 = vld [vmem:[%s1063 + $0x16a] sm:$0xff]
      %v1287 = vld [vmem:[%s1063 + $0x172] sm:$0xff]
      %s1288 = scalar_lea.vmem [#allocation2], 48
      %v1289 = vld [vmem:[%s1288] sm:$0xff]
      %v1290 = vld [vmem:[%s1288 + $0x8] sm:$0xff]
      %v1291 = vld [vmem:[%s1288 + $0x18] sm:$0xff]
      %v1292 = vld [vmem:[%s1288 + $0x20] sm:$0xff]
      %v1293 = vld [vmem:[%s1288 + $0x30] sm:$0xff]
      %v1294 = vld [vmem:[%s1288 + $0x38] sm:$0xff]
      %v1295 = vld [vmem:[%s1288 + $0x48] sm:$0xff]
      %v1296 = vld [vmem:[%s1288 + $0x50] sm:$0xff]
      %v1297 = vld [vmem:[%s1288 + $0x60] sm:$0xff]
      %v1298 = vld [vmem:[%s1288 + $0x68] sm:$0xff]
      %v1299 = vld [vmem:[%s1288 + $0x78] sm:$0xff]
      %v1300 = vld [vmem:[%s1288 + $0x80] sm:$0xff]
      %v1301 = vld [vmem:[%s1288 + $0x90] sm:$0xff]
      %v1302 = vld [vmem:[%s1288 + $0x98] sm:$0xff]
      %v1303 = vld [vmem:[%s1288 + $0xa8] sm:$0xff]
      %v1304 = vld [vmem:[%s1288 + $0xb0] sm:$0xff]
      %v1305 = vld [vmem:[%s1288 + $0xc0] sm:$0xff]
      %v1306 = vld [vmem:[%s1288 + $0xc8] sm:$0xff]
      %v1307 = vld [vmem:[%s1288 + $0xd8] sm:$0xff]
      %v1308 = vld [vmem:[%s1288 + $0xe0] sm:$0xff]
      %v1309 = vld [vmem:[%s1288 + $0xf0] sm:$0xff]
      %v1310 = vld [vmem:[%s1288 + $0xf8] sm:$0xff]
      %v1311 = vld [vmem:[%s1288 + $0x108] sm:$0xff]
      %v1312 = vld [vmem:[%s1288 + $0x110] sm:$0xff]
      %v1313 = vld [vmem:[%s1288 + $0x120] sm:$0xff]
      %v1314 = vld [vmem:[%s1288 + $0x128] sm:$0xff]
      %v1315 = vld [vmem:[%s1288 + $0x138] sm:$0xff]
      %v1316 = vld [vmem:[%s1288 + $0x140] sm:$0xff]
      %v1317 = vld [vmem:[%s1288 + $0x150] sm:$0xff]
      %v1318 = vld [vmem:[%s1288 + $0x158] sm:$0xff]
      %v1319 = vld [vmem:[%s1288 + $0x168] sm:$0xff]
      %v1320 = vld [vmem:[%s1288 + $0x170] sm:$0xff]
      %v1321 = vld [vmem:[%s1288 + $0x1] sm:$0xff]
      %v1322 = vld [vmem:[%s1288 + $0x9] sm:$0xff]
      %v1323 = vld [vmem:[%s1288 + $0x19] sm:$0xff]
      %v1324 = vld [vmem:[%s1288 + $0x21] sm:$0xff]
      %v1325 = vld [vmem:[%s1288 + $0x31] sm:$0xff]
      %v1326 = vld [vmem:[%s1288 + $0x39] sm:$0xff]
      %v1327 = vld [vmem:[%s1288 + $0x49] sm:$0xff]
      %v1328 = vld [vmem:[%s1288 + $0x51] sm:$0xff]
      %v1329 = vld [vmem:[%s1288 + $0x61] sm:$0xff]
      %v1330 = vld [vmem:[%s1288 + $0x69] sm:$0xff]
      %v1331 = vld [vmem:[%s1288 + $0x79] sm:$0xff]
      %v1332 = vld [vmem:[%s1288 + $0x81] sm:$0xff]
      %v1333 = vld [vmem:[%s1288 + $0x91] sm:$0xff]
      %v1334 = vld [vmem:[%s1288 + $0x99] sm:$0xff]
      %v1335 = vld [vmem:[%s1288 + $0xa9] sm:$0xff]
      %v1336 = vld [vmem:[%s1288 + $0xb1] sm:$0xff]
      %v1337 = vld [vmem:[%s1288 + $0xc1] sm:$0xff]
      %v1338 = vld [vmem:[%s1288 + $0xc9] sm:$0xff]
      %v1339 = vld [vmem:[%s1288 + $0xd9] sm:$0xff]
      %v1340 = vld [vmem:[%s1288 + $0xe1] sm:$0xff]
      %v1341 = vld [vmem:[%s1288 + $0xf1] sm:$0xff]
      %v1342 = vld [vmem:[%s1288 + $0xf9] sm:$0xff]
      %v1343 = vld [vmem:[%s1288 + $0x109] sm:$0xff]
      %v1344 = vld [vmem:[%s1288 + $0x111] sm:$0xff]
      %v1345 = vld [vmem:[%s1288 + $0x121] sm:$0xff]
      %v1346 = vld [vmem:[%s1288 + $0x129] sm:$0xff]
      %v1347 = vld [vmem:[%s1288 + $0x139] sm:$0xff]
      %v1348 = vld [vmem:[%s1288 + $0x141] sm:$0xff]
      %v1349 = vld [vmem:[%s1288 + $0x151] sm:$0xff]
      %v1350 = vld [vmem:[%s1288 + $0x159] sm:$0xff]
      %v1351 = vld [vmem:[%s1288 + $0x169] sm:$0xff]
      %v1352 = vld [vmem:[%s1288 + $0x171] sm:$0xff]
      %v1353 = vld [vmem:[%s1288 + $0x2] sm:$0xff]
      %v1354 = vld [vmem:[%s1288 + $0xa] sm:$0xff]
      %v1355 = vld [vmem:[%s1288 + $0x1a] sm:$0xff]
      %v1356 = vld [vmem:[%s1288 + $0x22] sm:$0xff]
      %v1357 = vld [vmem:[%s1288 + $0x32] sm:$0xff]
      %v1358 = vld [vmem:[%s1288 + $0x3a] sm:$0xff]
      %v1359 = vld [vmem:[%s1288 + $0x4a] sm:$0xff]
      %v1360 = vld [vmem:[%s1288 + $0x52] sm:$0xff]
      %v1361 = vld [vmem:[%s1288 + $0x62] sm:$0xff]
      %v1362 = vld [vmem:[%s1288 + $0x6a] sm:$0xff]
      %v1363 = vld [vmem:[%s1288 + $0x7a] sm:$0xff]
      %v1364 = vld [vmem:[%s1288 + $0x82] sm:$0xff]
      %v1365 = vld [vmem:[%s1288 + $0x92] sm:$0xff]
      %v1366 = vld [vmem:[%s1288 + $0x9a] sm:$0xff]
      %v1367 = vld [vmem:[%s1288 + $0xaa] sm:$0xff]
      %v1368 = vld [vmem:[%s1288 + $0xb2] sm:$0xff]
      %v1369 = vld [vmem:[%s1288 + $0xc2] sm:$0xff]
      %v1370 = vld [vmem:[%s1288 + $0xca] sm:$0xff]
      %v1371 = vld [vmem:[%s1288 + $0xda] sm:$0xff]
      %v1372 = vld [vmem:[%s1288 + $0xe2] sm:$0xff]
      %v1373 = vld [vmem:[%s1288 + $0xf2] sm:$0xff]
      %v1374 = vld [vmem:[%s1288 + $0xfa] sm:$0xff]
      %v1375 = vld [vmem:[%s1288 + $0x10a] sm:$0xff]
      %v1376 = vld [vmem:[%s1288 + $0x112] sm:$0xff]
      %v1377 = vld [vmem:[%s1288 + $0x122] sm:$0xff]
      %v1378 = vld [vmem:[%s1288 + $0x12a] sm:$0xff]
      %v1379 = vld [vmem:[%s1288 + $0x13a] sm:$0xff]
      %v1380 = vld [vmem:[%s1288 + $0x142] sm:$0xff]
      %v1381 = vld [vmem:[%s1288 + $0x152] sm:$0xff]
      %v1382 = vld [vmem:[%s1288 + $0x15a] sm:$0xff]
      %v1383 = vld [vmem:[%s1288 + $0x16a] sm:$0xff]
      %v1384 = vld [vmem:[%s1288 + $0x172] sm:$0xff]
      %1417 = vrot.lane.b32.xlu0 %v1128, 8
      %v1418 = vpop.permute.xlu0 %1417
      %1419 = vrot.lane.b32.xlu0 %v1129, 8
      %v1420 = vpop.permute.xlu0 %1419
      %1421 = vrot.lane.b32.xlu0 %v1130, 8
      %v1422 = vpop.permute.xlu0 %1421
      %1423 = vrot.lane.b32.xlu0 %v1131, 8
      %v1424 = vpop.permute.xlu0 %1423
      %1425 = vrot.lane.b32.xlu0 %v1132, 8
      %v1426 = vpop.permute.xlu0 %1425
      %1427 = vrot.lane.b32.xlu0 %v1133, 8
      %v1428 = vpop.permute.xlu0 %1427
      %1429 = vrot.lane.b32.xlu0 %v1134, 8
      %v1430 = vpop.permute.xlu0 %1429
      %1431 = vrot.lane.b32.xlu0 %v1135, 8
      %v1432 = vpop.permute.xlu0 %1431
      %1433 = vrot.lane.b32.xlu0 %v1136, 8
      %v1434 = vpop.permute.xlu0 %1433
      %1435 = vrot.lane.b32.xlu0 %v1137, 8
      %v1436 = vpop.permute.xlu0 %1435
      %1437 = vrot.lane.b32.xlu0 %v1138, 8
      %v1438 = vpop.permute.xlu0 %1437
      %1439 = vrot.lane.b32.xlu0 %v1139, 8
      %v1440 = vpop.permute.xlu0 %1439
      %1441 = vrot.lane.b32.xlu0 %v1140, 8
      %v1442 = vpop.permute.xlu0 %1441
      %1443 = vrot.lane.b32.xlu0 %v1141, 8
      %v1444 = vpop.permute.xlu0 %1443
      %1445 = vrot.lane.b32.xlu0 %v1142, 8
      %v1446 = vpop.permute.xlu0 %1445
      %1447 = vrot.lane.b32.xlu0 %v1143, 8
      %v1448 = vpop.permute.xlu0 %1447
      %1449 = vrot.lane.b32.xlu0 %v1144, 8
      %v1450 = vpop.permute.xlu0 %1449
      %1451 = vrot.lane.b32.xlu0 %v1145, 8
      %v1452 = vpop.permute.xlu0 %1451
      %1453 = vrot.lane.b32.xlu0 %v1146, 8
      %v1454 = vpop.permute.xlu0 %1453
      %1455 = vrot.lane.b32.xlu0 %v1147, 8
      %v1456 = vpop.permute.xlu0 %1455
      %1457 = vrot.lane.b32.xlu0 %v1148, 8
      %v1458 = vpop.permute.xlu0 %1457
      %1459 = vrot.lane.b32.xlu0 %v1149, 8
      %v1460 = vpop.permute.xlu0 %1459
      %1461 = vrot.lane.b32.xlu0 %v1150, 8
      %v1462 = vpop.permute.xlu0 %1461
      %1463 = vrot.lane.b32.xlu0 %v1151, 8
      %v1464 = vpop.permute.xlu0 %1463
      %1465 = vrot.lane.b32.xlu0 %v1152, 8
      %v1466 = vpop.permute.xlu0 %1465
      %1467 = vrot.lane.b32.xlu0 %v1153, 8
      %v1468 = vpop.permute.xlu0 %1467
      %1469 = vrot.lane.b32.xlu0 %v1154, 8
      %v1470 = vpop.permute.xlu0 %1469
      %1471 = vrot.lane.b32.xlu0 %v1155, 8
      %v1472 = vpop.permute.xlu0 %1471
      %1473 = vrot.lane.b32.xlu0 %v1156, 8
      %v1474 = vpop.permute.xlu0 %1473
      %1475 = vrot.lane.b32.xlu0 %v1157, 8
      %v1476 = vpop.permute.xlu0 %1475
      %1477 = vrot.lane.b32.xlu0 %v1158, 8
      %v1478 = vpop.permute.xlu0 %1477
      %1479 = vrot.lane.b32.xlu0 %v1159, 8
      %v1480 = vpop.permute.xlu0 %1479
      %1545 = vrot.lane.b32.xlu0 %v1160, 16
      %v1546 = vpop.permute.xlu0 %1545
      %1547 = vrot.lane.b32.xlu0 %v1161, 16
      %v1548 = vpop.permute.xlu0 %1547
      %1549 = vrot.lane.b32.xlu0 %v1162, 16
      %v1550 = vpop.permute.xlu0 %1549
      %1551 = vrot.lane.b32.xlu0 %v1163, 16
      %v1552 = vpop.permute.xlu0 %1551
      %1553 = vrot.lane.b32.xlu0 %v1164, 16
      %v1554 = vpop.permute.xlu0 %1553
      %1555 = vrot.lane.b32.xlu0 %v1165, 16
      %v1556 = vpop.permute.xlu0 %1555
      %1557 = vrot.lane.b32.xlu0 %v1166, 16
      %v1558 = vpop.permute.xlu0 %1557
      %1559 = vrot.lane.b32.xlu0 %v1167, 16
      %v1560 = vpop.permute.xlu0 %1559
      %1561 = vrot.lane.b32.xlu0 %v1168, 16
      %v1562 = vpop.permute.xlu0 %1561
      %1563 = vrot.lane.b32.xlu0 %v1169, 16
      %v1564 = vpop.permute.xlu0 %1563
      %1565 = vrot.lane.b32.xlu0 %v1170, 16
      %v1566 = vpop.permute.xlu0 %1565
      %1567 = vrot.lane.b32.xlu0 %v1171, 16
      %v1568 = vpop.permute.xlu0 %1567
      %1569 = vrot.lane.b32.xlu0 %v1172, 16
      %v1570 = vpop.permute.xlu0 %1569
      %1571 = vrot.lane.b32.xlu0 %v1173, 16
      %v1572 = vpop.permute.xlu0 %1571
      %1573 = vrot.lane.b32.xlu0 %v1174, 16
      %v1574 = vpop.permute.xlu0 %1573
      %1575 = vrot.lane.b32.xlu0 %v1175, 16
      %v1576 = vpop.permute.xlu0 %1575
      %1577 = vrot.lane.b32.xlu0 %v1176, 16
      %v1578 = vpop.permute.xlu0 %1577
      %1579 = vrot.lane.b32.xlu0 %v1177, 16
      %v1580 = vpop.permute.xlu0 %1579
      %1581 = vrot.lane.b32.xlu0 %v1178, 16
      %v1582 = vpop.permute.xlu0 %1581
      %1583 = vrot.lane.b32.xlu0 %v1179, 16
      %v1584 = vpop.permute.xlu0 %1583
      %1585 = vrot.lane.b32.xlu0 %v1180, 16
      %v1586 = vpop.permute.xlu0 %1585
      %1587 = vrot.lane.b32.xlu0 %v1181, 16
      %v1588 = vpop.permute.xlu0 %1587
      %1589 = vrot.lane.b32.xlu0 %v1182, 16
      %v1590 = vpop.permute.xlu0 %1589
      %1591 = vrot.lane.b32.xlu0 %v1183, 16
      %v1592 = vpop.permute.xlu0 %1591
      %1593 = vrot.lane.b32.xlu0 %v1184, 16
      %v1594 = vpop.permute.xlu0 %1593
      %1595 = vrot.lane.b32.xlu0 %v1185, 16
      %v1596 = vpop.permute.xlu0 %1595
      %1597 = vrot.lane.b32.xlu0 %v1186, 16
      %v1598 = vpop.permute.xlu0 %1597
      %1599 = vrot.lane.b32.xlu0 %v1187, 16
      %v1600 = vpop.permute.xlu0 %1599
      %1601 = vrot.lane.b32.xlu0 %v1188, 16
      %v1602 = vpop.permute.xlu0 %1601
      %1603 = vrot.lane.b32.xlu0 %v1189, 16
      %v1604 = vpop.permute.xlu0 %1603
      %1605 = vrot.lane.b32.xlu0 %v1190, 16
      %v1606 = vpop.permute.xlu0 %1605
      %1607 = vrot.lane.b32.xlu0 %v1191, 16
      %v1608 = vpop.permute.xlu0 %1607
      %1673 = vrot.lane.b32.xlu0 %v1192, 24
      %v1674 = vpop.permute.xlu0 %1673
      %1675 = vrot.lane.b32.xlu0 %v1193, 24
      %v1676 = vpop.permute.xlu0 %1675
      %1677 = vrot.lane.b32.xlu0 %v1194, 24
      %v1678 = vpop.permute.xlu0 %1677
      %1679 = vrot.lane.b32.xlu0 %v1195, 24
      %v1680 = vpop.permute.xlu0 %1679
      %1681 = vrot.lane.b32.xlu0 %v1196, 24
      %v1682 = vpop.permute.xlu0 %1681
      %1683 = vrot.lane.b32.xlu0 %v1197, 24
      %v1684 = vpop.permute.xlu0 %1683
      %1685 = vrot.lane.b32.xlu0 %v1198, 24
      %v1686 = vpop.permute.xlu0 %1685
      %1687 = vrot.lane.b32.xlu0 %v1199, 24
      %v1688 = vpop.permute.xlu0 %1687
      %1689 = vrot.lane.b32.xlu0 %v1200, 24
      %v1690 = vpop.permute.xlu0 %1689
      %1691 = vrot.lane.b32.xlu0 %v1201, 24
      %v1692 = vpop.permute.xlu0 %1691
      %1693 = vrot.lane.b32.xlu0 %v1202, 24
      %v1694 = vpop.permute.xlu0 %1693
      %1695 = vrot.lane.b32.xlu0 %v1203, 24
      %v1696 = vpop.permute.xlu0 %1695
      %1697 = vrot.lane.b32.xlu0 %v1204, 24
      %v1698 = vpop.permute.xlu0 %1697
      %1699 = vrot.lane.b32.xlu0 %v1205, 24
      %v1700 = vpop.permute.xlu0 %1699
      %1701 = vrot.lane.b32.xlu0 %v1206, 24
      %v1702 = vpop.permute.xlu0 %1701
      %1703 = vrot.lane.b32.xlu0 %v1207, 24
      %v1704 = vpop.permute.xlu0 %1703
      %1705 = vrot.lane.b32.xlu0 %v1208, 24
      %v1706 = vpop.permute.xlu0 %1705
      %1707 = vrot.lane.b32.xlu0 %v1209, 24
      %v1708 = vpop.permute.xlu0 %1707
      %1709 = vrot.lane.b32.xlu0 %v1210, 24
      %v1710 = vpop.permute.xlu0 %1709
      %1711 = vrot.lane.b32.xlu0 %v1211, 24
      %v1712 = vpop.permute.xlu0 %1711
      %1713 = vrot.lane.b32.xlu0 %v1212, 24
      %v1714 = vpop.permute.xlu0 %1713
      %1715 = vrot.lane.b32.xlu0 %v1213, 24
      %v1716 = vpop.permute.xlu0 %1715
      %1717 = vrot.lane.b32.xlu0 %v1214, 24
      %v1718 = vpop.permute.xlu0 %1717
      %1719 = vrot.lane.b32.xlu0 %v1215, 24
      %v1720 = vpop.permute.xlu0 %1719
      %1721 = vrot.lane.b32.xlu0 %v1216, 24
      %v1722 = vpop.permute.xlu0 %1721
      %1723 = vrot.lane.b32.xlu0 %v1217, 24
      %v1724 = vpop.permute.xlu0 %1723
      %1725 = vrot.lane.b32.xlu0 %v1218, 24
      %v1726 = vpop.permute.xlu0 %1725
      %1727 = vrot.lane.b32.xlu0 %v1219, 24
      %v1728 = vpop.permute.xlu0 %1727
      %1729 = vrot.lane.b32.xlu0 %v1220, 24
      %v1730 = vpop.permute.xlu0 %1729
      %1731 = vrot.lane.b32.xlu0 %v1221, 24
      %v1732 = vpop.permute.xlu0 %1731
      %1733 = vrot.lane.b32.xlu0 %v1222, 24
      %v1734 = vpop.permute.xlu0 %1733
      %1735 = vrot.lane.b32.xlu0 %v1223, 24
      %v1736 = vpop.permute.xlu0 %1735
      %1801 = vrot.lane.b32.xlu0 %v1224, 32
      %v1802 = vpop.permute.xlu0 %1801
      %1803 = vrot.lane.b32.xlu0 %v1225, 32
      %v1804 = vpop.permute.xlu0 %1803
      %1805 = vrot.lane.b32.xlu0 %v1226, 32
      %v1806 = vpop.permute.xlu0 %1805
      %1807 = vrot.lane.b32.xlu0 %v1227, 32
      %v1808 = vpop.permute.xlu0 %1807
      %1809 = vrot.lane.b32.xlu0 %v1228, 32
      %v1810 = vpop.permute.xlu0 %1809
      %1811 = vrot.lane.b32.xlu0 %v1229, 32
      %v1812 = vpop.permute.xlu0 %1811
      %1813 = vrot.lane.b32.xlu0 %v1230, 32
      %v1814 = vpop.permute.xlu0 %1813
      %1815 = vrot.lane.b32.xlu0 %v1231, 32
      %v1816 = vpop.permute.xlu0 %1815
      %1817 = vrot.lane.b32.xlu0 %v1232, 32
      %v1818 = vpop.permute.xlu0 %1817
      %1819 = vrot.lane.b32.xlu0 %v1233, 32
      %v1820 = vpop.permute.xlu0 %1819
      %1821 = vrot.lane.b32.xlu0 %v1234, 32
      %v1822 = vpop.permute.xlu0 %1821
      %1823 = vrot.lane.b32.xlu0 %v1235, 32
      %v1824 = vpop.permute.xlu0 %1823
      %1825 = vrot.lane.b32.xlu0 %v1236, 32
      %v1826 = vpop.permute.xlu0 %1825
      %1827 = vrot.lane.b32.xlu0 %v1237, 32
      %v1828 = vpop.permute.xlu0 %1827
      %1829 = vrot.lane.b32.xlu0 %v1238, 32
      %v1830 = vpop.permute.xlu0 %1829
      %1831 = vrot.lane.b32.xlu0 %v1239, 32
      %v1832 = vpop.permute.xlu0 %1831
      %1833 = vrot.lane.b32.xlu0 %v1240, 32
      %v1834 = vpop.permute.xlu0 %1833
      %1835 = vrot.lane.b32.xlu0 %v1241, 32
      %v1836 = vpop.permute.xlu0 %1835
      %1837 = vrot.lane.b32.xlu0 %v1242, 32
      %v1838 = vpop.permute.xlu0 %1837
      %1839 = vrot.lane.b32.xlu0 %v1243, 32
      %v1840 = vpop.permute.xlu0 %1839
      %1841 = vrot.lane.b32.xlu0 %v1244, 32
      %v1842 = vpop.permute.xlu0 %1841
      %1843 = vrot.lane.b32.xlu0 %v1245, 32
      %v1844 = vpop.permute.xlu0 %1843
      %1845 = vrot.lane.b32.xlu0 %v1246, 32
      %v1846 = vpop.permute.xlu0 %1845
      %1847 = vrot.lane.b32.xlu0 %v1247, 32
      %v1848 = vpop.permute.xlu0 %1847
      %1849 = vrot.lane.b32.xlu0 %v1248, 32
      %v1850 = vpop.permute.xlu0 %1849
      %1851 = vrot.lane.b32.xlu0 %v1249, 32
      %v1852 = vpop.permute.xlu0 %1851
      %1853 = vrot.lane.b32.xlu0 %v1250, 32
      %v1854 = vpop.permute.xlu0 %1853
      %1855 = vrot.lane.b32.xlu0 %v1251, 32
      %v1856 = vpop.permute.xlu0 %1855
      %1857 = vrot.lane.b32.xlu0 %v1252, 32
      %v1858 = vpop.permute.xlu0 %1857
      %1859 = vrot.lane.b32.xlu0 %v1253, 32
      %v1860 = vpop.permute.xlu0 %1859
      %1861 = vrot.lane.b32.xlu0 %v1254, 32
      %v1862 = vpop.permute.xlu0 %1861
      %1863 = vrot.lane.b32.xlu0 %v1255, 32
      %v1864 = vpop.permute.xlu0 %1863
      %1929 = vrot.lane.b32.xlu0 %v1256, 40
      %v1930 = vpop.permute.xlu0 %1929
      %1931 = vrot.lane.b32.xlu0 %v1257, 40
      %v1932 = vpop.permute.xlu0 %1931
      %1933 = vrot.lane.b32.xlu0 %v1258, 40
      %v1934 = vpop.permute.xlu0 %1933
      %1935 = vrot.lane.b32.xlu0 %v1259, 40
      %v1936 = vpop.permute.xlu0 %1935
      %1937 = vrot.lane.b32.xlu0 %v1260, 40
      %v1938 = vpop.permute.xlu0 %1937
      %1939 = vrot.lane.b32.xlu0 %v1261, 40
      %v1940 = vpop.permute.xlu0 %1939
      %1941 = vrot.lane.b32.xlu0 %v1262, 40
      %v1942 = vpop.permute.xlu0 %1941
      %1943 = vrot.lane.b32.xlu0 %v1263, 40
      %v1944 = vpop.permute.xlu0 %1943
      %1945 = vrot.lane.b32.xlu0 %v1264, 40
      %v1946 = vpop.permute.xlu0 %1945
      %1947 = vrot.lane.b32.xlu0 %v1265, 40
      %v1948 = vpop.permute.xlu0 %1947
      %1949 = vrot.lane.b32.xlu0 %v1266, 40
      %v1950 = vpop.permute.xlu0 %1949
      %1951 = vrot.lane.b32.xlu0 %v1267, 40
      %v1952 = vpop.permute.xlu0 %1951
      %1953 = vrot.lane.b32.xlu0 %v1268, 40
      %v1954 = vpop.permute.xlu0 %1953
      %1955 = vrot.lane.b32.xlu0 %v1269, 40
      %v1956 = vpop.permute.xlu0 %1955
      %1957 = vrot.lane.b32.xlu0 %v1270, 40
      %v1958 = vpop.permute.xlu0 %1957
      %1959 = vrot.lane.b32.xlu0 %v1271, 40
      %v1960 = vpop.permute.xlu0 %1959
      %1961 = vrot.lane.b32.xlu0 %v1272, 40
      %v1962 = vpop.permute.xlu0 %1961
      %1963 = vrot.lane.b32.xlu0 %v1273, 40
      %v1964 = vpop.permute.xlu0 %1963
      %1965 = vrot.lane.b32.xlu0 %v1274, 40
      %v1966 = vpop.permute.xlu0 %1965
      %1967 = vrot.lane.b32.xlu0 %v1275, 40
      %v1968 = vpop.permute.xlu0 %1967
      %1969 = vrot.lane.b32.xlu0 %v1276, 40
      %v1970 = vpop.permute.xlu0 %1969
      %1971 = vrot.lane.b32.xlu0 %v1277, 40
      %v1972 = vpop.permute.xlu0 %1971
      %1973 = vrot.lane.b32.xlu0 %v1278, 40
      %v1974 = vpop.permute.xlu0 %1973
      %1975 = vrot.lane.b32.xlu0 %v1279, 40
      %v1976 = vpop.permute.xlu0 %1975
      %1977 = vrot.lane.b32.xlu0 %v1280, 40
      %v1978 = vpop.permute.xlu0 %1977
      %1979 = vrot.lane.b32.xlu0 %v1281, 40
      %v1980 = vpop.permute.xlu0 %1979
      %1981 = vrot.lane.b32.xlu0 %v1282, 40
      %v1982 = vpop.permute.xlu0 %1981
      %1983 = vrot.lane.b32.xlu0 %v1283, 40
      %v1984 = vpop.permute.xlu0 %1983
      %1985 = vrot.lane.b32.xlu0 %v1284, 40
      %v1986 = vpop.permute.xlu0 %1985
      %1987 = vrot.lane.b32.xlu0 %v1285, 40
      %v1988 = vpop.permute.xlu0 %1987
      %1989 = vrot.lane.b32.xlu0 %v1286, 40
      %v1990 = vpop.permute.xlu0 %1989
      %1991 = vrot.lane.b32.xlu0 %v1287, 40
      %v1992 = vpop.permute.xlu0 %1991
      %2057 = vrot.lane.b32.xlu0 %v1289, 48
      %v2058 = vpop.permute.xlu0 %2057
      %2059 = vrot.lane.b32.xlu0 %v1290, 48
      %v2060 = vpop.permute.xlu0 %2059
      %2061 = vrot.lane.b32.xlu0 %v1291, 48
      %v2062 = vpop.permute.xlu0 %2061
      %2063 = vrot.lane.b32.xlu0 %v1292, 48
      %v2064 = vpop.permute.xlu0 %2063
      %2065 = vrot.lane.b32.xlu0 %v1293, 48
      %v2066 = vpop.permute.xlu0 %2065
      %2067 = vrot.lane.b32.xlu0 %v1294, 48
      %v2068 = vpop.permute.xlu0 %2067
      %2069 = vrot.lane.b32.xlu0 %v1295, 48
      %v2070 = vpop.permute.xlu0 %2069
      %2071 = vrot.lane.b32.xlu0 %v1296, 48
      %v2072 = vpop.permute.xlu0 %2071
      %2073 = vrot.lane.b32.xlu0 %v1297, 48
      %v2074 = vpop.permute.xlu0 %2073
      %2075 = vrot.lane.b32.xlu0 %v1298, 48
      %v2076 = vpop.permute.xlu0 %2075
      %2077 = vrot.lane.b32.xlu0 %v1299, 48
      %v2078 = vpop.permute.xlu0 %2077
      %2079 = vrot.lane.b32.xlu0 %v1300, 48
      %v2080 = vpop.permute.xlu0 %2079
      %2081 = vrot.lane.b32.xlu0 %v1301, 48
      %v2082 = vpop.permute.xlu0 %2081
      %2083 = vrot.lane.b32.xlu0 %v1302, 48
      %v2084 = vpop.permute.xlu0 %2083
      %2085 = vrot.lane.b32.xlu0 %v1303, 48
      %v2086 = vpop.permute.xlu0 %2085
      %2087 = vrot.lane.b32.xlu0 %v1304, 48
      %v2088 = vpop.permute.xlu0 %2087
      %2089 = vrot.lane.b32.xlu0 %v1305, 48
      %v2090 = vpop.permute.xlu0 %2089
      %2091 = vrot.lane.b32.xlu0 %v1306, 48
      %v2092 = vpop.permute.xlu0 %2091
      %2093 = vrot.lane.b32.xlu0 %v1307, 48
      %v2094 = vpop.permute.xlu0 %2093
      %2095 = vrot.lane.b32.xlu0 %v1308, 48
      %v2096 = vpop.permute.xlu0 %2095
      %2097 = vrot.lane.b32.xlu0 %v1309, 48
      %v2098 = vpop.permute.xlu0 %2097
      %2099 = vrot.lane.b32.xlu0 %v1310, 48
      %v2100 = vpop.permute.xlu0 %2099
      %2101 = vrot.lane.b32.xlu0 %v1311, 48
      %v2102 = vpop.permute.xlu0 %2101
      %2103 = vrot.lane.b32.xlu0 %v1312, 48
      %v2104 = vpop.permute.xlu0 %2103
      %2105 = vrot.lane.b32.xlu0 %v1313, 48
      %v2106 = vpop.permute.xlu0 %2105
      %2107 = vrot.lane.b32.xlu0 %v1314, 48
      %v2108 = vpop.permute.xlu0 %2107
      %2109 = vrot.lane.b32.xlu0 %v1315, 48
      %v2110 = vpop.permute.xlu0 %2109
      %2111 = vrot.lane.b32.xlu0 %v1316, 48
      %v2112 = vpop.permute.xlu0 %2111
      %2113 = vrot.lane.b32.xlu0 %v1317, 48
      %v2114 = vpop.permute.xlu0 %2113
      %2115 = vrot.lane.b32.xlu0 %v1318, 48
      %v2116 = vpop.permute.xlu0 %2115
      %2117 = vrot.lane.b32.xlu0 %v1319, 48
      %v2118 = vpop.permute.xlu0 %2117
      %2119 = vrot.lane.b32.xlu0 %v1320, 48
      %v2120 = vpop.permute.xlu0 %2119
      %2185 = vrot.lane.b32.xlu0 %v1321, 56
      %v2186 = vpop.permute.xlu0 %2185
      %2187 = vrot.lane.b32.xlu0 %v1322, 56
      %v2188 = vpop.permute.xlu0 %2187
      %2189 = vrot.lane.b32.xlu0 %v1323, 56
      %v2190 = vpop.permute.xlu0 %2189
      %2191 = vrot.lane.b32.xlu0 %v1324, 56
      %v2192 = vpop.permute.xlu0 %2191
      %2193 = vrot.lane.b32.xlu0 %v1325, 56
      %v2194 = vpop.permute.xlu0 %2193
      %2195 = vrot.lane.b32.xlu0 %v1326, 56
      %v2196 = vpop.permute.xlu0 %2195
      %2197 = vrot.lane.b32.xlu0 %v1327, 56
      %v2198 = vpop.permute.xlu0 %2197
      %2199 = vrot.lane.b32.xlu0 %v1328, 56
      %v2200 = vpop.permute.xlu0 %2199
      %2201 = vrot.lane.b32.xlu0 %v1329, 56
      %v2202 = vpop.permute.xlu0 %2201
      %2203 = vrot.lane.b32.xlu0 %v1330, 56
      %v2204 = vpop.permute.xlu0 %2203
      %2205 = vrot.lane.b32.xlu0 %v1331, 56
      %v2206 = vpop.permute.xlu0 %2205
      %2207 = vrot.lane.b32.xlu0 %v1332, 56
      %v2208 = vpop.permute.xlu0 %2207
      %2209 = vrot.lane.b32.xlu0 %v1333, 56
      %v2210 = vpop.permute.xlu0 %2209
      %2211 = vrot.lane.b32.xlu0 %v1334, 56
      %v2212 = vpop.permute.xlu0 %2211
      %2213 = vrot.lane.b32.xlu0 %v1335, 56
      %v2214 = vpop.permute.xlu0 %2213
      %2215 = vrot.lane.b32.xlu0 %v1336, 56
      %v2216 = vpop.permute.xlu0 %2215
      %2217 = vrot.lane.b32.xlu0 %v1337, 56
      %v2218 = vpop.permute.xlu0 %2217
      %2219 = vrot.lane.b32.xlu0 %v1338, 56
      %v2220 = vpop.permute.xlu0 %2219
      %2221 = vrot.lane.b32.xlu0 %v1339, 56
      %v2222 = vpop.permute.xlu0 %2221
      %2223 = vrot.lane.b32.xlu0 %v1340, 56
      %v2224 = vpop.permute.xlu0 %2223
      %2225 = vrot.lane.b32.xlu0 %v1341, 56
      %v2226 = vpop.permute.xlu0 %2225
      %2227 = vrot.lane.b32.xlu0 %v1342, 56
      %v2228 = vpop.permute.xlu0 %2227
      %2229 = vrot.lane.b32.xlu0 %v1343, 56
      %v2230 = vpop.permute.xlu0 %2229
      %2231 = vrot.lane.b32.xlu0 %v1344, 56
      %v2232 = vpop.permute.xlu0 %2231
      %2233 = vrot.lane.b32.xlu0 %v1345, 56
      %v2234 = vpop.permute.xlu0 %2233
      %2235 = vrot.lane.b32.xlu0 %v1346, 56
      %v2236 = vpop.permute.xlu0 %2235
      %2237 = vrot.lane.b32.xlu0 %v1347, 56
      %v2238 = vpop.permute.xlu0 %2237
      %2239 = vrot.lane.b32.xlu0 %v1348, 56
      %v2240 = vpop.permute.xlu0 %2239
      %2241 = vrot.lane.b32.xlu0 %v1349, 56
      %v2242 = vpop.permute.xlu0 %2241
      %2243 = vrot.lane.b32.xlu0 %v1350, 56
      %v2244 = vpop.permute.xlu0 %2243
      %2245 = vrot.lane.b32.xlu0 %v1351, 56
      %v2246 = vpop.permute.xlu0 %2245
      %2247 = vrot.lane.b32.xlu0 %v1352, 56
      %v2248 = vpop.permute.xlu0 %2247
      %2313 = vrot.lane.b32.xlu0 %v1353, 64
      %v2314 = vpop.permute.xlu0 %2313
      %2315 = vrot.lane.b32.xlu0 %v1354, 64
      %v2316 = vpop.permute.xlu0 %2315
      %2317 = vrot.lane.b32.xlu0 %v1355, 64
      %v2318 = vpop.permute.xlu0 %2317
      %2319 = vrot.lane.b32.xlu0 %v1356, 64
      %v2320 = vpop.permute.xlu0 %2319
      %2321 = vrot.lane.b32.xlu0 %v1357, 64
      %v2322 = vpop.permute.xlu0 %2321
      %2323 = vrot.lane.b32.xlu0 %v1358, 64
      %v2324 = vpop.permute.xlu0 %2323
      %2325 = vrot.lane.b32.xlu0 %v1359, 64
      %v2326 = vpop.permute.xlu0 %2325
      %2327 = vrot.lane.b32.xlu0 %v1360, 64
      %v2328 = vpop.permute.xlu0 %2327
      %2329 = vrot.lane.b32.xlu0 %v1361, 64
      %v2330 = vpop.permute.xlu0 %2329
      %2331 = vrot.lane.b32.xlu0 %v1362, 64
      %v2332 = vpop.permute.xlu0 %2331
      %2333 = vrot.lane.b32.xlu0 %v1363, 64
      %v2334 = vpop.permute.xlu0 %2333
      %2335 = vrot.lane.b32.xlu0 %v1364, 64
      %v2336 = vpop.permute.xlu0 %2335
      %2337 = vrot.lane.b32.xlu0 %v1365, 64
      %v2338 = vpop.permute.xlu0 %2337
      %2339 = vrot.lane.b32.xlu0 %v1366, 64
      %v2340 = vpop.permute.xlu0 %2339
      %2341 = vrot.lane.b32.xlu0 %v1367, 64
      %v2342 = vpop.permute.xlu0 %2341
      %2343 = vrot.lane.b32.xlu0 %v1368, 64
      %v2344 = vpop.permute.xlu0 %2343
      %2345 = vrot.lane.b32.xlu0 %v1369, 64
      %v2346 = vpop.permute.xlu0 %2345
      %2347 = vrot.lane.b32.xlu0 %v1370, 64
      %v2348 = vpop.permute.xlu0 %2347
      %2349 = vrot.lane.b32.xlu0 %v1371, 64
      %v2350 = vpop.permute.xlu0 %2349
      %2351 = vrot.lane.b32.xlu0 %v1372, 64
      %v2352 = vpop.permute.xlu0 %2351
      %2353 = vrot.lane.b32.xlu0 %v1373, 64
      %v2354 = vpop.permute.xlu0 %2353
      %2355 = vrot.lane.b32.xlu0 %v1374, 64
      %v2356 = vpop.permute.xlu0 %2355
      %2357 = vrot.lane.b32.xlu0 %v1375, 64
      %v2358 = vpop.permute.xlu0 %2357
      %2359 = vrot.lane.b32.xlu0 %v1376, 64
      %v2360 = vpop.permute.xlu0 %2359
      %2361 = vrot.lane.b32.xlu0 %v1377, 64
      %v2362 = vpop.permute.xlu0 %2361
      %2363 = vrot.lane.b32.xlu0 %v1378, 64
      %v2364 = vpop.permute.xlu0 %2363
      %2365 = vrot.lane.b32.xlu0 %v1379, 64
      %v2366 = vpop.permute.xlu0 %2365
      %2367 = vrot.lane.b32.xlu0 %v1380, 64
      %v2368 = vpop.permute.xlu0 %2367
      %2369 = vrot.lane.b32.xlu0 %v1381, 64
      %v2370 = vpop.permute.xlu0 %2369
      %2371 = vrot.lane.b32.xlu0 %v1382, 64
      %v2372 = vpop.permute.xlu0 %2371
      %2373 = vrot.lane.b32.xlu0 %v1383, 64
      %v2374 = vpop.permute.xlu0 %2373
      %2375 = vrot.lane.b32.xlu0 %v1384, 64
      %v2376 = vpop.permute.xlu0 %2375
      %v2409 = vsel %vm1007, %v1096, %v1418
      %v2410 = vsel %vm1007, %v1097, %v1420
      %v2411 = vsel %vm1007, %v1098, %v1422
      %v2412 = vsel %vm1007, %v1099, %v1424
      %v2413 = vsel %vm1007, %v1100, %v1426
      %v2414 = vsel %vm1007, %v1101, %v1428
      %v2415 = vsel %vm1007, %v1102, %v1430
      %v2416 = vsel %vm1007, %v1103, %v1432
      %v2417 = vsel %vm1007, %v1104, %v1434
      %v2418 = vsel %vm1007, %v1105, %v1436
      %v2419 = vsel %vm1007, %v1106, %v1438
      %v2420 = vsel %vm1007, %v1107, %v1440
      %v2421 = vsel %vm1007, %v1108, %v1442
      %v2422 = vsel %vm1007, %v1109, %v1444
      %v2423 = vsel %vm1007, %v1110, %v1446
      %v2424 = vsel %vm1007, %v1111, %v1448
      %v2425 = vsel %vm1007, %v1112, %v1450
      %v2426 = vsel %vm1007, %v1113, %v1452
      %v2427 = vsel %vm1007, %v1114, %v1454
      %v2428 = vsel %vm1007, %v1115, %v1456
      %v2429 = vsel %vm1007, %v1116, %v1458
      %v2430 = vsel %vm1007, %v1117, %v1460
      %v2431 = vsel %vm1007, %v1118, %v1462
      %v2432 = vsel %vm1007, %v1119, %v1464
      %v2433 = vsel %vm1007, %v1120, %v1466
      %v2434 = vsel %vm1007, %v1121, %v1468
      %v2435 = vsel %vm1007, %v1122, %v1470
      %v2436 = vsel %vm1007, %v1123, %v1472
      %v2437 = vsel %vm1007, %v1124, %v1474
      %v2438 = vsel %vm1007, %v1125, %v1476
      %v2439 = vsel %vm1007, %v1126, %v1478
      %v2440 = vsel %vm1007, %v1127, %v1480
      %vm2441 = vcmask 130048
      %v2442 = vsel %vm2441, %v2409, %v1546
      %v2443 = vsel %vm2441, %v2410, %v1548
      %v2444 = vsel %vm2441, %v2411, %v1550
      %v2445 = vsel %vm2441, %v2412, %v1552
      %v2446 = vsel %vm2441, %v2413, %v1554
      %v2447 = vsel %vm2441, %v2414, %v1556
      %v2448 = vsel %vm2441, %v2415, %v1558
      %v2449 = vsel %vm2441, %v2416, %v1560
      %v2450 = vsel %vm2441, %v2417, %v1562
      %v2451 = vsel %vm2441, %v2418, %v1564
      %v2452 = vsel %vm2441, %v2419, %v1566
      %v2453 = vsel %vm2441, %v2420, %v1568
      %v2454 = vsel %vm2441, %v2421, %v1570
      %v2455 = vsel %vm2441, %v2422, %v1572
      %v2456 = vsel %vm2441, %v2423, %v1574
      %v2457 = vsel %vm2441, %v2424, %v1576
      %v2458 = vsel %vm2441, %v2425, %v1578
      %v2459 = vsel %vm2441, %v2426, %v1580
      %v2460 = vsel %vm2441, %v2427, %v1582
      %v2461 = vsel %vm2441, %v2428, %v1584
      %v2462 = vsel %vm2441, %v2429, %v1586
      %v2463 = vsel %vm2441, %v2430, %v1588
      %v2464 = vsel %vm2441, %v2431, %v1590
      %v2465 = vsel %vm2441, %v2432, %v1592
      %v2466 = vsel %vm2441, %v2433, %v1594
      %v2467 = vsel %vm2441, %v2434, %v1596
      %v2468 = vsel %vm2441, %v2435, %v1598
      %v2469 = vsel %vm2441, %v2436, %v1600
      %v2470 = vsel %vm2441, %v2437, %v1602
      %v2471 = vsel %vm2441, %v2438, %v1604
      %v2472 = vsel %vm2441, %v2439, %v1606
      %v2473 = vsel %vm2441, %v2440, %v1608
      %vm2474 = vcmask 195584
      %v2475 = vsel %vm2474, %v2442, %v1674
      %v2476 = vsel %vm2474, %v2443, %v1676
      %v2477 = vsel %vm2474, %v2444, %v1678
      %v2478 = vsel %vm2474, %v2445, %v1680
      %v2479 = vsel %vm2474, %v2446, %v1682
      %v2480 = vsel %vm2474, %v2447, %v1684
      %v2481 = vsel %vm2474, %v2448, %v1686
      %v2482 = vsel %vm2474, %v2449, %v1688
      %v2483 = vsel %vm2474, %v2450, %v1690
      %v2484 = vsel %vm2474, %v2451, %v1692
      %v2485 = vsel %vm2474, %v2452, %v1694
      %v2486 = vsel %vm2474, %v2453, %v1696
      %v2487 = vsel %vm2474, %v2454, %v1698
      %v2488 = vsel %vm2474, %v2455, %v1700
      %v2489 = vsel %vm2474, %v2456, %v1702
      %v2490 = vsel %vm2474, %v2457, %v1704
      %v2491 = vsel %vm2474, %v2458, %v1706
      %v2492 = vsel %vm2474, %v2459, %v1708
      %v2493 = vsel %vm2474, %v2460, %v1710
      %v2494 = vsel %vm2474, %v2461, %v1712
      %v2495 = vsel %vm2474, %v2462, %v1714
      %v2496 = vsel %vm2474, %v2463, %v1716
      %v2497 = vsel %vm2474, %v2464, %v1718
      %v2498 = vsel %vm2474, %v2465, %v1720
      %v2499 = vsel %vm2474, %v2466, %v1722
      %v2500 = vsel %vm2474, %v2467, %v1724
      %v2501 = vsel %vm2474, %v2468, %v1726
      %v2502 = vsel %vm2474, %v2469, %v1728
      %v2503 = vsel %vm2474, %v2470, %v1730
      %v2504 = vsel %vm2474, %v2471, %v1732
      %v2505 = vsel %vm2474, %v2472, %v1734
      %v2506 = vsel %vm2474, %v2473, %v1736
      %vm2507 = vcmask 261120
      %v2508 = vsel %vm2507, %v2475, %v1802
      %v2509 = vsel %vm2507, %v2476, %v1804
      %v2510 = vsel %vm2507, %v2477, %v1806
      %v2511 = vsel %vm2507, %v2478, %v1808
      %v2512 = vsel %vm2507, %v2479, %v1810
      %v2513 = vsel %vm2507, %v2480, %v1812
      %v2514 = vsel %vm2507, %v2481, %v1814
      %v2515 = vsel %vm2507, %v2482, %v1816
      %v2516 = vsel %vm2507, %v2483, %v1818
      %v2517 = vsel %vm2507, %v2484, %v1820
      %v2518 = vsel %vm2507, %v2485, %v1822
      %v2519 = vsel %vm2507, %v2486, %v1824
      %v2520 = vsel %vm2507, %v2487, %v1826
      %v2521 = vsel %vm2507, %v2488, %v1828
      %v2522 = vsel %vm2507, %v2489, %v1830
      %v2523 = vsel %vm2507, %v2490, %v1832
      %v2524 = vsel %vm2507, %v2491, %v1834
      %v2525 = vsel %vm2507, %v2492, %v1836
      %v2526 = vsel %vm2507, %v2493, %v1838
      %v2527 = vsel %vm2507, %v2494, %v1840
      %v2528 = vsel %vm2507, %v2495, %v1842
      %v2529 = vsel %vm2507, %v2496, %v1844
      %v2530 = vsel %vm2507, %v2497, %v1846
      %v2531 = vsel %vm2507, %v2498, %v1848
      %v2532 = vsel %vm2507, %v2499, %v1850
      %v2533 = vsel %vm2507, %v2500, %v1852
      %v2534 = vsel %vm2507, %v2501, %v1854
      %v2535 = vsel %vm2507, %v2502, %v1856
      %v2536 = vsel %vm2507, %v2503, %v1858
      %v2537 = vsel %vm2507, %v2504, %v1860
      %v2538 = vsel %vm2507, %v2505, %v1862
      %v2539 = vsel %vm2507, %v2506, %v1864
      %vm2540 = vcmask 326656
      %v2541 = vsel %vm2540, %v2508, %v1930
      %v2542 = vsel %vm2540, %v2509, %v1932
      %v2543 = vsel %vm2540, %v2510, %v1934
      %v2544 = vsel %vm2540, %v2511, %v1936
      %v2545 = vsel %vm2540, %v2512, %v1938
      %v2546 = vsel %vm2540, %v2513, %v1940
      %v2547 = vsel %vm2540, %v2514, %v1942
      %v2548 = vsel %vm2540, %v2515, %v1944
      %v2549 = vsel %vm2540, %v2516, %v1946
      %v2550 = vsel %vm2540, %v2517, %v1948
      %v2551 = vsel %vm2540, %v2518, %v1950
      %v2552 = vsel %vm2540, %v2519, %v1952
      %v2553 = vsel %vm2540, %v2520, %v1954
      %v2554 = vsel %vm2540, %v2521, %v1956
      %v2555 = vsel %vm2540, %v2522, %v1958
      %v2556 = vsel %vm2540, %v2523, %v1960
      %v2557 = vsel %vm2540, %v2524, %v1962
      %v2558 = vsel %vm2540, %v2525, %v1964
      %v2559 = vsel %vm2540, %v2526, %v1966
      %v2560 = vsel %vm2540, %v2527, %v1968
      %v2561 = vsel %vm2540, %v2528, %v1970
      %v2562 = vsel %vm2540, %v2529, %v1972
      %v2563 = vsel %vm2540, %v2530, %v1974
      %v2564 = vsel %vm2540, %v2531, %v1976
      %v2565 = vsel %vm2540, %v2532, %v1978
      %v2566 = vsel %vm2540, %v2533, %v1980
      %v2567 = vsel %vm2540, %v2534, %v1982
      %v2568 = vsel %vm2540, %v2535, %v1984
      %v2569 = vsel %vm2540, %v2536, %v1986
      %v2570 = vsel %vm2540, %v2537, %v1988
      %v2571 = vsel %vm2540, %v2538, %v1990
      %v2572 = vsel %vm2540, %v2539, %v1992
      %vm2573 = vcmask 392192
      %v2574 = vsel %vm2573, %v2541, %v2058
      %v2575 = vsel %vm2573, %v2542, %v2060
      %v2576 = vsel %vm2573, %v2543, %v2062
      %v2577 = vsel %vm2573, %v2544, %v2064
      %v2578 = vsel %vm2573, %v2545, %v2066
      %v2579 = vsel %vm2573, %v2546, %v2068
      %v2580 = vsel %vm2573, %v2547, %v2070
      %v2581 = vsel %vm2573, %v2548, %v2072
      %v2582 = vsel %vm2573, %v2549, %v2074
      %v2583 = vsel %vm2573, %v2550, %v2076
      %v2584 = vsel %vm2573, %v2551, %v2078
      %v2585 = vsel %vm2573, %v2552, %v2080
      %v2586 = vsel %vm2573, %v2553, %v2082
      %v2587 = vsel %vm2573, %v2554, %v2084
      %v2588 = vsel %vm2573, %v2555, %v2086
      %v2589 = vsel %vm2573, %v2556, %v2088
      %v2590 = vsel %vm2573, %v2557, %v2090
      %v2591 = vsel %vm2573, %v2558, %v2092
      %v2592 = vsel %vm2573, %v2559, %v2094
      %v2593 = vsel %vm2573, %v2560, %v2096
      %v2594 = vsel %vm2573, %v2561, %v2098
      %v2595 = vsel %vm2573, %v2562, %v2100
      %v2596 = vsel %vm2573, %v2563, %v2102
      %v2597 = vsel %vm2573, %v2564, %v2104
      %v2598 = vsel %vm2573, %v2565, %v2106
      %v2599 = vsel %vm2573, %v2566, %v2108
      %v2600 = vsel %vm2573, %v2567, %v2110
      %v2601 = vsel %vm2573, %v2568, %v2112
      %v2602 = vsel %vm2573, %v2569, %v2114
      %v2603 = vsel %vm2573, %v2570, %v2116
      %v2604 = vsel %vm2573, %v2571, %v2118
      %v2605 = vsel %vm2573, %v2572, %v2120
      %vm2606 = vcmask 457728
      %v2607 = vsel %vm2606, %v2574, %v2186
      %v2608 = vsel %vm2606, %v2575, %v2188
      %v2609 = vsel %vm2606, %v2576, %v2190
      %v2610 = vsel %vm2606, %v2577, %v2192
      %v2611 = vsel %vm2606, %v2578, %v2194
      %v2612 = vsel %vm2606, %v2579, %v2196
      %v2613 = vsel %vm2606, %v2580, %v2198
      %v2614 = vsel %vm2606, %v2581, %v2200
      %v2615 = vsel %vm2606, %v2582, %v2202
      %v2616 = vsel %vm2606, %v2583, %v2204
      %v2617 = vsel %vm2606, %v2584, %v2206
      %v2618 = vsel %vm2606, %v2585, %v2208
      %v2619 = vsel %vm2606, %v2586, %v2210
      %v2620 = vsel %vm2606, %v2587, %v2212
      %v2621 = vsel %vm2606, %v2588, %v2214
      %v2622 = vsel %vm2606, %v2589, %v2216
      %v2623 = vsel %vm2606, %v2590, %v2218
      %v2624 = vsel %vm2606, %v2591, %v2220
      %v2625 = vsel %vm2606, %v2592, %v2222
      %v2626 = vsel %vm2606, %v2593, %v2224
      %v2627 = vsel %vm2606, %v2594, %v2226
      %v2628 = vsel %vm2606, %v2595, %v2228
      %v2629 = vsel %vm2606, %v2596, %v2230
      %v2630 = vsel %vm2606, %v2597, %v2232
      %v2631 = vsel %vm2606, %v2598, %v2234
      %v2632 = vsel %vm2606, %v2599, %v2236
      %v2633 = vsel %vm2606, %v2600, %v2238
      %v2634 = vsel %vm2606, %v2601, %v2240
      %v2635 = vsel %vm2606, %v2602, %v2242
      %v2636 = vsel %vm2606, %v2603, %v2244
      %v2637 = vsel %vm2606, %v2604, %v2246
      %v2638 = vsel %vm2606, %v2605, %v2248
      %vm2639 = vcmask 523264
      %v2640 = vsel %vm2639, %v2607, %v2314
      %v2641 = vsel %vm2639, %v2608, %v2316
      %v2642 = vsel %vm2639, %v2609, %v2318
      %v2643 = vsel %vm2639, %v2610, %v2320
      %v2644 = vsel %vm2639, %v2611, %v2322
      %v2645 = vsel %vm2639, %v2612, %v2324
      %v2646 = vsel %vm2639, %v2613, %v2326
      %v2647 = vsel %vm2639, %v2614, %v2328
      %v2648 = vsel %vm2639, %v2615, %v2330
      %v2649 = vsel %vm2639, %v2616, %v2332
      %v2650 = vsel %vm2639, %v2617, %v2334
      %v2651 = vsel %vm2639, %v2618, %v2336
      %v2652 = vsel %vm2639, %v2619, %v2338
      %v2653 = vsel %vm2639, %v2620, %v2340
      %v2654 = vsel %vm2639, %v2621, %v2342
      %v2655 = vsel %vm2639, %v2622, %v2344
      %v2656 = vsel %vm2639, %v2623, %v2346
      %v2657 = vsel %vm2639, %v2624, %v2348
      %v2658 = vsel %vm2639, %v2625, %v2350
      %v2659 = vsel %vm2639, %v2626, %v2352
      %v2660 = vsel %vm2639, %v2627, %v2354
      %v2661 = vsel %vm2639, %v2628, %v2356
      %v2662 = vsel %vm2639, %v2629, %v2358
      %v2663 = vsel %vm2639, %v2630, %v2360
      %v2664 = vsel %vm2639, %v2631, %v2362
      %v2665 = vsel %vm2639, %v2632, %v2364
      %v2666 = vsel %vm2639, %v2633, %v2366
      %v2667 = vsel %vm2639, %v2634, %v2368
      %v2668 = vsel %vm2639, %v2635, %v2370
      %v2669 = vsel %vm2639, %v2636, %v2372
      %v2670 = vsel %vm2639, %v2637, %v2374
      %v2671 = vsel %vm2639, %v2638, %v2376
      %v2672 = vld [vmem:[%s3] sm:$0xff]
      %v2673 = vld [vmem:[%s3 + $0x8] sm:$0xff]
      %v2674 = vld [vmem:[%s3 + $0x10] sm:$0xff]
      %v2675 = vld [vmem:[%s3 + $0x18] sm:$0xff]
      %v2676 = vld [vmem:[%s3 + $0x20] sm:$0xff]
      %v2677 = vld [vmem:[%s3 + $0x28] sm:$0xff]
      %v2678 = vld [vmem:[%s3 + $0x30] sm:$0xff]
      %v2679 = vld [vmem:[%s3 + $0x38] sm:$0xff]
      %v2680 = vld [vmem:[%s3 + $0x40] sm:$0xff]
      %v2681 = vld [vmem:[%s4] sm:$0x1]
      %v2683 = vperm.slane %v2681, 0
      %vm2685 = vcmask 588800
      %v2687 = vsel %vm2685, %v2640, 0
      %v2690 = vsel %vm2685, %v2641, 0
      %v2693 = vsel %vm2685, %v2642, 0
      %v2696 = vsel %vm2685, %v2643, 0
      %v2699 = vsel %vm2685, %v2644, 0
      %v2702 = vsel %vm2685, %v2645, 0
      %v2705 = vsel %vm2685, %v2646, 0
      %v2708 = vsel %vm2685, %v2647, 0
      %v2711 = vsel %vm2685, %v2648, 0
      %v2714 = vsel %vm2685, %v2649, 0
      %v2717 = vsel %vm2685, %v2650, 0
      %v2720 = vsel %vm2685, %v2651, 0
      %v2723 = vsel %vm2685, %v2652, 0
      %v2726 = vsel %vm2685, %v2653, 0
      %v2729 = vsel %vm2685, %v2654, 0
      %v2732 = vsel %vm2685, %v2655, 0
      %v2735 = vsel %vm2685, %v2656, 0
      %v2738 = vsel %vm2685, %v2657, 0
      %v2741 = vsel %vm2685, %v2658, 0
      %v2744 = vsel %vm2685, %v2659, 0
      %v2747 = vsel %vm2685, %v2660, 0
      %v2750 = vsel %vm2685, %v2661, 0
      %v2753 = vsel %vm2685, %v2662, 0
      %v2756 = vsel %vm2685, %v2663, 0
      %v2759 = vsel %vm2685, %v2664, 0
      %v2762 = vsel %vm2685, %v2665, 0
      %v2765 = vsel %vm2685, %v2666, 0
      %v2768 = vsel %vm2685, %v2667, 0
      %v2771 = vsel %vm2685, %v2668, 0
      %v2774 = vsel %vm2685, %v2669, 0
      %v2777 = vsel %vm2685, %v2670, 0
      %v2780 = vsel %vm2685, %v2671, 0
      %2782 = vmatpush.msra.mxu0 0.0
      %2783 = vmatpush.msra.mxu0 0.0
      %2784 = vmatpush.msra.mxu0 0.0
      %2785 = vmatpush.msra.mxu0 0.0
      %2786 = vmatpush.msra.mxu0 0.0
      %2787 = vmatpush.msra.mxu0 0.0
      %2788 = vmatpush.msra.mxu0 0.0
      %2789 = vmatpush.msra.mxu0 %v2680
      %2790 = vmatpush.msra.mxu0 %v2679
      %2791 = vmatpush.msra.mxu0 %v2678
      %2792 = vmatpush.msra.mxu0 %v2677
      %2793 = vmatpush.msra.mxu0 %v2676
      %2794 = vmatpush.msra.mxu0 %v2675
      %2795 = vmatpush.msra.mxu0 %v2674
      %2796 = vmatpush.msra.mxu0 %v2673
      %2797 = vmatpush.msra.mxu0 %v2672
      %2798 = vmatmul.f32.gmra.mxu0 %v2687
      %v2799 = vpop.f32.mrf.mxu0
      %v2800 = vadd.f32 %v2683, %v2799
      %2801 = vmatmul.f32.gmra.mxu0 %v2690
      %v2802 = vpop.f32.mrf.mxu0
      %v2803 = vadd.f32 %v2683, %v2802
      %2804 = vmatmul.f32.gmra.mxu0 %v2693
      %v2805 = vpop.f32.mrf.mxu0
      %v2806 = vadd.f32 %v2683, %v2805
      %2807 = vmatmul.f32.gmra.mxu0 %v2696
      %v2808 = vpop.f32.mrf.mxu0
      %v2809 = vadd.f32 %v2683, %v2808
      %2810 = vmatmul.f32.gmra.mxu0 %v2699
      %v2811 = vpop.f32.mrf.mxu0
      %v2812 = vadd.f32 %v2683, %v2811
      %2813 = vmatmul.f32.gmra.mxu0 %v2702
      %v2814 = vpop.f32.mrf.mxu0
      %v2815 = vadd.f32 %v2683, %v2814
      %2816 = vmatmul.f32.gmra.mxu0 %v2705
      %v2817 = vpop.f32.mrf.mxu0
      %v2818 = vadd.f32 %v2683, %v2817
      %2819 = vmatmul.f32.gmra.mxu0 %v2708
      %v2820 = vpop.f32.mrf.mxu0
      %v2821 = vadd.f32 %v2683, %v2820
      %2822 = vmatmul.f32.gmra.mxu0 %v2711
      %v2823 = vpop.f32.mrf.mxu0
      %v2824 = vadd.f32 %v2683, %v2823
      %2825 = vmatmul.f32.gmra.mxu0 %v2714
      %v2826 = vpop.f32.mrf.mxu0
      %v2827 = vadd.f32 %v2683, %v2826
      %2828 = vmatmul.f32.gmra.mxu0 %v2717
      %v2829 = vpop.f32.mrf.mxu0
      %v2830 = vadd.f32 %v2683, %v2829
      %2831 = vmatmul.f32.gmra.mxu0 %v2720
      %v2832 = vpop.f32.mrf.mxu0
      %v2833 = vadd.f32 %v2683, %v2832
      %2834 = vmatmul.f32.gmra.mxu0 %v2723
      %v2835 = vpop.f32.mrf.mxu0
      %v2836 = vadd.f32 %v2683, %v2835
      %2837 = vmatmul.f32.gmra.mxu0 %v2726
      %v2838 = vpop.f32.mrf.mxu0
      %v2839 = vadd.f32 %v2683, %v2838
      %2840 = vmatmul.f32.gmra.mxu0 %v2729
      %v2841 = vpop.f32.mrf.mxu0
      %v2842 = vadd.f32 %v2683, %v2841
      %2843 = vmatmul.f32.gmra.mxu0 %v2732
      %v2844 = vpop.f32.mrf.mxu0
      %v2845 = vadd.f32 %v2683, %v2844
      %2846 = vmatmul.f32.gmra.mxu0 %v2735
      %v2847 = vpop.f32.mrf.mxu0
      %v2848 = vadd.f32 %v2683, %v2847
      %2849 = vmatmul.f32.gmra.mxu0 %v2738
      %v2850 = vpop.f32.mrf.mxu0
      %v2851 = vadd.f32 %v2683, %v2850
      %2852 = vmatmul.f32.gmra.mxu0 %v2741
      %v2853 = vpop.f32.mrf.mxu0
      %v2854 = vadd.f32 %v2683, %v2853
      %2855 = vmatmul.f32.gmra.mxu0 %v2744
      %v2856 = vpop.f32.mrf.mxu0
      %v2857 = vadd.f32 %v2683, %v2856
      %2858 = vmatmul.f32.gmra.mxu0 %v2747
      %v2859 = vpop.f32.mrf.mxu0
      %v2860 = vadd.f32 %v2683, %v2859
      %2861 = vmatmul.f32.gmra.mxu0 %v2750
      %v2862 = vpop.f32.mrf.mxu0
      %v2863 = vadd.f32 %v2683, %v2862
      %2864 = vmatmul.f32.gmra.mxu0 %v2753
      %v2865 = vpop.f32.mrf.mxu0
      %v2866 = vadd.f32 %v2683, %v2865
      %2867 = vmatmul.f32.gmra.mxu0 %v2756
      %v2868 = vpop.f32.mrf.mxu0
      %v2869 = vadd.f32 %v2683, %v2868
      %2870 = vmatmul.f32.gmra.mxu0 %v2759
      %v2871 = vpop.f32.mrf.mxu0
      %v2872 = vadd.f32 %v2683, %v2871
      %2873 = vmatmul.f32.gmra.mxu0 %v2762
      %v2874 = vpop.f32.mrf.mxu0
      %v2875 = vadd.f32 %v2683, %v2874
      %2876 = vmatmul.f32.gmra.mxu0 %v2765
      %v2877 = vpop.f32.mrf.mxu0
      %v2878 = vadd.f32 %v2683, %v2877
      %2879 = vmatmul.f32.gmra.mxu0 %v2768
      %v2880 = vpop.f32.mrf.mxu0
      %v2881 = vadd.f32 %v2683, %v2880
      %2882 = vmatmul.f32.gmra.mxu0 %v2771
      %v2883 = vpop.f32.mrf.mxu0
      %v2884 = vadd.f32 %v2683, %v2883
      %2885 = vmatmul.f32.gmra.mxu0 %v2774
      %v2886 = vpop.f32.mrf.mxu0
      %v2887 = vadd.f32 %v2683, %v2886
      %2888 = vmatmul.f32.gmra.mxu0 %v2777
      %v2889 = vpop.f32.mrf.mxu0
      %v2890 = vadd.f32 %v2683, %v2889
      %2891 = vmatmul.f32.gmra.mxu0 %v2780
      %v2892 = vpop.f32.mrf.mxu0
      %v2893 = vadd.f32 %v2683, %v2892
      %2894 = vdwg.mxu0
      %2895 = vst.msk [vmem:[%s258] sm:$0xff] %vm1007, %v2800
      %2896 = vst.msk [vmem:[%s258 + $0x8] sm:$0xff] %vm1007, %v2803
      %2897 = vst.msk [vmem:[%s258 + $0x10] sm:$0xff] %vm1007, %v2806
      %2898 = vst.msk [vmem:[%s258 + $0x18] sm:$0xff] %vm1007, %v2809
      %2899 = vst.msk [vmem:[%s258 + $0x20] sm:$0xff] %vm1007, %v2812
      %2900 = vst.msk [vmem:[%s258 + $0x28] sm:$0xff] %vm1007, %v2815
      %2901 = vst.msk [vmem:[%s258 + $0x30] sm:$0xff] %vm1007, %v2818
      %2902 = vst.msk [vmem:[%s258 + $0x38] sm:$0xff] %vm1007, %v2821
      %2903 = vst.msk [vmem:[%s258 + $0x40] sm:$0xff] %vm1007, %v2824
      %2904 = vst.msk [vmem:[%s258 + $0x48] sm:$0xff] %vm1007, %v2827
      %2905 = vst.msk [vmem:[%s258 + $0x50] sm:$0xff] %vm1007, %v2830
      %2906 = vst.msk [vmem:[%s258 + $0x58] sm:$0xff] %vm1007, %v2833
      %2907 = vst.msk [vmem:[%s258 + $0x60] sm:$0xff] %vm1007, %v2836
      %2908 = vst.msk [vmem:[%s258 + $0x68] sm:$0xff] %vm1007, %v2839
      %2909 = vst.msk [vmem:[%s258 + $0x70] sm:$0xff] %vm1007, %v2842
      %2910 = vst.msk [vmem:[%s258 + $0x78] sm:$0xff] %vm1007, %v2845
      %2911 = vst.msk [vmem:[%s258 + $0x80] sm:$0xff] %vm1007, %v2848
      %2912 = vst.msk [vmem:[%s258 + $0x88] sm:$0xff] %vm1007, %v2851
      %2913 = vst.msk [vmem:[%s258 + $0x90] sm:$0xff] %vm1007, %v2854
      %2914 = vst.msk [vmem:[%s258 + $0x98] sm:$0xff] %vm1007, %v2857
      %2915 = vst.msk [vmem:[%s258 + $0xa0] sm:$0xff] %vm1007, %v2860
      %2916 = vst.msk [vmem:[%s258 + $0xa8] sm:$0xff] %vm1007, %v2863
      %2917 = vst.msk [vmem:[%s258 + $0xb0] sm:$0xff] %vm1007, %v2866
      %2918 = vst.msk [vmem:[%s258 + $0xb8] sm:$0xff] %vm1007, %v2869
      %2919 = vst.msk [vmem:[%s258 + $0xc0] sm:$0xff] %vm1007, %v2872
      %2920 = vst.msk [vmem:[%s258 + $0xc8] sm:$0xff] %vm1007, %v2875
      %2921 = vst.msk [vmem:[%s258 + $0xd0] sm:$0xff] %vm1007, %v2878
      %2922 = vst.msk [vmem:[%s258 + $0xd8] sm:$0xff] %vm1007, %v2881
      %2923 = vst.msk [vmem:[%s258 + $0xe0] sm:$0xff] %vm1007, %v2884
      %2924 = vst.msk [vmem:[%s258 + $0xe8] sm:$0xff] %vm1007, %v2887
      %2925 = vst.msk [vmem:[%s258 + $0xf0] sm:$0xff] %vm1007, %v2890
      %2926 = vst.msk [vmem:[%s258 + $0xf8] sm:$0xff] %vm1007, %v2893
      %v2927 = vsel %vm1007, %v2800, 0.0
      %v2928 = vsel %vm1007, %v2803, 0.0
      %v2929 = vadd.f32 %v2927, %v2928
      %v2930 = vsel %vm1007, %v2806, 0.0
      %v2931 = vadd.f32 %v2929, %v2930
      %v2932 = vsel %vm1007, %v2809, 0.0
      %v2933 = vadd.f32 %v2931, %v2932
      %v2934 = vsel %vm1007, %v2812, 0.0
      %v2935 = vadd.f32 %v2933, %v2934
      %v2936 = vsel %vm1007, %v2815, 0.0
      %v2937 = vadd.f32 %v2935, %v2936
      %v2938 = vsel %vm1007, %v2818, 0.0
      %v2939 = vadd.f32 %v2937, %v2938
      %v2940 = vsel %vm1007, %v2821, 0.0
      %v2941 = vadd.f32 %v2939, %v2940
      %v2942 = vsel %vm1007, %v2824, 0.0
      %v2943 = vadd.f32 %v2941, %v2942
      %v2944 = vsel %vm1007, %v2827, 0.0
      %v2945 = vadd.f32 %v2943, %v2944
      %v2946 = vsel %vm1007, %v2830, 0.0
      %v2947 = vadd.f32 %v2945, %v2946
      %v2948 = vsel %vm1007, %v2833, 0.0
      %v2949 = vadd.f32 %v2947, %v2948
      %v2950 = vsel %vm1007, %v2836, 0.0
      %v2951 = vadd.f32 %v2949, %v2950
      %v2952 = vsel %vm1007, %v2839, 0.0
      %v2953 = vadd.f32 %v2951, %v2952
      %v2954 = vsel %vm1007, %v2842, 0.0
      %v2955 = vadd.f32 %v2953, %v2954
      %v2956 = vsel %vm1007, %v2845, 0.0
      %v2957 = vadd.f32 %v2955, %v2956
      %v2958 = vsel %vm1007, %v2848, 0.0
      %v2959 = vadd.f32 %v2957, %v2958
      %v2960 = vsel %vm1007, %v2851, 0.0
      %v2961 = vadd.f32 %v2959, %v2960
      %v2962 = vsel %vm1007, %v2854, 0.0
      %v2963 = vadd.f32 %v2961, %v2962
      %v2964 = vsel %vm1007, %v2857, 0.0
      %v2965 = vadd.f32 %v2963, %v2964
      %v2966 = vsel %vm1007, %v2860, 0.0
      %v2967 = vadd.f32 %v2965, %v2966
      %v2968 = vsel %vm1007, %v2863, 0.0
      %v2969 = vadd.f32 %v2967, %v2968
      %v2970 = vsel %vm1007, %v2866, 0.0
      %v2971 = vadd.f32 %v2969, %v2970
      %v2972 = vsel %vm1007, %v2869, 0.0
      %v2973 = vadd.f32 %v2971, %v2972
      %v2974 = vsel %vm1007, %v2872, 0.0
      %v2975 = vadd.f32 %v2973, %v2974
      %v2976 = vsel %vm1007, %v2875, 0.0
      %v2977 = vadd.f32 %v2975, %v2976
      %v2978 = vsel %vm1007, %v2878, 0.0
      %v2979 = vadd.f32 %v2977, %v2978
      %v2980 = vsel %vm1007, %v2881, 0.0
      %v2981 = vadd.f32 %v2979, %v2980
      %v2982 = vsel %vm1007, %v2884, 0.0
      %v2983 = vadd.f32 %v2981, %v2982
      %v2984 = vsel %vm1007, %v2887, 0.0
      %v2985 = vadd.f32 %v2983, %v2984
      %v2986 = vsel %vm1007, %v2890, 0.0
      %v2987 = vadd.f32 %v2985, %v2986
      %v2988 = vsel %vm1007, %v2893, 0.0
      %v2989 = vadd.f32 %v2987, %v2988
      %v2990 = vrot.slane %v2989, 4
      %v2991 = vadd.f32 %v2989, %v2990
      %v2992 = vrot.slane %v2991, 2
      %v2993 = vadd.f32 %v2991, %v2992
      %v2994 = vrot.slane %v2993, 1
      %v2995 = vadd.f32 %v2993, %v2994
      %v2996 = vmul.f32 %v2800, %v2800
      %v2997 = vmul.f32 %v2803, %v2803
      %v2998 = vmul.f32 %v2806, %v2806
      %v2999 = vmul.f32 %v2809, %v2809
      %v3000 = vmul.f32 %v2812, %v2812
      %v3001 = vmul.f32 %v2815, %v2815
      %v3002 = vmul.f32 %v2818, %v2818
      %v3003 = vmul.f32 %v2821, %v2821
      %v3004 = vmul.f32 %v2824, %v2824
      %v3005 = vmul.f32 %v2827, %v2827
      %v3006 = vmul.f32 %v2830, %v2830
      %v3007 = vmul.f32 %v2833, %v2833
      %v3008 = vmul.f32 %v2836, %v2836
      %v3009 = vmul.f32 %v2839, %v2839
      %v3010 = vmul.f32 %v2842, %v2842
      %v3011 = vmul.f32 %v2845, %v2845
      %v3012 = vmul.f32 %v2848, %v2848
      %v3013 = vmul.f32 %v2851, %v2851
      %v3014 = vmul.f32 %v2854, %v2854
      %v3015 = vmul.f32 %v2857, %v2857
      %v3016 = vmul.f32 %v2860, %v2860
      %v3017 = vmul.f32 %v2863, %v2863
      %v3018 = vmul.f32 %v2866, %v2866
      %v3019 = vmul.f32 %v2869, %v2869
      %v3020 = vmul.f32 %v2872, %v2872
      %v3021 = vmul.f32 %v2875, %v2875
      %v3022 = vmul.f32 %v2878, %v2878
      %v3023 = vmul.f32 %v2881, %v2881
      %v3024 = vmul.f32 %v2884, %v2884
      %v3025 = vmul.f32 %v2887, %v2887
      %v3026 = vmul.f32 %v2890, %v2890
      %v3027 = vmul.f32 %v2893, %v2893
      %v3028 = vsel %vm1007, %v2996, 0.0
      %v3029 = vsel %vm1007, %v2997, 0.0
      %v3030 = vadd.f32 %v3028, %v3029
      %v3031 = vsel %vm1007, %v2998, 0.0
      %v3032 = vadd.f32 %v3030, %v3031
      %v3033 = vsel %vm1007, %v2999, 0.0
      %v3034 = vadd.f32 %v3032, %v3033
      %v3035 = vsel %vm1007, %v3000, 0.0
      %v3036 = vadd.f32 %v3034, %v3035
      %v3037 = vsel %vm1007, %v3001, 0.0
      %v3038 = vadd.f32 %v3036, %v3037
      %v3039 = vsel %vm1007, %v3002, 0.0
      %v3040 = vadd.f32 %v3038, %v3039
      %v3041 = vsel %vm1007, %v3003, 0.0
      %v3042 = vadd.f32 %v3040, %v3041
      %v3043 = vsel %vm1007, %v3004, 0.0
      %v3044 = vadd.f32 %v3042, %v3043
      %v3045 = vsel %vm1007, %v3005, 0.0
      %v3046 = vadd.f32 %v3044, %v3045
      %v3047 = vsel %vm1007, %v3006, 0.0
      %v3048 = vadd.f32 %v3046, %v3047
      %v3049 = vsel %vm1007, %v3007, 0.0
      %v3050 = vadd.f32 %v3048, %v3049
      %v3051 = vsel %vm1007, %v3008, 0.0
      %v3052 = vadd.f32 %v3050, %v3051
      %v3053 = vsel %vm1007, %v3009, 0.0
      %v3054 = vadd.f32 %v3052, %v3053
      %v3055 = vsel %vm1007, %v3010, 0.0
      %v3056 = vadd.f32 %v3054, %v3055
      %v3057 = vsel %vm1007, %v3011, 0.0
      %v3058 = vadd.f32 %v3056, %v3057
      %v3059 = vsel %vm1007, %v3012, 0.0
      %v3060 = vadd.f32 %v3058, %v3059
      %v3061 = vsel %vm1007, %v3013, 0.0
      %v3062 = vadd.f32 %v3060, %v3061
      %v3063 = vsel %vm1007, %v3014, 0.0
      %v3064 = vadd.f32 %v3062, %v3063
      %v3065 = vsel %vm1007, %v3015, 0.0
      %v3066 = vadd.f32 %v3064, %v3065
      %v3067 = vsel %vm1007, %v3016, 0.0
      %v3068 = vadd.f32 %v3066, %v3067
      %v3069 = vsel %vm1007, %v3017, 0.0
      %v3070 = vadd.f32 %v3068, %v3069
      %v3071 = vsel %vm1007, %v3018, 0.0
      %v3072 = vadd.f32 %v3070, %v3071
      %v3073 = vsel %vm1007, %v3019, 0.0
      %v3074 = vadd.f32 %v3072, %v3073
      %v3075 = vsel %vm1007, %v3020, 0.0
      %v3076 = vadd.f32 %v3074, %v3075
      %v3077 = vsel %vm1007, %v3021, 0.0
      %v3078 = vadd.f32 %v3076, %v3077
      %v3079 = vsel %vm1007, %v3022, 0.0
      %v3080 = vadd.f32 %v3078, %v3079
      %v3081 = vsel %vm1007, %v3023, 0.0
      %v3082 = vadd.f32 %v3080, %v3081
      %v3083 = vsel %vm1007, %v3024, 0.0
      %v3084 = vadd.f32 %v3082, %v3083
      %v3085 = vsel %vm1007, %v3025, 0.0
      %v3086 = vadd.f32 %v3084, %v3085
      %v3087 = vsel %vm1007, %v3026, 0.0
      %v3088 = vadd.f32 %v3086, %v3087
      %v3089 = vsel %vm1007, %v3027, 0.0
      %v3090 = vadd.f32 %v3088, %v3089
      %v3091 = vrot.slane %v3090, 4
      %v3092 = vadd.f32 %v3090, %v3091
      %v3093 = vrot.slane %v3092, 2
      %v3094 = vadd.f32 %v3092, %v3093
      %v3095 = vrot.slane %v3094, 1
      %v3096 = vadd.f32 %v3094, %v3095
      %vm3097 = vcmask 1040384
      %v3098 = vsel %vm3097, %v2995, %v3096
      %3099 = vst.msk [vmem:[%s262] sm:$0x3] %vm1010, %v3098
      %p3100 = scmp.lt.s32.totalorder %s18, 1
      %s3101 = scalar_select %p3100, %s18, 1
      %s3102 = smul.addr %s3101, 32
      %s3103 = smul.addr %s3102, 8
      %s3104 = scalar_lea.vmem %s5, %s3103
      %p3105 = scmp.lt.s32.totalorder %s18, 1
      %s3106 = scalar_select %p3105, %s18, 1
      %s3107 = smul.addr %s3106, 2
      %s3108 = scalar_lea.vmem %s6, %s3107
      // Predicated region
      $region41: #{down_layer_forward.4} parent=39 // pred_check
        %p3109 = pneg %p146
      $region42: #{down_layer_forward.4} parent=39 // pred_check_branch
        %3111 = sbr.rel (%p3109) target = $region44
      $region43: #{down_layer_forward.4} parent=39 // pred_region
        _
      $region44: #{down_layer_forward.4} parent=39 // pred_fallthru
        _
      // Predicated region
      $region45: #{down_layer_forward.4} parent=39 // pred_check
        %p3112 = pneg %p172
      $region46: #{down_layer_forward.4} parent=39 // pred_check_branch
        %3114 = sbr.rel (%p3112) target = $region48
      $region47: #{down_layer_forward.4} parent=39 // pred_region
        _
      $region48: #{down_layer_forward.4} parent=39 // pred_fallthru
        _
    $region40: #{down_layer_forward.4} parent=5 // pred_fallthru
      _
    %p3115 = scmp.le.s32.totalorder 2, %s13
    // Predicated region
    $region49: #{down_layer_forward.4} parent=5 // pred_check
      %p3116 = pneg %p3115
    $region50: #{down_layer_forward.4} parent=5 // pred_check_branch
      %3118 = sbr.rel (%p3116) target = $region52
    $region51: #{down_layer_forward.4} parent=5 // pred_region
      %s3119 = ssub.s32 %s13, 2
      // Predicated region
      $region53: #{down_layer_forward.4} parent=51 // pred_check
        %p3120 = pneg %p152
      $region54: #{down_layer_forward.4} parent=51 // pred_check_branch
        %3122 = sbr.rel (%p3120) target = $region56
      $region55: #{down_layer_forward.4} parent=51 // pred_region
        %p3123 = scmp.lt.s32.totalorder %s19, 1
        %s3124 = scalar_select %p3123, %s19, 1
        %s3125 = smul.addr %s3124, 32
        %s3126 = smul.addr %s3125, 8
        %s3127 = scalar_lea.vmem %s5, %s3126
      $region56: #{down_layer_forward.4} parent=51 // pred_fallthru
        _
      // Predicated region
      $region57: #{down_layer_forward.4} parent=51 // pred_check
        %p3128 = pneg %p178
      $region58: #{down_layer_forward.4} parent=51 // pred_check_branch
        %3130 = sbr.rel (%p3128) target = $region60
      $region59: #{down_layer_forward.4} parent=51 // pred_region
        %p3131 = scmp.lt.s32.totalorder %s19, 1
        %s3132 = scalar_select %p3131, %s19, 1
        %s3133 = smul.addr %s3132, 2
        %s3134 = scalar_lea.vmem %s6, %s3133
      $region60: #{down_layer_forward.4} parent=51 // pred_fallthru
        _
    $region52: #{down_layer_forward.4} parent=5 // pred_fallthru
      _
  $region6: #{down_layer_forward.4} parent=0 // loop_footer
    %s17 = sadd.s32 1, %s13
  $region7: #{down_layer_forward.4} parent=0 // loop_footer_branch
    %12 = sbr.rel target = $region3
  $region8: #{down_layer_forward.4} parent=0 // loop_exit
    _

</llo_original>
